<compile_context>
chip_gen: v7x
topology: tpu7x:2x2x1
jax: 0.10.0
libtpu: 0.0.40
codegen_flags: <defaults>
</compile_context>

<pallas_src>
import functools

import jax
import jax.numpy as jnp
from jax import lax
from jax.experimental import pallas as pl
from jax.experimental.pallas import tpu as pltpu

VMEM = pltpu.MemorySpace.VMEM
BF16 = jnp.bfloat16


# ----------------------------------------------------------------------------
# Shared in-kernel LSTM layer (fused gates, hoisted input projection, unrolled)
# ----------------------------------------------------------------------------
def _lstm_layer(x, wx, wh, b):
    # x: [T, N, In]; wx: [In, 4H]; wh: [H, 4H]; b: [1, 4H].
    # Recurrence over axis 0 (PyTorch batch_first=False quirk: T == caller batch).
    # Gate order (i, f, g, o); zero initial state. Kept f32 (review: recurrence
    # compounds rounding; compute here is tiny).
    T, N, In = x.shape
    Hd = wh.shape[0]
    # Hoisted input projection: one big matmul instead of T x 4 tiny ones.
    xp = (jnp.dot(x.reshape(T * N, In), wx, preferred_element_type=jnp.float32)
          + b).reshape(T, N, 4 * Hd)
    h = jnp.zeros((N, Hd), jnp.float32)
    c = jnp.zeros((N, Hd), jnp.float32)
    ys = []
    # T == caller batch (2 here): full unroll. TODO(synk): lax.fori_loop once T>8.
    for t in range(T):
        g = xp[t] + jnp.dot(h, wh, preferred_element_type=jnp.float32)
        i_g = jax.nn.sigmoid(g[:, 0 * Hd:1 * Hd])
        f_g = jax.nn.sigmoid(g[:, 1 * Hd:2 * Hd])
        g_g = jnp.tanh(g[:, 2 * Hd:3 * Hd])
        o_g = jax.nn.sigmoid(g[:, 3 * Hd:4 * Hd])
        c = f_g * c + i_g * g_g
        h = o_g * jnp.tanh(c)
        ys.append(h)
    return jnp.stack(ys, axis=0)                                   # [T, N, H]


# ----------------------------------------------------------------------------
# Kernel 1: fused SAREncoder (2xLSTM + valid-step gather + Linear)
# (H-maxpool is done in the wrapper: the kernel never holds [B,H,W,C] in VMEM.)
# ----------------------------------------------------------------------------
def encoder_kernel(pooled_ref, onehot_ref,
                   wx0_ref, wh0_ref, b0_ref, wx1_ref, wh1_ref, b1_ref,
                   wlin_ref, blin_ref, hol_ref):
    y0 = _lstm_layer(pooled_ref[...], wx0_ref[...], wh0_ref[...], b0_ref[...])
    y1 = _lstm_layer(y0, wx1_ref[...], wh1_ref[...], b1_ref[...])  # [B, W, H]
    # Per-batch valid-step gather as a one-hot select-sum (no dynamic slicing).
    valid = jnp.sum(y1 * onehot_ref[...][:, :, None], axis=1)      # [B, H]
    hol_ref[...] = (jnp.dot(valid, wlin_ref[...],
                            preferred_element_type=jnp.float32)
                    + blin_ref[...]).astype(hol_ref.dtype)


def encoder_forward(pooled, onehot, p):
    # TODO(synk): grid over the independent W axis ("parallel") for v7x dual-TC
    #             once W is non-trivial; coupled to the valid-step gather.
    B = pooled.shape[0]
    enc_dim = p['enc_lin_w'].shape[1]
    wx0, wh0, b0 = p['enc_lstm0']
    wx1, wh1, b1 = p['enc_lstm1']
    return pl.pallas_call(
        encoder_kernel,
        out_shape=jax.ShapeDtypeStruct((B, enc_dim), jnp.float32),
        in_specs=[pl.BlockSpec(memory_space=VMEM)] * 10,
        out_specs=pl.BlockSpec(memory_space=VMEM),
    )(pooled, onehot, wx0, wh0, b0, wx1, wh1, b1,
      p['enc_lin_w'], p['enc_lin_b'])


# ----------------------------------------------------------------------------
# Kernel 2: fused 2-layer decoder LSTM (output lane-padded to 128)
# ----------------------------------------------------------------------------
def dec_lstm_kernel(x_ref, wx0_ref, wh0_ref, b0_ref, wx1_ref, wh1_ref, b1_ref,
                    y_ref):
    y0 = _lstm_layer(x_ref[...], wx0_ref[...], wh0_ref[...], b0_ref[...])
    y1 = _lstm_layer(y0, wx1_ref[...], wh1_ref[...], b1_ref[...])
    padw = y_ref.shape[-1] - y1.shape[-1]
    if padw:  # lane-dense (unmasked) store; zero lanes multiply zero weight rows
        y1 = jnp.concatenate(
            [y1, jnp.zeros(y1.shape[:-1] + (padw,), y1.dtype)], axis=-1)
    y_ref[...] = y1.astype(y_ref.dtype)


def decoder_lstm_forward(in_dec, p, yl):
    B, Tp, _ = in_dec.shape
    wx0, wh0, b0 = p['dec_lstm0']
    wx1, wh1, b1 = p['dec_lstm1']
    return pl.pallas_call(
        dec_lstm_kernel,
        out_shape=jax.ShapeDtypeStruct((B, Tp, yl), jnp.float32),
        in_specs=[pl.BlockSpec(memory_space=VMEM)] * 7,
        out_specs=pl.BlockSpec(memory_space=VMEM),
    )(in_dec, wx0, wh0, b0, wx1, wh1, b1)


# ----------------------------------------------------------------------------
# Kernel 3: 2D attention + prediction (per-batch grid step, lane-dense)
# ----------------------------------------------------------------------------
def attn_pred_kernel(vw_ref, y_ref, feat_ref, hol_ref,
                     wq_ref, bq_ref, wk_ref, bk_ref, wv_ref, bv_ref,
                     wpy_ref, wpa_ref, wph_ref, bp_ref,
                     o_ref, fpad_ref, *, H, W):
    b = pl.program_id(0)
    HW = H * W
    C = feat_ref.shape[-1]
    dk = wq_ref.shape[1]
    Tp = y_ref.shape[1]

    # Stage the feature tile into a zero-padded VMEM scratch (conv3x3 pad=1).
    # No HBM-side padded copy of the feature map exists any more.
    fpad_ref[...] = jnp.zeros_like(fpad_ref)
    fpad_ref[1:H + 1, 1:W + 1, :] = feat_ref[0]

    y_bf = y_ref[0].astype(BF16)                                    # [Tp, YL]
    hol_bf = hol_ref[0].astype(BF16)                                # [1, De]

    # conv1x1_1 (attention query); bf16 MXU operands, f32 accumulation.
    q = (jnp.dot(y_bf, wq_ref[...], preferred_element_type=jnp.float32)
         + bq_ref[...])                                             # [Tp, dk]

    # conv3x3_1 (attention key): only 3 dw-shifted (sublane-axis) copies, each
    # reused across the 3 dh taps -- H slices are on an untiled axis (cheap).
    key = jnp.zeros((HW, dk), jnp.float32)
    feat_flat = None
    for dw in range(3):
        fw = fpad_ref[:, dw:dw + W, :]                              # [H+2, W, C]
        for dh in range(3):
            sl = fw[dh:dh + H].reshape(HW, C).astype(BF16)          # [HW, C]
            if dh == 1 and dw == 1:                                 # centre tap
                feat_flat = sl
            key = key + jnp.dot(sl, wk_ref[dh * 3 + dw],
                                preferred_element_type=jnp.float32)
    key = key + bk_ref[...]                                         # [HW, dk] f32

    # Additive-attention scores: per decode row, tanh(key + q_t) then MXU
    # contraction over d_k -- never materializes a [T, d_k, HW] tensor.
    # TODO(synk): tile HW with an online softmax at production HW (~1000).
    cols = []
    for t in range(Tp):
        e_t = jnp.tanh(key + q[t:t + 1, :])                         # [HW, dk] f32
        cols.append(jnp.dot(e_t.astype(BF16), wv_ref[...],
                            preferred_element_type=jnp.float32))    # [HW, 1]
    scores = jnp.concatenate(cols, axis=1).T + bv_ref[...]          # [Tp, HW]

    # valid-ratio masking along the width axis (w index = hw % W)
    col_w = lax.broadcasted_iota(jnp.int32, scores.shape, 1) % W
    scores = jnp.where(col_w < vw_ref[b], scores, -jnp.inf)

    # softmax over H*W (lane reduction, f32 stats); divide -> EUP reciprocal.
    m = jnp.max(scores, axis=-1, keepdims=True)
    pexp = jnp.exp(scores - m)
    attn = pexp * pl.reciprocal(jnp.sum(pexp, axis=-1, keepdims=True),
                                approx=True)                        # [Tp, HW]

    # attention-weighted feature sum over (h, w)
    attn_feat = jnp.dot(attn.astype(BF16), feat_flat,
                        preferred_element_type=jnp.float32)         # [Tp, C]

    # prediction Linear on concat(y, attn_feat, holistic) as split matmuls;
    # output is padded to 128 lanes (lane-dense store), sliced in the wrapper.
    out = (jnp.dot(y_bf, wpy_ref[...], preferred_element_type=jnp.float32)
           + jnp.dot(attn_feat.astype(BF16), wpa_ref[...],
                     preferred_element_type=jnp.float32)
           + jnp.dot(hol_bf, wph_ref[...], preferred_element_type=jnp.float32)
           + bp_ref[...])
    o_ref[0] = out.astype(o_ref.dtype)


def attention_prediction(vw, y, feat_nhwc, hol3, p, H, W):
    B, Tp, Yl = y.shape                       # Yl = lane-padded decoder width
    C = feat_nhwc.shape[-1]
    De = hol3.shape[-1]
    dk = p['wq'].shape[1]
    npred = p['wpy'].shape[1]
    P = ((npred + 127) // 128) * 128          # lane-padded prediction width

    # bf16 weights (wrapper-side, once per call): halves per-step weight DMA and
    # feeds the MXU natively on v6e/v7x; biases stay f32.
    wq_p = jnp.pad(p['wq'], ((0, Yl - De), (0, 0))).astype(BF16)          # [Yl,dk]
    wk_bf = p['wk_taps'].astype(BF16)                                      # [9,C,dk]
    wv_bf = p['wv'].astype(BF16)                                           # [dk,1]
    wpy_p = jnp.pad(p['wpy'], ((0, Yl - De), (0, P - npred))).astype(BF16)
    wpa_p = jnp.pad(p['wpa'], ((0, 0), (0, P - npred))).astype(BF16)
    wph_p = jnp.pad(p['wph'], ((0, 0), (0, P - npred))).astype(BF16)
    bp_p = jnp.pad(p['bp'], ((0, 0), (0, P - npred)))

    kernel = functools.partial(attn_pred_kernel, H=H, W=W)
    grid_spec = pltpu.PrefetchScalarGridSpec(
        num_scalar_prefetch=1,
        grid=(B,),
        in_specs=[
            pl.BlockSpec((1, Tp, Yl), lambda b, vw: (b, 0, 0)),        # y
            pl.BlockSpec((1, H, W, C), lambda b, vw: (b, 0, 0, 0)),    # feat (unpadded)
            pl.BlockSpec((1, 1, De), lambda b, vw: (b, 0, 0)),         # holistic
            pl.BlockSpec((Yl, dk), lambda b, vw: (0, 0)),              # wq (padded)
            pl.BlockSpec((1, dk), lambda b, vw: (0, 0)),               # bq
            pl.BlockSpec((9, C, dk), lambda b, vw: (0, 0, 0)),         # wk taps
            pl.BlockSpec((1, dk), lambda b, vw: (0, 0)),               # bk
            pl.BlockSpec((dk, 1), lambda b, vw: (0, 0)),               # wv
            pl.BlockSpec((1, 1), lambda b, vw: (0, 0)),                # bv
            pl.BlockSpec((Yl, P), lambda b, vw: (0, 0)),               # wpy (padded)
            pl.BlockSpec((C, P), lambda b, vw: (0, 0)),                # wpa (padded)
            pl.BlockSpec((De, P), lambda b, vw: (0, 0)),               # wph (padded)
            pl.BlockSpec((1, P), lambda b, vw: (0, 0)),                # bp  (padded)
        ],
        out_specs=pl.BlockSpec((1, Tp, P), lambda b, vw: (b, 0, 0)),
        scratch_shapes=[pltpu.VMEM((H + 2, W + 2, C), jnp.float32)],   # padded feat
    )
    return pl.pallas_call(
        kernel,
        out_shape=jax.ShapeDtypeStruct((B, Tp, P), jnp.float32),
        grid_spec=grid_spec,
        compiler_params=pltpu.CompilerParams(
            dimension_semantics=("parallel",)),   # both TensorCores on v7x
    )(vw, y, feat_nhwc, hol3,
      wq_p, p['bq'], wk_bf, p['bk'], wv_bf, p['bv'],
      wpy_p, wpa_p, wph_p, bp_p)


# ----------------------------------------------------------------------------
# SARHead forward (train path), Pallas version
# ----------------------------------------------------------------------------
@jax.jit
def sar_head_forward(params, feat, label, valid_ratios):
    B, C, H, W = feat.shape
    feat_nhwc = jnp.transpose(feat, (0, 2, 3, 1))                  # [B, H, W, C]

    # ---------------- SAREncoder ----------------
    # H-maxpool in the wrapper (cheap XLA reduce) so the encoder kernel only
    # holds [B, W, C] in VMEM.
    pooled = jnp.max(feat_nhwc, axis=1)                            # [B, W, C]
    Tenc = W
    vstep = jnp.minimum(Tenc, jnp.ceil(Tenc * valid_ratios)).astype(jnp.int32) - 1
    vstep = jnp.clip(vstep, 0, Tenc - 1)       # guard degenerate valid_ratio ~ 0
    onehot = jax.nn.one_hot(vstep, Tenc, dtype=jnp.float32)        # [B, W]
    hol = encoder_forward(pooled, onehot, params)                  # [B, enc_dim]

    # ---------------- ParallelSARDecoder (forward_train) ----------------
    enc_dim = hol.shape[-1]
    emb = jnp.take(params['embedding'], label, axis=0)             # [B, L, enc_dim]
    in_dec = jnp.concatenate([hol[:, None, :], emb], axis=1)       # [B, 1+L, enc_dim]
    T = in_dec.shape[1]
    Tp = ((T + 7) // 8) * 8                    # sublane-align the decode axis
    in_dec = jnp.pad(in_dec, ((0, 0), (0, Tp - T), (0, 0)))
    Yl = ((enc_dim + 127) // 128) * 128        # lane-padded decoder output width
    y = decoder_lstm_forward(in_dec, params, Yl)                   # [B, Tp, Yl]

    vw = jnp.minimum(W, jnp.ceil(W * valid_ratios)).astype(jnp.int32)
    vw = jnp.maximum(vw, 1)                    # guard all -inf -> NaN softmax

    out = attention_prediction(vw, y, feat_nhwc, hol[:, None, :], params, H, W)
    npred = params['wpy'].shape[1]
    return out[:, 1:T, :npred]                                     # [B, L, num_classes-1]


# ----------------------------------------------------------------------------
# Deterministic parameter init (synthetic; shapes follow the module __init__)
# ----------------------------------------------------------------------------
def init_params(key, in_channel, out_channel, enc_dim, d_k):
    keys = iter(jax.random.split(key, 40))

    def u(shape, scale=0.1):
        return jax.random.uniform(next(keys), shape, jnp.float32, -scale, scale)

    def lstm_params(in_dim, hid):
        # fused-gate format: wx [In, 4H], wh [H, 4H], b [1, 4H]; gate order (i,f,g,o)
        return (u((in_dim, 4 * hid)), u((hid, 4 * hid)), u((1, 4 * hid)))

    p = {}
    p['enc_lstm0'] = lstm_params(in_channel, enc_dim)
    p['enc_lstm1'] = lstm_params(enc_dim, enc_dim)
    p['enc_lin_w'] = u((enc_dim, enc_dim))
    p['enc_lin_b'] = u((1, enc_dim))
    p['dec_lstm0'] = lstm_params(enc_dim, enc_dim)
    p['dec_lstm1'] = lstm_params(enc_dim, enc_dim)
    p['wq'] = u((enc_dim, d_k))                        # conv1x1_1
    p['bq'] = u((1, d_k))
    w_conv = u((d_k, in_channel, 3, 3))                # conv3x3_1 (OIHW like PyTorch)
    # taps laid out as [9, C, d_k], tap index = dh*3 + dw
    p['wk_taps'] = jnp.transpose(w_conv, (2, 3, 1, 0)).reshape(9, in_channel, d_k)
    p['bk'] = u((1, d_k))
    p['wv'] = u((d_k, 1))                              # conv1x1_2
    p['bv'] = u((1, 1))
    emb = u((out_channel, enc_dim))
    p['embedding'] = emb.at[out_channel - 1].set(0.0)  # padding_idx row = 0
    npred = out_channel - 1
    p['wpy'] = u((enc_dim, npred))                     # prediction, split by concat chunks
    p['wpa'] = u((in_channel, npred))
    p['wph'] = u((enc_dim, npred))
    p['bp'] = u((1, npred))
    return p


# ----------------------------------------------------------------------------
# Pure-JAX reference (same math, full f32) for verification
# ----------------------------------------------------------------------------
def lstm_layer_ref(x, wx, wh, b):
    N = x.shape[1]
    Hd = wh.shape[0]

    def step(carry, x_t):
        h, c = carry
        g = x_t @ wx + h @ wh + b
        i = jax.nn.sigmoid(g[:, 0 * Hd:1 * Hd])
        f = jax.nn.sigmoid(g[:, 1 * Hd:2 * Hd])
        gg = jnp.tanh(g[:, 2 * Hd:3 * Hd])
        o = jax.nn.sigmoid(g[:, 3 * Hd:4 * Hd])
        c = f * c + i * gg
        h = o * jnp.tanh(c)
        return (h, c), h

    init = (jnp.zeros((N, Hd), jnp.float32), jnp.zeros((N, Hd), jnp.float32))
    _, ys = lax.scan(step, init, x)
    return ys


def reference_forward(p, feat, label, ratios):
    B, C, H, W = feat.shape
    feat_nhwc = jnp.transpose(feat, (0, 2, 3, 1))
    feat_v = jnp.max(feat_nhwc, axis=1)
    h = lstm_layer_ref(feat_v, *p['enc_lstm0'])
    h = lstm_layer_ref(h, *p['enc_lstm1'])
    Tenc = h.shape[1]
    vstep = jnp.clip(
        jnp.minimum(Tenc, jnp.ceil(Tenc * ratios)).astype(jnp.int32) - 1,
        0, Tenc - 1)
    valid_hf = h[jnp.arange(B), vstep]
    hol = valid_hf @ p['enc_lin_w'] + p['enc_lin_b']
    emb = jnp.take(p['embedding'], label, axis=0)
    in_dec = jnp.concatenate([hol[:, None, :], emb], axis=1)
    y = lstm_layer_ref(in_dec, *p['dec_lstm0'])
    y = lstm_layer_ref(y, *p['dec_lstm1'])
    pad = jnp.pad(feat_nhwc, ((0, 0), (1, 1), (1, 1), (0, 0)))
    cols = [pad[:, dh:dh + H, dw:dw + W, :] for dh in range(3) for dw in range(3)]
    feat_col = jnp.concatenate(cols, axis=-1).reshape(B, H * W, 9 * C)
    feat_flat = feat_nhwc.reshape(B, H * W, C)
    wk_col = p['wk_taps'].reshape(9 * C, -1)
    q = jnp.einsum('btd,dk->btk', y, p['wq']) + p['bq']
    keyf = jnp.einsum('bnc,ck->bnk', feat_col, wk_col) + p['bk']
    e = jnp.tanh(keyf[:, None, :, :] + q[:, :, None, :])
    scores = jnp.sum(e * p['wv'][:, 0], axis=-1) + p['bv'][0, 0]
    vw = jnp.maximum(jnp.minimum(W, jnp.ceil(W * ratios)).astype(jnp.int32), 1)
    col_w = jnp.arange(H * W) % W
    mask = col_w[None, None, :] < vw[:, None, None]
    scores = jnp.where(mask, scores, -jnp.inf)
    attn = jax.nn.softmax(scores, axis=-1)
    attn_feat = jnp.einsum('bth,bhc->btc', attn, feat_flat)
    out = (jnp.einsum('btd,dn->btn', y, p['wpy'])
           + jnp.einsum('btc,cn->btn', attn_feat, p['wpa'])
           + (hol @ p['wph'])[:, None, :]
           + p['bp'])
    return out[:, 1:, :]


# ----------------------------------------------------------------------------
if __name__ == "__main__":
    # Small, module-consistent shapes.
    B, Cin, H, W = 2, 32, 8, 16          # feat: [B, in_channel, H, W]
    out_channel, enc_dim, d_k = 10, 32, 16
    L = 6                                # label length (<= max_text_length)

    root = jax.random.PRNGKey(0)
    k_feat, k_lab, k_par = jax.random.split(root, 3)

    feat = jax.random.normal(k_feat, (B, Cin, H, W), jnp.float32)
    label = jax.random.randint(k_lab, (B, L), 0, out_channel, dtype=jnp.int32)
    valid_ratios = jnp.array([1.0, 0.6], jnp.float32)   # targets[-1]

    params = init_params(k_par, Cin, out_channel, enc_dim, d_k)

    out = sar_head_forward(params, feat, label, valid_ratios)
    out = jax.block_until_ready(out)

    assert out.shape == (B, L, out_channel - 1), out.shape

    ref = reference_forward(params, feat, label, valid_ratios)
    ref = jax.block_until_ready(ref)
    max_err = float(jnp.max(jnp.abs(out - ref)))
    # Tolerance relaxed vs. a pure-f32 kernel: attention/prediction matmuls use
    # bf16 MXU operands (f32 accumulation); LSTM path and softmax stats are f32.
    assert max_err < 1e-2, f"mismatch vs reference: {max_err}"

    print("KERNEL_OK")
</pallas_src>

<mosaic_0001>
module attributes {stable_mosaic.version = 11 : i64} {
  func.func @encoder_kernel(%arg0: memref<2x16x32xf32, #tpu.memory_space<vmem>>, %arg1: memref<2x16xf32, #tpu.memory_space<vmem>>, %arg2: memref<32x128xf32, #tpu.memory_space<vmem>>, %arg3: memref<32x128xf32, #tpu.memory_space<vmem>>, %arg4: memref<1x128xf32, #tpu.memory_space<vmem>>, %arg5: memref<32x128xf32, #tpu.memory_space<vmem>>, %arg6: memref<32x128xf32, #tpu.memory_space<vmem>>, %arg7: memref<1x128xf32, #tpu.memory_space<vmem>>, %arg8: memref<32x32xf32, #tpu.memory_space<vmem>>, %arg9: memref<1x32xf32, #tpu.memory_space<vmem>>, %arg10: memref<2x32xf32, #tpu.memory_space<vmem>>) attributes {dimension_semantics = [], scalar_prefetch = 0 : i64, scratch_operands = 0 : i64, tpu.core_type = #tpu.core_type<tc>} {
    %c0 = arith.constant 0 : index
    %c0_0 = arith.constant 0 : index
    %c0_1 = arith.constant 0 : index
    %0 = vector.load %arg0[%c0, %c0_0, %c0_1] : memref<2x16x32xf32, #tpu.memory_space<vmem>>, vector<2x16x32xf32>
    %c0_2 = arith.constant 0 : index
    %c0_3 = arith.constant 0 : index
    %1 = vector.load %arg2[%c0_2, %c0_3] : memref<32x128xf32, #tpu.memory_space<vmem>>, vector<32x128xf32>
    %c0_4 = arith.constant 0 : index
    %c0_5 = arith.constant 0 : index
    %2 = vector.load %arg3[%c0_4, %c0_5] : memref<32x128xf32, #tpu.memory_space<vmem>>, vector<32x128xf32>
    %c0_6 = arith.constant 0 : index
    %c0_7 = arith.constant 0 : index
    %3 = vector.load %arg4[%c0_6, %c0_7] : memref<1x128xf32, #tpu.memory_space<vmem>>, vector<1x128xf32>
    %4 = vector.shape_cast %0 : vector<2x16x32xf32> to vector<32x32xf32>
    %cst = arith.constant dense<0.000000e+00> : vector<32x128xf32>
    %5 = tpu.matmul %4, %1, %cst {dimension_numbers = #tpu.dot_dimension_numbers<[1], [0], [0], [1], [0, 0, 1, 1], [], []>} : vector<32x32xf32>, vector<32x128xf32>, vector<32x128xf32> -> vector<32x128xf32>
    %6 = vector.broadcast %3 : vector<1x128xf32> to vector<32x128xf32>
    %7 = arith.addf %5, %6 : vector<32x128xf32>
    %8 = vector.shape_cast %7 : vector<32x128xf32> to vector<2x16x128xf32>
    %cst_8 = arith.constant 0.000000e+00 : f32
    %9 = vector.broadcast %cst_8 : f32 to vector<16x32xf32>
    %cst_9 = arith.constant 0.000000e+00 : f32
    %10 = vector.broadcast %cst_9 : f32 to vector<16x32xf32>
    %11 = vector.extract_strided_slice %8 {offsets = [0, 0, 0], sizes = [1, 16, 128], strides = [1, 1, 1]} : vector<2x16x128xf32> to vector<1x16x128xf32>
    %12 = vector.shape_cast %11 : vector<1x16x128xf32> to vector<16x128xf32>
    %cst_10 = arith.constant dense<0.000000e+00> : vector<16x128xf32>
    %13 = tpu.matmul %9, %2, %cst_10 {dimension_numbers = #tpu.dot_dimension_numbers<[1], [0], [0], [1], [0, 0, 1, 1], [], []>} : vector<16x32xf32>, vector<32x128xf32>, vector<16x128xf32> -> vector<16x128xf32>
    %14 = arith.addf %12, %13 : vector<16x128xf32>
    %15 = vector.extract_strided_slice %14 {offsets = [0, 0], sizes = [16, 32], strides = [1, 1]} : vector<16x128xf32> to vector<16x32xf32>
    %16 = arith.negf %15 : vector<16x32xf32>
    %17 = math.exp %16 : vector<16x32xf32>
    %cst_11 = arith.constant 1.000000e+00 : f32
    %18 = vector.broadcast %cst_11 : f32 to vector<16x32xf32>
    %19 = arith.addf %18, %17 : vector<16x32xf32>
    %20 = arith.divf %18, %19 : vector<16x32xf32>
    %21 = vector.extract_strided_slice %14 {offsets = [0, 32], sizes = [16, 32], strides = [1, 1]} : vector<16x128xf32> to vector<16x32xf32>
    %22 = arith.negf %21 : vector<16x32xf32>
    %23 = math.exp %22 : vector<16x32xf32>
    %cst_12 = arith.constant 1.000000e+00 : f32
    %24 = vector.broadcast %cst_12 : f32 to vector<16x32xf32>
    %25 = arith.addf %24, %23 : vector<16x32xf32>
    %26 = arith.divf %24, %25 : vector<16x32xf32>
    %27 = vector.extract_strided_slice %14 {offsets = [0, 64], sizes = [16, 32], strides = [1, 1]} : vector<16x128xf32> to vector<16x32xf32>
    %28 = math.tanh %27 : vector<16x32xf32>
    %29 = vector.extract_strided_slice %14 {offsets = [0, 96], sizes = [16, 32], strides = [1, 1]} : vector<16x128xf32> to vector<16x32xf32>
    %30 = arith.negf %29 : vector<16x32xf32>
    %31 = math.exp %30 : vector<16x32xf32>
    %cst_13 = arith.constant 1.000000e+00 : f32
    %32 = vector.broadcast %cst_13 : f32 to vector<16x32xf32>
    %33 = arith.addf %32, %31 : vector<16x32xf32>
    %34 = arith.divf %32, %33 : vector<16x32xf32>
    %35 = arith.mulf %26, %10 : vector<16x32xf32>
    %36 = arith.mulf %20, %28 : vector<16x32xf32>
    %37 = arith.addf %35, %36 : vector<16x32xf32>
    %38 = math.tanh %37 : vector<16x32xf32>
    %39 = arith.mulf %34, %38 : vector<16x32xf32>
    %40 = vector.extract_strided_slice %8 {offsets = [1, 0, 0], sizes = [1, 16, 128], strides = [1, 1, 1]} : vector<2x16x128xf32> to vector<1x16x128xf32>
    %41 = vector.shape_cast %40 : vector<1x16x128xf32> to vector<16x128xf32>
    %cst_14 = arith.constant dense<0.000000e+00> : vector<16x128xf32>
    %42 = tpu.matmul %39, %2, %cst_14 {dimension_numbers = #tpu.dot_dimension_numbers<[1], [0], [0], [1], [0, 0, 1, 1], [], []>} : vector<16x32xf32>, vector<32x128xf32>, vector<16x128xf32> -> vector<16x128xf32>
    %43 = arith.addf %41, %42 : vector<16x128xf32>
    %44 = vector.extract_strided_slice %43 {offsets = [0, 0], sizes = [16, 32], strides = [1, 1]} : vector<16x128xf32> to vector<16x32xf32>
    %45 = arith.negf %44 : vector<16x32xf32>
    %46 = math.exp %45 : vector<16x32xf32>
    %cst_15 = arith.constant 1.000000e+00 : f32
    %47 = vector.broadcast %cst_15 : f32 to vector<16x32xf32>
    %48 = arith.addf %47, %46 : vector<16x32xf32>
    %49 = arith.divf %47, %48 : vector<16x32xf32>
    %50 = vector.extract_strided_slice %43 {offsets = [0, 32], sizes = [16, 32], strides = [1, 1]} : vector<16x128xf32> to vector<16x32xf32>
    %51 = arith.negf %50 : vector<16x32xf32>
    %52 = math.exp %51 : vector<16x32xf32>
    %cst_16 = arith.constant 1.000000e+00 : f32
    %53 = vector.broadcast %cst_16 : f32 to vector<16x32xf32>
    %54 = arith.addf %53, %52 : vector<16x32xf32>
    %55 = arith.divf %53, %54 : vector<16x32xf32>
    %56 = vector.extract_strided_slice %43 {offsets = [0, 64], sizes = [16, 32], strides = [1, 1]} : vector<16x128xf32> to vector<16x32xf32>
    %57 = math.tanh %56 : vector<16x32xf32>
    %58 = vector.extract_strided_slice %43 {offsets = [0, 96], sizes = [16, 32], strides = [1, 1]} : vector<16x128xf32> to vector<16x32xf32>
    %59 = arith.negf %58 : vector<16x32xf32>
    %60 = math.exp %59 : vector<16x32xf32>
    %cst_17 = arith.constant 1.000000e+00 : f32
    %61 = vector.broadcast %cst_17 : f32 to vector<16x32xf32>
    %62 = arith.addf %61, %60 : vector<16x32xf32>
    %63 = arith.divf %61, %62 : vector<16x32xf32>
    %64 = arith.mulf %55, %37 : vector<16x32xf32>
    %65 = arith.mulf %49, %57 : vector<16x32xf32>
    %66 = arith.addf %64, %65 : vector<16x32xf32>
    %67 = math.tanh %66 : vector<16x32xf32>
    %68 = arith.mulf %63, %67 : vector<16x32xf32>
    %69 = vector.shape_cast %39 : vector<16x32xf32> to vector<1x16x32xf32>
    %70 = vector.shape_cast %68 : vector<16x32xf32> to vector<1x16x32xf32>
    %71 = tpu.concatenate %69, %70 in 0 : vector<1x16x32xf32>, vector<1x16x32xf32> -> vector<2x16x32xf32>
    %c0_18 = arith.constant 0 : index
    %c0_19 = arith.constant 0 : index
    %72 = vector.load %arg5[%c0_18, %c0_19] : memref<32x128xf32, #tpu.memory_space<vmem>>, vector<32x128xf32>
    %c0_20 = arith.constant 0 : index
    %c0_21 = arith.constant 0 : index
    %73 = vector.load %arg6[%c0_20, %c0_21] : memref<32x128xf32, #tpu.memory_space<vmem>>, vector<32x128xf32>
    %c0_22 = arith.constant 0 : index
    %c0_23 = arith.constant 0 : index
    %74 = vector.load %arg7[%c0_22, %c0_23] : memref<1x128xf32, #tpu.memory_space<vmem>>, vector<1x128xf32>
    %75 = vector.shape_cast %71 : vector<2x16x32xf32> to vector<32x32xf32>
    %cst_24 = arith.constant dense<0.000000e+00> : vector<32x128xf32>
    %76 = tpu.matmul %75, %72, %cst_24 {dimension_numbers = #tpu.dot_dimension_numbers<[1], [0], [0], [1], [0, 0, 1, 1], [], []>} : vector<32x32xf32>, vector<32x128xf32>, vector<32x128xf32> -> vector<32x128xf32>
    %77 = vector.broadcast %74 : vector<1x128xf32> to vector<32x128xf32>
    %78 = arith.addf %76, %77 : vector<32x128xf32>
    %79 = vector.shape_cast %78 : vector<32x128xf32> to vector<2x16x128xf32>
    %cst_25 = arith.constant 0.000000e+00 : f32
    %80 = vector.broadcast %cst_25 : f32 to vector<16x32xf32>
    %cst_26 = arith.constant 0.000000e+00 : f32
    %81 = vector.broadcast %cst_26 : f32 to vector<16x32xf32>
    %82 = vector.extract_strided_slice %79 {offsets = [0, 0, 0], sizes = [1, 16, 128], strides = [1, 1, 1]} : vector<2x16x128xf32> to vector<1x16x128xf32>
    %83 = vector.shape_cast %82 : vector<1x16x128xf32> to vector<16x128xf32>
    %cst_27 = arith.constant dense<0.000000e+00> : vector<16x128xf32>
    %84 = tpu.matmul %80, %73, %cst_27 {dimension_numbers = #tpu.dot_dimension_numbers<[1], [0], [0], [1], [0, 0, 1, 1], [], []>} : vector<16x32xf32>, vector<32x128xf32>, vector<16x128xf32> -> vector<16x128xf32>
    %85 = arith.addf %83, %84 : vector<16x128xf32>
    %86 = vector.extract_strided_slice %85 {offsets = [0, 0], sizes = [16, 32], strides = [1, 1]} : vector<16x128xf32> to vector<16x32xf32>
    %87 = arith.negf %86 : vector<16x32xf32>
    %88 = math.exp %87 : vector<16x32xf32>
    %cst_28 = arith.constant 1.000000e+00 : f32
    %89 = vector.broadcast %cst_28 : f32 to vector<16x32xf32>
    %90 = arith.addf %89, %88 : vector<16x32xf32>
    %91 = arith.divf %89, %90 : vector<16x32xf32>
    %92 = vector.extract_strided_slice %85 {offsets = [0, 32], sizes = [16, 32], strides = [1, 1]} : vector<16x128xf32> to vector<16x32xf32>
    %93 = arith.negf %92 : vector<16x32xf32>
    %94 = math.exp %93 : vector<16x32xf32>
    %cst_29 = arith.constant 1.000000e+00 : f32
    %95 = vector.broadcast %cst_29 : f32 to vector<16x32xf32>
    %96 = arith.addf %95, %94 : vector<16x32xf32>
    %97 = arith.divf %95, %96 : vector<16x32xf32>
    %98 = vector.extract_strided_slice %85 {offsets = [0, 64], sizes = [16, 32], strides = [1, 1]} : vector<16x128xf32> to vector<16x32xf32>
    %99 = math.tanh %98 : vector<16x32xf32>
    %100 = vector.extract_strided_slice %85 {offsets = [0, 96], sizes = [16, 32], strides = [1, 1]} : vector<16x128xf32> to vector<16x32xf32>
    %101 = arith.negf %100 : vector<16x32xf32>
    %102 = math.exp %101 : vector<16x32xf32>
    %cst_30 = arith.constant 1.000000e+00 : f32
    %103 = vector.broadcast %cst_30 : f32 to vector<16x32xf32>
    %104 = arith.addf %103, %102 : vector<16x32xf32>
    %105 = arith.divf %103, %104 : vector<16x32xf32>
    %106 = arith.mulf %97, %81 : vector<16x32xf32>
    %107 = arith.mulf %91, %99 : vector<16x32xf32>
    %108 = arith.addf %106, %107 : vector<16x32xf32>
    %109 = math.tanh %108 : vector<16x32xf32>
    %110 = arith.mulf %105, %109 : vector<16x32xf32>
    %111 = vector.extract_strided_slice %79 {offsets = [1, 0, 0], sizes = [1, 16, 128], strides = [1, 1, 1]} : vector<2x16x128xf32> to vector<1x16x128xf32>
    %112 = vector.shape_cast %111 : vector<1x16x128xf32> to vector<16x128xf32>
    %cst_31 = arith.constant dense<0.000000e+00> : vector<16x128xf32>
    %113 = tpu.matmul %110, %73, %cst_31 {dimension_numbers = #tpu.dot_dimension_numbers<[1], [0], [0], [1], [0, 0, 1, 1], [], []>} : vector<16x32xf32>, vector<32x128xf32>, vector<16x128xf32> -> vector<16x128xf32>
    %114 = arith.addf %112, %113 : vector<16x128xf32>
    %115 = vector.extract_strided_slice %114 {offsets = [0, 0], sizes = [16, 32], strides = [1, 1]} : vector<16x128xf32> to vector<16x32xf32>
    %116 = arith.negf %115 : vector<16x32xf32>
    %117 = math.exp %116 : vector<16x32xf32>
    %cst_32 = arith.constant 1.000000e+00 : f32
    %118 = vector.broadcast %cst_32 : f32 to vector<16x32xf32>
    %119 = arith.addf %118, %117 : vector<16x32xf32>
    %120 = arith.divf %118, %119 : vector<16x32xf32>
    %121 = vector.extract_strided_slice %114 {offsets = [0, 32], sizes = [16, 32], strides = [1, 1]} : vector<16x128xf32> to vector<16x32xf32>
    %122 = arith.negf %121 : vector<16x32xf32>
    %123 = math.exp %122 : vector<16x32xf32>
    %cst_33 = arith.constant 1.000000e+00 : f32
    %124 = vector.broadcast %cst_33 : f32 to vector<16x32xf32>
    %125 = arith.addf %124, %123 : vector<16x32xf32>
    %126 = arith.divf %124, %125 : vector<16x32xf32>
    %127 = vector.extract_strided_slice %114 {offsets = [0, 64], sizes = [16, 32], strides = [1, 1]} : vector<16x128xf32> to vector<16x32xf32>
    %128 = math.tanh %127 : vector<16x32xf32>
    %129 = vector.extract_strided_slice %114 {offsets = [0, 96], sizes = [16, 32], strides = [1, 1]} : vector<16x128xf32> to vector<16x32xf32>
    %130 = arith.negf %129 : vector<16x32xf32>
    %131 = math.exp %130 : vector<16x32xf32>
    %cst_34 = arith.constant 1.000000e+00 : f32
    %132 = vector.broadcast %cst_34 : f32 to vector<16x32xf32>
    %133 = arith.addf %132, %131 : vector<16x32xf32>
    %134 = arith.divf %132, %133 : vector<16x32xf32>
    %135 = arith.mulf %126, %108 : vector<16x32xf32>
    %136 = arith.mulf %120, %128 : vector<16x32xf32>
    %137 = arith.addf %135, %136 : vector<16x32xf32>
    %138 = math.tanh %137 : vector<16x32xf32>
    %139 = arith.mulf %134, %138 : vector<16x32xf32>
    %140 = vector.shape_cast %110 : vector<16x32xf32> to vector<1x16x32xf32>
    %141 = vector.shape_cast %139 : vector<16x32xf32> to vector<1x16x32xf32>
    %142 = tpu.concatenate %140, %141 in 0 : vector<1x16x32xf32>, vector<1x16x32xf32> -> vector<2x16x32xf32>
    %c0_35 = arith.constant 0 : index
    %c0_36 = arith.constant 0 : index
    %143 = vector.load %arg1[%c0_35, %c0_36] : memref<2x16xf32, #tpu.memory_space<vmem>>, vector<2x16xf32>
    %144 = vector.shape_cast %143 : vector<2x16xf32> to vector<2x16x1xf32>
    %145 = vector.broadcast %144 : vector<2x16x1xf32> to vector<2x16x32xf32>
    %146 = arith.mulf %142, %145 : vector<2x16x32xf32>
    %cst_37 = arith.constant dense<0.000000e+00> : vector<2x32xf32>
    %147 = vector.multi_reduction <add>, %146, %cst_37 [1] : vector<2x16x32xf32> to vector<2x32xf32>
    %c0_38 = arith.constant 0 : index
    %c0_39 = arith.constant 0 : index
    %148 = vector.load %arg8[%c0_38, %c0_39] : memref<32x32xf32, #tpu.memory_space<vmem>>, vector<32x32xf32>
    %cst_40 = arith.constant dense<0.000000e+00> : vector<2x32xf32>
    %149 = tpu.matmul %147, %148, %cst_40 {dimension_numbers = #tpu.dot_dimension_numbers<[1], [0], [0], [1], [0, 0, 1, 1], [], []>} : vector<2x32xf32>, vector<32x32xf32>, vector<2x32xf32> -> vector<2x32xf32>
    %c0_41 = arith.constant 0 : index
    %c0_42 = arith.constant 0 : index
    %150 = vector.load %arg9[%c0_41, %c0_42] : memref<1x32xf32, #tpu.memory_space<vmem>>, vector<1x32xf32>
    %151 = vector.broadcast %150 : vector<1x32xf32> to vector<2x32xf32>
    %152 = arith.addf %149, %151 : vector<2x32xf32>
    %c0_43 = arith.constant 0 : index
    %c0_44 = arith.constant 0 : index
    %153 = vector.load %arg10[%c0_43, %c0_44] : memref<2x32xf32, #tpu.memory_space<vmem>>, vector<2x32xf32>
    tpu.vector_store %arg10[%c0_43, %c0_44], %152 {strides = array<i32>} : memref<2x32xf32, #tpu.memory_space<vmem>>, vector<2x32xf32>,
    return
  }
}

module attributes {stable_mosaic.version = 11 : i64} {
  func.func @dec_lstm_kernel(%arg0: memref<2x8x32xf32, #tpu.memory_space<vmem>>, %arg1: memref<32x128xf32, #tpu.memory_space<vmem>>, %arg2: memref<32x128xf32, #tpu.memory_space<vmem>>, %arg3: memref<1x128xf32, #tpu.memory_space<vmem>>, %arg4: memref<32x128xf32, #tpu.memory_space<vmem>>, %arg5: memref<32x128xf32, #tpu.memory_space<vmem>>, %arg6: memref<1x128xf32, #tpu.memory_space<vmem>>, %arg7: memref<2x8x128xf32, #tpu.memory_space<vmem>>) attributes {dimension_semantics = [], scalar_prefetch = 0 : i64, scratch_operands = 0 : i64, tpu.core_type = #tpu.core_type<tc>} {
    %c0 = arith.constant 0 : index
    %c0_0 = arith.constant 0 : index
    %c0_1 = arith.constant 0 : index
    %0 = vector.load %arg0[%c0, %c0_0, %c0_1] : memref<2x8x32xf32, #tpu.memory_space<vmem>>, vector<2x8x32xf32>
    %c0_2 = arith.constant 0 : index
    %c0_3 = arith.constant 0 : index
    %1 = vector.load %arg1[%c0_2, %c0_3] : memref<32x128xf32, #tpu.memory_space<vmem>>, vector<32x128xf32>
    %c0_4 = arith.constant 0 : index
    %c0_5 = arith.constant 0 : index
    %2 = vector.load %arg2[%c0_4, %c0_5] : memref<32x128xf32, #tpu.memory_space<vmem>>, vector<32x128xf32>
    %c0_6 = arith.constant 0 : index
    %c0_7 = arith.constant 0 : index
    %3 = vector.load %arg3[%c0_6, %c0_7] : memref<1x128xf32, #tpu.memory_space<vmem>>, vector<1x128xf32>
    %4 = vector.shape_cast %0 : vector<2x8x32xf32> to vector<16x32xf32>
    %cst = arith.constant dense<0.000000e+00> : vector<16x128xf32>
    %5 = tpu.matmul %4, %1, %cst {dimension_numbers = #tpu.dot_dimension_numbers<[1], [0], [0], [1], [0, 0, 1, 1], [], []>} : vector<16x32xf32>, vector<32x128xf32>, vector<16x128xf32> -> vector<16x128xf32>
    %6 = vector.broadcast %3 : vector<1x128xf32> to vector<16x128xf32>
    %7 = arith.addf %5, %6 : vector<16x128xf32>
    %8 = vector.shape_cast %7 : vector<16x128xf32> to vector<2x8x128xf32>
    %cst_8 = arith.constant 0.000000e+00 : f32
    %9 = vector.broadcast %cst_8 : f32 to vector<8x32xf32>
    %cst_9 = arith.constant 0.000000e+00 : f32
    %10 = vector.broadcast %cst_9 : f32 to vector<8x32xf32>
    %11 = vector.extract_strided_slice %8 {offsets = [0, 0, 0], sizes = [1, 8, 128], strides = [1, 1, 1]} : vector<2x8x128xf32> to vector<1x8x128xf32>
    %12 = vector.shape_cast %11 : vector<1x8x128xf32> to vector<8x128xf32>
    %cst_10 = arith.constant dense<0.000000e+00> : vector<8x128xf32>
    %13 = tpu.matmul %9, %2, %cst_10 {dimension_numbers = #tpu.dot_dimension_numbers<[1], [0], [0], [1], [0, 0, 1, 1], [], []>} : vector<8x32xf32>, vector<32x128xf32>, vector<8x128xf32> -> vector<8x128xf32>
    %14 = arith.addf %12, %13 : vector<8x128xf32>
    %15 = vector.extract_strided_slice %14 {offsets = [0, 0], sizes = [8, 32], strides = [1, 1]} : vector<8x128xf32> to vector<8x32xf32>
    %16 = arith.negf %15 : vector<8x32xf32>
    %17 = math.exp %16 : vector<8x32xf32>
    %cst_11 = arith.constant 1.000000e+00 : f32
    %18 = vector.broadcast %cst_11 : f32 to vector<8x32xf32>
    %19 = arith.addf %18, %17 : vector<8x32xf32>
    %20 = arith.divf %18, %19 : vector<8x32xf32>
    %21 = vector.extract_strided_slice %14 {offsets = [0, 32], sizes = [8, 32], strides = [1, 1]} : vector<8x128xf32> to vector<8x32xf32>
    %22 = arith.negf %21 : vector<8x32xf32>
    %23 = math.exp %22 : vector<8x32xf32>
    %cst_12 = arith.constant 1.000000e+00 : f32
    %24 = vector.broadcast %cst_12 : f32 to vector<8x32xf32>
    %25 = arith.addf %24, %23 : vector<8x32xf32>
    %26 = arith.divf %24, %25 : vector<8x32xf32>
    %27 = vector.extract_strided_slice %14 {offsets = [0, 64], sizes = [8, 32], strides = [1, 1]} : vector<8x128xf32> to vector<8x32xf32>
    %28 = math.tanh %27 : vector<8x32xf32>
    %29 = vector.extract_strided_slice %14 {offsets = [0, 96], sizes = [8, 32], strides = [1, 1]} : vector<8x128xf32> to vector<8x32xf32>
    %30 = arith.negf %29 : vector<8x32xf32>
    %31 = math.exp %30 : vector<8x32xf32>
    %cst_13 = arith.constant 1.000000e+00 : f32
    %32 = vector.broadcast %cst_13 : f32 to vector<8x32xf32>
    %33 = arith.addf %32, %31 : vector<8x32xf32>
    %34 = arith.divf %32, %33 : vector<8x32xf32>
    %35 = arith.mulf %26, %10 : vector<8x32xf32>
    %36 = arith.mulf %20, %28 : vector<8x32xf32>
    %37 = arith.addf %35, %36 : vector<8x32xf32>
    %38 = math.tanh %37 : vector<8x32xf32>
    %39 = arith.mulf %34, %38 : vector<8x32xf32>
    %40 = vector.extract_strided_slice %8 {offsets = [1, 0, 0], sizes = [1, 8, 128], strides = [1, 1, 1]} : vector<2x8x128xf32> to vector<1x8x128xf32>
    %41 = vector.shape_cast %40 : vector<1x8x128xf32> to vector<8x128xf32>
    %cst_14 = arith.constant dense<0.000000e+00> : vector<8x128xf32>
    %42 = tpu.matmul %39, %2, %cst_14 {dimension_numbers = #tpu.dot_dimension_numbers<[1], [0], [0], [1], [0, 0, 1, 1], [], []>} : vector<8x32xf32>, vector<32x128xf32>, vector<8x128xf32> -> vector<8x128xf32>
    %43 = arith.addf %41, %42 : vector<8x128xf32>
    %44 = vector.extract_strided_slice %43 {offsets = [0, 0], sizes = [8, 32], strides = [1, 1]} : vector<8x128xf32> to vector<8x32xf32>
    %45 = arith.negf %44 : vector<8x32xf32>
    %46 = math.exp %45 : vector<8x32xf32>
    %cst_15 = arith.constant 1.000000e+00 : f32
    %47 = vector.broadcast %cst_15 : f32 to vector<8x32xf32>
    %48 = arith.addf %47, %46 : vector<8x32xf32>
    %49 = arith.divf %47, %48 : vector<8x32xf32>
    %50 = vector.extract_strided_slice %43 {offsets = [0, 32], sizes = [8, 32], strides = [1, 1]} : vector<8x128xf32> to vector<8x32xf32>
    %51 = arith.negf %50 : vector<8x32xf32>
    %52 = math.exp %51 : vector<8x32xf32>
    %cst_16 = arith.constant 1.000000e+00 : f32
    %53 = vector.broadcast %cst_16 : f32 to vector<8x32xf32>
    %54 = arith.addf %53, %52 : vector<8x32xf32>
    %55 = arith.divf %53, %54 : vector<8x32xf32>
    %56 = vector.extract_strided_slice %43 {offsets = [0, 64], sizes = [8, 32], strides = [1, 1]} : vector<8x128xf32> to vector<8x32xf32>
    %57 = math.tanh %56 : vector<8x32xf32>
    %58 = vector.extract_strided_slice %43 {offsets = [0, 96], sizes = [8, 32], strides = [1, 1]} : vector<8x128xf32> to vector<8x32xf32>
    %59 = arith.negf %58 : vector<8x32xf32>
    %60 = math.exp %59 : vector<8x32xf32>
    %cst_17 = arith.constant 1.000000e+00 : f32
    %61 = vector.broadcast %cst_17 : f32 to vector<8x32xf32>
    %62 = arith.addf %61, %60 : vector<8x32xf32>
    %63 = arith.divf %61, %62 : vector<8x32xf32>
    %64 = arith.mulf %55, %37 : vector<8x32xf32>
    %65 = arith.mulf %49, %57 : vector<8x32xf32>
    %66 = arith.addf %64, %65 : vector<8x32xf32>
    %67 = math.tanh %66 : vector<8x32xf32>
    %68 = arith.mulf %63, %67 : vector<8x32xf32>
    %69 = vector.shape_cast %39 : vector<8x32xf32> to vector<1x8x32xf32>
    %70 = vector.shape_cast %68 : vector<8x32xf32> to vector<1x8x32xf32>
    %71 = tpu.concatenate %69, %70 in 0 : vector<1x8x32xf32>, vector<1x8x32xf32> -> vector<2x8x32xf32>
    %c0_18 = arith.constant 0 : index
    %c0_19 = arith.constant 0 : index
    %72 = vector.load %arg4[%c0_18, %c0_19] : memref<32x128xf32, #tpu.memory_space<vmem>>, vector<32x128xf32>
    %c0_20 = arith.constant 0 : index
    %c0_21 = arith.constant 0 : index
    %73 = vector.load %arg5[%c0_20, %c0_21] : memref<32x128xf32, #tpu.memory_space<vmem>>, vector<32x128xf32>
    %c0_22 = arith.constant 0 : index
    %c0_23 = arith.constant 0 : index
    %74 = vector.load %arg6[%c0_22, %c0_23] : memref<1x128xf32, #tpu.memory_space<vmem>>, vector<1x128xf32>
    %75 = vector.shape_cast %71 : vector<2x8x32xf32> to vector<16x32xf32>
    %cst_24 = arith.constant dense<0.000000e+00> : vector<16x128xf32>
    %76 = tpu.matmul %75, %72, %cst_24 {dimension_numbers = #tpu.dot_dimension_numbers<[1], [0], [0], [1], [0, 0, 1, 1], [], []>} : vector<16x32xf32>, vector<32x128xf32>, vector<16x128xf32> -> vector<16x128xf32>
    %77 = vector.broadcast %74 : vector<1x128xf32> to vector<16x128xf32>
    %78 = arith.addf %76, %77 : vector<16x128xf32>
    %79 = vector.shape_cast %78 : vector<16x128xf32> to vector<2x8x128xf32>
    %cst_25 = arith.constant 0.000000e+00 : f32
    %80 = vector.broadcast %cst_25 : f32 to vector<8x32xf32>
    %cst_26 = arith.constant 0.000000e+00 : f32
    %81 = vector.broadcast %cst_26 : f32 to vector<8x32xf32>
    %82 = vector.extract_strided_slice %79 {offsets = [0, 0, 0], sizes = [1, 8, 128], strides = [1, 1, 1]} : vector<2x8x128xf32> to vector<1x8x128xf32>
    %83 = vector.shape_cast %82 : vector<1x8x128xf32> to vector<8x128xf32>
    %cst_27 = arith.constant dense<0.000000e+00> : vector<8x128xf32>
    %84 = tpu.matmul %80, %73, %cst_27 {dimension_numbers = #tpu.dot_dimension_numbers<[1], [0], [0], [1], [0, 0, 1, 1], [], []>} : vector<8x32xf32>, vector<32x128xf32>, vector<8x128xf32> -> vector<8x128xf32>
    %85 = arith.addf %83, %84 : vector<8x128xf32>
    %86 = vector.extract_strided_slice %85 {offsets = [0, 0], sizes = [8, 32], strides = [1, 1]} : vector<8x128xf32> to vector<8x32xf32>
    %87 = arith.negf %86 : vector<8x32xf32>
    %88 = math.exp %87 : vector<8x32xf32>
    %cst_28 = arith.constant 1.000000e+00 : f32
    %89 = vector.broadcast %cst_28 : f32 to vector<8x32xf32>
    %90 = arith.addf %89, %88 : vector<8x32xf32>
    %91 = arith.divf %89, %90 : vector<8x32xf32>
    %92 = vector.extract_strided_slice %85 {offsets = [0, 32], sizes = [8, 32], strides = [1, 1]} : vector<8x128xf32> to vector<8x32xf32>
    %93 = arith.negf %92 : vector<8x32xf32>
    %94 = math.exp %93 : vector<8x32xf32>
    %cst_29 = arith.constant 1.000000e+00 : f32
    %95 = vector.broadcast %cst_29 : f32 to vector<8x32xf32>
    %96 = arith.addf %95, %94 : vector<8x32xf32>
    %97 = arith.divf %95, %96 : vector<8x32xf32>
    %98 = vector.extract_strided_slice %85 {offsets = [0, 64], sizes = [8, 32], strides = [1, 1]} : vector<8x128xf32> to vector<8x32xf32>
    %99 = math.tanh %98 : vector<8x32xf32>
    %100 = vector.extract_strided_slice %85 {offsets = [0, 96], sizes = [8, 32], strides = [1, 1]} : vector<8x128xf32> to vector<8x32xf32>
    %101 = arith.negf %100 : vector<8x32xf32>
    %102 = math.exp %101 : vector<8x32xf32>
    %cst_30 = arith.constant 1.000000e+00 : f32
    %103 = vector.broadcast %cst_30 : f32 to vector<8x32xf32>
    %104 = arith.addf %103, %102 : vector<8x32xf32>
    %105 = arith.divf %103, %104 : vector<8x32xf32>
    %106 = arith.mulf %97, %81 : vector<8x32xf32>
    %107 = arith.mulf %91, %99 : vector<8x32xf32>
    %108 = arith.addf %106, %107 : vector<8x32xf32>
    %109 = math.tanh %108 : vector<8x32xf32>
    %110 = arith.mulf %105, %109 : vector<8x32xf32>
    %111 = vector.extract_strided_slice %79 {offsets = [1, 0, 0], sizes = [1, 8, 128], strides = [1, 1, 1]} : vector<2x8x128xf32> to vector<1x8x128xf32>
    %112 = vector.shape_cast %111 : vector<1x8x128xf32> to vector<8x128xf32>
    %cst_31 = arith.constant dense<0.000000e+00> : vector<8x128xf32>
    %113 = tpu.matmul %110, %73, %cst_31 {dimension_numbers = #tpu.dot_dimension_numbers<[1], [0], [0], [1], [0, 0, 1, 1], [], []>} : vector<8x32xf32>, vector<32x128xf32>, vector<8x128xf32> -> vector<8x128xf32>
    %114 = arith.addf %112, %113 : vector<8x128xf32>
    %115 = vector.extract_strided_slice %114 {offsets = [0, 0], sizes = [8, 32], strides = [1, 1]} : vector<8x128xf32> to vector<8x32xf32>
    %116 = arith.negf %115 : vector<8x32xf32>
    %117 = math.exp %116 : vector<8x32xf32>
    %cst_32 = arith.constant 1.000000e+00 : f32
    %118 = vector.broadcast %cst_32 : f32 to vector<8x32xf32>
    %119 = arith.addf %118, %117 : vector<8x32xf32>
    %120 = arith.divf %118, %119 : vector<8x32xf32>
    %121 = vector.extract_strided_slice %114 {offsets = [0, 32], sizes = [8, 32], strides = [1, 1]} : vector<8x128xf32> to vector<8x32xf32>
    %122 = arith.negf %121 : vector<8x32xf32>
    %123 = math.exp %122 : vector<8x32xf32>
    %cst_33 = arith.constant 1.000000e+00 : f32
    %124 = vector.broadcast %cst_33 : f32 to vector<8x32xf32>
    %125 = arith.addf %124, %123 : vector<8x32xf32>
    %126 = arith.divf %124, %125 : vector<8x32xf32>
    %127 = vector.extract_strided_slice %114 {offsets = [0, 64], sizes = [8, 32], strides = [1, 1]} : vector<8x128xf32> to vector<8x32xf32>
    %128 = math.tanh %127 : vector<8x32xf32>
    %129 = vector.extract_strided_slice %114 {offsets = [0, 96], sizes = [8, 32], strides = [1, 1]} : vector<8x128xf32> to vector<8x32xf32>
    %130 = arith.negf %129 : vector<8x32xf32>
    %131 = math.exp %130 : vector<8x32xf32>
    %cst_34 = arith.constant 1.000000e+00 : f32
    %132 = vector.broadcast %cst_34 : f32 to vector<8x32xf32>
    %133 = arith.addf %132, %131 : vector<8x32xf32>
    %134 = arith.divf %132, %133 : vector<8x32xf32>
    %135 = arith.mulf %126, %108 : vector<8x32xf32>
    %136 = arith.mulf %120, %128 : vector<8x32xf32>
    %137 = arith.addf %135, %136 : vector<8x32xf32>
    %138 = math.tanh %137 : vector<8x32xf32>
    %139 = arith.mulf %134, %138 : vector<8x32xf32>
    %140 = vector.shape_cast %110 : vector<8x32xf32> to vector<1x8x32xf32>
    %141 = vector.shape_cast %139 : vector<8x32xf32> to vector<1x8x32xf32>
    %142 = tpu.concatenate %140, %141 in 0 : vector<1x8x32xf32>, vector<1x8x32xf32> -> vector<2x8x32xf32>
    %cst_35 = arith.constant 0.000000e+00 : f32
    %143 = vector.broadcast %cst_35 : f32 to vector<2x8x96xf32>
    %144 = tpu.concatenate %142, %143 in 2 : vector<2x8x32xf32>, vector<2x8x96xf32> -> vector<2x8x128xf32>
    %c0_36 = arith.constant 0 : index
    %c0_37 = arith.constant 0 : index
    %c0_38 = arith.constant 0 : index
    %145 = vector.load %arg7[%c0_36, %c0_37, %c0_38] : memref<2x8x128xf32, #tpu.memory_space<vmem>>, vector<2x8x128xf32>
    tpu.vector_store %arg7[%c0_36, %c0_37, %c0_38], %144 {strides = array<i32>} : memref<2x8x128xf32, #tpu.memory_space<vmem>>, vector<2x8x128xf32>,
    return
  }
}

module attributes {stable_mosaic.version = 11 : i64} {
  func.func @attn_pred_kernel(%arg0: i32, %arg1: memref<2xi32, #tpu.memory_space<smem>>, %arg2: memref<1x8x128xf32, #tpu.memory_space<vmem>>, %arg3: memref<1x8x16x32xf32, #tpu.memory_space<vmem>>, %arg4: memref<1x1x32xf32, #tpu.memory_space<vmem>>, %arg5: memref<128x16xbf16, #tpu.memory_space<vmem>>, %arg6: memref<1x16xf32, #tpu.memory_space<vmem>>, %arg7: memref<9x32x16xbf16, #tpu.memory_space<vmem>>, %arg8: memref<1x16xf32, #tpu.memory_space<vmem>>, %arg9: memref<16x1xbf16, #tpu.memory_space<vmem>>, %arg10: memref<1x1xf32, #tpu.memory_space<vmem>>, %arg11: memref<128x128xbf16, #tpu.memory_space<vmem>>, %arg12: memref<32x128xbf16, #tpu.memory_space<vmem>>, %arg13: memref<32x128xbf16, #tpu.memory_space<vmem>>, %arg14: memref<1x128xf32, #tpu.memory_space<vmem>>, %arg15: memref<1x8x128xf32, #tpu.memory_space<vmem>>, %arg16: memref<10x18x32xf32, #tpu.memory_space<vmem>>) attributes {dimension_semantics = [#tpu.dimension_semantics<parallel>], iteration_bounds = array<i64: 2>, scalar_prefetch = 1 : i64, scratch_operands = 1 : i64, tpu.core_type = #tpu.core_type<tc>, window_params = [{transform_indices = @transform_0, window_bounds = array<i64: 1, 8, 128>}, {transform_indices = @transform_1, window_bounds = array<i64: 1, 8, 16, 32>}, {transform_indices = @transform_2, window_bounds = array<i64: 1, 1, 32>}, {pipeline_mode = #tpu.pipeline_mode<synchronous>, transform_indices = @transform_3, window_bounds = array<i64: 128, 16>}, {pipeline_mode = #tpu.pipeline_mode<synchronous>, transform_indices = @transform_4, window_bounds = array<i64: 1, 16>}, {pipeline_mode = #tpu.pipeline_mode<synchronous>, transform_indices = @transform_5, window_bounds = array<i64: 9, 32, 16>}, {pipeline_mode = #tpu.pipeline_mode<synchronous>, transform_indices = @transform_6, window_bounds = array<i64: 1, 16>}, {pipeline_mode = #tpu.pipeline_mode<synchronous>, transform_indices = @transform_7, window_bounds = array<i64: 16, 1>}, {pipeline_mode = #tpu.pipeline_mode<synchronous>, transform_indices = @transform_8, window_bounds = array<i64: 1, 1>}, {pipeline_mode = #tpu.pipeline_mode<synchronous>, transform_indices = @transform_9, window_bounds = array<i64: 128, 128>}, {pipeline_mode = #tpu.pipeline_mode<synchronous>, transform_indices = @transform_10, window_bounds = array<i64: 32, 128>}, {pipeline_mode = #tpu.pipeline_mode<synchronous>, transform_indices = @transform_11, window_bounds = array<i64: 32, 128>}, {pipeline_mode = #tpu.pipeline_mode<synchronous>, transform_indices = @transform_12, window_bounds = array<i64: 1, 128>}, {transform_indices = @transform_13, window_bounds = array<i64: 1, 8, 128>}]} {
    %cst = arith.constant 0.000000e+00 : f32
    %0 = vector.broadcast %cst : f32 to vector<10x18x32xf32>
    %c0 = arith.constant 0 : index
    %c0_0 = arith.constant 0 : index
    %c0_1 = arith.constant 0 : index
    %1 = vector.load %arg16[%c0, %c0_0, %c0_1] : memref<10x18x32xf32, #tpu.memory_space<vmem>>, vector<10x18x32xf32>
    tpu.vector_store %arg16[%c0, %c0_0, %c0_1], %0 {strides = array<i32>} : memref<10x18x32xf32, #tpu.memory_space<vmem>>, vector<10x18x32xf32>,
    %c0_2 = arith.constant 0 : index
    %c0_3 = arith.constant 0 : index
    %c0_4 = arith.constant 0 : index
    %c0_5 = arith.constant 0 : index
    %2 = vector.load %arg3[%c0_2, %c0_3, %c0_4, %c0_5] : memref<1x8x16x32xf32, #tpu.memory_space<vmem>>, vector<1x8x16x32xf32>
    %3 = vector.shape_cast %2 : vector<1x8x16x32xf32> to vector<8x16x32xf32>
    %c1 = arith.constant 1 : index
    %c1_6 = arith.constant 1 : index
    %c0_7 = arith.constant 0 : index
    %4 = vector.load %arg16[%c1, %c1_6, %c0_7] : memref<10x18x32xf32, #tpu.memory_space<vmem>>, vector<8x16x32xf32>
    tpu.vector_store %arg16[%c1, %c1_6, %c0_7], %3 {strides = array<i32>} : memref<10x18x32xf32, #tpu.memory_space<vmem>>, vector<8x16x32xf32>,
    %c0_8 = arith.constant 0 : index
    %c0_9 = arith.constant 0 : index
    %c0_10 = arith.constant 0 : index
    %5 = vector.load %arg2[%c0_8, %c0_9, %c0_10] : memref<1x8x128xf32, #tpu.memory_space<vmem>>, vector<1x8x128xf32>
    %6 = vector.shape_cast %5 : vector<1x8x128xf32> to vector<8x128xf32>
    %7 = arith.truncf %6 : vector<8x128xf32> to vector<8x128xbf16>
    %c0_11 = arith.constant 0 : index
    %c0_12 = arith.constant 0 : index
    %c0_13 = arith.constant 0 : index
    %8 = vector.load %arg4[%c0_11, %c0_12, %c0_13] : memref<1x1x32xf32, #tpu.memory_space<vmem>>, vector<1x1x32xf32>
    %9 = vector.shape_cast %8 : vector<1x1x32xf32> to vector<1x32xf32>
    %10 = arith.truncf %9 : vector<1x32xf32> to vector<1x32xbf16>
    %c0_14 = arith.constant 0 : index
    %c0_15 = arith.constant 0 : index
    %11 = vector.load %arg5[%c0_14, %c0_15] : memref<128x16xbf16, #tpu.memory_space<vmem>>, vector<128x16xbf16>
    %cst_16 = arith.constant dense<0.000000e+00> : vector<8x16xf32>
    %12 = tpu.matmul %7, %11, %cst_16 {dimension_numbers = #tpu.dot_dimension_numbers<[1], [0], [0], [1], [0, 0, 1, 1], [], []>} : vector<8x128xbf16>, vector<128x16xbf16>, vector<8x16xf32> -> vector<8x16xf32>
    %c0_17 = arith.constant 0 : index
    %c0_18 = arith.constant 0 : index
    %13 = vector.load %arg6[%c0_17, %c0_18] : memref<1x16xf32, #tpu.memory_space<vmem>>, vector<1x16xf32>
    %14 = vector.broadcast %13 : vector<1x16xf32> to vector<8x16xf32>
    %15 = arith.addf %12, %14 : vector<8x16xf32>
    %cst_19 = arith.constant 0.000000e+00 : f32
    %16 = vector.broadcast %cst_19 : f32 to vector<128x16xf32>
    %c0_20 = arith.constant 0 : index
    %c0_21 = arith.constant 0 : index
    %c0_22 = arith.constant 0 : index
    %17 = vector.load %arg16[%c0_20, %c0_21, %c0_22] : memref<10x18x32xf32, #tpu.memory_space<vmem>>, vector<10x16x32xf32>
    %18 = vector.extract_strided_slice %17 {offsets = [0, 0, 0], sizes = [8, 16, 32], strides = [1, 1, 1]} : vector<10x16x32xf32> to vector<8x16x32xf32>
    %19 = vector.shape_cast %18 : vector<8x16x32xf32> to vector<128x32xf32>
    %20 = arith.truncf %19 : vector<128x32xf32> to vector<128x32xbf16>
    %c0_23 = arith.constant 0 : index
    %c0_24 = arith.constant 0 : index
    %c0_25 = arith.constant 0 : index
    %21 = vector.load %arg7[%c0_23, %c0_24, %c0_25] : memref<9x32x16xbf16, #tpu.memory_space<vmem>>, vector<1x32x16xbf16>
    %22 = vector.shape_cast %21 : vector<1x32x16xbf16> to vector<32x16xbf16>
    %cst_26 = arith.constant dense<0.000000e+00> : vector<128x16xf32>
    %23 = tpu.matmul %20, %22, %cst_26 {dimension_numbers = #tpu.dot_dimension_numbers<[1], [0], [0], [1], [0, 0, 1, 1], [], []>} : vector<128x32xbf16>, vector<32x16xbf16>, vector<128x16xf32> -> vector<128x16xf32>
    %24 = arith.addf %16, %23 : vector<128x16xf32>
    %25 = vector.extract_strided_slice %17 {offsets = [1, 0, 0], sizes = [8, 16, 32], strides = [1, 1, 1]} : vector<10x16x32xf32> to vector<8x16x32xf32>
    %26 = vector.shape_cast %25 : vector<8x16x32xf32> to vector<128x32xf32>
    %27 = arith.truncf %26 : vector<128x32xf32> to vector<128x32xbf16>
    %c3 = arith.constant 3 : index
    %c0_27 = arith.constant 0 : index
    %c0_28 = arith.constant 0 : index
    %28 = vector.load %arg7[%c3, %c0_27, %c0_28] : memref<9x32x16xbf16, #tpu.memory_space<vmem>>, vector<1x32x16xbf16>
    %29 = vector.shape_cast %28 : vector<1x32x16xbf16> to vector<32x16xbf16>
    %cst_29 = arith.constant dense<0.000000e+00> : vector<128x16xf32>
    %30 = tpu.matmul %27, %29, %cst_29 {dimension_numbers = #tpu.dot_dimension_numbers<[1], [0], [0], [1], [0, 0, 1, 1], [], []>} : vector<128x32xbf16>, vector<32x16xbf16>, vector<128x16xf32> -> vector<128x16xf32>
    %31 = arith.addf %24, %30 : vector<128x16xf32>
    %32 = vector.extract_strided_slice %17 {offsets = [2, 0, 0], sizes = [8, 16, 32], strides = [1, 1, 1]} : vector<10x16x32xf32> to vector<8x16x32xf32>
    %33 = vector.shape_cast %32 : vector<8x16x32xf32> to vector<128x32xf32>
    %34 = arith.truncf %33 : vector<128x32xf32> to vector<128x32xbf16>
    %c6 = arith.constant 6 : index
    %c0_30 = arith.constant 0 : index
    %c0_31 = arith.constant 0 : index
    %35 = vector.load %arg7[%c6, %c0_30, %c0_31] : memref<9x32x16xbf16, #tpu.memory_space<vmem>>, vector<1x32x16xbf16>
    %36 = vector.shape_cast %35 : vector<1x32x16xbf16> to vector<32x16xbf16>
    %cst_32 = arith.constant dense<0.000000e+00> : vector<128x16xf32>
    %37 = tpu.matmul %34, %36, %cst_32 {dimension_numbers = #tpu.dot_dimension_numbers<[1], [0], [0], [1], [0, 0, 1, 1], [], []>} : vector<128x32xbf16>, vector<32x16xbf16>, vector<128x16xf32> -> vector<128x16xf32>
    %38 = arith.addf %31, %37 : vector<128x16xf32>
    %c0_33 = arith.constant 0 : index
    %c1_34 = arith.constant 1 : index
    %c0_35 = arith.constant 0 : index
    %39 = vector.load %arg16[%c0_33, %c1_34, %c0_35] : memref<10x18x32xf32, #tpu.memory_space<vmem>>, vector<10x16x32xf32>
    %40 = vector.extract_strided_slice %39 {offsets = [0, 0, 0], sizes = [8, 16, 32], strides = [1, 1, 1]} : vector<10x16x32xf32> to vector<8x16x32xf32>
    %41 = vector.shape_cast %40 : vector<8x16x32xf32> to vector<128x32xf32>
    %42 = arith.truncf %41 : vector<128x32xf32> to vector<128x32xbf16>
    %c1_36 = arith.constant 1 : index
    %c0_37 = arith.constant 0 : index
    %c0_38 = arith.constant 0 : index
    %43 = vector.load %arg7[%c1_36, %c0_37, %c0_38] : memref<9x32x16xbf16, #tpu.memory_space<vmem>>, vector<1x32x16xbf16>
    %44 = vector.shape_cast %43 : vector<1x32x16xbf16> to vector<32x16xbf16>
    %cst_39 = arith.constant dense<0.000000e+00> : vector<128x16xf32>
    %45 = tpu.matmul %42, %44, %cst_39 {dimension_numbers = #tpu.dot_dimension_numbers<[1], [0], [0], [1], [0, 0, 1, 1], [], []>} : vector<128x32xbf16>, vector<32x16xbf16>, vector<128x16xf32> -> vector<128x16xf32>
    %46 = arith.addf %38, %45 : vector<128x16xf32>
    %47 = vector.extract_strided_slice %39 {offsets = [1, 0, 0], sizes = [8, 16, 32], strides = [1, 1, 1]} : vector<10x16x32xf32> to vector<8x16x32xf32>
    %48 = vector.shape_cast %47 : vector<8x16x32xf32> to vector<128x32xf32>
    %49 = arith.truncf %48 : vector<128x32xf32> to vector<128x32xbf16>
    %c4 = arith.constant 4 : index
    %c0_40 = arith.constant 0 : index
    %c0_41 = arith.constant 0 : index
    %50 = vector.load %arg7[%c4, %c0_40, %c0_41] : memref<9x32x16xbf16, #tpu.memory_space<vmem>>, vector<1x32x16xbf16>
    %51 = vector.shape_cast %50 : vector<1x32x16xbf16> to vector<32x16xbf16>
    %cst_42 = arith.constant dense<0.000000e+00> : vector<128x16xf32>
    %52 = tpu.matmul %49, %51, %cst_42 {dimension_numbers = #tpu.dot_dimension_numbers<[1], [0], [0], [1], [0, 0, 1, 1], [], []>} : vector<128x32xbf16>, vector<32x16xbf16>, vector<128x16xf32> -> vector<128x16xf32>
    %53 = arith.addf %46, %52 : vector<128x16xf32>
    %54 = vector.extract_strided_slice %39 {offsets = [2, 0, 0], sizes = [8, 16, 32], strides = [1, 1, 1]} : vector<10x16x32xf32> to vector<8x16x32xf32>
    %55 = vector.shape_cast %54 : vector<8x16x32xf32> to vector<128x32xf32>
    %56 = arith.truncf %55 : vector<128x32xf32> to vector<128x32xbf16>
    %c7 = arith.constant 7 : index
    %c0_43 = arith.constant 0 : index
    %c0_44 = arith.constant 0 : index
    %57 = vector.load %arg7[%c7, %c0_43, %c0_44] : memref<9x32x16xbf16, #tpu.memory_space<vmem>>, vector<1x32x16xbf16>
    %58 = vector.shape_cast %57 : vector<1x32x16xbf16> to vector<32x16xbf16>
    %cst_45 = arith.constant dense<0.000000e+00> : vector<128x16xf32>
    %59 = tpu.matmul %56, %58, %cst_45 {dimension_numbers = #tpu.dot_dimension_numbers<[1], [0], [0], [1], [0, 0, 1, 1], [], []>} : vector<128x32xbf16>, vector<32x16xbf16>, vector<128x16xf32> -> vector<128x16xf32>
    %60 = arith.addf %53, %59 : vector<128x16xf32>
    %c0_46 = arith.constant 0 : index
    %c2 = arith.constant 2 : index
    %c0_47 = arith.constant 0 : index
    %61 = vector.load %arg16[%c0_46, %c2, %c0_47] : memref<10x18x32xf32, #tpu.memory_space<vmem>>, vector<10x16x32xf32>
    %62 = vector.extract_strided_slice %61 {offsets = [0, 0, 0], sizes = [8, 16, 32], strides = [1, 1, 1]} : vector<10x16x32xf32> to vector<8x16x32xf32>
    %63 = vector.shape_cast %62 : vector<8x16x32xf32> to vector<128x32xf32>
    %64 = arith.truncf %63 : vector<128x32xf32> to vector<128x32xbf16>
    %c2_48 = arith.constant 2 : index
    %c0_49 = arith.constant 0 : index
    %c0_50 = arith.constant 0 : index
    %65 = vector.load %arg7[%c2_48, %c0_49, %c0_50] : memref<9x32x16xbf16, #tpu.memory_space<vmem>>, vector<1x32x16xbf16>
    %66 = vector.shape_cast %65 : vector<1x32x16xbf16> to vector<32x16xbf16>
    %cst_51 = arith.constant dense<0.000000e+00> : vector<128x16xf32>
    %67 = tpu.matmul %64, %66, %cst_51 {dimension_numbers = #tpu.dot_dimension_numbers<[1], [0], [0], [1], [0, 0, 1, 1], [], []>} : vector<128x32xbf16>, vector<32x16xbf16>, vector<128x16xf32> -> vector<128x16xf32>
    %68 = arith.addf %60, %67 : vector<128x16xf32>
    %69 = vector.extract_strided_slice %61 {offsets = [1, 0, 0], sizes = [8, 16, 32], strides = [1, 1, 1]} : vector<10x16x32xf32> to vector<8x16x32xf32>
    %70 = vector.shape_cast %69 : vector<8x16x32xf32> to vector<128x32xf32>
    %71 = arith.truncf %70 : vector<128x32xf32> to vector<128x32xbf16>
    %c5 = arith.constant 5 : index
    %c0_52 = arith.constant 0 : index
    %c0_53 = arith.constant 0 : index
    %72 = vector.load %arg7[%c5, %c0_52, %c0_53] : memref<9x32x16xbf16, #tpu.memory_space<vmem>>, vector<1x32x16xbf16>
    %73 = vector.shape_cast %72 : vector<1x32x16xbf16> to vector<32x16xbf16>
    %cst_54 = arith.constant dense<0.000000e+00> : vector<128x16xf32>
    %74 = tpu.matmul %71, %73, %cst_54 {dimension_numbers = #tpu.dot_dimension_numbers<[1], [0], [0], [1], [0, 0, 1, 1], [], []>} : vector<128x32xbf16>, vector<32x16xbf16>, vector<128x16xf32> -> vector<128x16xf32>
    %75 = arith.addf %68, %74 : vector<128x16xf32>
    %76 = vector.extract_strided_slice %61 {offsets = [2, 0, 0], sizes = [8, 16, 32], strides = [1, 1, 1]} : vector<10x16x32xf32> to vector<8x16x32xf32>
    %77 = vector.shape_cast %76 : vector<8x16x32xf32> to vector<128x32xf32>
    %78 = arith.truncf %77 : vector<128x32xf32> to vector<128x32xbf16>
    %c8 = arith.constant 8 : index
    %c0_55 = arith.constant 0 : index
    %c0_56 = arith.constant 0 : index
    %79 = vector.load %arg7[%c8, %c0_55, %c0_56] : memref<9x32x16xbf16, #tpu.memory_space<vmem>>, vector<1x32x16xbf16>
    %80 = vector.shape_cast %79 : vector<1x32x16xbf16> to vector<32x16xbf16>
    %cst_57 = arith.constant dense<0.000000e+00> : vector<128x16xf32>
    %81 = tpu.matmul %78, %80, %cst_57 {dimension_numbers = #tpu.dot_dimension_numbers<[1], [0], [0], [1], [0, 0, 1, 1], [], []>} : vector<128x32xbf16>, vector<32x16xbf16>, vector<128x16xf32> -> vector<128x16xf32>
    %82 = arith.addf %75, %81 : vector<128x16xf32>
    %c0_58 = arith.constant 0 : index
    %c0_59 = arith.constant 0 : index
    %83 = vector.load %arg8[%c0_58, %c0_59] : memref<1x16xf32, #tpu.memory_space<vmem>>, vector<1x16xf32>
    %84 = vector.broadcast %83 : vector<1x16xf32> to vector<128x16xf32>
    %85 = arith.addf %82, %84 : vector<128x16xf32>
    %86 = vector.extract_strided_slice %15 {offsets = [0, 0], sizes = [1, 16], strides = [1, 1]} : vector<8x16xf32> to vector<1x16xf32>
    %87 = vector.broadcast %86 : vector<1x16xf32> to vector<128x16xf32>
    %88 = arith.addf %85, %87 : vector<128x16xf32>
    %89 = math.tanh %88 : vector<128x16xf32>
    %90 = arith.truncf %89 : vector<128x16xf32> to vector<128x16xbf16>
    %c0_60 = arith.constant 0 : index
    %c0_61 = arith.constant 0 : index
    %91 = vector.load %arg9[%c0_60, %c0_61] : memref<16x1xbf16, #tpu.memory_space<vmem>>, vector<16x1xbf16>
    %cst_62 = arith.constant dense<0.000000e+00> : vector<128x1xf32>
    %92 = tpu.matmul %90, %91, %cst_62 {dimension_numbers = #tpu.dot_dimension_numbers<[1], [0], [0], [1], [0, 0, 1, 1], [], []>} : vector<128x16xbf16>, vector<16x1xbf16>, vector<128x1xf32> -> vector<128x1xf32>
    %93 = vector.extract_strided_slice %15 {offsets = [1, 0], sizes = [1, 16], strides = [1, 1]} : vector<8x16xf32> to vector<1x16xf32>
    %94 = vector.broadcast %93 : vector<1x16xf32> to vector<128x16xf32>
    %95 = arith.addf %85, %94 : vector<128x16xf32>
    %96 = math.tanh %95 : vector<128x16xf32>
    %97 = arith.truncf %96 : vector<128x16xf32> to vector<128x16xbf16>
    %c0_63 = arith.constant 0 : index
    %c0_64 = arith.constant 0 : index
    %98 = vector.load %arg9[%c0_63, %c0_64] : memref<16x1xbf16, #tpu.memory_space<vmem>>, vector<16x1xbf16>
    %cst_65 = arith.constant dense<0.000000e+00> : vector<128x1xf32>
    %99 = tpu.matmul %97, %98, %cst_65 {dimension_numbers = #tpu.dot_dimension_numbers<[1], [0], [0], [1], [0, 0, 1, 1], [], []>} : vector<128x16xbf16>, vector<16x1xbf16>, vector<128x1xf32> -> vector<128x1xf32>
    %100 = vector.extract_strided_slice %15 {offsets = [2, 0], sizes = [1, 16], strides = [1, 1]} : vector<8x16xf32> to vector<1x16xf32>
    %101 = vector.broadcast %100 : vector<1x16xf32> to vector<128x16xf32>
    %102 = arith.addf %85, %101 : vector<128x16xf32>
    %103 = math.tanh %102 : vector<128x16xf32>
    %104 = arith.truncf %103 : vector<128x16xf32> to vector<128x16xbf16>
    %c0_66 = arith.constant 0 : index
    %c0_67 = arith.constant 0 : index
    %105 = vector.load %arg9[%c0_66, %c0_67] : memref<16x1xbf16, #tpu.memory_space<vmem>>, vector<16x1xbf16>
    %cst_68 = arith.constant dense<0.000000e+00> : vector<128x1xf32>
    %106 = tpu.matmul %104, %105, %cst_68 {dimension_numbers = #tpu.dot_dimension_numbers<[1], [0], [0], [1], [0, 0, 1, 1], [], []>} : vector<128x16xbf16>, vector<16x1xbf16>, vector<128x1xf32> -> vector<128x1xf32>
    %107 = vector.extract_strided_slice %15 {offsets = [3, 0], sizes = [1, 16], strides = [1, 1]} : vector<8x16xf32> to vector<1x16xf32>
    %108 = vector.broadcast %107 : vector<1x16xf32> to vector<128x16xf32>
    %109 = arith.addf %85, %108 : vector<128x16xf32>
    %110 = math.tanh %109 : vector<128x16xf32>
    %111 = arith.truncf %110 : vector<128x16xf32> to vector<128x16xbf16>
    %c0_69 = arith.constant 0 : index
    %c0_70 = arith.constant 0 : index
    %112 = vector.load %arg9[%c0_69, %c0_70] : memref<16x1xbf16, #tpu.memory_space<vmem>>, vector<16x1xbf16>
    %cst_71 = arith.constant dense<0.000000e+00> : vector<128x1xf32>
    %113 = tpu.matmul %111, %112, %cst_71 {dimension_numbers = #tpu.dot_dimension_numbers<[1], [0], [0], [1], [0, 0, 1, 1], [], []>} : vector<128x16xbf16>, vector<16x1xbf16>, vector<128x1xf32> -> vector<128x1xf32>
    %114 = vector.extract_strided_slice %15 {offsets = [4, 0], sizes = [1, 16], strides = [1, 1]} : vector<8x16xf32> to vector<1x16xf32>
    %115 = vector.broadcast %114 : vector<1x16xf32> to vector<128x16xf32>
    %116 = arith.addf %85, %115 : vector<128x16xf32>
    %117 = math.tanh %116 : vector<128x16xf32>
    %118 = arith.truncf %117 : vector<128x16xf32> to vector<128x16xbf16>
    %c0_72 = arith.constant 0 : index
    %c0_73 = arith.constant 0 : index
    %119 = vector.load %arg9[%c0_72, %c0_73] : memref<16x1xbf16, #tpu.memory_space<vmem>>, vector<16x1xbf16>
    %cst_74 = arith.constant dense<0.000000e+00> : vector<128x1xf32>
    %120 = tpu.matmul %118, %119, %cst_74 {dimension_numbers = #tpu.dot_dimension_numbers<[1], [0], [0], [1], [0, 0, 1, 1], [], []>} : vector<128x16xbf16>, vector<16x1xbf16>, vector<128x1xf32> -> vector<128x1xf32>
    %121 = vector.extract_strided_slice %15 {offsets = [5, 0], sizes = [1, 16], strides = [1, 1]} : vector<8x16xf32> to vector<1x16xf32>
    %122 = vector.broadcast %121 : vector<1x16xf32> to vector<128x16xf32>
    %123 = arith.addf %85, %122 : vector<128x16xf32>
    %124 = math.tanh %123 : vector<128x16xf32>
    %125 = arith.truncf %124 : vector<128x16xf32> to vector<128x16xbf16>
    %c0_75 = arith.constant 0 : index
    %c0_76 = arith.constant 0 : index
    %126 = vector.load %arg9[%c0_75, %c0_76] : memref<16x1xbf16, #tpu.memory_space<vmem>>, vector<16x1xbf16>
    %cst_77 = arith.constant dense<0.000000e+00> : vector<128x1xf32>
    %127 = tpu.matmul %125, %126, %cst_77 {dimension_numbers = #tpu.dot_dimension_numbers<[1], [0], [0], [1], [0, 0, 1, 1], [], []>} : vector<128x16xbf16>, vector<16x1xbf16>, vector<128x1xf32> -> vector<128x1xf32>
    %128 = vector.extract_strided_slice %15 {offsets = [6, 0], sizes = [1, 16], strides = [1, 1]} : vector<8x16xf32> to vector<1x16xf32>
    %129 = vector.broadcast %128 : vector<1x16xf32> to vector<128x16xf32>
    %130 = arith.addf %85, %129 : vector<128x16xf32>
    %131 = math.tanh %130 : vector<128x16xf32>
    %132 = arith.truncf %131 : vector<128x16xf32> to vector<128x16xbf16>
    %c0_78 = arith.constant 0 : index
    %c0_79 = arith.constant 0 : index
    %133 = vector.load %arg9[%c0_78, %c0_79] : memref<16x1xbf16, #tpu.memory_space<vmem>>, vector<16x1xbf16>
    %cst_80 = arith.constant dense<0.000000e+00> : vector<128x1xf32>
    %134 = tpu.matmul %132, %133, %cst_80 {dimension_numbers = #tpu.dot_dimension_numbers<[1], [0], [0], [1], [0, 0, 1, 1], [], []>} : vector<128x16xbf16>, vector<16x1xbf16>, vector<128x1xf32> -> vector<128x1xf32>
    %135 = vector.extract_strided_slice %15 {offsets = [7, 0], sizes = [1, 16], strides = [1, 1]} : vector<8x16xf32> to vector<1x16xf32>
    %136 = vector.broadcast %135 : vector<1x16xf32> to vector<128x16xf32>
    %137 = arith.addf %85, %136 : vector<128x16xf32>
    %138 = math.tanh %137 : vector<128x16xf32>
    %139 = arith.truncf %138 : vector<128x16xf32> to vector<128x16xbf16>
    %c0_81 = arith.constant 0 : index
    %c0_82 = arith.constant 0 : index
    %140 = vector.load %arg9[%c0_81, %c0_82] : memref<16x1xbf16, #tpu.memory_space<vmem>>, vector<16x1xbf16>
    %cst_83 = arith.constant dense<0.000000e+00> : vector<128x1xf32>
    %141 = tpu.matmul %139, %140, %cst_83 {dimension_numbers = #tpu.dot_dimension_numbers<[1], [0], [0], [1], [0, 0, 1, 1], [], []>} : vector<128x16xbf16>, vector<16x1xbf16>, vector<128x1xf32> -> vector<128x1xf32>
    %142 = tpu.concatenate %92, %99, %106, %113, %120, %127, %134, %141 in 1 : vector<128x1xf32>, vector<128x1xf32>, vector<128x1xf32>, vector<128x1xf32>, vector<128x1xf32>, vector<128x1xf32>, vector<128x1xf32>, vector<128x1xf32> -> vector<128x8xf32>
    %143 = tpu.transpose %142, [1, 0] : vector<128x8xf32> -> vector<8x128xf32>
    %c0_84 = arith.constant 0 : index
    %c0_85 = arith.constant 0 : index
    %144 = vector.load %arg10[%c0_84, %c0_85] : memref<1x1xf32, #tpu.memory_space<vmem>>, vector<1x1xf32>
    %145 = vector.broadcast %144 : vector<1x1xf32> to vector<8x128xf32>
    %146 = arith.addf %143, %145 : vector<8x128xf32>
    %147 = tpu.iota {dimensions = array<i32: 1>} : vector<8x128xi32>
    %c16_i32 = arith.constant 16 : i32
    %c0_i32 = arith.constant 0 : i32
    %148 = arith.cmpi eq, %c16_i32, %c0_i32 : i32
    %c1_i32 = arith.constant 1 : i32
    %149 = arith.select %148, %c1_i32, %c16_i32 : i32
    %150 = vector.broadcast %149 : i32 to vector<8x128xi32>
    %151 = arith.remsi %147, %150 : vector<8x128xi32>
    %c0_i32_86 = arith.constant 0 : i32
    %152 = vector.broadcast %c0_i32_86 : i32 to vector<8x128xi32>
    %153 = arith.cmpi ne, %151, %152 : vector<8x128xi32>
    %c0_i32_87 = arith.constant 0 : i32
    %154 = vector.broadcast %c0_i32_87 : i32 to vector<8x128xi32>
    %155 = arith.cmpi slt, %151, %154 : vector<8x128xi32>
    %c0_i32_88 = arith.constant 0 : i32
    %156 = arith.cmpi slt, %149, %c0_i32_88 : i32
    %157 = vector.broadcast %156 : i1 to vector<8x128xi1>
    %158 = vector.broadcast %157 : vector<8x128xi1> to vector<8x128xi1>
    %159 = arith.xori %155, %158 : vector<8x128xi1>
    %160 = arith.andi %159, %153 : vector<8x128xi1>
    %161 = vector.broadcast %149 : i32 to vector<8x128xi32>
    %162 = arith.addi %151, %161 : vector<8x128xi32>
    %163 = arith.select %160, %162, %151 : vector<8x128xi1>, vector<8x128xi32>
    %164 = arith.index_cast %arg0 : i32 to index
    %165 = memref.load %arg1[%164] : memref<2xi32, #tpu.memory_space<smem>>
    %166 = vector.broadcast %165 : i32 to vector<8x128xi32>
    %167 = arith.cmpi slt, %163, %166 : vector<8x128xi32>
    %cst_89 = arith.constant 0xFF800000 : f32
    %168 = vector.broadcast %cst_89 : f32 to vector<8x128xf32>
    %169 = arith.select %167, %146, %168 : vector<8x128xi1>, vector<8x128xf32>
    %cst_90 = arith.constant dense<0xFF800000> : vector<8xf32>
    %170 = vector.multi_reduction <maximumf>, %169, %cst_90 [1] : vector<8x128xf32> to vector<8xf32>
    %171 = vector.shape_cast %170 : vector<8xf32> to vector<8x1xf32>
    %172 = vector.broadcast %171 : vector<8x1xf32> to vector<8x128xf32>
    %173 = arith.subf %169, %172 : vector<8x128xf32>
    %174 = math.exp %173 : vector<8x128xf32>
    %cst_91 = arith.constant dense<0.000000e+00> : vector<8xf32>
    %175 = vector.multi_reduction <add>, %174, %cst_91 [1] : vector<8x128xf32> to vector<8xf32>
    %176 = vector.shape_cast %175 : vector<8xf32> to vector<8x1xf32>
    %177 = tpu.reciprocal %176 {approx = true} : vector<8x1xf32> -> vector<8x1xf32>
    %178 = vector.broadcast %177 : vector<8x1xf32> to vector<8x128xf32>
    %179 = arith.mulf %174, %178 : vector<8x128xf32>
    %180 = arith.truncf %179 : vector<8x128xf32> to vector<8x128xbf16>
    %cst_92 = arith.constant dense<0.000000e+00> : vector<8x32xf32>
    %181 = tpu.matmul %180, %49, %cst_92 {dimension_numbers = #tpu.dot_dimension_numbers<[1], [0], [0], [1], [0, 0, 1, 1], [], []>} : vector<8x128xbf16>, vector<128x32xbf16>, vector<8x32xf32> -> vector<8x32xf32>
    %c0_93 = arith.constant 0 : index
    %c0_94 = arith.constant 0 : index
    %182 = vector.load %arg11[%c0_93, %c0_94] : memref<128x128xbf16, #tpu.memory_space<vmem>>, vector<128x128xbf16>
    %cst_95 = arith.constant dense<0.000000e+00> : vector<8x128xf32>
    %183 = tpu.matmul %7, %182, %cst_95 {dimension_numbers = #tpu.dot_dimension_numbers<[1], [0], [0], [1], [0, 0, 1, 1], [], []>} : vector<8x128xbf16>, vector<128x128xbf16>, vector<8x128xf32> -> vector<8x128xf32>
    %184 = arith.truncf %181 : vector<8x32xf32> to vector<8x32xbf16>
    %c0_96 = arith.constant 0 : index
    %c0_97 = arith.constant 0 : index
    %185 = vector.load %arg12[%c0_96, %c0_97] : memref<32x128xbf16, #tpu.memory_space<vmem>>, vector<32x128xbf16>
    %cst_98 = arith.constant dense<0.000000e+00> : vector<8x128xf32>
    %186 = tpu.matmul %184, %185, %cst_98 {dimension_numbers = #tpu.dot_dimension_numbers<[1], [0], [0], [1], [0, 0, 1, 1], [], []>} : vector<8x32xbf16>, vector<32x128xbf16>, vector<8x128xf32> -> vector<8x128xf32>
    %187 = arith.addf %183, %186 : vector<8x128xf32>
    %c0_99 = arith.constant 0 : index
    %c0_100 = arith.constant 0 : index
    %188 = vector.load %arg13[%c0_99, %c0_100] : memref<32x128xbf16, #tpu.memory_space<vmem>>, vector<32x128xbf16>
    %cst_101 = arith.constant dense<0.000000e+00> : vector<1x128xf32>
    %189 = tpu.matmul %10, %188, %cst_101 {dimension_numbers = #tpu.dot_dimension_numbers<[1], [0], [0], [1], [0, 0, 1, 1], [], []>} : vector<1x32xbf16>, vector<32x128xbf16>, vector<1x128xf32> -> vector<1x128xf32>
    %190 = vector.broadcast %189 : vector<1x128xf32> to vector<8x128xf32>
    %191 = arith.addf %187, %190 : vector<8x128xf32>
    %c0_102 = arith.constant 0 : index
    %c0_103 = arith.constant 0 : index
    %192 = vector.load %arg14[%c0_102, %c0_103] : memref<1x128xf32, #tpu.memory_space<vmem>>, vector<1x128xf32>
    %193 = vector.broadcast %192 : vector<1x128xf32> to vector<8x128xf32>
    %194 = arith.addf %191, %193 : vector<8x128xf32>
    %c0_104 = arith.constant 0 : index
    %c0_105 = arith.constant 0 : index
    %c0_106 = arith.constant 0 : index
    %195 = vector.load %arg15[%c0_104, %c0_105, %c0_106] : memref<1x8x128xf32, #tpu.memory_space<vmem>>, vector<1x8x128xf32>
    %196 = vector.shape_cast %195 : vector<1x8x128xf32> to vector<8x128xf32>
    %197 = vector.shape_cast %194 : vector<8x128xf32> to vector<1x8x128xf32>
    tpu.vector_store %arg15[%c0_104, %c0_105, %c0_106], %197 {strides = array<i32>} : memref<1x8x128xf32, #tpu.memory_space<vmem>>, vector<1x8x128xf32>,
    return
  }
  func.func @transform_0(%arg0: i32, %arg1: memref<2xi32, #tpu.memory_space<smem>>) -> (i32, i32, i32) {
    %c0_i32 = arith.constant 0 : i32
    %c0_i32_0 = arith.constant 0 : i32
    %c0_i32_1 = arith.constant 0 : i32
    return %arg0, %c0_i32, %c0_i32_0 : i32, i32, i32
  }
  func.func @transform_1(%arg0: i32, %arg1: memref<2xi32, #tpu.memory_space<smem>>) -> (i32, i32, i32, i32) {
    %c0_i32 = arith.constant 0 : i32
    %c0_i32_0 = arith.constant 0 : i32
    %c0_i32_1 = arith.constant 0 : i32
    %c0_i32_2 = arith.constant 0 : i32
    return %arg0, %c0_i32, %c0_i32_0, %c0_i32_1 : i32, i32, i32, i32
  }
  func.func @transform_2(%arg0: i32, %arg1: memref<2xi32, #tpu.memory_space<smem>>) -> (i32, i32, i32) {
    %c0_i32 = arith.constant 0 : i32
    %c0_i32_0 = arith.constant 0 : i32
    %c0_i32_1 = arith.constant 0 : i32
    return %arg0, %c0_i32, %c0_i32_0 : i32, i32, i32
  }
  func.func @transform_3(%arg0: i32, %arg1: memref<2xi32, #tpu.memory_space<smem>>) -> (i32, i32) {
    %c0_i32 = arith.constant 0 : i32
    %c0_i32_0 = arith.constant 0 : i32
    %c0_i32_1 = arith.constant 0 : i32
    return %c0_i32, %c0_i32_0 : i32, i32
  }
  func.func @transform_4(%arg0: i32, %arg1: memref<2xi32, #tpu.memory_space<smem>>) -> (i32, i32) {
    %c0_i32 = arith.constant 0 : i32
    %c0_i32_0 = arith.constant 0 : i32
    %c0_i32_1 = arith.constant 0 : i32
    return %c0_i32, %c0_i32_0 : i32, i32
  }
  func.func @transform_5(%arg0: i32, %arg1: memref<2xi32, #tpu.memory_space<smem>>) -> (i32, i32, i32) {
    %c0_i32 = arith.constant 0 : i32
    %c0_i32_0 = arith.constant 0 : i32
    %c0_i32_1 = arith.constant 0 : i32
    %c0_i32_2 = arith.constant 0 : i32
    return %c0_i32, %c0_i32_0, %c0_i32_1 : i32, i32, i32
  }
  func.func @transform_6(%arg0: i32, %arg1: memref<2xi32, #tpu.memory_space<smem>>) -> (i32, i32) {
    %c0_i32 = arith.constant 0 : i32
    %c0_i32_0 = arith.constant 0 : i32
    %c0_i32_1 = arith.constant 0 : i32
    return %c0_i32, %c0_i32_0 : i32, i32
  }
  func.func @transform_7(%arg0: i32, %arg1: memref<2xi32, #tpu.memory_space<smem>>) -> (i32, i32) {
    %c0_i32 = arith.constant 0 : i32
    %c0_i32_0 = arith.constant 0 : i32
    %c0_i32_1 = arith.constant 0 : i32
    return %c0_i32, %c0_i32_0 : i32, i32
  }
  func.func @transform_8(%arg0: i32, %arg1: memref<2xi32, #tpu.memory_space<smem>>) -> (i32, i32) {
    %c0_i32 = arith.constant 0 : i32
    %c0_i32_0 = arith.constant 0 : i32
    %c0_i32_1 = arith.constant 0 : i32
    return %c0_i32, %c0_i32_0 : i32, i32
  }
  func.func @transform_9(%arg0: i32, %arg1: memref<2xi32, #tpu.memory_space<smem>>) -> (i32, i32) {
    %c0_i32 = arith.constant 0 : i32
    %c0_i32_0 = arith.constant 0 : i32
    %c0_i32_1 = arith.constant 0 : i32
    return %c0_i32, %c0_i32_0 : i32, i32
  }
  func.func @transform_10(%arg0: i32, %arg1: memref<2xi32, #tpu.memory_space<smem>>) -> (i32, i32) {
    %c0_i32 = arith.constant 0 : i32
    %c0_i32_0 = arith.constant 0 : i32
    %c0_i32_1 = arith.constant 0 : i32
    return %c0_i32, %c0_i32_0 : i32, i32
  }
  func.func @transform_11(%arg0: i32, %arg1: memref<2xi32, #tpu.memory_space<smem>>) -> (i32, i32) {
    %c0_i32 = arith.constant 0 : i32
    %c0_i32_0 = arith.constant 0 : i32
    %c0_i32_1 = arith.constant 0 : i32
    return %c0_i32, %c0_i32_0 : i32, i32
  }
  func.func @transform_12(%arg0: i32, %arg1: memref<2xi32, #tpu.memory_space<smem>>) -> (i32, i32) {
    %c0_i32 = arith.constant 0 : i32
    %c0_i32_0 = arith.constant 0 : i32
    %c0_i32_1 = arith.constant 0 : i32
    return %c0_i32, %c0_i32_0 : i32, i32
  }
  func.func @transform_13(%arg0: i32, %arg1: memref<2xi32, #tpu.memory_space<smem>>) -> (i32, i32, i32) {
    %c0_i32 = arith.constant 0 : i32
    %c0_i32_0 = arith.constant 0 : i32
    %c0_i32_1 = arith.constant 0 : i32
    return %arg0, %c0_i32, %c0_i32_0 : i32, i32, i32
  }
}

</mosaic_0001>

<llo_original>
// kernel: sar_head_forward.4
$region0: #{sar_head_forward.4}
  #allocation0 [shape = 'u32[]', space=smem, size = 0x4, offset = 0x4, fixed_abs, tag = 'smem constant byte address 0x4 - core index']
  #allocation1 [shape = 'u32[144,128]{1,0:T(1,128)}', space=vmem, size = 0x12000, scoped, tag = 'internal scratch']
  %s0 = inlined_call_operand.vmem [shape: f32[2,8,32], index: 0, kind: input, shape index: {}]
  %s1 = inlined_call_operand.vmem [shape: f32[32,128], index: 1, kind: input, shape index: {}]
  %s2 = inlined_call_operand.vmem [shape: f32[32,128], index: 2, kind: input, shape index: {}]
  %s3 = inlined_call_operand.vmem [shape: f32[1,128], index: 3, kind: input, shape index: {}]
  %s4 = inlined_call_operand.vmem [shape: f32[32,128], index: 4, kind: input, shape index: {}]
  %s5 = inlined_call_operand.vmem [shape: f32[32,128], index: 5, kind: input, shape index: {}]
  %s6 = inlined_call_operand.vmem [shape: f32[1,128], index: 6, kind: input, shape index: {}]
  %s7 = inlined_call_operand.vmem [shape: f32[2,8,128], index: 7, kind: output, shape index: {}]
  %s8 = sld [smem:[#allocation0]]
  $region38: #{sar_head_forward.4} parent=0
    _
  %s10 = ssub.s32 1, %s8
  %s11 = scalar_select 0, %s10, %s8
  // Predicated region
  $region2: #{sar_head_forward.4} parent=0 // pred_check
    _
  $region3: #{sar_head_forward.4} parent=0 // pred_check_branch
    %13 = sbr.rel (0) target = $region5
  $region4: #{sar_head_forward.4} parent=0 // pred_region
    _
  $region5: #{sar_head_forward.4} parent=0 // pred_fallthru
    _
  // Predicated region
  $region6: #{sar_head_forward.4} parent=0 // pred_check
    _
  $region7: #{sar_head_forward.4} parent=0 // pred_check_branch
    %15 = sbr.rel (0) target = $region9
  $region8: #{sar_head_forward.4} parent=0 // pred_region
    _
  $region9: #{sar_head_forward.4} parent=0 // pred_fallthru
    _
  // Predicated region
  $region10: #{sar_head_forward.4} parent=0 // pred_check
    _
  $region11: #{sar_head_forward.4} parent=0 // pred_check_branch
    %17 = sbr.rel (0) target = $region13
  $region12: #{sar_head_forward.4} parent=0 // pred_region
    _
  $region13: #{sar_head_forward.4} parent=0 // pred_fallthru
    _
  // Predicated region
  $region14: #{sar_head_forward.4} parent=0 // pred_check
    _
  $region15: #{sar_head_forward.4} parent=0 // pred_check_branch
    %19 = sbr.rel (0) target = $region17
  $region16: #{sar_head_forward.4} parent=0 // pred_region
    _
  $region17: #{sar_head_forward.4} parent=0 // pred_fallthru
    _
  // Predicated region
  $region18: #{sar_head_forward.4} parent=0 // pred_check
    _
  $region19: #{sar_head_forward.4} parent=0 // pred_check_branch
    %21 = sbr.rel (0) target = $region21
  $region20: #{sar_head_forward.4} parent=0 // pred_region
    _
  $region21: #{sar_head_forward.4} parent=0 // pred_fallthru
    _
  // Predicated region
  $region22: #{sar_head_forward.4} parent=0 // pred_check
    _
  $region23: #{sar_head_forward.4} parent=0 // pred_check_branch
    %23 = sbr.rel (0) target = $region25
  $region24: #{sar_head_forward.4} parent=0 // pred_region
    _
  $region25: #{sar_head_forward.4} parent=0 // pred_fallthru
    _
  // Predicated region
  $region26: #{sar_head_forward.4} parent=0 // pred_check
    _
  $region27: #{sar_head_forward.4} parent=0 // pred_check_branch
    %25 = sbr.rel (0) target = $region29
  $region28: #{sar_head_forward.4} parent=0 // pred_region
    _
  $region29: #{sar_head_forward.4} parent=0 // pred_fallthru
    _
  %v26 = vld [vmem:[%s0] sm:$0xff]
  %v27 = vld [vmem:[%s0 + $0x8] sm:$0xff]
  %v28 = vld [vmem:[%s1] sm:$0xff]
  %v29 = vld [vmem:[%s1 + $0x8] sm:$0xff]
  %v30 = vld [vmem:[%s1 + $0x10] sm:$0xff]
  %v31 = vld [vmem:[%s1 + $0x18] sm:$0xff]
  %v32 = vld [vmem:[%s2] sm:$0xff]
  %v33 = vld [vmem:[%s2 + $0x8] sm:$0xff]
  %v34 = vld [vmem:[%s2 + $0x10] sm:$0xff]
  %v35 = vld [vmem:[%s2 + $0x18] sm:$0xff]
  %v36 = vld [vmem:[%s3] sm:$0x1]
  %v38 = vlaneseq
  %v39 = vshrl.u32 %v38, 7
  %v40 = vsub.s32 0, %v39
  %v41 = vrot.slane %v36, %v40
  %vm43 = vcmask 261120
  %v45 = vsel %vm43, %v26, 0
  %v48 = vsel %vm43, %v27, 0
  %50 = vmatprep.subr.mxu0 0.0
  %51 = vmatpush1.msra.mxu0 %v28
  %52 = vmatprep.subr.mxu0 0.0
  %53 = vmatpush1.msra.mxu0 %v29
  %54 = vmatprep.subr.mxu0 0.0
  %55 = vmatpush1.msra.mxu0 %v30
  %56 = vmatprep.subr.mxu0 0.0
  %57 = vmatpush1.msra.mxu0 %v31
  %58 = vmatprep.subr.mxu0 0.0
  %59 = vmatpush1.msra.mxu0 0.0
  %60 = vmatprep.subr.mxu0 0.0
  %61 = vmatpush1.msra.mxu0 0.0
  %62 = vmatprep.subr.mxu0 0.0
  %63 = vmatpush1.msra.mxu0 0.0
  %64 = vmatprep.subr.mxu0 0.0
  %65 = vmatpush1.msra.mxu0 0.0
  %66 = vmatprep.subr.mxu0 0.0
  %67 = vmatpush1.msra.mxu0 0.0
  %68 = vmatprep.subr.mxu0 0.0
  %69 = vmatpush1.msra.mxu0 0.0
  %70 = vmatprep.subr.mxu0 0.0
  %71 = vmatpush1.msra.mxu0 0.0
  %72 = vmatprep.subr.mxu0 0.0
  %73 = vmatpush1.msra.mxu0 0.0
  %74 = vmatprep.subr.mxu0 0.0
  %75 = vmatpush1.msra.mxu0 0.0
  %76 = vmatprep.subr.mxu0 0.0
  %77 = vmatpush1.msra.mxu0 0.0
  %78 = vmatprep.subr.mxu0 0.0
  %79 = vmatpush1.msra.mxu0 0.0
  %80 = vmatprep.subr.mxu0 0.0
  %81 = vmatpush1.msra.mxu0 0.0
  %82 = vmatprep.subr.mxu0 0.0
  %83 = vmatpush1.msra.mxu0 0.0
  %84 = vmatprep.subr.mxu0 0.0
  %85 = vmatpush1.msra.mxu0 0.0
  %86 = vmatprep.subr.mxu0 0.0
  %87 = vmatpush1.msra.mxu0 0.0
  %88 = vmatprep.subr.mxu0 0.0
  %89 = vmatpush1.msra.mxu0 0.0
  %90 = vmatprep.subr.mxu0 0.0
  %91 = vmatpush1.msra.mxu0 0.0
  %92 = vmatprep.subr.mxu0 0.0
  %93 = vmatpush1.msra.mxu0 0.0
  %94 = vmatprep.subr.mxu0 0.0
  %95 = vmatpush1.msra.mxu0 0.0
  %96 = vmatprep.subr.mxu0 0.0
  %97 = vmatpush1.msra.mxu0 0.0
  %98 = vmatprep.subr.mxu0 0.0
  %99 = vmatpush1.msra.mxu0 0.0
  %100 = vmatprep.subr.mxu0 0.0
  %101 = vmatpush1.msra.mxu0 0.0
  %102 = vmatprep.subr.mxu0 0.0
  %103 = vmatpush1.msra.mxu0 0.0
  %104 = vmatprep.subr.mxu0 0.0
  %105 = vmatpush1.msra.mxu0 0.0
  %106 = vmatprep.subr.mxu0 0.0
  %107 = vmatpush1.msra.mxu0 0.0
  %108 = vmatprep.subr.mxu0 0.0
  %109 = vmatpush1.msra.mxu0 0.0
  %110 = vmatprep.subr.mxu0 0.0
  %111 = vmatpush1.msra.mxu0 0.0
  %112 = vmatprep.subr.mxu0 0.0
  %113 = vmatpush1.msra.mxu0 0.0
  %114 = vmatprep.mubr.f32.mxu0 0.0
  %115 = vmatmul.mubr.f32.gmra.mrb[0].mxu0 %v45
  %v116 = vpop.f32.mrb[0].mxu0
  %v117 = vadd.f32 %v41, %v116
  %v118 = vpop.f32.mrb[0].mxu0
  %119 = vmatprep.mubr.f32.mxu0 0.0
  %120 = vmatmul.mubr.f32.gmra.mrb[0].mxu0 %v48
  %v121 = vpop.f32.mrb[0].mxu0
  %v122 = vadd.f32 %v41, %v121
  %v123 = vpop.f32.mrb[0].mxu0
  %124 = vdwg.mxu0
  %v126 = vsel %vm43, 0.0, 0
  %128 = vmatprep.subr.mxu0 0.0
  %129 = vmatpush1.msra.mxu0 %v32
  %130 = vmatprep.subr.mxu0 0.0
  %131 = vmatpush1.msra.mxu0 %v33
  %132 = vmatprep.subr.mxu0 0.0
  %133 = vmatpush1.msra.mxu0 %v34
  %134 = vmatprep.subr.mxu0 0.0
  %135 = vmatpush1.msra.mxu0 %v35
  %136 = vmatprep.subr.mxu0 0.0
  %137 = vmatpush1.msra.mxu0 0.0
  %138 = vmatprep.subr.mxu0 0.0
  %139 = vmatpush1.msra.mxu0 0.0
  %140 = vmatprep.subr.mxu0 0.0
  %141 = vmatpush1.msra.mxu0 0.0
  %142 = vmatprep.subr.mxu0 0.0
  %143 = vmatpush1.msra.mxu0 0.0
  %144 = vmatprep.subr.mxu0 0.0
  %145 = vmatpush1.msra.mxu0 0.0
  %146 = vmatprep.subr.mxu0 0.0
  %147 = vmatpush1.msra.mxu0 0.0
  %148 = vmatprep.subr.mxu0 0.0
  %149 = vmatpush1.msra.mxu0 0.0
  %150 = vmatprep.subr.mxu0 0.0
  %151 = vmatpush1.msra.mxu0 0.0
  %152 = vmatprep.subr.mxu0 0.0
  %153 = vmatpush1.msra.mxu0 0.0
  %154 = vmatprep.subr.mxu0 0.0
  %155 = vmatpush1.msra.mxu0 0.0
  %156 = vmatprep.subr.mxu0 0.0
  %157 = vmatpush1.msra.mxu0 0.0
  %158 = vmatprep.subr.mxu0 0.0
  %159 = vmatpush1.msra.mxu0 0.0
  %160 = vmatprep.subr.mxu0 0.0
  %161 = vmatpush1.msra.mxu0 0.0
  %162 = vmatprep.subr.mxu0 0.0
  %163 = vmatpush1.msra.mxu0 0.0
  %164 = vmatprep.subr.mxu0 0.0
  %165 = vmatpush1.msra.mxu0 0.0
  %166 = vmatprep.subr.mxu0 0.0
  %167 = vmatpush1.msra.mxu0 0.0
  %168 = vmatprep.subr.mxu0 0.0
  %169 = vmatpush1.msra.mxu0 0.0
  %170 = vmatprep.subr.mxu0 0.0
  %171 = vmatpush1.msra.mxu0 0.0
  %172 = vmatprep.subr.mxu0 0.0
  %173 = vmatpush1.msra.mxu0 0.0
  %174 = vmatprep.subr.mxu0 0.0
  %175 = vmatpush1.msra.mxu0 0.0
  %176 = vmatprep.subr.mxu0 0.0
  %177 = vmatpush1.msra.mxu0 0.0
  %178 = vmatprep.subr.mxu0 0.0
  %179 = vmatpush1.msra.mxu0 0.0
  %180 = vmatprep.subr.mxu0 0.0
  %181 = vmatpush1.msra.mxu0 0.0
  %182 = vmatprep.subr.mxu0 0.0
  %183 = vmatpush1.msra.mxu0 0.0
  %184 = vmatprep.subr.mxu0 0.0
  %185 = vmatpush1.msra.mxu0 0.0
  %186 = vmatprep.subr.mxu0 0.0
  %187 = vmatpush1.msra.mxu0 0.0
  %188 = vmatprep.subr.mxu0 0.0
  %189 = vmatpush1.msra.mxu0 0.0
  %190 = vmatprep.subr.mxu0 0.0
  %191 = vmatpush1.msra.mxu0 0.0
  %192 = vmatprep.mubr.f32.mxu0 0.0
  %193 = vmatmul.mubr.f32.gmra.mrb[0].mxu0 %v126
  %v194 = vpop.f32.mrb[0].mxu0
  %v195 = vadd.f32 0.0, %v194
  %v196 = vpop.f32.mrb[0].mxu0
  %197 = vdwg.mxu0
  %v198 = vadd.f32 %v117, %v195
  %v199 = vxor.u32 %v198, 2147483648
  %v200 = vmul.f32 %v199, 1.442695
  %v201 = vpow.pop %v200
  %v202 = vadd.f32 %v201, 1.0
  %v203 = vrcp.pop %v202
  %v204 = vmul.f32 1.0, %v203
  %v205 = vtanh.pop %v198
  %v206 = vmul.f32 %v204, 0.0
  %208 = vrot.lane.b32.xlu0 %v205, 64
  %v209 = vpop.permute.xlu0 %208
  %v211 = vmul.f32 %v204, %v209
  %213 = vrot.lane.b32.xlu0 %v211, 32
  %v214 = vpop.permute.xlu0 %213
  %v216 = vadd.f32 %v206, %v214
  %v217 = vtanh.pop %v216
  %219 = vrot.lane.b32.xlu0 %v217, 64
  %v220 = vpop.permute.xlu0 %219
  %v222 = vmul.f32 %v204, %v220
  %224 = vrot.lane.b32.xlu0 %v222, 32
  %v225 = vpop.permute.xlu0 %224
  %v226 = vsel %vm43, %v225, 0
  %228 = vmatprep.subr.mxu0 0.0
  %229 = vmatpush1.msra.mxu0 %v32
  %230 = vmatprep.subr.mxu0 0.0
  %231 = vmatpush1.msra.mxu0 %v33
  %232 = vmatprep.subr.mxu0 0.0
  %233 = vmatpush1.msra.mxu0 %v34
  %234 = vmatprep.subr.mxu0 0.0
  %235 = vmatpush1.msra.mxu0 %v35
  %236 = vmatprep.subr.mxu0 0.0
  %237 = vmatpush1.msra.mxu0 0.0
  %238 = vmatprep.subr.mxu0 0.0
  %239 = vmatpush1.msra.mxu0 0.0
  %240 = vmatprep.subr.mxu0 0.0
  %241 = vmatpush1.msra.mxu0 0.0
  %242 = vmatprep.subr.mxu0 0.0
  %243 = vmatpush1.msra.mxu0 0.0
  %244 = vmatprep.subr.mxu0 0.0
  %245 = vmatpush1.msra.mxu0 0.0
  %246 = vmatprep.subr.mxu0 0.0
  %247 = vmatpush1.msra.mxu0 0.0
  %248 = vmatprep.subr.mxu0 0.0
  %249 = vmatpush1.msra.mxu0 0.0
  %250 = vmatprep.subr.mxu0 0.0
  %251 = vmatpush1.msra.mxu0 0.0
  %252 = vmatprep.subr.mxu0 0.0
  %253 = vmatpush1.msra.mxu0 0.0
  %254 = vmatprep.subr.mxu0 0.0
  %255 = vmatpush1.msra.mxu0 0.0
  %256 = vmatprep.subr.mxu0 0.0
  %257 = vmatpush1.msra.mxu0 0.0
  %258 = vmatprep.subr.mxu0 0.0
  %259 = vmatpush1.msra.mxu0 0.0
  %260 = vmatprep.subr.mxu0 0.0
  %261 = vmatpush1.msra.mxu0 0.0
  %262 = vmatprep.subr.mxu0 0.0
  %263 = vmatpush1.msra.mxu0 0.0
  %264 = vmatprep.subr.mxu0 0.0
  %265 = vmatpush1.msra.mxu0 0.0
  %266 = vmatprep.subr.mxu0 0.0
  %267 = vmatpush1.msra.mxu0 0.0
  %268 = vmatprep.subr.mxu0 0.0
  %269 = vmatpush1.msra.mxu0 0.0
  %270 = vmatprep.subr.mxu0 0.0
  %271 = vmatpush1.msra.mxu0 0.0
  %272 = vmatprep.subr.mxu0 0.0
  %273 = vmatpush1.msra.mxu0 0.0
  %274 = vmatprep.subr.mxu0 0.0
  %275 = vmatpush1.msra.mxu0 0.0
  %276 = vmatprep.subr.mxu0 0.0
  %277 = vmatpush1.msra.mxu0 0.0
  %278 = vmatprep.subr.mxu0 0.0
  %279 = vmatpush1.msra.mxu0 0.0
  %280 = vmatprep.subr.mxu0 0.0
  %281 = vmatpush1.msra.mxu0 0.0
  %282 = vmatprep.subr.mxu0 0.0
  %283 = vmatpush1.msra.mxu0 0.0
  %284 = vmatprep.subr.mxu0 0.0
  %285 = vmatpush1.msra.mxu0 0.0
  %286 = vmatprep.subr.mxu0 0.0
  %287 = vmatpush1.msra.mxu0 0.0
  %288 = vmatprep.subr.mxu0 0.0
  %289 = vmatpush1.msra.mxu0 0.0
  %290 = vmatprep.subr.mxu0 0.0
  %291 = vmatpush1.msra.mxu0 0.0
  %292 = vmatprep.mubr.f32.mxu0 0.0
  %293 = vmatmul.mubr.f32.gmra.mrb[0].mxu0 %v226
  %v294 = vpop.f32.mrb[0].mxu0
  %v295 = vadd.f32 0.0, %v294
  %v296 = vpop.f32.mrb[0].mxu0
  %297 = vdwg.mxu0
  %v298 = vadd.f32 %v122, %v295
  %v299 = vxor.u32 %v298, 2147483648
  %v300 = vmul.f32 %v299, 1.442695
  %v301 = vpow.pop %v300
  %v302 = vadd.f32 %v301, 1.0
  %v303 = vrcp.pop %v302
  %v304 = vmul.f32 1.0, %v303
  %v305 = vtanh.pop %v298
  %v306 = vmul.f32 %v304, %v216
  %308 = vrot.lane.b32.xlu0 %v305, 64
  %v309 = vpop.permute.xlu0 %308
  %v311 = vmul.f32 %v304, %v309
  %313 = vrot.lane.b32.xlu0 %v311, 32
  %v314 = vpop.permute.xlu0 %313
  %v316 = vadd.f32 %v306, %v314
  %v317 = vtanh.pop %v316
  %319 = vrot.lane.b32.xlu0 %v317, 64
  %v320 = vpop.permute.xlu0 %319
  %v322 = vmul.f32 %v304, %v320
  %v323 = vld [vmem:[%s4] sm:$0xff]
  %v324 = vld [vmem:[%s4 + $0x8] sm:$0xff]
  %v325 = vld [vmem:[%s4 + $0x10] sm:$0xff]
  %v326 = vld [vmem:[%s4 + $0x18] sm:$0xff]
  %v327 = vld [vmem:[%s5] sm:$0xff]
  %v328 = vld [vmem:[%s5 + $0x8] sm:$0xff]
  %v329 = vld [vmem:[%s5 + $0x10] sm:$0xff]
  %v330 = vld [vmem:[%s5 + $0x18] sm:$0xff]
  %v331 = vld [vmem:[%s6] sm:$0x1]
  %v333 = vlaneseq
  %v334 = vshrl.u32 %v333, 7
  %v335 = vsub.s32 0, %v334
  %v336 = vrot.slane %v331, %v335
  %339 = vrot.lane.b32.xlu0 %v322, 32
  %v340 = vpop.permute.xlu0 %339
  %v341 = vsel %vm43, %v340, 0
  %343 = vmatprep.subr.mxu0 0.0
  %344 = vmatpush1.msra.mxu0 %v323
  %345 = vmatprep.subr.mxu0 0.0
  %346 = vmatpush1.msra.mxu0 %v324
  %347 = vmatprep.subr.mxu0 0.0
  %348 = vmatpush1.msra.mxu0 %v325
  %349 = vmatprep.subr.mxu0 0.0
  %350 = vmatpush1.msra.mxu0 %v326
  %351 = vmatprep.subr.mxu0 0.0
  %352 = vmatpush1.msra.mxu0 0.0
  %353 = vmatprep.subr.mxu0 0.0
  %354 = vmatpush1.msra.mxu0 0.0
  %355 = vmatprep.subr.mxu0 0.0
  %356 = vmatpush1.msra.mxu0 0.0
  %357 = vmatprep.subr.mxu0 0.0
  %358 = vmatpush1.msra.mxu0 0.0
  %359 = vmatprep.subr.mxu0 0.0
  %360 = vmatpush1.msra.mxu0 0.0
  %361 = vmatprep.subr.mxu0 0.0
  %362 = vmatpush1.msra.mxu0 0.0
  %363 = vmatprep.subr.mxu0 0.0
  %364 = vmatpush1.msra.mxu0 0.0
  %365 = vmatprep.subr.mxu0 0.0
  %366 = vmatpush1.msra.mxu0 0.0
  %367 = vmatprep.subr.mxu0 0.0
  %368 = vmatpush1.msra.mxu0 0.0
  %369 = vmatprep.subr.mxu0 0.0
  %370 = vmatpush1.msra.mxu0 0.0
  %371 = vmatprep.subr.mxu0 0.0
  %372 = vmatpush1.msra.mxu0 0.0
  %373 = vmatprep.subr.mxu0 0.0
  %374 = vmatpush1.msra.mxu0 0.0
  %375 = vmatprep.subr.mxu0 0.0
  %376 = vmatpush1.msra.mxu0 0.0
  %377 = vmatprep.subr.mxu0 0.0
  %378 = vmatpush1.msra.mxu0 0.0
  %379 = vmatprep.subr.mxu0 0.0
  %380 = vmatpush1.msra.mxu0 0.0
  %381 = vmatprep.subr.mxu0 0.0
  %382 = vmatpush1.msra.mxu0 0.0
  %383 = vmatprep.subr.mxu0 0.0
  %384 = vmatpush1.msra.mxu0 0.0
  %385 = vmatprep.subr.mxu0 0.0
  %386 = vmatpush1.msra.mxu0 0.0
  %387 = vmatprep.subr.mxu0 0.0
  %388 = vmatpush1.msra.mxu0 0.0
  %389 = vmatprep.subr.mxu0 0.0
  %390 = vmatpush1.msra.mxu0 0.0
  %391 = vmatprep.subr.mxu0 0.0
  %392 = vmatpush1.msra.mxu0 0.0
  %393 = vmatprep.subr.mxu0 0.0
  %394 = vmatpush1.msra.mxu0 0.0
  %395 = vmatprep.subr.mxu0 0.0
  %396 = vmatpush1.msra.mxu0 0.0
  %397 = vmatprep.subr.mxu0 0.0
  %398 = vmatpush1.msra.mxu0 0.0
  %399 = vmatprep.subr.mxu0 0.0
  %400 = vmatpush1.msra.mxu0 0.0
  %401 = vmatprep.subr.mxu0 0.0
  %402 = vmatpush1.msra.mxu0 0.0
  %403 = vmatprep.subr.mxu0 0.0
  %404 = vmatpush1.msra.mxu0 0.0
  %405 = vmatprep.subr.mxu0 0.0
  %406 = vmatpush1.msra.mxu0 0.0
  %407 = vmatprep.mubr.f32.mxu0 0.0
  %408 = vmatmul.mubr.f32.gmra.mrb[0].mxu0 %v226
  %v409 = vpop.f32.mrb[0].mxu0
  %v410 = vadd.f32 %v336, %v409
  %v411 = vpop.f32.mrb[0].mxu0
  %412 = vmatprep.mubr.f32.mxu0 0.0
  %413 = vmatmul.mubr.f32.gmra.mrb[0].mxu0 %v341
  %v414 = vpop.f32.mrb[0].mxu0
  %v415 = vadd.f32 %v336, %v414
  %v416 = vpop.f32.mrb[0].mxu0
  %417 = vdwg.mxu0
  %418 = vmatprep.subr.mxu0 0.0
  %419 = vmatpush1.msra.mxu0 %v327
  %420 = vmatprep.subr.mxu0 0.0
  %421 = vmatpush1.msra.mxu0 %v328
  %422 = vmatprep.subr.mxu0 0.0
  %423 = vmatpush1.msra.mxu0 %v329
  %424 = vmatprep.subr.mxu0 0.0
  %425 = vmatpush1.msra.mxu0 %v330
  %426 = vmatprep.subr.mxu0 0.0
  %427 = vmatpush1.msra.mxu0 0.0
  %428 = vmatprep.subr.mxu0 0.0
  %429 = vmatpush1.msra.mxu0 0.0
  %430 = vmatprep.subr.mxu0 0.0
  %431 = vmatpush1.msra.mxu0 0.0
  %432 = vmatprep.subr.mxu0 0.0
  %433 = vmatpush1.msra.mxu0 0.0
  %434 = vmatprep.subr.mxu0 0.0
  %435 = vmatpush1.msra.mxu0 0.0
  %436 = vmatprep.subr.mxu0 0.0
  %437 = vmatpush1.msra.mxu0 0.0
  %438 = vmatprep.subr.mxu0 0.0
  %439 = vmatpush1.msra.mxu0 0.0
  %440 = vmatprep.subr.mxu0 0.0
  %441 = vmatpush1.msra.mxu0 0.0
  %442 = vmatprep.subr.mxu0 0.0
  %443 = vmatpush1.msra.mxu0 0.0
  %444 = vmatprep.subr.mxu0 0.0
  %445 = vmatpush1.msra.mxu0 0.0
  %446 = vmatprep.subr.mxu0 0.0
  %447 = vmatpush1.msra.mxu0 0.0
  %448 = vmatprep.subr.mxu0 0.0
  %449 = vmatpush1.msra.mxu0 0.0
  %450 = vmatprep.subr.mxu0 0.0
  %451 = vmatpush1.msra.mxu0 0.0
  %452 = vmatprep.subr.mxu0 0.0
  %453 = vmatpush1.msra.mxu0 0.0
  %454 = vmatprep.subr.mxu0 0.0
  %455 = vmatpush1.msra.mxu0 0.0
  %456 = vmatprep.subr.mxu0 0.0
  %457 = vmatpush1.msra.mxu0 0.0
  %458 = vmatprep.subr.mxu0 0.0
  %459 = vmatpush1.msra.mxu0 0.0
  %460 = vmatprep.subr.mxu0 0.0
  %461 = vmatpush1.msra.mxu0 0.0
  %462 = vmatprep.subr.mxu0 0.0
  %463 = vmatpush1.msra.mxu0 0.0
  %464 = vmatprep.subr.mxu0 0.0
  %465 = vmatpush1.msra.mxu0 0.0
  %466 = vmatprep.subr.mxu0 0.0
  %467 = vmatpush1.msra.mxu0 0.0
  %468 = vmatprep.subr.mxu0 0.0
  %469 = vmatpush1.msra.mxu0 0.0
  %470 = vmatprep.subr.mxu0 0.0
  %471 = vmatpush1.msra.mxu0 0.0
  %472 = vmatprep.subr.mxu0 0.0
  %473 = vmatpush1.msra.mxu0 0.0
  %474 = vmatprep.subr.mxu0 0.0
  %475 = vmatpush1.msra.mxu0 0.0
  %476 = vmatprep.subr.mxu0 0.0
  %477 = vmatpush1.msra.mxu0 0.0
  %478 = vmatprep.subr.mxu0 0.0
  %479 = vmatpush1.msra.mxu0 0.0
  %480 = vmatprep.subr.mxu0 0.0
  %481 = vmatpush1.msra.mxu0 0.0
  %482 = vmatprep.mubr.f32.mxu0 0.0
  %483 = vmatmul.mubr.f32.gmra.mrb[0].mxu0 %v126
  %v484 = vpop.f32.mrb[0].mxu0
  %v485 = vadd.f32 0.0, %v484
  %v486 = vpop.f32.mrb[0].mxu0
  %487 = vdwg.mxu0
  %v488 = vadd.f32 %v410, %v485
  %v489 = vxor.u32 %v488, 2147483648
  %v490 = vmul.f32 %v489, 1.442695
  %v491 = vpow.pop %v490
  %v492 = vadd.f32 %v491, 1.0
  %v493 = vrcp.pop %v492
  %v494 = vmul.f32 1.0, %v493
  %v495 = vtanh.pop %v488
  %v496 = vmul.f32 %v494, 0.0
  %498 = vrot.lane.b32.xlu0 %v495, 64
  %v499 = vpop.permute.xlu0 %498
  %v501 = vmul.f32 %v494, %v499
  %503 = vrot.lane.b32.xlu0 %v501, 32
  %v504 = vpop.permute.xlu0 %503
  %v506 = vadd.f32 %v496, %v504
  %v507 = vtanh.pop %v506
  %509 = vrot.lane.b32.xlu0 %v507, 64
  %v510 = vpop.permute.xlu0 %509
  %v512 = vmul.f32 %v494, %v510
  %514 = vrot.lane.b32.xlu0 %v512, 32
  %v515 = vpop.permute.xlu0 %514
  %v516 = vsel %vm43, %v515, 0
  %518 = vmatprep.subr.mxu0 0.0
  %519 = vmatpush1.msra.mxu0 %v327
  %520 = vmatprep.subr.mxu0 0.0
  %521 = vmatpush1.msra.mxu0 %v328
  %522 = vmatprep.subr.mxu0 0.0
  %523 = vmatpush1.msra.mxu0 %v329
  %524 = vmatprep.subr.mxu0 0.0
  %525 = vmatpush1.msra.mxu0 %v330
  %526 = vmatprep.subr.mxu0 0.0
  %527 = vmatpush1.msra.mxu0 0.0
  %528 = vmatprep.subr.mxu0 0.0
  %529 = vmatpush1.msra.mxu0 0.0
  %530 = vmatprep.subr.mxu0 0.0
  %531 = vmatpush1.msra.mxu0 0.0
  %532 = vmatprep.subr.mxu0 0.0
  %533 = vmatpush1.msra.mxu0 0.0
  %534 = vmatprep.subr.mxu0 0.0
  %535 = vmatpush1.msra.mxu0 0.0
  %536 = vmatprep.subr.mxu0 0.0
  %537 = vmatpush1.msra.mxu0 0.0
  %538 = vmatprep.subr.mxu0 0.0
  %539 = vmatpush1.msra.mxu0 0.0
  %540 = vmatprep.subr.mxu0 0.0
  %541 = vmatpush1.msra.mxu0 0.0
  %542 = vmatprep.subr.mxu0 0.0
  %543 = vmatpush1.msra.mxu0 0.0
  %544 = vmatprep.subr.mxu0 0.0
  %545 = vmatpush1.msra.mxu0 0.0
  %546 = vmatprep.subr.mxu0 0.0
  %547 = vmatpush1.msra.mxu0 0.0
  %548 = vmatprep.subr.mxu0 0.0
  %549 = vmatpush1.msra.mxu0 0.0
  %550 = vmatprep.subr.mxu0 0.0
  %551 = vmatpush1.msra.mxu0 0.0
  %552 = vmatprep.subr.mxu0 0.0
  %553 = vmatpush1.msra.mxu0 0.0
  %554 = vmatprep.subr.mxu0 0.0
  %555 = vmatpush1.msra.mxu0 0.0
  %556 = vmatprep.subr.mxu0 0.0
  %557 = vmatpush1.msra.mxu0 0.0
  %558 = vmatprep.subr.mxu0 0.0
  %559 = vmatpush1.msra.mxu0 0.0
  %560 = vmatprep.subr.mxu0 0.0
  %561 = vmatpush1.msra.mxu0 0.0
  %562 = vmatprep.subr.mxu0 0.0
  %563 = vmatpush1.msra.mxu0 0.0
  %564 = vmatprep.subr.mxu0 0.0
  %565 = vmatpush1.msra.mxu0 0.0
  %566 = vmatprep.subr.mxu0 0.0
  %567 = vmatpush1.msra.mxu0 0.0
  %568 = vmatprep.subr.mxu0 0.0
  %569 = vmatpush1.msra.mxu0 0.0
  %570 = vmatprep.subr.mxu0 0.0
  %571 = vmatpush1.msra.mxu0 0.0
  %572 = vmatprep.subr.mxu0 0.0
  %573 = vmatpush1.msra.mxu0 0.0
  %574 = vmatprep.subr.mxu0 0.0
  %575 = vmatpush1.msra.mxu0 0.0
  %576 = vmatprep.subr.mxu0 0.0
  %577 = vmatpush1.msra.mxu0 0.0
  %578 = vmatprep.subr.mxu0 0.0
  %579 = vmatpush1.msra.mxu0 0.0
  %580 = vmatprep.subr.mxu0 0.0
  %581 = vmatpush1.msra.mxu0 0.0
  %582 = vmatprep.mubr.f32.mxu0 0.0
  %583 = vmatmul.mubr.f32.gmra.mrb[0].mxu0 %v516
  %v584 = vpop.f32.mrb[0].mxu0
  %v585 = vadd.f32 0.0, %v584
  %v586 = vpop.f32.mrb[0].mxu0
  %587 = vdwg.mxu0
  %v588 = vadd.f32 %v415, %v585
  %v589 = vxor.u32 %v588, 2147483648
  %v590 = vmul.f32 %v589, 1.442695
  %v591 = vpow.pop %v590
  %v592 = vadd.f32 %v591, 1.0
  %v593 = vrcp.pop %v592
  %v594 = vmul.f32 1.0, %v593
  %v595 = vtanh.pop %v588
  %v596 = vmul.f32 %v594, %v506
  %598 = vrot.lane.b32.xlu0 %v595, 64
  %v599 = vpop.permute.xlu0 %598
  %v601 = vmul.f32 %v594, %v599
  %603 = vrot.lane.b32.xlu0 %v601, 32
  %v604 = vpop.permute.xlu0 %603
  %v606 = vadd.f32 %v596, %v604
  %v607 = vtanh.pop %v606
  %609 = vrot.lane.b32.xlu0 %v607, 64
  %v610 = vpop.permute.xlu0 %609
  %v612 = vmul.f32 %v594, %v610
  %614 = vrot.lane.b32.xlu0 %v612, 32
  %v615 = vpop.permute.xlu0 %614
  %v618 = vsel %vm43, %v515, 0.0
  %v619 = vsel %vm43, %v615, 0.0
  %620 = vst [vmem:[%s7] sm:$0xff] %v618
  %621 = vst [vmem:[%s7 + $0x8] sm:$0xff] %v619
  // Predicated region
  $region30: #{sar_head_forward.4} parent=0 // pred_check
    _
  $region31: #{sar_head_forward.4} parent=0 // pred_check_branch
    %623 = sbr.rel (0) target = $region33
  $region32: #{sar_head_forward.4} parent=0 // pred_region
    _
  $region33: #{sar_head_forward.4} parent=0 // pred_fallthru
    _
  // Predicated region
  $region34: #{sar_head_forward.4} parent=0 // pred_check
    _
  $region35: #{sar_head_forward.4} parent=0 // pred_check_branch
    %625 = sbr.rel (0) target = $region37
  $region36: #{sar_head_forward.4} parent=0 // pred_region
    _
  $region37: #{sar_head_forward.4} parent=0 // pred_fallthru
    _

// kernel: sar_head_forward.3
$region0: #{sar_head_forward.3}
  #allocation0 [shape = 'u32[]', space=smem, size = 0x4, offset = 0x4, fixed_abs, tag = 'smem constant byte address 0x4 - core index']
  #allocation1 [shape = 'u32[144,128]{1,0:T(1,128)}', space=vmem, size = 0x12000, scoped, tag = 'internal scratch']
  %s0 = inlined_call_operand.vmem [shape: f32[2,16,32], index: 0, kind: input, shape index: {}]
  %s1 = inlined_call_operand.vmem [shape: f32[2,16], index: 1, kind: input, shape index: {}]
  %s2 = inlined_call_operand.vmem [shape: f32[32,128], index: 2, kind: input, shape index: {}]
  %s3 = inlined_call_operand.vmem [shape: f32[32,128], index: 3, kind: input, shape index: {}]
  %s4 = inlined_call_operand.vmem [shape: f32[1,128], index: 4, kind: input, shape index: {}]
  %s5 = inlined_call_operand.vmem [shape: f32[32,128], index: 5, kind: input, shape index: {}]
  %s6 = inlined_call_operand.vmem [shape: f32[32,128], index: 6, kind: input, shape index: {}]
  %s7 = inlined_call_operand.vmem [shape: f32[1,128], index: 7, kind: input, shape index: {}]
  %s8 = inlined_call_operand.vmem [shape: f32[32,32], index: 8, kind: input, shape index: {}]
  %s9 = inlined_call_operand.vmem [shape: f32[1,32], index: 9, kind: input, shape index: {}]
  %s10 = inlined_call_operand.vmem [shape: f32[2,32], index: 10, kind: output, shape index: {}]
  %s11 = sld [smem:[#allocation0]]
  $region50: #{sar_head_forward.3} parent=0
    _
  %s13 = ssub.s32 1, %s11
  %s14 = scalar_select 0, %s13, %s11
  // Predicated region
  $region2: #{sar_head_forward.3} parent=0 // pred_check
    _
  $region3: #{sar_head_forward.3} parent=0 // pred_check_branch
    %16 = sbr.rel (0) target = $region5
  $region4: #{sar_head_forward.3} parent=0 // pred_region
    _
  $region5: #{sar_head_forward.3} parent=0 // pred_fallthru
    _
  // Predicated region
  $region6: #{sar_head_forward.3} parent=0 // pred_check
    _
  $region7: #{sar_head_forward.3} parent=0 // pred_check_branch
    %18 = sbr.rel (0) target = $region9
  $region8: #{sar_head_forward.3} parent=0 // pred_region
    _
  $region9: #{sar_head_forward.3} parent=0 // pred_fallthru
    _
  // Predicated region
  $region10: #{sar_head_forward.3} parent=0 // pred_check
    _
  $region11: #{sar_head_forward.3} parent=0 // pred_check_branch
    %20 = sbr.rel (0) target = $region13
  $region12: #{sar_head_forward.3} parent=0 // pred_region
    _
  $region13: #{sar_head_forward.3} parent=0 // pred_fallthru
    _
  // Predicated region
  $region14: #{sar_head_forward.3} parent=0 // pred_check
    _
  $region15: #{sar_head_forward.3} parent=0 // pred_check_branch
    %22 = sbr.rel (0) target = $region17
  $region16: #{sar_head_forward.3} parent=0 // pred_region
    _
  $region17: #{sar_head_forward.3} parent=0 // pred_fallthru
    _
  // Predicated region
  $region18: #{sar_head_forward.3} parent=0 // pred_check
    _
  $region19: #{sar_head_forward.3} parent=0 // pred_check_branch
    %24 = sbr.rel (0) target = $region21
  $region20: #{sar_head_forward.3} parent=0 // pred_region
    _
  $region21: #{sar_head_forward.3} parent=0 // pred_fallthru
    _
  // Predicated region
  $region22: #{sar_head_forward.3} parent=0 // pred_check
    _
  $region23: #{sar_head_forward.3} parent=0 // pred_check_branch
    %26 = sbr.rel (0) target = $region25
  $region24: #{sar_head_forward.3} parent=0 // pred_region
    _
  $region25: #{sar_head_forward.3} parent=0 // pred_fallthru
    _
  // Predicated region
  $region26: #{sar_head_forward.3} parent=0 // pred_check
    _
  $region27: #{sar_head_forward.3} parent=0 // pred_check_branch
    %28 = sbr.rel (0) target = $region29
  $region28: #{sar_head_forward.3} parent=0 // pred_region
    _
  $region29: #{sar_head_forward.3} parent=0 // pred_fallthru
    _
  // Predicated region
  $region30: #{sar_head_forward.3} parent=0 // pred_check
    _
  $region31: #{sar_head_forward.3} parent=0 // pred_check_branch
    %30 = sbr.rel (0) target = $region33
  $region32: #{sar_head_forward.3} parent=0 // pred_region
    _
  $region33: #{sar_head_forward.3} parent=0 // pred_fallthru
    _
  // Predicated region
  $region34: #{sar_head_forward.3} parent=0 // pred_check
    _
  $region35: #{sar_head_forward.3} parent=0 // pred_check_branch
    %32 = sbr.rel (0) target = $region37
  $region36: #{sar_head_forward.3} parent=0 // pred_region
    _
  $region37: #{sar_head_forward.3} parent=0 // pred_fallthru
    _
  // Predicated region
  $region38: #{sar_head_forward.3} parent=0 // pred_check
    _
  $region39: #{sar_head_forward.3} parent=0 // pred_check_branch
    %34 = sbr.rel (0) target = $region41
  $region40: #{sar_head_forward.3} parent=0 // pred_region
    _
  $region41: #{sar_head_forward.3} parent=0 // pred_fallthru
    _
  %v35 = vld [vmem:[%s0] sm:$0xff]
  %v36 = vld [vmem:[%s0 + $0x8] sm:$0xff]
  %v37 = vld [vmem:[%s0 + $0x10] sm:$0xff]
  %v38 = vld [vmem:[%s0 + $0x18] sm:$0xff]
  %v39 = vld [vmem:[%s2] sm:$0xff]
  %v40 = vld [vmem:[%s2 + $0x8] sm:$0xff]
  %v41 = vld [vmem:[%s2 + $0x10] sm:$0xff]
  %v42 = vld [vmem:[%s2 + $0x18] sm:$0xff]
  %v43 = vld [vmem:[%s3] sm:$0xff]
  %v44 = vld [vmem:[%s3 + $0x8] sm:$0xff]
  %v45 = vld [vmem:[%s3 + $0x10] sm:$0xff]
  %v46 = vld [vmem:[%s3 + $0x18] sm:$0xff]
  %v47 = vld [vmem:[%s4] sm:$0x1]
  %v49 = vlaneseq
  %v50 = vshrl.u32 %v49, 7
  %v51 = vsub.s32 0, %v50
  %v52 = vrot.slane %v47, %v51
  %vm54 = vcmask 261120
  %v56 = vsel %vm54, %v35, 0
  %v59 = vsel %vm54, %v36, 0
  %v62 = vsel %vm54, %v37, 0
  %v65 = vsel %vm54, %v38, 0
  %67 = vmatprep.subr.mxu0 0.0
  %68 = vmatpush1.msra.mxu0 %v39
  %69 = vmatprep.subr.mxu0 0.0
  %70 = vmatpush1.msra.mxu0 %v40
  %71 = vmatprep.subr.mxu0 0.0
  %72 = vmatpush1.msra.mxu0 %v41
  %73 = vmatprep.subr.mxu0 0.0
  %74 = vmatpush1.msra.mxu0 %v42
  %75 = vmatprep.subr.mxu0 0.0
  %76 = vmatpush1.msra.mxu0 0.0
  %77 = vmatprep.subr.mxu0 0.0
  %78 = vmatpush1.msra.mxu0 0.0
  %79 = vmatprep.subr.mxu0 0.0
  %80 = vmatpush1.msra.mxu0 0.0
  %81 = vmatprep.subr.mxu0 0.0
  %82 = vmatpush1.msra.mxu0 0.0
  %83 = vmatprep.subr.mxu0 0.0
  %84 = vmatpush1.msra.mxu0 0.0
  %85 = vmatprep.subr.mxu0 0.0
  %86 = vmatpush1.msra.mxu0 0.0
  %87 = vmatprep.subr.mxu0 0.0
  %88 = vmatpush1.msra.mxu0 0.0
  %89 = vmatprep.subr.mxu0 0.0
  %90 = vmatpush1.msra.mxu0 0.0
  %91 = vmatprep.subr.mxu0 0.0
  %92 = vmatpush1.msra.mxu0 0.0
  %93 = vmatprep.subr.mxu0 0.0
  %94 = vmatpush1.msra.mxu0 0.0
  %95 = vmatprep.subr.mxu0 0.0
  %96 = vmatpush1.msra.mxu0 0.0
  %97 = vmatprep.subr.mxu0 0.0
  %98 = vmatpush1.msra.mxu0 0.0
  %99 = vmatprep.subr.mxu0 0.0
  %100 = vmatpush1.msra.mxu0 0.0
  %101 = vmatprep.subr.mxu0 0.0
  %102 = vmatpush1.msra.mxu0 0.0
  %103 = vmatprep.subr.mxu0 0.0
  %104 = vmatpush1.msra.mxu0 0.0
  %105 = vmatprep.subr.mxu0 0.0
  %106 = vmatpush1.msra.mxu0 0.0
  %107 = vmatprep.subr.mxu0 0.0
  %108 = vmatpush1.msra.mxu0 0.0
  %109 = vmatprep.subr.mxu0 0.0
  %110 = vmatpush1.msra.mxu0 0.0
  %111 = vmatprep.subr.mxu0 0.0
  %112 = vmatpush1.msra.mxu0 0.0
  %113 = vmatprep.subr.mxu0 0.0
  %114 = vmatpush1.msra.mxu0 0.0
  %115 = vmatprep.subr.mxu0 0.0
  %116 = vmatpush1.msra.mxu0 0.0
  %117 = vmatprep.subr.mxu0 0.0
  %118 = vmatpush1.msra.mxu0 0.0
  %119 = vmatprep.subr.mxu0 0.0
  %120 = vmatpush1.msra.mxu0 0.0
  %121 = vmatprep.subr.mxu0 0.0
  %122 = vmatpush1.msra.mxu0 0.0
  %123 = vmatprep.subr.mxu0 0.0
  %124 = vmatpush1.msra.mxu0 0.0
  %125 = vmatprep.subr.mxu0 0.0
  %126 = vmatpush1.msra.mxu0 0.0
  %127 = vmatprep.subr.mxu0 0.0
  %128 = vmatpush1.msra.mxu0 0.0
  %129 = vmatprep.subr.mxu0 0.0
  %130 = vmatpush1.msra.mxu0 0.0
  %131 = vmatprep.mubr.f32.mxu0 0.0
  %132 = vmatmul.mubr.f32.gmra.mrb[0].mxu0 %v56
  %v133 = vpop.f32.mrb[0].mxu0
  %v134 = vadd.f32 %v52, %v133
  %v135 = vpop.f32.mrb[0].mxu0
  %136 = vmatprep.mubr.f32.mxu0 0.0
  %137 = vmatmul.mubr.f32.gmra.mrb[0].mxu0 %v59
  %v138 = vpop.f32.mrb[0].mxu0
  %v139 = vadd.f32 %v52, %v138
  %v140 = vpop.f32.mrb[0].mxu0
  %141 = vmatprep.mubr.f32.mxu0 0.0
  %142 = vmatmul.mubr.f32.gmra.mrb[0].mxu0 %v62
  %v143 = vpop.f32.mrb[0].mxu0
  %v144 = vadd.f32 %v52, %v143
  %v145 = vpop.f32.mrb[0].mxu0
  %146 = vmatprep.mubr.f32.mxu0 0.0
  %147 = vmatmul.mubr.f32.gmra.mrb[0].mxu0 %v65
  %v148 = vpop.f32.mrb[0].mxu0
  %v149 = vadd.f32 %v52, %v148
  %v150 = vpop.f32.mrb[0].mxu0
  %151 = vdwg.mxu0
  %v153 = vsel %vm54, 0.0, 0
  %155 = vmatprep.subr.mxu0 0.0
  %156 = vmatpush1.msra.mxu0 %v43
  %157 = vmatprep.subr.mxu0 0.0
  %158 = vmatpush1.msra.mxu0 %v44
  %159 = vmatprep.subr.mxu0 0.0
  %160 = vmatpush1.msra.mxu0 %v45
  %161 = vmatprep.subr.mxu0 0.0
  %162 = vmatpush1.msra.mxu0 %v46
  %163 = vmatprep.subr.mxu0 0.0
  %164 = vmatpush1.msra.mxu0 0.0
  %165 = vmatprep.subr.mxu0 0.0
  %166 = vmatpush1.msra.mxu0 0.0
  %167 = vmatprep.subr.mxu0 0.0
  %168 = vmatpush1.msra.mxu0 0.0
  %169 = vmatprep.subr.mxu0 0.0
  %170 = vmatpush1.msra.mxu0 0.0
  %171 = vmatprep.subr.mxu0 0.0
  %172 = vmatpush1.msra.mxu0 0.0
  %173 = vmatprep.subr.mxu0 0.0
  %174 = vmatpush1.msra.mxu0 0.0
  %175 = vmatprep.subr.mxu0 0.0
  %176 = vmatpush1.msra.mxu0 0.0
  %177 = vmatprep.subr.mxu0 0.0
  %178 = vmatpush1.msra.mxu0 0.0
  %179 = vmatprep.subr.mxu0 0.0
  %180 = vmatpush1.msra.mxu0 0.0
  %181 = vmatprep.subr.mxu0 0.0
  %182 = vmatpush1.msra.mxu0 0.0
  %183 = vmatprep.subr.mxu0 0.0
  %184 = vmatpush1.msra.mxu0 0.0
  %185 = vmatprep.subr.mxu0 0.0
  %186 = vmatpush1.msra.mxu0 0.0
  %187 = vmatprep.subr.mxu0 0.0
  %188 = vmatpush1.msra.mxu0 0.0
  %189 = vmatprep.subr.mxu0 0.0
  %190 = vmatpush1.msra.mxu0 0.0
  %191 = vmatprep.subr.mxu0 0.0
  %192 = vmatpush1.msra.mxu0 0.0
  %193 = vmatprep.subr.mxu0 0.0
  %194 = vmatpush1.msra.mxu0 0.0
  %195 = vmatprep.subr.mxu0 0.0
  %196 = vmatpush1.msra.mxu0 0.0
  %197 = vmatprep.subr.mxu0 0.0
  %198 = vmatpush1.msra.mxu0 0.0
  %199 = vmatprep.subr.mxu0 0.0
  %200 = vmatpush1.msra.mxu0 0.0
  %201 = vmatprep.subr.mxu0 0.0
  %202 = vmatpush1.msra.mxu0 0.0
  %203 = vmatprep.subr.mxu0 0.0
  %204 = vmatpush1.msra.mxu0 0.0
  %205 = vmatprep.subr.mxu0 0.0
  %206 = vmatpush1.msra.mxu0 0.0
  %207 = vmatprep.subr.mxu0 0.0
  %208 = vmatpush1.msra.mxu0 0.0
  %209 = vmatprep.subr.mxu0 0.0
  %210 = vmatpush1.msra.mxu0 0.0
  %211 = vmatprep.subr.mxu0 0.0
  %212 = vmatpush1.msra.mxu0 0.0
  %213 = vmatprep.subr.mxu0 0.0
  %214 = vmatpush1.msra.mxu0 0.0
  %215 = vmatprep.subr.mxu0 0.0
  %216 = vmatpush1.msra.mxu0 0.0
  %217 = vmatprep.subr.mxu0 0.0
  %218 = vmatpush1.msra.mxu0 0.0
  %219 = vmatprep.mubr.f32.mxu0 0.0
  %220 = vmatmul.mubr.f32.gmra.mrb[0].mxu0 %v153
  %v221 = vpop.f32.mrb[0].mxu0
  %v222 = vadd.f32 0.0, %v221
  %v223 = vpop.f32.mrb[0].mxu0
  %224 = vmatprep.mubr.f32.mxu0 0.0
  %225 = vmatmul.mubr.f32.gmra.mrb[0].mxu0 %v153
  %v226 = vpop.f32.mrb[0].mxu0
  %v227 = vadd.f32 0.0, %v226
  %v228 = vpop.f32.mrb[0].mxu0
  %229 = vdwg.mxu0
  %v230 = vadd.f32 %v134, %v222
  %v231 = vadd.f32 %v139, %v227
  %v232 = vxor.u32 %v230, 2147483648
  %v233 = vxor.u32 %v231, 2147483648
  %v234 = vmul.f32 %v232, 1.442695
  %v235 = vpow.pop %v234
  %v236 = vmul.f32 %v233, 1.442695
  %v237 = vpow.pop %v236
  %v238 = vadd.f32 %v235, 1.0
  %v239 = vadd.f32 %v237, 1.0
  %v240 = vrcp.pop %v238
  %v241 = vmul.f32 1.0, %v240
  %v242 = vrcp.pop %v239
  %v243 = vmul.f32 1.0, %v242
  %v244 = vtanh.pop %v230
  %v245 = vtanh.pop %v231
  %v246 = vmul.f32 %v241, 0.0
  %v247 = vmul.f32 %v243, 0.0
  %250 = vrot.lane.b32.xlu0 %v244, 64
  %v251 = vpop.permute.xlu0 %250
  %252 = vrot.lane.b32.xlu0 %v245, 64
  %v253 = vpop.permute.xlu0 %252
  %v256 = vmul.f32 %v241, %v251
  %v257 = vmul.f32 %v243, %v253
  %260 = vrot.lane.b32.xlu0 %v256, 32
  %v261 = vpop.permute.xlu0 %260
  %262 = vrot.lane.b32.xlu0 %v257, 32
  %v263 = vpop.permute.xlu0 %262
  %v266 = vadd.f32 %v246, %v261
  %v267 = vadd.f32 %v247, %v263
  %v268 = vtanh.pop %v266
  %v269 = vtanh.pop %v267
  %272 = vrot.lane.b32.xlu0 %v268, 64
  %v273 = vpop.permute.xlu0 %272
  %274 = vrot.lane.b32.xlu0 %v269, 64
  %v275 = vpop.permute.xlu0 %274
  %v278 = vmul.f32 %v241, %v273
  %v279 = vmul.f32 %v243, %v275
  %282 = vrot.lane.b32.xlu0 %v278, 32
  %v283 = vpop.permute.xlu0 %282
  %284 = vrot.lane.b32.xlu0 %v279, 32
  %v285 = vpop.permute.xlu0 %284
  %v286 = vsel %vm54, %v283, 0
  %v288 = vsel %vm54, %v285, 0
  %290 = vmatprep.subr.mxu0 0.0
  %291 = vmatpush1.msra.mxu0 %v43
  %292 = vmatprep.subr.mxu0 0.0
  %293 = vmatpush1.msra.mxu0 %v44
  %294 = vmatprep.subr.mxu0 0.0
  %295 = vmatpush1.msra.mxu0 %v45
  %296 = vmatprep.subr.mxu0 0.0
  %297 = vmatpush1.msra.mxu0 %v46
  %298 = vmatprep.subr.mxu0 0.0
  %299 = vmatpush1.msra.mxu0 0.0
  %300 = vmatprep.subr.mxu0 0.0
  %301 = vmatpush1.msra.mxu0 0.0
  %302 = vmatprep.subr.mxu0 0.0
  %303 = vmatpush1.msra.mxu0 0.0
  %304 = vmatprep.subr.mxu0 0.0
  %305 = vmatpush1.msra.mxu0 0.0
  %306 = vmatprep.subr.mxu0 0.0
  %307 = vmatpush1.msra.mxu0 0.0
  %308 = vmatprep.subr.mxu0 0.0
  %309 = vmatpush1.msra.mxu0 0.0
  %310 = vmatprep.subr.mxu0 0.0
  %311 = vmatpush1.msra.mxu0 0.0
  %312 = vmatprep.subr.mxu0 0.0
  %313 = vmatpush1.msra.mxu0 0.0
  %314 = vmatprep.subr.mxu0 0.0
  %315 = vmatpush1.msra.mxu0 0.0
  %316 = vmatprep.subr.mxu0 0.0
  %317 = vmatpush1.msra.mxu0 0.0
  %318 = vmatprep.subr.mxu0 0.0
  %319 = vmatpush1.msra.mxu0 0.0
  %320 = vmatprep.subr.mxu0 0.0
  %321 = vmatpush1.msra.mxu0 0.0
  %322 = vmatprep.subr.mxu0 0.0
  %323 = vmatpush1.msra.mxu0 0.0
  %324 = vmatprep.subr.mxu0 0.0
  %325 = vmatpush1.msra.mxu0 0.0
  %326 = vmatprep.subr.mxu0 0.0
  %327 = vmatpush1.msra.mxu0 0.0
  %328 = vmatprep.subr.mxu0 0.0
  %329 = vmatpush1.msra.mxu0 0.0
  %330 = vmatprep.subr.mxu0 0.0
  %331 = vmatpush1.msra.mxu0 0.0
  %332 = vmatprep.subr.mxu0 0.0
  %333 = vmatpush1.msra.mxu0 0.0
  %334 = vmatprep.subr.mxu0 0.0
  %335 = vmatpush1.msra.mxu0 0.0
  %336 = vmatprep.subr.mxu0 0.0
  %337 = vmatpush1.msra.mxu0 0.0
  %338 = vmatprep.subr.mxu0 0.0
  %339 = vmatpush1.msra.mxu0 0.0
  %340 = vmatprep.subr.mxu0 0.0
  %341 = vmatpush1.msra.mxu0 0.0
  %342 = vmatprep.subr.mxu0 0.0
  %343 = vmatpush1.msra.mxu0 0.0
  %344 = vmatprep.subr.mxu0 0.0
  %345 = vmatpush1.msra.mxu0 0.0
  %346 = vmatprep.subr.mxu0 0.0
  %347 = vmatpush1.msra.mxu0 0.0
  %348 = vmatprep.subr.mxu0 0.0
  %349 = vmatpush1.msra.mxu0 0.0
  %350 = vmatprep.subr.mxu0 0.0
  %351 = vmatpush1.msra.mxu0 0.0
  %352 = vmatprep.subr.mxu0 0.0
  %353 = vmatpush1.msra.mxu0 0.0
  %354 = vmatprep.mubr.f32.mxu0 0.0
  %355 = vmatmul.mubr.f32.gmra.mrb[0].mxu0 %v286
  %v356 = vpop.f32.mrb[0].mxu0
  %v357 = vadd.f32 0.0, %v356
  %v358 = vpop.f32.mrb[0].mxu0
  %359 = vmatprep.mubr.f32.mxu0 0.0
  %360 = vmatmul.mubr.f32.gmra.mrb[0].mxu0 %v288
  %v361 = vpop.f32.mrb[0].mxu0
  %v362 = vadd.f32 0.0, %v361
  %v363 = vpop.f32.mrb[0].mxu0
  %364 = vdwg.mxu0
  %v365 = vadd.f32 %v144, %v357
  %v366 = vadd.f32 %v149, %v362
  %v367 = vxor.u32 %v365, 2147483648
  %v368 = vxor.u32 %v366, 2147483648
  %v369 = vmul.f32 %v367, 1.442695
  %v370 = vpow.pop %v369
  %v371 = vmul.f32 %v368, 1.442695
  %v372 = vpow.pop %v371
  %v373 = vadd.f32 %v370, 1.0
  %v374 = vadd.f32 %v372, 1.0
  %v375 = vrcp.pop %v373
  %v376 = vmul.f32 1.0, %v375
  %v377 = vrcp.pop %v374
  %v378 = vmul.f32 1.0, %v377
  %v379 = vtanh.pop %v365
  %v380 = vtanh.pop %v366
  %v381 = vmul.f32 %v376, %v266
  %v382 = vmul.f32 %v378, %v267
  %385 = vrot.lane.b32.xlu0 %v379, 64
  %v386 = vpop.permute.xlu0 %385
  %387 = vrot.lane.b32.xlu0 %v380, 64
  %v388 = vpop.permute.xlu0 %387
  %v391 = vmul.f32 %v376, %v386
  %v392 = vmul.f32 %v378, %v388
  %395 = vrot.lane.b32.xlu0 %v391, 32
  %v396 = vpop.permute.xlu0 %395
  %397 = vrot.lane.b32.xlu0 %v392, 32
  %v398 = vpop.permute.xlu0 %397
  %v401 = vadd.f32 %v381, %v396
  %v402 = vadd.f32 %v382, %v398
  %v403 = vtanh.pop %v401
  %v404 = vtanh.pop %v402
  %407 = vrot.lane.b32.xlu0 %v403, 64
  %v408 = vpop.permute.xlu0 %407
  %409 = vrot.lane.b32.xlu0 %v404, 64
  %v410 = vpop.permute.xlu0 %409
  %v413 = vmul.f32 %v376, %v408
  %v414 = vmul.f32 %v378, %v410
  %v415 = vld [vmem:[%s5] sm:$0xff]
  %v416 = vld [vmem:[%s5 + $0x8] sm:$0xff]
  %v417 = vld [vmem:[%s5 + $0x10] sm:$0xff]
  %v418 = vld [vmem:[%s5 + $0x18] sm:$0xff]
  %v419 = vld [vmem:[%s6] sm:$0xff]
  %v420 = vld [vmem:[%s6 + $0x8] sm:$0xff]
  %v421 = vld [vmem:[%s6 + $0x10] sm:$0xff]
  %v422 = vld [vmem:[%s6 + $0x18] sm:$0xff]
  %v423 = vld [vmem:[%s7] sm:$0x1]
  %v425 = vlaneseq
  %v426 = vshrl.u32 %v425, 7
  %v427 = vsub.s32 0, %v426
  %v428 = vrot.slane %v423, %v427
  %432 = vrot.lane.b32.xlu0 %v413, 32
  %v433 = vpop.permute.xlu0 %432
  %434 = vrot.lane.b32.xlu0 %v414, 32
  %v435 = vpop.permute.xlu0 %434
  %v436 = vsel %vm54, %v433, 0
  %v438 = vsel %vm54, %v435, 0
  %440 = vmatprep.subr.mxu0 0.0
  %441 = vmatpush1.msra.mxu0 %v415
  %442 = vmatprep.subr.mxu0 0.0
  %443 = vmatpush1.msra.mxu0 %v416
  %444 = vmatprep.subr.mxu0 0.0
  %445 = vmatpush1.msra.mxu0 %v417
  %446 = vmatprep.subr.mxu0 0.0
  %447 = vmatpush1.msra.mxu0 %v418
  %448 = vmatprep.subr.mxu0 0.0
  %449 = vmatpush1.msra.mxu0 0.0
  %450 = vmatprep.subr.mxu0 0.0
  %451 = vmatpush1.msra.mxu0 0.0
  %452 = vmatprep.subr.mxu0 0.0
  %453 = vmatpush1.msra.mxu0 0.0
  %454 = vmatprep.subr.mxu0 0.0
  %455 = vmatpush1.msra.mxu0 0.0
  %456 = vmatprep.subr.mxu0 0.0
  %457 = vmatpush1.msra.mxu0 0.0
  %458 = vmatprep.subr.mxu0 0.0
  %459 = vmatpush1.msra.mxu0 0.0
  %460 = vmatprep.subr.mxu0 0.0
  %461 = vmatpush1.msra.mxu0 0.0
  %462 = vmatprep.subr.mxu0 0.0
  %463 = vmatpush1.msra.mxu0 0.0
  %464 = vmatprep.subr.mxu0 0.0
  %465 = vmatpush1.msra.mxu0 0.0
  %466 = vmatprep.subr.mxu0 0.0
  %467 = vmatpush1.msra.mxu0 0.0
  %468 = vmatprep.subr.mxu0 0.0
  %469 = vmatpush1.msra.mxu0 0.0
  %470 = vmatprep.subr.mxu0 0.0
  %471 = vmatpush1.msra.mxu0 0.0
  %472 = vmatprep.subr.mxu0 0.0
  %473 = vmatpush1.msra.mxu0 0.0
  %474 = vmatprep.subr.mxu0 0.0
  %475 = vmatpush1.msra.mxu0 0.0
  %476 = vmatprep.subr.mxu0 0.0
  %477 = vmatpush1.msra.mxu0 0.0
  %478 = vmatprep.subr.mxu0 0.0
  %479 = vmatpush1.msra.mxu0 0.0
  %480 = vmatprep.subr.mxu0 0.0
  %481 = vmatpush1.msra.mxu0 0.0
  %482 = vmatprep.subr.mxu0 0.0
  %483 = vmatpush1.msra.mxu0 0.0
  %484 = vmatprep.subr.mxu0 0.0
  %485 = vmatpush1.msra.mxu0 0.0
  %486 = vmatprep.subr.mxu0 0.0
  %487 = vmatpush1.msra.mxu0 0.0
  %488 = vmatprep.subr.mxu0 0.0
  %489 = vmatpush1.msra.mxu0 0.0
  %490 = vmatprep.subr.mxu0 0.0
  %491 = vmatpush1.msra.mxu0 0.0
  %492 = vmatprep.subr.mxu0 0.0
  %493 = vmatpush1.msra.mxu0 0.0
  %494 = vmatprep.subr.mxu0 0.0
  %495 = vmatpush1.msra.mxu0 0.0
  %496 = vmatprep.subr.mxu0 0.0
  %497 = vmatpush1.msra.mxu0 0.0
  %498 = vmatprep.subr.mxu0 0.0
  %499 = vmatpush1.msra.mxu0 0.0
  %500 = vmatprep.subr.mxu0 0.0
  %501 = vmatpush1.msra.mxu0 0.0
  %502 = vmatprep.subr.mxu0 0.0
  %503 = vmatpush1.msra.mxu0 0.0
  %504 = vmatprep.mubr.f32.mxu0 0.0
  %505 = vmatmul.mubr.f32.gmra.mrb[0].mxu0 %v286
  %v506 = vpop.f32.mrb[0].mxu0
  %v507 = vadd.f32 %v428, %v506
  %v508 = vpop.f32.mrb[0].mxu0
  %509 = vmatprep.mubr.f32.mxu0 0.0
  %510 = vmatmul.mubr.f32.gmra.mrb[0].mxu0 %v288
  %v511 = vpop.f32.mrb[0].mxu0
  %v512 = vadd.f32 %v428, %v511
  %v513 = vpop.f32.mrb[0].mxu0
  %514 = vmatprep.mubr.f32.mxu0 0.0
  %515 = vmatmul.mubr.f32.gmra.mrb[0].mxu0 %v436
  %v516 = vpop.f32.mrb[0].mxu0
  %v517 = vadd.f32 %v428, %v516
  %v518 = vpop.f32.mrb[0].mxu0
  %519 = vmatprep.mubr.f32.mxu0 0.0
  %520 = vmatmul.mubr.f32.gmra.mrb[0].mxu0 %v438
  %v521 = vpop.f32.mrb[0].mxu0
  %v522 = vadd.f32 %v428, %v521
  %v523 = vpop.f32.mrb[0].mxu0
  %524 = vdwg.mxu0
  %525 = vmatprep.subr.mxu0 0.0
  %526 = vmatpush1.msra.mxu0 %v419
  %527 = vmatprep.subr.mxu0 0.0
  %528 = vmatpush1.msra.mxu0 %v420
  %529 = vmatprep.subr.mxu0 0.0
  %530 = vmatpush1.msra.mxu0 %v421
  %531 = vmatprep.subr.mxu0 0.0
  %532 = vmatpush1.msra.mxu0 %v422
  %533 = vmatprep.subr.mxu0 0.0
  %534 = vmatpush1.msra.mxu0 0.0
  %535 = vmatprep.subr.mxu0 0.0
  %536 = vmatpush1.msra.mxu0 0.0
  %537 = vmatprep.subr.mxu0 0.0
  %538 = vmatpush1.msra.mxu0 0.0
  %539 = vmatprep.subr.mxu0 0.0
  %540 = vmatpush1.msra.mxu0 0.0
  %541 = vmatprep.subr.mxu0 0.0
  %542 = vmatpush1.msra.mxu0 0.0
  %543 = vmatprep.subr.mxu0 0.0
  %544 = vmatpush1.msra.mxu0 0.0
  %545 = vmatprep.subr.mxu0 0.0
  %546 = vmatpush1.msra.mxu0 0.0
  %547 = vmatprep.subr.mxu0 0.0
  %548 = vmatpush1.msra.mxu0 0.0
  %549 = vmatprep.subr.mxu0 0.0
  %550 = vmatpush1.msra.mxu0 0.0
  %551 = vmatprep.subr.mxu0 0.0
  %552 = vmatpush1.msra.mxu0 0.0
  %553 = vmatprep.subr.mxu0 0.0
  %554 = vmatpush1.msra.mxu0 0.0
  %555 = vmatprep.subr.mxu0 0.0
  %556 = vmatpush1.msra.mxu0 0.0
  %557 = vmatprep.subr.mxu0 0.0
  %558 = vmatpush1.msra.mxu0 0.0
  %559 = vmatprep.subr.mxu0 0.0
  %560 = vmatpush1.msra.mxu0 0.0
  %561 = vmatprep.subr.mxu0 0.0
  %562 = vmatpush1.msra.mxu0 0.0
  %563 = vmatprep.subr.mxu0 0.0
  %564 = vmatpush1.msra.mxu0 0.0
  %565 = vmatprep.subr.mxu0 0.0
  %566 = vmatpush1.msra.mxu0 0.0
  %567 = vmatprep.subr.mxu0 0.0
  %568 = vmatpush1.msra.mxu0 0.0
  %569 = vmatprep.subr.mxu0 0.0
  %570 = vmatpush1.msra.mxu0 0.0
  %571 = vmatprep.subr.mxu0 0.0
  %572 = vmatpush1.msra.mxu0 0.0
  %573 = vmatprep.subr.mxu0 0.0
  %574 = vmatpush1.msra.mxu0 0.0
  %575 = vmatprep.subr.mxu0 0.0
  %576 = vmatpush1.msra.mxu0 0.0
  %577 = vmatprep.subr.mxu0 0.0
  %578 = vmatpush1.msra.mxu0 0.0
  %579 = vmatprep.subr.mxu0 0.0
  %580 = vmatpush1.msra.mxu0 0.0
  %581 = vmatprep.subr.mxu0 0.0
  %582 = vmatpush1.msra.mxu0 0.0
  %583 = vmatprep.subr.mxu0 0.0
  %584 = vmatpush1.msra.mxu0 0.0
  %585 = vmatprep.subr.mxu0 0.0
  %586 = vmatpush1.msra.mxu0 0.0
  %587 = vmatprep.subr.mxu0 0.0
  %588 = vmatpush1.msra.mxu0 0.0
  %589 = vmatprep.mubr.f32.mxu0 0.0
  %590 = vmatmul.mubr.f32.gmra.mrb[0].mxu0 %v153
  %v591 = vpop.f32.mrb[0].mxu0
  %v592 = vadd.f32 0.0, %v591
  %v593 = vpop.f32.mrb[0].mxu0
  %594 = vmatprep.mubr.f32.mxu0 0.0
  %595 = vmatmul.mubr.f32.gmra.mrb[0].mxu0 %v153
  %v596 = vpop.f32.mrb[0].mxu0
  %v597 = vadd.f32 0.0, %v596
  %v598 = vpop.f32.mrb[0].mxu0
  %599 = vdwg.mxu0
  %v600 = vadd.f32 %v507, %v592
  %v601 = vadd.f32 %v512, %v597
  %v602 = vxor.u32 %v600, 2147483648
  %v603 = vxor.u32 %v601, 2147483648
  %v604 = vmul.f32 %v602, 1.442695
  %v605 = vpow.pop %v604
  %v606 = vmul.f32 %v603, 1.442695
  %v607 = vpow.pop %v606
  %v608 = vadd.f32 %v605, 1.0
  %v609 = vadd.f32 %v607, 1.0
  %v610 = vrcp.pop %v608
  %v611 = vmul.f32 1.0, %v610
  %v612 = vrcp.pop %v609
  %v613 = vmul.f32 1.0, %v612
  %v614 = vtanh.pop %v600
  %v615 = vtanh.pop %v601
  %v616 = vmul.f32 %v611, 0.0
  %v617 = vmul.f32 %v613, 0.0
  %620 = vrot.lane.b32.xlu0 %v614, 64
  %v621 = vpop.permute.xlu0 %620
  %622 = vrot.lane.b32.xlu0 %v615, 64
  %v623 = vpop.permute.xlu0 %622
  %v626 = vmul.f32 %v611, %v621
  %v627 = vmul.f32 %v613, %v623
  %630 = vrot.lane.b32.xlu0 %v626, 32
  %v631 = vpop.permute.xlu0 %630
  %632 = vrot.lane.b32.xlu0 %v627, 32
  %v633 = vpop.permute.xlu0 %632
  %v636 = vadd.f32 %v616, %v631
  %v637 = vadd.f32 %v617, %v633
  %v638 = vtanh.pop %v636
  %v639 = vtanh.pop %v637
  %642 = vrot.lane.b32.xlu0 %v638, 64
  %v643 = vpop.permute.xlu0 %642
  %644 = vrot.lane.b32.xlu0 %v639, 64
  %v645 = vpop.permute.xlu0 %644
  %v648 = vmul.f32 %v611, %v643
  %v649 = vmul.f32 %v613, %v645
  %652 = vrot.lane.b32.xlu0 %v648, 32
  %v653 = vpop.permute.xlu0 %652
  %654 = vrot.lane.b32.xlu0 %v649, 32
  %v655 = vpop.permute.xlu0 %654
  %v656 = vsel %vm54, %v653, 0
  %v658 = vsel %vm54, %v655, 0
  %660 = vmatprep.subr.mxu0 0.0
  %661 = vmatpush1.msra.mxu0 %v419
  %662 = vmatprep.subr.mxu0 0.0
  %663 = vmatpush1.msra.mxu0 %v420
  %664 = vmatprep.subr.mxu0 0.0
  %665 = vmatpush1.msra.mxu0 %v421
  %666 = vmatprep.subr.mxu0 0.0
  %667 = vmatpush1.msra.mxu0 %v422
  %668 = vmatprep.subr.mxu0 0.0
  %669 = vmatpush1.msra.mxu0 0.0
  %670 = vmatprep.subr.mxu0 0.0
  %671 = vmatpush1.msra.mxu0 0.0
  %672 = vmatprep.subr.mxu0 0.0
  %673 = vmatpush1.msra.mxu0 0.0
  %674 = vmatprep.subr.mxu0 0.0
  %675 = vmatpush1.msra.mxu0 0.0
  %676 = vmatprep.subr.mxu0 0.0
  %677 = vmatpush1.msra.mxu0 0.0
  %678 = vmatprep.subr.mxu0 0.0
  %679 = vmatpush1.msra.mxu0 0.0
  %680 = vmatprep.subr.mxu0 0.0
  %681 = vmatpush1.msra.mxu0 0.0
  %682 = vmatprep.subr.mxu0 0.0
  %683 = vmatpush1.msra.mxu0 0.0
  %684 = vmatprep.subr.mxu0 0.0
  %685 = vmatpush1.msra.mxu0 0.0
  %686 = vmatprep.subr.mxu0 0.0
  %687 = vmatpush1.msra.mxu0 0.0
  %688 = vmatprep.subr.mxu0 0.0
  %689 = vmatpush1.msra.mxu0 0.0
  %690 = vmatprep.subr.mxu0 0.0
  %691 = vmatpush1.msra.mxu0 0.0
  %692 = vmatprep.subr.mxu0 0.0
  %693 = vmatpush1.msra.mxu0 0.0
  %694 = vmatprep.subr.mxu0 0.0
  %695 = vmatpush1.msra.mxu0 0.0
  %696 = vmatprep.subr.mxu0 0.0
  %697 = vmatpush1.msra.mxu0 0.0
  %698 = vmatprep.subr.mxu0 0.0
  %699 = vmatpush1.msra.mxu0 0.0
  %700 = vmatprep.subr.mxu0 0.0
  %701 = vmatpush1.msra.mxu0 0.0
  %702 = vmatprep.subr.mxu0 0.0
  %703 = vmatpush1.msra.mxu0 0.0
  %704 = vmatprep.subr.mxu0 0.0
  %705 = vmatpush1.msra.mxu0 0.0
  %706 = vmatprep.subr.mxu0 0.0
  %707 = vmatpush1.msra.mxu0 0.0
  %708 = vmatprep.subr.mxu0 0.0
  %709 = vmatpush1.msra.mxu0 0.0
  %710 = vmatprep.subr.mxu0 0.0
  %711 = vmatpush1.msra.mxu0 0.0
  %712 = vmatprep.subr.mxu0 0.0
  %713 = vmatpush1.msra.mxu0 0.0
  %714 = vmatprep.subr.mxu0 0.0
  %715 = vmatpush1.msra.mxu0 0.0
  %716 = vmatprep.subr.mxu0 0.0
  %717 = vmatpush1.msra.mxu0 0.0
  %718 = vmatprep.subr.mxu0 0.0
  %719 = vmatpush1.msra.mxu0 0.0
  %720 = vmatprep.subr.mxu0 0.0
  %721 = vmatpush1.msra.mxu0 0.0
  %722 = vmatprep.subr.mxu0 0.0
  %723 = vmatpush1.msra.mxu0 0.0
  %724 = vmatprep.mubr.f32.mxu0 0.0
  %725 = vmatmul.mubr.f32.gmra.mrb[0].mxu0 %v656
  %v726 = vpop.f32.mrb[0].mxu0
  %v727 = vadd.f32 0.0, %v726
  %v728 = vpop.f32.mrb[0].mxu0
  %729 = vmatprep.mubr.f32.mxu0 0.0
  %730 = vmatmul.mubr.f32.gmra.mrb[0].mxu0 %v658
  %v731 = vpop.f32.mrb[0].mxu0
  %v732 = vadd.f32 0.0, %v731
  %v733 = vpop.f32.mrb[0].mxu0
  %734 = vdwg.mxu0
  %v735 = vadd.f32 %v517, %v727
  %v736 = vadd.f32 %v522, %v732
  %v737 = vxor.u32 %v735, 2147483648
  %v738 = vxor.u32 %v736, 2147483648
  %v739 = vmul.f32 %v737, 1.442695
  %v740 = vpow.pop %v739
  %v741 = vmul.f32 %v738, 1.442695
  %v742 = vpow.pop %v741
  %v743 = vadd.f32 %v740, 1.0
  %v744 = vadd.f32 %v742, 1.0
  %v745 = vrcp.pop %v743
  %v746 = vmul.f32 1.0, %v745
  %v747 = vrcp.pop %v744
  %v748 = vmul.f32 1.0, %v747
  %v749 = vtanh.pop %v735
  %v750 = vtanh.pop %v736
  %v751 = vmul.f32 %v746, %v636
  %v752 = vmul.f32 %v748, %v637
  %755 = vrot.lane.b32.xlu0 %v749, 64
  %v756 = vpop.permute.xlu0 %755
  %757 = vrot.lane.b32.xlu0 %v750, 64
  %v758 = vpop.permute.xlu0 %757
  %v761 = vmul.f32 %v746, %v756
  %v762 = vmul.f32 %v748, %v758
  %765 = vrot.lane.b32.xlu0 %v761, 32
  %v766 = vpop.permute.xlu0 %765
  %767 = vrot.lane.b32.xlu0 %v762, 32
  %v768 = vpop.permute.xlu0 %767
  %v771 = vadd.f32 %v751, %v766
  %v772 = vadd.f32 %v752, %v768
  %v773 = vtanh.pop %v771
  %v774 = vtanh.pop %v772
  %777 = vrot.lane.b32.xlu0 %v773, 64
  %v778 = vpop.permute.xlu0 %777
  %779 = vrot.lane.b32.xlu0 %v774, 64
  %v780 = vpop.permute.xlu0 %779
  %v783 = vmul.f32 %v746, %v778
  %v784 = vmul.f32 %v748, %v780
  %v785 = vld [vmem:[%s1] sm:$0x3]
  %v786 = vlaneseq
  %v787 = vshrl.u32 %v786, 7
  %v788 = vsub.s32 0, %v787
  %v789 = vrot.slane %v785, %v788
  %791 = vbcast.lane.b32.xlu0 %v789, 256
  %v792 = vpop.permute.xlu0 %791
  %s794 = sor.u32 256, 8
  %795 = vbcast.lane.b32.xlu0 %v789, %s794
  %v796 = vpop.permute.xlu0 %795
  %v797 = vlaneseq
  %v798 = vshrl.u32 %v797, 7
  %v799 = vsub.s32 1, %v798
  %v800 = vrot.slane %v785, %v799
  %802 = vbcast.lane.b32.xlu0 %v800, 256
  %v803 = vpop.permute.xlu0 %802
  %s805 = sor.u32 256, 8
  %806 = vbcast.lane.b32.xlu0 %v800, %s805
  %v807 = vpop.permute.xlu0 %806
  %v808 = vmul.f32 %v648, %v792
  %v809 = vmul.f32 %v649, %v796
  %v810 = vmul.f32 %v783, %v803
  %v811 = vmul.f32 %v784, %v807
  %vm812 = vcmask 1048320
  %v813 = vsel %vm812, %v808, 0.0
  %v814 = vsel %vm812, %v809, 0.0
  %v815 = vadd.f32 %v813, %v814
  %v816 = vrot.slane %v815, 4
  %v817 = vadd.f32 %v815, %v816
  %v818 = vrot.slane %v817, 2
  %v819 = vadd.f32 %v817, %v818
  %v820 = vrot.slane %v819, 1
  %v821 = vadd.f32 %v819, %v820
  %v822 = vsel %vm812, %v810, 0.0
  %v823 = vsel %vm812, %v811, 0.0
  %v824 = vadd.f32 %v822, %v823
  %v825 = vrot.slane %v824, 4
  %v826 = vadd.f32 %v824, %v825
  %v827 = vrot.slane %v826, 2
  %v828 = vadd.f32 %v826, %v827
  %v829 = vrot.slane %v828, 1
  %v830 = vadd.f32 %v828, %v829
  %v831 = vld [vmem:[%s8] sm:$0xff]
  %v832 = vld [vmem:[%s8 + $0x8] sm:$0xff]
  %v833 = vld [vmem:[%s8 + $0x10] sm:$0xff]
  %v834 = vld [vmem:[%s8 + $0x18] sm:$0xff]
  %v835 = vld [vmem:[%s9] sm:$0x1]
  %v837 = vlaneseq
  %v838 = vshrl.u32 %v837, 7
  %v839 = vsub.s32 0, %v838
  %v840 = vrot.slane %v835, %v839
  %vm844 = vcmask 1041409
  %v845 = vsel %vm844, %v830, %v821
  %846 = vrot.lane.b32.xlu0 %v845, 32
  %v847 = vpop.permute.xlu0 %846
  %v848 = vsel %vm54, %v847, 0
  %850 = vmatprep.subr.mxu0 0.0
  %851 = vmatpush1.msra.mxu0 %v831
  %852 = vmatprep.subr.mxu0 0.0
  %853 = vmatpush1.msra.mxu0 %v832
  %854 = vmatprep.subr.mxu0 0.0
  %855 = vmatpush1.msra.mxu0 %v833
  %856 = vmatprep.subr.mxu0 0.0
  %857 = vmatpush1.msra.mxu0 %v834
  %858 = vmatprep.subr.mxu0 0.0
  %859 = vmatpush1.msra.mxu0 0.0
  %860 = vmatprep.subr.mxu0 0.0
  %861 = vmatpush1.msra.mxu0 0.0
  %862 = vmatprep.subr.mxu0 0.0
  %863 = vmatpush1.msra.mxu0 0.0
  %864 = vmatprep.subr.mxu0 0.0
  %865 = vmatpush1.msra.mxu0 0.0
  %866 = vmatprep.subr.mxu0 0.0
  %867 = vmatpush1.msra.mxu0 0.0
  %868 = vmatprep.subr.mxu0 0.0
  %869 = vmatpush1.msra.mxu0 0.0
  %870 = vmatprep.subr.mxu0 0.0
  %871 = vmatpush1.msra.mxu0 0.0
  %872 = vmatprep.subr.mxu0 0.0
  %873 = vmatpush1.msra.mxu0 0.0
  %874 = vmatprep.subr.mxu0 0.0
  %875 = vmatpush1.msra.mxu0 0.0
  %876 = vmatprep.subr.mxu0 0.0
  %877 = vmatpush1.msra.mxu0 0.0
  %878 = vmatprep.subr.mxu0 0.0
  %879 = vmatpush1.msra.mxu0 0.0
  %880 = vmatprep.subr.mxu0 0.0
  %881 = vmatpush1.msra.mxu0 0.0
  %882 = vmatprep.subr.mxu0 0.0
  %883 = vmatpush1.msra.mxu0 0.0
  %884 = vmatprep.subr.mxu0 0.0
  %885 = vmatpush1.msra.mxu0 0.0
  %886 = vmatprep.subr.mxu0 0.0
  %887 = vmatpush1.msra.mxu0 0.0
  %888 = vmatprep.subr.mxu0 0.0
  %889 = vmatpush1.msra.mxu0 0.0
  %890 = vmatprep.subr.mxu0 0.0
  %891 = vmatpush1.msra.mxu0 0.0
  %892 = vmatprep.subr.mxu0 0.0
  %893 = vmatpush1.msra.mxu0 0.0
  %894 = vmatprep.subr.mxu0 0.0
  %895 = vmatpush1.msra.mxu0 0.0
  %896 = vmatprep.subr.mxu0 0.0
  %897 = vmatpush1.msra.mxu0 0.0
  %898 = vmatprep.subr.mxu0 0.0
  %899 = vmatpush1.msra.mxu0 0.0
  %900 = vmatprep.subr.mxu0 0.0
  %901 = vmatpush1.msra.mxu0 0.0
  %902 = vmatprep.subr.mxu0 0.0
  %903 = vmatpush1.msra.mxu0 0.0
  %904 = vmatprep.subr.mxu0 0.0
  %905 = vmatpush1.msra.mxu0 0.0
  %906 = vmatprep.subr.mxu0 0.0
  %907 = vmatpush1.msra.mxu0 0.0
  %908 = vmatprep.subr.mxu0 0.0
  %909 = vmatpush1.msra.mxu0 0.0
  %910 = vmatprep.subr.mxu0 0.0
  %911 = vmatpush1.msra.mxu0 0.0
  %912 = vmatprep.subr.mxu0 0.0
  %913 = vmatpush1.msra.mxu0 0.0
  %914 = vmatprep.mubr.f32.mxu0 0.0
  %915 = vmatmul.mubr.f32.gmra.mrb[0].mxu0 %v848
  %v916 = vpop.f32.mrb[0].mxu0
  %v917 = vadd.f32 %v840, %v916
  %v918 = vpop.f32.mrb[0].mxu0
  %919 = vdwg.mxu0
  %vm920 = vcmask 254976
  %921 = vst.msk [vmem:[%s10] sm:$0x3] %vm920, %v917
  // Predicated region
  $region42: #{sar_head_forward.3} parent=0 // pred_check
    _
  $region43: #{sar_head_forward.3} parent=0 // pred_check_branch
    %923 = sbr.rel (0) target = $region45
  $region44: #{sar_head_forward.3} parent=0 // pred_region
    _
  $region45: #{sar_head_forward.3} parent=0 // pred_fallthru
    _
  // Predicated region
  $region46: #{sar_head_forward.3} parent=0 // pred_check
    _
  $region47: #{sar_head_forward.3} parent=0 // pred_check_branch
    %925 = sbr.rel (0) target = $region49
  $region48: #{sar_head_forward.3} parent=0 // pred_region
    _
  $region49: #{sar_head_forward.3} parent=0 // pred_fallthru
    _

// kernel: sar_head_forward.5
$region0: #{sar_head_forward.5}
  #allocation0 [shape = 'u32[]', space=smem, size = 0x4, offset = 0x4, fixed_abs, tag = 'smem constant byte address 0x4 - core index']
  #allocation1 [shape = 'u32[144,128]{1,0:T(1,128)}', space=vmem, size = 0x12000, scoped, tag = 'internal scratch']
  #allocation2 [shape = 'f32[10,18,32]{2,1,0:T(8,128)}', space=vmem, size = 0x1e000, scoped, tag = 'scratch operand']
  #allocation3 [shape = 's32[1]{0}', space=sflag, size = 0x4, scoped, tag = 'scoped memory for sar_head_forward.5']
  #allocation4 [shape = 'u8[512]{0}', space=smem, size = 0x200, scoped, tag = 'prefetched SMEM operand 0']
  #allocation5 [shape = 'f32[1,1]{1,0:T(1,128)S(1)}', space=vmem, size = 0x200, scoped, tag = 'scoped memory for sar_head_forward.5']
  %s0 = inlined_call_operand.vmem [shape: s32[2], index: 0, kind: input, shape index: {}]
  %s1 = inlined_call_operand.vmem [shape: f32[2,8,128], index: 1, kind: input, shape index: {}]
  %s2 = inlined_call_operand.vmem [shape: f32[2,8,16,32], index: 2, kind: input, shape index: {}]
  %s3 = inlined_call_operand.vmem [shape: f32[2,1,32], index: 3, kind: input, shape index: {}]
  %s4 = inlined_call_operand.vmem [shape: bf16[128,16], index: 4, kind: input, shape index: {}]
  %s5 = inlined_call_operand.vmem [shape: f32[1,16], index: 5, kind: input, shape index: {}]
  %s6 = inlined_call_operand.vmem [shape: bf16[9,32,16], index: 6, kind: input, shape index: {}]
  %s7 = inlined_call_operand.vmem [shape: f32[1,16], index: 7, kind: input, shape index: {}]
  %s8 = inlined_call_operand.vmem [shape: bf16[16,1], index: 8, kind: input, shape index: {}]
  %s9 = inlined_call_operand.<no memory space> [shape: f32[1,1], index: 9, kind: input, shape index: {}]
  %s10 = inlined_call_operand.vmem [shape: bf16[128,128], index: 10, kind: input, shape index: {}]
  %s11 = inlined_call_operand.vmem [shape: bf16[32,128], index: 11, kind: input, shape index: {}]
  %s12 = inlined_call_operand.vmem [shape: bf16[32,128], index: 12, kind: input, shape index: {}]
  %s13 = inlined_call_operand.vmem [shape: f32[1,128], index: 13, kind: input, shape index: {}]
  %s14 = inlined_call_operand.vmem [shape: f32[2,8,128], index: 14, kind: output, shape index: {}]
  %s15 = sld [smem:[#allocation0]]
  $region85: #{sar_head_forward.5} parent=0
    _
  %s17 = ssub.s32 1, %s15
  %s18 = scalar_select 0, %s17, %s15
  %s19 = sshll.u32 %s0, 4
  %s20 = int_to_ptr.vmem [resolvable:$true] %s19
  %22 = dma.vmem_to_smem %s20, 16, [#allocation4], [#allocation3]
  %v23 = vstv %s9
  %24 = vst [vmem:[#allocation5] sm:$0x1] %v23
  %25 = dma.done [#allocation3], 16
  %26 = sfence
  loop: start=0, step=1, limit=4
  $region2: #{sar_head_forward.5} parent=0 // loop_pre_header
    _
  $region3: #{sar_head_forward.5} parent=0 // loop_header
    %s28 = sphi 0, %s32
    %p29 = scmp.ge.s32.totalorder %s28, 4
    %s38 = sphi 0, %s40
    %s41 = sphi 0, %s38
    %s42 = sphi 0, %s41
    %s58 = sphi 0, %s42
    %s64 = sphi 0, %s66
    %s67 = sphi 0, %s64
    %s68 = sphi 0, %s67
    %s84 = sphi 0, %s68
    %s90 = sphi 0, %s92
    %s93 = sphi 0, %s90
    %s94 = sphi 0, %s93
    %s110 = sphi 0, %s94
    %s114 = sphi 0, %s114
    %s116 = sphi 0, %s114
    %s117 = sphi 0, %s116
    %s131 = sphi 0, %s117
    %s135 = sphi 0, %s135
    %s137 = sphi 0, %s135
    %s138 = sphi 0, %s137
    %s152 = sphi 0, %s138
    %s156 = sphi 0, %s156
    %s158 = sphi 0, %s156
    %s159 = sphi 0, %s158
    %s173 = sphi 0, %s159
    %s177 = sphi 0, %s177
    %s179 = sphi 0, %s177
    %s180 = sphi 0, %s179
    %s194 = sphi 0, %s180
    %s198 = sphi 0, %s198
    %s200 = sphi 0, %s198
    %s201 = sphi 0, %s200
    %s215 = sphi 0, %s201
    %s219 = sphi 0, %s219
    %s221 = sphi 0, %s219
    %s222 = sphi 0, %s221
    %s236 = sphi 0, %s222
    %s240 = sphi 0, %s240
    %s242 = sphi 0, %s240
    %s243 = sphi 0, %s242
    %s257 = sphi 0, %s243
    %s261 = sphi 0, %s261
    %s263 = sphi 0, %s261
    %s264 = sphi 0, %s263
    %s278 = sphi 0, %s264
    %s282 = sphi 0, %s282
    %s284 = sphi 0, %s282
    %s285 = sphi 0, %s284
    %s299 = sphi 0, %s285
    %s303 = sphi 0, %s303
    %s305 = sphi 0, %s303
    %s306 = sphi 0, %s305
    %s320 = sphi 0, %s306
    %s326 = sphi 0, %s328
    %s329 = sphi 0, %s326
    %s330 = sphi 0, %s329
    %s346 = sphi 0, %s330
  $region4: #{sar_head_forward.5} parent=0 // loop_header_branch
    %31 = sbr.rel (%p29) target = $region8
  $region5: #{sar_head_forward.5} parent=0 // loop_body
    %s33 = ssub.s32 %s28, 1
    %s34 = ssub.s32 %s28, 2
    %s35 = sadd.s32 %s28, 1
    %s36 = ssub.s32 %s28, %s35
    %p37 = scmp.eq.s32.totalorder %s36, 0
    %s39 = sadd.s32 %s38, 1
    %s40 = scalar_select %p37, %s38, %s39
    %p43 = pneg %p37
    %p44 = scmp.eq.s32.totalorder %s28, 1
    %p45 = por %p43, %p44
    %p46 = scmp.ne.s32.totalorder %s38, %s41
    %p47 = scmp.eq.s32.totalorder %s28, 0
    %p48 = por %p46, %p47
    %p49 = scmp.ne.s32.totalorder %s38, %s41
    %p50 = scmp.eq.s32.totalorder %s33, 1
    %p51 = por %p49, %p50
    %p52 = scmp.ne.s32.totalorder %s41, %s42
    %p53 = scmp.eq.s32.totalorder %s33, 0
    %p54 = por %p52, %p53
    %p55 = scmp.ne.s32.totalorder %s41, %s42
    %p56 = scmp.eq.s32.totalorder %s34, 1
    %p57 = por %p55, %p56
    %p59 = scmp.ne.s32.totalorder %s42, %s58
    %p60 = scmp.eq.s32.totalorder %s34, 0
    %p61 = por %p59, %p60
    %s62 = ssub.s32 %s28, %s35
    %p63 = scmp.eq.s32.totalorder %s62, 0
    %s65 = sadd.s32 %s64, 1
    %s66 = scalar_select %p63, %s64, %s65
    %p69 = pneg %p63
    %p70 = scmp.eq.s32.totalorder %s28, 1
    %p71 = por %p69, %p70
    %p72 = scmp.ne.s32.totalorder %s64, %s67
    %p73 = scmp.eq.s32.totalorder %s28, 0
    %p74 = por %p72, %p73
    %p75 = scmp.ne.s32.totalorder %s64, %s67
    %p76 = scmp.eq.s32.totalorder %s33, 1
    %p77 = por %p75, %p76
    %p78 = scmp.ne.s32.totalorder %s67, %s68
    %p79 = scmp.eq.s32.totalorder %s33, 0
    %p80 = por %p78, %p79
    %p81 = scmp.ne.s32.totalorder %s67, %s68
    %p82 = scmp.eq.s32.totalorder %s34, 1
    %p83 = por %p81, %p82
    %p85 = scmp.ne.s32.totalorder %s68, %s84
    %p86 = scmp.eq.s32.totalorder %s34, 0
    %p87 = por %p85, %p86
    %s88 = ssub.s32 %s28, %s35
    %p89 = scmp.eq.s32.totalorder %s88, 0
    %s91 = sadd.s32 %s90, 1
    %s92 = scalar_select %p89, %s90, %s91
    %p95 = pneg %p89
    %p96 = scmp.eq.s32.totalorder %s28, 1
    %p97 = por %p95, %p96
    %p98 = scmp.ne.s32.totalorder %s90, %s93
    %p99 = scmp.eq.s32.totalorder %s28, 0
    %p100 = por %p98, %p99
    %p101 = scmp.ne.s32.totalorder %s90, %s93
    %p102 = scmp.eq.s32.totalorder %s33, 1
    %p103 = por %p101, %p102
    %p104 = scmp.ne.s32.totalorder %s93, %s94
    %p105 = scmp.eq.s32.totalorder %s33, 0
    %p106 = por %p104, %p105
    %p107 = scmp.ne.s32.totalorder %s93, %s94
    %p108 = scmp.eq.s32.totalorder %s34, 1
    %p109 = por %p107, %p108
    %p111 = scmp.ne.s32.totalorder %s94, %s110
    %p112 = scmp.eq.s32.totalorder %s34, 0
    %p113 = por %p111, %p112
    %s115 = sadd.s32 %s114, 1
    %p118 = scmp.eq.s32.totalorder %s28, 1
    %p119 = scmp.ne.s32.totalorder %s114, %s116
    %p120 = scmp.eq.s32.totalorder %s28, 0
    %p121 = por %p119, %p120
    %p122 = scmp.ne.s32.totalorder %s114, %s116
    %p123 = scmp.eq.s32.totalorder %s33, 1
    %p124 = por %p122, %p123
    %p125 = scmp.ne.s32.totalorder %s116, %s117
    %p126 = scmp.eq.s32.totalorder %s33, 0
    %p127 = por %p125, %p126
    %p128 = scmp.ne.s32.totalorder %s116, %s117
    %p129 = scmp.eq.s32.totalorder %s34, 1
    %p130 = por %p128, %p129
    %p132 = scmp.ne.s32.totalorder %s117, %s131
    %p133 = scmp.eq.s32.totalorder %s34, 0
    %p134 = por %p132, %p133
    %s136 = sadd.s32 %s135, 1
    %p139 = scmp.eq.s32.totalorder %s28, 1
    %p140 = scmp.ne.s32.totalorder %s135, %s137
    %p141 = scmp.eq.s32.totalorder %s28, 0
    %p142 = por %p140, %p141
    %p143 = scmp.ne.s32.totalorder %s135, %s137
    %p144 = scmp.eq.s32.totalorder %s33, 1
    %p145 = por %p143, %p144
    %p146 = scmp.ne.s32.totalorder %s137, %s138
    %p147 = scmp.eq.s32.totalorder %s33, 0
    %p148 = por %p146, %p147
    %p149 = scmp.ne.s32.totalorder %s137, %s138
    %p150 = scmp.eq.s32.totalorder %s34, 1
    %p151 = por %p149, %p150
    %p153 = scmp.ne.s32.totalorder %s138, %s152
    %p154 = scmp.eq.s32.totalorder %s34, 0
    %p155 = por %p153, %p154
    %s157 = sadd.s32 %s156, 1
    %p160 = scmp.eq.s32.totalorder %s28, 1
    %p161 = scmp.ne.s32.totalorder %s156, %s158
    %p162 = scmp.eq.s32.totalorder %s28, 0
    %p163 = por %p161, %p162
    %p164 = scmp.ne.s32.totalorder %s156, %s158
    %p165 = scmp.eq.s32.totalorder %s33, 1
    %p166 = por %p164, %p165
    %p167 = scmp.ne.s32.totalorder %s158, %s159
    %p168 = scmp.eq.s32.totalorder %s33, 0
    %p169 = por %p167, %p168
    %p170 = scmp.ne.s32.totalorder %s158, %s159
    %p171 = scmp.eq.s32.totalorder %s34, 1
    %p172 = por %p170, %p171
    %p174 = scmp.ne.s32.totalorder %s159, %s173
    %p175 = scmp.eq.s32.totalorder %s34, 0
    %p176 = por %p174, %p175
    %s178 = sadd.s32 %s177, 1
    %p181 = scmp.eq.s32.totalorder %s28, 1
    %p182 = scmp.ne.s32.totalorder %s177, %s179
    %p183 = scmp.eq.s32.totalorder %s28, 0
    %p184 = por %p182, %p183
    %p185 = scmp.ne.s32.totalorder %s177, %s179
    %p186 = scmp.eq.s32.totalorder %s33, 1
    %p187 = por %p185, %p186
    %p188 = scmp.ne.s32.totalorder %s179, %s180
    %p189 = scmp.eq.s32.totalorder %s33, 0
    %p190 = por %p188, %p189
    %p191 = scmp.ne.s32.totalorder %s179, %s180
    %p192 = scmp.eq.s32.totalorder %s34, 1
    %p193 = por %p191, %p192
    %p195 = scmp.ne.s32.totalorder %s180, %s194
    %p196 = scmp.eq.s32.totalorder %s34, 0
    %p197 = por %p195, %p196
    %s199 = sadd.s32 %s198, 1
    %p202 = scmp.eq.s32.totalorder %s28, 1
    %p203 = scmp.ne.s32.totalorder %s198, %s200
    %p204 = scmp.eq.s32.totalorder %s28, 0
    %p205 = por %p203, %p204
    %p206 = scmp.ne.s32.totalorder %s198, %s200
    %p207 = scmp.eq.s32.totalorder %s33, 1
    %p208 = por %p206, %p207
    %p209 = scmp.ne.s32.totalorder %s200, %s201
    %p210 = scmp.eq.s32.totalorder %s33, 0
    %p211 = por %p209, %p210
    %p212 = scmp.ne.s32.totalorder %s200, %s201
    %p213 = scmp.eq.s32.totalorder %s34, 1
    %p214 = por %p212, %p213
    %p216 = scmp.ne.s32.totalorder %s201, %s215
    %p217 = scmp.eq.s32.totalorder %s34, 0
    %p218 = por %p216, %p217
    %s220 = sadd.s32 %s219, 1
    %p223 = scmp.eq.s32.totalorder %s28, 1
    %p224 = scmp.ne.s32.totalorder %s219, %s221
    %p225 = scmp.eq.s32.totalorder %s28, 0
    %p226 = por %p224, %p225
    %p227 = scmp.ne.s32.totalorder %s219, %s221
    %p228 = scmp.eq.s32.totalorder %s33, 1
    %p229 = por %p227, %p228
    %p230 = scmp.ne.s32.totalorder %s221, %s222
    %p231 = scmp.eq.s32.totalorder %s33, 0
    %p232 = por %p230, %p231
    %p233 = scmp.ne.s32.totalorder %s221, %s222
    %p234 = scmp.eq.s32.totalorder %s34, 1
    %p235 = por %p233, %p234
    %p237 = scmp.ne.s32.totalorder %s222, %s236
    %p238 = scmp.eq.s32.totalorder %s34, 0
    %p239 = por %p237, %p238
    %s241 = sadd.s32 %s240, 1
    %p244 = scmp.eq.s32.totalorder %s28, 1
    %p245 = scmp.ne.s32.totalorder %s240, %s242
    %p246 = scmp.eq.s32.totalorder %s28, 0
    %p247 = por %p245, %p246
    %p248 = scmp.ne.s32.totalorder %s240, %s242
    %p249 = scmp.eq.s32.totalorder %s33, 1
    %p250 = por %p248, %p249
    %p251 = scmp.ne.s32.totalorder %s242, %s243
    %p252 = scmp.eq.s32.totalorder %s33, 0
    %p253 = por %p251, %p252
    %p254 = scmp.ne.s32.totalorder %s242, %s243
    %p255 = scmp.eq.s32.totalorder %s34, 1
    %p256 = por %p254, %p255
    %p258 = scmp.ne.s32.totalorder %s243, %s257
    %p259 = scmp.eq.s32.totalorder %s34, 0
    %p260 = por %p258, %p259
    %s262 = sadd.s32 %s261, 1
    %p265 = scmp.eq.s32.totalorder %s28, 1
    %p266 = scmp.ne.s32.totalorder %s261, %s263
    %p267 = scmp.eq.s32.totalorder %s28, 0
    %p268 = por %p266, %p267
    %p269 = scmp.ne.s32.totalorder %s261, %s263
    %p270 = scmp.eq.s32.totalorder %s33, 1
    %p271 = por %p269, %p270
    %p272 = scmp.ne.s32.totalorder %s263, %s264
    %p273 = scmp.eq.s32.totalorder %s33, 0
    %p274 = por %p272, %p273
    %p275 = scmp.ne.s32.totalorder %s263, %s264
    %p276 = scmp.eq.s32.totalorder %s34, 1
    %p277 = por %p275, %p276
    %p279 = scmp.ne.s32.totalorder %s264, %s278
    %p280 = scmp.eq.s32.totalorder %s34, 0
    %p281 = por %p279, %p280
    %s283 = sadd.s32 %s282, 1
    %p286 = scmp.eq.s32.totalorder %s28, 1
    %p287 = scmp.ne.s32.totalorder %s282, %s284
    %p288 = scmp.eq.s32.totalorder %s28, 0
    %p289 = por %p287, %p288
    %p290 = scmp.ne.s32.totalorder %s282, %s284
    %p291 = scmp.eq.s32.totalorder %s33, 1
    %p292 = por %p290, %p291
    %p293 = scmp.ne.s32.totalorder %s284, %s285
    %p294 = scmp.eq.s32.totalorder %s33, 0
    %p295 = por %p293, %p294
    %p296 = scmp.ne.s32.totalorder %s284, %s285
    %p297 = scmp.eq.s32.totalorder %s34, 1
    %p298 = por %p296, %p297
    %p300 = scmp.ne.s32.totalorder %s285, %s299
    %p301 = scmp.eq.s32.totalorder %s34, 0
    %p302 = por %p300, %p301
    %s304 = sadd.s32 %s303, 1
    %p307 = scmp.eq.s32.totalorder %s28, 1
    %p308 = scmp.ne.s32.totalorder %s303, %s305
    %p309 = scmp.eq.s32.totalorder %s28, 0
    %p310 = por %p308, %p309
    %p311 = scmp.ne.s32.totalorder %s303, %s305
    %p312 = scmp.eq.s32.totalorder %s33, 1
    %p313 = por %p311, %p312
    %p314 = scmp.ne.s32.totalorder %s305, %s306
    %p315 = scmp.eq.s32.totalorder %s33, 0
    %p316 = por %p314, %p315
    %p317 = scmp.ne.s32.totalorder %s305, %s306
    %p318 = scmp.eq.s32.totalorder %s34, 1
    %p319 = por %p317, %p318
    %p321 = scmp.ne.s32.totalorder %s306, %s320
    %p322 = scmp.eq.s32.totalorder %s34, 0
    %p323 = por %p321, %p322
    %s324 = ssub.s32 %s28, %s35
    %p325 = scmp.eq.s32.totalorder %s324, 0
    %s327 = sadd.s32 %s326, 1
    %s328 = scalar_select %p325, %s326, %s327
    %p331 = pneg %p325
    %p332 = scmp.eq.s32.totalorder %s28, 1
    %p333 = por %p331, %p332
    %p334 = scmp.ne.s32.totalorder %s326, %s329
    %p335 = scmp.eq.s32.totalorder %s28, 0
    %p336 = por %p334, %p335
    %p337 = scmp.ne.s32.totalorder %s326, %s329
    %p338 = scmp.eq.s32.totalorder %s33, 1
    %p339 = por %p337, %p338
    %p340 = scmp.ne.s32.totalorder %s329, %s330
    %p341 = scmp.eq.s32.totalorder %s33, 0
    %p342 = por %p340, %p341
    %p343 = scmp.ne.s32.totalorder %s329, %s330
    %p344 = scmp.eq.s32.totalorder %s34, 1
    %p345 = por %p343, %p344
    %p347 = scmp.ne.s32.totalorder %s330, %s346
    %p348 = scmp.eq.s32.totalorder %s34, 0
    %p349 = por %p347, %p348
    %p350 = scmp.le.s32.totalorder 1, %s28
    %p351 = scmp.lt.s32.totalorder %s28, 3
    %p352 = pnand %p350, %p351
    %p353 = pneg %p352
    // Predicated region
    $region9: #{sar_head_forward.5} parent=5 // pred_check
      _
    $region10: #{sar_head_forward.5} parent=5 // pred_check_branch
      %355 = sbr.rel (%p352) target = $region12
    $region11: #{sar_head_forward.5} parent=5 // pred_region
      %s356 = ssub.s32 %s28, 1
      // Predicated region
      $region13: #{sar_head_forward.5} parent=11 // pred_check
        %p357 = pneg %p127
      $region14: #{sar_head_forward.5} parent=11 // pred_check_branch
        %359 = sbr.rel (%p357) target = $region16
      $region15: #{sar_head_forward.5} parent=11 // pred_region
        _
      $region16: #{sar_head_forward.5} parent=11 // pred_fallthru
        _
      // Predicated region
      $region17: #{sar_head_forward.5} parent=11 // pred_check
        %p360 = pneg %p148
      $region18: #{sar_head_forward.5} parent=11 // pred_check_branch
        %362 = sbr.rel (%p360) target = $region20
      $region19: #{sar_head_forward.5} parent=11 // pred_region
        _
      $region20: #{sar_head_forward.5} parent=11 // pred_fallthru
        _
      // Predicated region
      $region21: #{sar_head_forward.5} parent=11 // pred_check
        %p363 = pneg %p169
      $region22: #{sar_head_forward.5} parent=11 // pred_check_branch
        %365 = sbr.rel (%p363) target = $region24
      $region23: #{sar_head_forward.5} parent=11 // pred_region
        _
      $region24: #{sar_head_forward.5} parent=11 // pred_fallthru
        _
      // Predicated region
      $region25: #{sar_head_forward.5} parent=11 // pred_check
        %p366 = pneg %p190
      $region26: #{sar_head_forward.5} parent=11 // pred_check_branch
        %368 = sbr.rel (%p366) target = $region28
      $region27: #{sar_head_forward.5} parent=11 // pred_region
        _
      $region28: #{sar_head_forward.5} parent=11 // pred_fallthru
        _
      // Predicated region
      $region29: #{sar_head_forward.5} parent=11 // pred_check
        %p369 = pneg %p211
      $region30: #{sar_head_forward.5} parent=11 // pred_check_branch
        %371 = sbr.rel (%p369) target = $region32
      $region31: #{sar_head_forward.5} parent=11 // pred_region
        _
      $region32: #{sar_head_forward.5} parent=11 // pred_fallthru
        _
      // Predicated region
      $region33: #{sar_head_forward.5} parent=11 // pred_check
        %p372 = pneg %p232
      $region34: #{sar_head_forward.5} parent=11 // pred_check_branch
        %374 = sbr.rel (%p372) target = $region36
      $region35: #{sar_head_forward.5} parent=11 // pred_region
        _
      $region36: #{sar_head_forward.5} parent=11 // pred_fallthru
        _
      // Predicated region
      $region37: #{sar_head_forward.5} parent=11 // pred_check
        %p375 = pneg %p253
      $region38: #{sar_head_forward.5} parent=11 // pred_check_branch
        %377 = sbr.rel (%p375) target = $region40
      $region39: #{sar_head_forward.5} parent=11 // pred_region
        _
      $region40: #{sar_head_forward.5} parent=11 // pred_fallthru
        _
      // Predicated region
      $region41: #{sar_head_forward.5} parent=11 // pred_check
        %p378 = pneg %p274
      $region42: #{sar_head_forward.5} parent=11 // pred_check_branch
        %380 = sbr.rel (%p378) target = $region44
      $region43: #{sar_head_forward.5} parent=11 // pred_region
        _
      $region44: #{sar_head_forward.5} parent=11 // pred_fallthru
        _
      // Predicated region
      $region45: #{sar_head_forward.5} parent=11 // pred_check
        %p381 = pneg %p295
      $region46: #{sar_head_forward.5} parent=11 // pred_check_branch
        %383 = sbr.rel (%p381) target = $region48
      $region47: #{sar_head_forward.5} parent=11 // pred_region
        _
      $region48: #{sar_head_forward.5} parent=11 // pred_fallthru
        _
      // Predicated region
      $region49: #{sar_head_forward.5} parent=11 // pred_check
        %p384 = pneg %p316
      $region50: #{sar_head_forward.5} parent=11 // pred_check_branch
        %386 = sbr.rel (%p384) target = $region52
      $region51: #{sar_head_forward.5} parent=11 // pred_region
        _
      $region52: #{sar_head_forward.5} parent=11 // pred_fallthru
        _
    $region12: #{sar_head_forward.5} parent=5 // pred_fallthru
      _
    %p387 = scmp.lt.s32.totalorder %s28, 2
    // Predicated region
    $region53: #{sar_head_forward.5} parent=5 // pred_check
      %p388 = pneg %p387
    $region54: #{sar_head_forward.5} parent=5 // pred_check_branch
      %390 = sbr.rel (%p388) target = $region56
    $region55: #{sar_head_forward.5} parent=5 // pred_region
      // Predicated region
      $region57: #{sar_head_forward.5} parent=55 // pred_check
        %p391 = pneg %p48
      $region58: #{sar_head_forward.5} parent=55 // pred_check_branch
        %393 = sbr.rel (%p391) target = $region60
      $region59: #{sar_head_forward.5} parent=55 // pred_region
        %p394 = scmp.lt.s32.totalorder %s28, 1
        %s395 = scalar_select %p394, %s28, 1
        %s396 = smul.addr %s395, 8
        %s397 = scalar_lea.vmem %s1, %s396
      $region60: #{sar_head_forward.5} parent=55 // pred_fallthru
        _
      // Predicated region
      $region61: #{sar_head_forward.5} parent=55 // pred_check
        %p398 = pneg %p74
      $region62: #{sar_head_forward.5} parent=55 // pred_check_branch
        %400 = sbr.rel (%p398) target = $region64
      $region63: #{sar_head_forward.5} parent=55 // pred_region
        %p401 = scmp.lt.s32.totalorder %s28, 1
        %s402 = scalar_select %p401, %s28, 1
        %s403 = smul.addr %s402, 16
        %s404 = smul.addr %s403, 8
        %s405 = scalar_lea.vmem %s2, %s404
      $region64: #{sar_head_forward.5} parent=55 // pred_fallthru
        _
      // Predicated region
      $region65: #{sar_head_forward.5} parent=55 // pred_check
        %p406 = pneg %p100
      $region66: #{sar_head_forward.5} parent=55 // pred_check_branch
        %408 = sbr.rel (%p406) target = $region68
      $region67: #{sar_head_forward.5} parent=55 // pred_region
        %p409 = scmp.lt.s32.totalorder %s28, 1
        %s410 = scalar_select %p409, %s28, 1
        %s411 = scalar_lea.vmem %s3, %s410
      $region68: #{sar_head_forward.5} parent=55 // pred_fallthru
        _
    $region56: #{sar_head_forward.5} parent=5 // pred_fallthru
      _
    %p412 = scmp.le.s32.totalorder 1, %s28
    %p413 = scmp.lt.s32.totalorder %s28, 3
    %p414 = pnand %p412, %p413
    %p415 = pneg %p414
    // Predicated region
    $region69: #{sar_head_forward.5} parent=5 // pred_check
      _
    $region70: #{sar_head_forward.5} parent=5 // pred_check_branch
      %417 = sbr.rel (%p414) target = $region72
    $region71: #{sar_head_forward.5} parent=5 // pred_region
      %s418 = ssub.s32 %s28, 1
      %p419 = scmp.lt.s32.totalorder %s33, 1
      %s420 = scalar_select %p419, %s33, 1
      %s421 = smul.addr %s420, 8
      %s422 = scalar_lea.vmem %s1, %s421
      %p423 = pneg %p54
      %p424 = pneg %p51
      %p425 = scmp.lt.s32.totalorder %s33, 1
      %s426 = scalar_select %p425, %s33, 1
      %s427 = smul.addr %s426, 16
      %s428 = smul.addr %s427, 8
      %s429 = scalar_lea.vmem %s2, %s428
      %p430 = pneg %p80
      %p431 = pneg %p77
      %p432 = scmp.lt.s32.totalorder %s33, 1
      %s433 = scalar_select %p432, %s33, 1
      %s434 = scalar_lea.vmem %s3, %s433
      %p435 = pneg %p106
      %p436 = pneg %p103
      %p437 = pneg %p127
      %p438 = pneg %p124
      %p439 = pneg %p148
      %p440 = pneg %p145
      %p441 = pneg %p169
      %p442 = pneg %p166
      %p443 = pneg %p190
      %p444 = pneg %p187
      %p445 = pneg %p211
      %p446 = pneg %p208
      %p447 = pneg %p232
      %p448 = pneg %p229
      %p449 = pneg %p253
      %p450 = pneg %p250
      %p451 = pneg %p274
      %p452 = pneg %p271
      %p453 = pneg %p295
      %p454 = pneg %p292
      %p455 = pneg %p316
      %p456 = pneg %p313
      %p457 = pneg %p342
      %p458 = pneg %p339
      %p459 = scmp.lt.s32.totalorder %s33, 1
      %s460 = scalar_select %p459, %s33, 1
      %s461 = smul.addr %s460, 8
      %s462 = scalar_lea.vmem %s14, %s461
      %p463 = scmp.lt.s32.totalorder %s33, 1
      %s464 = scalar_select %p463, %s33, 1
      %s465 = smul.addr %s464, 8
      %s466 = scalar_lea.vmem %s1, %s465
      %p467 = scmp.lt.s32.totalorder %s33, 1
      %s468 = scalar_select %p467, %s33, 1
      %s469 = smul.addr %s468, 16
      %s470 = smul.addr %s469, 8
      %s471 = scalar_lea.vmem %s2, %s470
      %p472 = scmp.lt.s32.totalorder %s33, 1
      %s473 = scalar_select %p472, %s33, 1
      %s474 = scalar_lea.vmem %s3, %s473
      %p475 = scmp.lt.s32.totalorder %s33, 1
      %s476 = scalar_select %p475, %s33, 1
      %s477 = smul.addr %s476, 8
      %s478 = scalar_lea.vmem %s14, %s477
      %vm480 = vcmask 261120
      %481 = vst.msk [vmem:[#allocation2] sm:$0xff] %vm480, 0.0
      %482 = vst.msk [vmem:[#allocation2 + $0x8] sm:$0xff] %vm480, 0.0
      %vm483 = vcmask 254976
      %484 = vst.msk [vmem:[#allocation2 + $0x10] sm:$0x3] %vm483, 0.0
      %485 = vst.msk [vmem:[#allocation2 + $0x18] sm:$0xff] %vm480, 0.0
      %486 = vst.msk [vmem:[#allocation2 + $0x20] sm:$0xff] %vm480, 0.0
      %487 = vst.msk [vmem:[#allocation2 + $0x28] sm:$0x3] %vm483, 0.0
      %488 = vst.msk [vmem:[#allocation2 + $0x30] sm:$0xff] %vm480, 0.0
      %489 = vst.msk [vmem:[#allocation2 + $0x38] sm:$0xff] %vm480, 0.0
      %490 = vst.msk [vmem:[#allocation2 + $0x40] sm:$0x3] %vm483, 0.0
      %491 = vst.msk [vmem:[#allocation2 + $0x48] sm:$0xff] %vm480, 0.0
      %492 = vst.msk [vmem:[#allocation2 + $0x50] sm:$0xff] %vm480, 0.0
      %493 = vst.msk [vmem:[#allocation2 + $0x58] sm:$0x3] %vm483, 0.0
      %494 = vst.msk [vmem:[#allocation2 + $0x60] sm:$0xff] %vm480, 0.0
      %495 = vst.msk [vmem:[#allocation2 + $0x68] sm:$0xff] %vm480, 0.0
      %496 = vst.msk [vmem:[#allocation2 + $0x70] sm:$0x3] %vm483, 0.0
      %497 = vst.msk [vmem:[#allocation2 + $0x78] sm:$0xff] %vm480, 0.0
      %498 = vst.msk [vmem:[#allocation2 + $0x80] sm:$0xff] %vm480, 0.0
      %499 = vst.msk [vmem:[#allocation2 + $0x88] sm:$0x3] %vm483, 0.0
      %500 = vst.msk [vmem:[#allocation2 + $0x90] sm:$0xff] %vm480, 0.0
      %501 = vst.msk [vmem:[#allocation2 + $0x98] sm:$0xff] %vm480, 0.0
      %502 = vst.msk [vmem:[#allocation2 + $0xa0] sm:$0x3] %vm483, 0.0
      %503 = vst.msk [vmem:[#allocation2 + $0xa8] sm:$0xff] %vm480, 0.0
      %504 = vst.msk [vmem:[#allocation2 + $0xb0] sm:$0xff] %vm480, 0.0
      %505 = vst.msk [vmem:[#allocation2 + $0xb8] sm:$0x3] %vm483, 0.0
      %506 = vst.msk [vmem:[#allocation2 + $0xc0] sm:$0xff] %vm480, 0.0
      %507 = vst.msk [vmem:[#allocation2 + $0xc8] sm:$0xff] %vm480, 0.0
      %508 = vst.msk [vmem:[#allocation2 + $0xd0] sm:$0x3] %vm483, 0.0
      %509 = vst.msk [vmem:[#allocation2 + $0xd8] sm:$0xff] %vm480, 0.0
      %510 = vst.msk [vmem:[#allocation2 + $0xe0] sm:$0xff] %vm480, 0.0
      %511 = vst.msk [vmem:[#allocation2 + $0xe8] sm:$0x3] %vm483, 0.0
      %v512 = vld [vmem:[%s471] sm:$0xff]
      %v513 = vld [vmem:[%s471 + $0x8] sm:$0xff]
      %v514 = vld [vmem:[%s471 + $0x10] sm:$0xff]
      %v515 = vld [vmem:[%s471 + $0x18] sm:$0xff]
      %v516 = vld [vmem:[%s471 + $0x20] sm:$0xff]
      %v517 = vld [vmem:[%s471 + $0x28] sm:$0xff]
      %v518 = vld [vmem:[%s471 + $0x30] sm:$0xff]
      %v519 = vld [vmem:[%s471 + $0x38] sm:$0xff]
      %v520 = vld [vmem:[%s471 + $0x40] sm:$0xff]
      %v521 = vld [vmem:[%s471 + $0x48] sm:$0xff]
      %v522 = vld [vmem:[%s471 + $0x50] sm:$0xff]
      %v523 = vld [vmem:[%s471 + $0x58] sm:$0xff]
      %v524 = vld [vmem:[%s471 + $0x60] sm:$0xff]
      %v525 = vld [vmem:[%s471 + $0x68] sm:$0xff]
      %v526 = vld [vmem:[%s471 + $0x70] sm:$0xff]
      %v527 = vld [vmem:[%s471 + $0x78] sm:$0xff]
      %s528 = scalar_lea.vmem [#allocation2], 24
      %529 = vst.msk [vmem:[%s528 + $0x1] sm:$0xff] %vm480, %v512
      %530 = vst.msk [vmem:[%s528 + $0x9] sm:$0xff] %vm480, %v513
      %531 = vst.msk [vmem:[%s528 + $0x19] sm:$0xff] %vm480, %v514
      %532 = vst.msk [vmem:[%s528 + $0x21] sm:$0xff] %vm480, %v515
      %533 = vst.msk [vmem:[%s528 + $0x31] sm:$0xff] %vm480, %v516
      %534 = vst.msk [vmem:[%s528 + $0x39] sm:$0xff] %vm480, %v517
      %535 = vst.msk [vmem:[%s528 + $0x49] sm:$0xff] %vm480, %v518
      %536 = vst.msk [vmem:[%s528 + $0x51] sm:$0xff] %vm480, %v519
      %537 = vst.msk [vmem:[%s528 + $0x61] sm:$0xff] %vm480, %v520
      %538 = vst.msk [vmem:[%s528 + $0x69] sm:$0xff] %vm480, %v521
      %539 = vst.msk [vmem:[%s528 + $0x79] sm:$0xff] %vm480, %v522
      %540 = vst.msk [vmem:[%s528 + $0x81] sm:$0xff] %vm480, %v523
      %541 = vst.msk [vmem:[%s528 + $0x91] sm:$0xff] %vm480, %v524
      %542 = vst.msk [vmem:[%s528 + $0x99] sm:$0xff] %vm480, %v525
      %543 = vst.msk [vmem:[%s528 + $0xa9] sm:$0xff] %vm480, %v526
      %544 = vst.msk [vmem:[%s528 + $0xb1] sm:$0xff] %vm480, %v527
      %v545 = vld [vmem:[%s466] sm:$0xff]
      %v546 = vpack.c.bf16 %v545, %v545
      %v547 = vld [vmem:[%s474] sm:$0x1]
      %v548 = vpack.c.bf16 %v547, %v547
      %v549 = vld [vmem:[%s4] sm:$0xf]
      %v550 = vld [vmem:[%s4 + $0x4] sm:$0xf]
      %v551 = vld [vmem:[%s4 + $0x8] sm:$0xf]
      %v552 = vld [vmem:[%s4 + $0xc] sm:$0xf]
      %v553 = vld [vmem:[%s4 + $0x10] sm:$0xf]
      %v554 = vld [vmem:[%s4 + $0x14] sm:$0xf]
      %v555 = vld [vmem:[%s4 + $0x18] sm:$0xf]
      %v556 = vld [vmem:[%s4 + $0x1c] sm:$0xf]
      %v557 = vld [vmem:[%s4 + $0x20] sm:$0xf]
      %v558 = vld [vmem:[%s4 + $0x24] sm:$0xf]
      %v559 = vld [vmem:[%s4 + $0x28] sm:$0xf]
      %v560 = vld [vmem:[%s4 + $0x2c] sm:$0xf]
      %v561 = vld [vmem:[%s4 + $0x30] sm:$0xf]
      %v562 = vld [vmem:[%s4 + $0x34] sm:$0xf]
      %v563 = vld [vmem:[%s4 + $0x38] sm:$0xf]
      %v564 = vld [vmem:[%s4 + $0x3c] sm:$0xf]
      %v565 = vld [vmem:[%s5] sm:$0x1]
      %v567 = vlaneseq
      %v568 = vshrl.u32 %v567, 7
      %v569 = vsub.s32 0, %v568
      %v570 = vrot.slane %v565, %v569
      %v588 = vunpack.c.l.b16 %v549
      %v589 = vunpack.c.l.b16 %v550
      %v590 = vunpack.c.l.b16 %v551
      %v591 = vunpack.c.l.b16 %v552
      %v592 = vunpack.c.l.b16 %v553
      %v593 = vunpack.c.l.b16 %v554
      %v594 = vunpack.c.l.b16 %v555
      %v595 = vunpack.c.l.b16 %v556
      %v596 = vunpack.c.l.b16 %v557
      %v597 = vunpack.c.l.b16 %v558
      %v598 = vunpack.c.l.b16 %v559
      %v599 = vunpack.c.l.b16 %v560
      %v600 = vunpack.c.l.b16 %v561
      %v601 = vunpack.c.l.b16 %v562
      %v602 = vunpack.c.l.b16 %v563
      %v603 = vunpack.c.l.b16 %v564
      %v604 = vpack.c.b16 %v589, %v588
      %v605 = vpack.c.b16 %v591, %v590
      %v606 = vpack.c.b16 %v593, %v592
      %v607 = vpack.c.b16 %v595, %v594
      %v608 = vpack.c.b16 %v597, %v596
      %v609 = vpack.c.b16 %v599, %v598
      %v610 = vpack.c.b16 %v601, %v600
      %v611 = vpack.c.b16 %v603, %v602
      %620 = vmatprep.subr.bf16.mxu0 0
      %621 = vmatpush1.bf16.msra.mxu0 %v604
      %622 = vmatprep.subr.bf16.mxu0 0
      %623 = vmatpush1.bf16.msra.mxu0 %v605
      %624 = vmatprep.subr.bf16.mxu0 0
      %625 = vmatpush1.bf16.msra.mxu0 %v606
      %626 = vmatprep.subr.bf16.mxu0 0
      %627 = vmatpush1.bf16.msra.mxu0 %v607
      %628 = vmatprep.subr.bf16.mxu0 0
      %629 = vmatpush1.bf16.msra.mxu0 %v608
      %630 = vmatprep.subr.bf16.mxu0 0
      %631 = vmatpush1.bf16.msra.mxu0 %v609
      %632 = vmatprep.subr.bf16.mxu0 0
      %633 = vmatpush1.bf16.msra.mxu0 %v610
      %634 = vmatprep.subr.bf16.mxu0 0
      %635 = vmatpush1.bf16.msra.mxu0 %v611
      %636 = vmatprep.subr.bf16.mxu0 0
      %637 = vmatpush1.bf16.msra.mxu0 0
      %638 = vmatprep.subr.bf16.mxu0 0
      %639 = vmatpush1.bf16.msra.mxu0 0
      %640 = vmatprep.subr.bf16.mxu0 0
      %641 = vmatpush1.bf16.msra.mxu0 0
      %642 = vmatprep.subr.bf16.mxu0 0
      %643 = vmatpush1.bf16.msra.mxu0 0
      %644 = vmatprep.subr.bf16.mxu0 0
      %645 = vmatpush1.bf16.msra.mxu0 0
      %646 = vmatprep.subr.bf16.mxu0 0
      %647 = vmatpush1.bf16.msra.mxu0 0
      %648 = vmatprep.subr.bf16.mxu0 0
      %649 = vmatpush1.bf16.msra.mxu0 0
      %650 = vmatprep.subr.bf16.mxu0 0
      %651 = vmatpush1.bf16.msra.mxu0 0
      %652 = vmatprep.mubr.bf16.mxu0 0
      %653 = vmatmul.mubr.bf16.gmra.mrb[0].mxu0 %v546
      %v654 = vpop.f32.mrb[0].mxu0
      %v655 = vadd.f32 %v570, %v654
      %v656 = vpop.f32.mrb[0].mxu0
      %v657 = vpop.f32.mrb[0].mxu0
      %v658 = vpop.f32.mrb[0].mxu0
      %659 = vdwg.mxu0
      %v660 = vld [vmem:[#allocation2] sm:$0xff]
      %v661 = vld [vmem:[#allocation2 + $0x8] sm:$0xff]
      %v662 = vld [vmem:[#allocation2 + $0x18] sm:$0xff]
      %v663 = vld [vmem:[#allocation2 + $0x20] sm:$0xff]
      %v664 = vld [vmem:[#allocation2 + $0x30] sm:$0xff]
      %v665 = vld [vmem:[#allocation2 + $0x38] sm:$0xff]
      %v666 = vld [vmem:[#allocation2 + $0x48] sm:$0xff]
      %v667 = vld [vmem:[#allocation2 + $0x50] sm:$0xff]
      %v668 = vld [vmem:[#allocation2 + $0x60] sm:$0xff]
      %v669 = vld [vmem:[#allocation2 + $0x68] sm:$0xff]
      %v670 = vld [vmem:[#allocation2 + $0x78] sm:$0xff]
      %v671 = vld [vmem:[#allocation2 + $0x80] sm:$0xff]
      %v672 = vld [vmem:[#allocation2 + $0x90] sm:$0xff]
      %v673 = vld [vmem:[#allocation2 + $0x98] sm:$0xff]
      %v674 = vld [vmem:[#allocation2 + $0xa8] sm:$0xff]
      %v675 = vld [vmem:[#allocation2 + $0xb0] sm:$0xff]
      %v676 = vld [vmem:[#allocation2 + $0xc0] sm:$0xff]
      %v677 = vld [vmem:[#allocation2 + $0xc8] sm:$0xff]
      %v678 = vld [vmem:[#allocation2 + $0xd8] sm:$0xff]
      %v679 = vld [vmem:[#allocation2 + $0xe0] sm:$0xff]
      %v680 = vpack.c.bf16 %v661, %v660
      %v681 = vpack.c.bf16 %v663, %v662
      %v682 = vpack.c.bf16 %v665, %v664
      %v683 = vpack.c.bf16 %v667, %v666
      %v684 = vpack.c.bf16 %v669, %v668
      %v685 = vpack.c.bf16 %v671, %v670
      %v686 = vpack.c.bf16 %v673, %v672
      %v687 = vpack.c.bf16 %v675, %v674
      %v688 = vld [vmem:[%s6] sm:$0xf]
      %v689 = vld [vmem:[%s6 + $0x4] sm:$0xf]
      %v690 = vld [vmem:[%s6 + $0x8] sm:$0xf]
      %v691 = vld [vmem:[%s6 + $0xc] sm:$0xf]
      %v692 = vpack.c.bf16 %v677, %v676
      %s693 = scalar_lea.vmem %s6, 48
      %v694 = vld [vmem:[%s693] sm:$0xf]
      %v695 = vld [vmem:[%s693 + $0x4] sm:$0xf]
      %v696 = vld [vmem:[%s693 + $0x8] sm:$0xf]
      %v697 = vld [vmem:[%s693 + $0xc] sm:$0xf]
      %v702 = vunpack.c.l.b16 %v694
      %v703 = vunpack.c.l.b16 %v695
      %v704 = vunpack.c.l.b16 %v696
      %v705 = vunpack.c.l.b16 %v697
      %v706 = vpack.c.b16 %v703, %v702
      %v707 = vpack.c.b16 %v705, %v704
      %v711 = vsel %vm480, %v681, 0
      %v714 = vsel %vm480, %v682, 0
      %v717 = vsel %vm480, %v683, 0
      %v720 = vsel %vm480, %v684, 0
      %v723 = vsel %vm480, %v685, 0
      %v726 = vsel %vm480, %v686, 0
      %v729 = vsel %vm480, %v687, 0
      %v732 = vsel %vm480, %v692, 0
      %734 = vmatprep.subr.bf16.mxu0 0
      %735 = vmatpush1.bf16.msra.mxu0 %v706
      %736 = vmatprep.subr.bf16.mxu0 0
      %737 = vmatpush1.bf16.msra.mxu0 %v707
      %738 = vmatprep.subr.bf16.mxu0 0
      %739 = vmatpush1.bf16.msra.mxu0 0
      %740 = vmatprep.subr.bf16.mxu0 0
      %741 = vmatpush1.bf16.msra.mxu0 0
      %742 = vmatprep.subr.bf16.mxu0 0
      %743 = vmatpush1.bf16.msra.mxu0 0
      %744 = vmatprep.subr.bf16.mxu0 0
      %745 = vmatpush1.bf16.msra.mxu0 0
      %746 = vmatprep.subr.bf16.mxu0 0
      %747 = vmatpush1.bf16.msra.mxu0 0
      %748 = vmatprep.subr.bf16.mxu0 0
      %749 = vmatpush1.bf16.msra.mxu0 0
      %750 = vmatprep.subr.bf16.mxu0 0
      %751 = vmatpush1.bf16.msra.mxu0 0
      %752 = vmatprep.subr.bf16.mxu0 0
      %753 = vmatpush1.bf16.msra.mxu0 0
      %754 = vmatprep.subr.bf16.mxu0 0
      %755 = vmatpush1.bf16.msra.mxu0 0
      %756 = vmatprep.subr.bf16.mxu0 0
      %757 = vmatpush1.bf16.msra.mxu0 0
      %758 = vmatprep.subr.bf16.mxu0 0
      %759 = vmatpush1.bf16.msra.mxu0 0
      %760 = vmatprep.subr.bf16.mxu0 0
      %761 = vmatpush1.bf16.msra.mxu0 0
      %762 = vmatprep.subr.bf16.mxu0 0
      %763 = vmatpush1.bf16.msra.mxu0 0
      %764 = vmatprep.subr.bf16.mxu0 0
      %765 = vmatpush1.bf16.msra.mxu0 0
      %766 = vmatprep.mubr.bf16.mxu0 0
      %767 = vmatmul.mubr.bf16.gmra.mrb[0].mxu0 %v711
      %v768 = vpop.f32.mrb[0].mxu0
      %v769 = vadd.f32 0.0, %v768
      %v770 = vpop.f32.mrb[0].mxu0
      %v771 = vpop.f32.mrb[0].mxu0
      %v772 = vadd.f32 0.0, %v771
      %v773 = vpop.f32.mrb[0].mxu0
      %774 = vmatprep.mubr.bf16.mxu0 0
      %775 = vmatmul.mubr.bf16.gmra.mrb[0].mxu0 %v714
      %v776 = vpop.f32.mrb[0].mxu0
      %v777 = vadd.f32 0.0, %v776
      %v778 = vpop.f32.mrb[0].mxu0
      %v779 = vpop.f32.mrb[0].mxu0
      %v780 = vadd.f32 0.0, %v779
      %v781 = vpop.f32.mrb[0].mxu0
      %782 = vmatprep.mubr.bf16.mxu0 0
      %783 = vmatmul.mubr.bf16.gmra.mrb[0].mxu0 %v717
      %v784 = vpop.f32.mrb[0].mxu0
      %v785 = vadd.f32 0.0, %v784
      %v786 = vpop.f32.mrb[0].mxu0
      %v787 = vpop.f32.mrb[0].mxu0
      %v788 = vadd.f32 0.0, %v787
      %v789 = vpop.f32.mrb[0].mxu0
      %790 = vmatprep.mubr.bf16.mxu0 0
      %791 = vmatmul.mubr.bf16.gmra.mrb[0].mxu0 %v720
      %v792 = vpop.f32.mrb[0].mxu0
      %v793 = vadd.f32 0.0, %v792
      %v794 = vpop.f32.mrb[0].mxu0
      %v795 = vpop.f32.mrb[0].mxu0
      %v796 = vadd.f32 0.0, %v795
      %v797 = vpop.f32.mrb[0].mxu0
      %798 = vmatprep.mubr.bf16.mxu0 0
      %799 = vmatmul.mubr.bf16.gmra.mrb[0].mxu0 %v723
      %v800 = vpop.f32.mrb[0].mxu0
      %v801 = vadd.f32 0.0, %v800
      %v802 = vpop.f32.mrb[0].mxu0
      %v803 = vpop.f32.mrb[0].mxu0
      %v804 = vadd.f32 0.0, %v803
      %v805 = vpop.f32.mrb[0].mxu0
      %806 = vmatprep.mubr.bf16.mxu0 0
      %807 = vmatmul.mubr.bf16.gmra.mrb[0].mxu0 %v726
      %v808 = vpop.f32.mrb[0].mxu0
      %v809 = vadd.f32 0.0, %v808
      %v810 = vpop.f32.mrb[0].mxu0
      %v811 = vpop.f32.mrb[0].mxu0
      %v812 = vadd.f32 0.0, %v811
      %v813 = vpop.f32.mrb[0].mxu0
      %814 = vmatprep.mubr.bf16.mxu0 0
      %815 = vmatmul.mubr.bf16.gmra.mrb[0].mxu0 %v729
      %v816 = vpop.f32.mrb[0].mxu0
      %v817 = vadd.f32 0.0, %v816
      %v818 = vpop.f32.mrb[0].mxu0
      %v819 = vpop.f32.mrb[0].mxu0
      %v820 = vadd.f32 0.0, %v819
      %v821 = vpop.f32.mrb[0].mxu0
      %822 = vmatprep.mubr.bf16.mxu0 0
      %823 = vmatmul.mubr.bf16.gmra.mrb[0].mxu0 %v732
      %v824 = vpop.f32.mrb[0].mxu0
      %v825 = vadd.f32 0.0, %v824
      %v826 = vpop.f32.mrb[0].mxu0
      %v827 = vpop.f32.mrb[0].mxu0
      %v828 = vadd.f32 0.0, %v827
      %v829 = vpop.f32.mrb[0].mxu0
      %830 = vdwg.mxu0
      %v835 = vunpack.c.l.b16 %v688
      %v836 = vunpack.c.l.b16 %v689
      %v837 = vunpack.c.l.b16 %v690
      %v838 = vunpack.c.l.b16 %v691
      %v839 = vpack.c.b16 %v836, %v835
      %v840 = vpack.c.b16 %v838, %v837
      %v844 = vsel %vm480, %v680, 0
      %846 = vmatprep.subr.bf16.mxu0 0
      %847 = vmatpush1.bf16.msra.mxu0 %v839
      %848 = vmatprep.subr.bf16.mxu0 0
      %849 = vmatpush1.bf16.msra.mxu0 %v840
      %850 = vmatprep.subr.bf16.mxu0 0
      %851 = vmatpush1.bf16.msra.mxu0 0
      %852 = vmatprep.subr.bf16.mxu0 0
      %853 = vmatpush1.bf16.msra.mxu0 0
      %854 = vmatprep.subr.bf16.mxu0 0
      %855 = vmatpush1.bf16.msra.mxu0 0
      %856 = vmatprep.subr.bf16.mxu0 0
      %857 = vmatpush1.bf16.msra.mxu0 0
      %858 = vmatprep.subr.bf16.mxu0 0
      %859 = vmatpush1.bf16.msra.mxu0 0
      %860 = vmatprep.subr.bf16.mxu0 0
      %861 = vmatpush1.bf16.msra.mxu0 0
      %862 = vmatprep.subr.bf16.mxu0 0
      %863 = vmatpush1.bf16.msra.mxu0 0
      %864 = vmatprep.subr.bf16.mxu0 0
      %865 = vmatpush1.bf16.msra.mxu0 0
      %866 = vmatprep.subr.bf16.mxu0 0
      %867 = vmatpush1.bf16.msra.mxu0 0
      %868 = vmatprep.subr.bf16.mxu0 0
      %869 = vmatpush1.bf16.msra.mxu0 0
      %870 = vmatprep.subr.bf16.mxu0 0
      %871 = vmatpush1.bf16.msra.mxu0 0
      %872 = vmatprep.subr.bf16.mxu0 0
      %873 = vmatpush1.bf16.msra.mxu0 0
      %874 = vmatprep.subr.bf16.mxu0 0
      %875 = vmatpush1.bf16.msra.mxu0 0
      %876 = vmatprep.subr.bf16.mxu0 0
      %877 = vmatpush1.bf16.msra.mxu0 0
      %878 = vmatprep.mubr.bf16.mxu0 0
      %879 = vmatmul.mubr.bf16.gmra.mrb[0].mxu0 %v844
      %v880 = vpop.f32.mrb[0].mxu0
      %v881 = vadd.f32 %v769, %v880
      %v882 = vpop.f32.mrb[0].mxu0
      %v883 = vpop.f32.mrb[0].mxu0
      %v884 = vadd.f32 %v772, %v883
      %v885 = vpop.f32.mrb[0].mxu0
      %886 = vmatprep.mubr.bf16.mxu0 0
      %887 = vmatmul.mubr.bf16.gmra.mrb[0].mxu0 %v711
      %v888 = vpop.f32.mrb[0].mxu0
      %v889 = vadd.f32 %v777, %v888
      %v890 = vpop.f32.mrb[0].mxu0
      %v891 = vpop.f32.mrb[0].mxu0
      %v892 = vadd.f32 %v780, %v891
      %v893 = vpop.f32.mrb[0].mxu0
      %894 = vmatprep.mubr.bf16.mxu0 0
      %895 = vmatmul.mubr.bf16.gmra.mrb[0].mxu0 %v714
      %v896 = vpop.f32.mrb[0].mxu0
      %v897 = vadd.f32 %v785, %v896
      %v898 = vpop.f32.mrb[0].mxu0
      %v899 = vpop.f32.mrb[0].mxu0
      %v900 = vadd.f32 %v788, %v899
      %v901 = vpop.f32.mrb[0].mxu0
      %902 = vmatprep.mubr.bf16.mxu0 0
      %903 = vmatmul.mubr.bf16.gmra.mrb[0].mxu0 %v717
      %v904 = vpop.f32.mrb[0].mxu0
      %v905 = vadd.f32 %v793, %v904
      %v906 = vpop.f32.mrb[0].mxu0
      %v907 = vpop.f32.mrb[0].mxu0
      %v908 = vadd.f32 %v796, %v907
      %v909 = vpop.f32.mrb[0].mxu0
      %910 = vmatprep.mubr.bf16.mxu0 0
      %911 = vmatmul.mubr.bf16.gmra.mrb[0].mxu0 %v720
      %v912 = vpop.f32.mrb[0].mxu0
      %v913 = vadd.f32 %v801, %v912
      %v914 = vpop.f32.mrb[0].mxu0
      %v915 = vpop.f32.mrb[0].mxu0
      %v916 = vadd.f32 %v804, %v915
      %v917 = vpop.f32.mrb[0].mxu0
      %918 = vmatprep.mubr.bf16.mxu0 0
      %919 = vmatmul.mubr.bf16.gmra.mrb[0].mxu0 %v723
      %v920 = vpop.f32.mrb[0].mxu0
      %v921 = vadd.f32 %v809, %v920
      %v922 = vpop.f32.mrb[0].mxu0
      %v923 = vpop.f32.mrb[0].mxu0
      %v924 = vadd.f32 %v812, %v923
      %v925 = vpop.f32.mrb[0].mxu0
      %926 = vmatprep.mubr.bf16.mxu0 0
      %927 = vmatmul.mubr.bf16.gmra.mrb[0].mxu0 %v726
      %v928 = vpop.f32.mrb[0].mxu0
      %v929 = vadd.f32 %v817, %v928
      %v930 = vpop.f32.mrb[0].mxu0
      %v931 = vpop.f32.mrb[0].mxu0
      %v932 = vadd.f32 %v820, %v931
      %v933 = vpop.f32.mrb[0].mxu0
      %934 = vmatprep.mubr.bf16.mxu0 0
      %935 = vmatmul.mubr.bf16.gmra.mrb[0].mxu0 %v729
      %v936 = vpop.f32.mrb[0].mxu0
      %v937 = vadd.f32 %v825, %v936
      %v938 = vpop.f32.mrb[0].mxu0
      %v939 = vpop.f32.mrb[0].mxu0
      %v940 = vadd.f32 %v828, %v939
      %v941 = vpop.f32.mrb[0].mxu0
      %942 = vdwg.mxu0
      %v943 = vpack.c.bf16 %v679, %v678
      %s944 = scalar_lea.vmem %s6, 96
      %v945 = vld [vmem:[%s944] sm:$0xf]
      %v946 = vld [vmem:[%s944 + $0x4] sm:$0xf]
      %v947 = vld [vmem:[%s944 + $0x8] sm:$0xf]
      %v948 = vld [vmem:[%s944 + $0xc] sm:$0xf]
      %v953 = vunpack.c.l.b16 %v945
      %v954 = vunpack.c.l.b16 %v946
      %v955 = vunpack.c.l.b16 %v947
      %v956 = vunpack.c.l.b16 %v948
      %v957 = vpack.c.b16 %v954, %v953
      %v958 = vpack.c.b16 %v956, %v955
      %v962 = vsel %vm480, %v943, 0
      %964 = vmatprep.subr.bf16.mxu0 0
      %965 = vmatpush1.bf16.msra.mxu0 %v957
      %966 = vmatprep.subr.bf16.mxu0 0
      %967 = vmatpush1.bf16.msra.mxu0 %v958
      %968 = vmatprep.subr.bf16.mxu0 0
      %969 = vmatpush1.bf16.msra.mxu0 0
      %970 = vmatprep.subr.bf16.mxu0 0
      %971 = vmatpush1.bf16.msra.mxu0 0
      %972 = vmatprep.subr.bf16.mxu0 0
      %973 = vmatpush1.bf16.msra.mxu0 0
      %974 = vmatprep.subr.bf16.mxu0 0
      %975 = vmatpush1.bf16.msra.mxu0 0
      %976 = vmatprep.subr.bf16.mxu0 0
      %977 = vmatpush1.bf16.msra.mxu0 0
      %978 = vmatprep.subr.bf16.mxu0 0
      %979 = vmatpush1.bf16.msra.mxu0 0
      %980 = vmatprep.subr.bf16.mxu0 0
      %981 = vmatpush1.bf16.msra.mxu0 0
      %982 = vmatprep.subr.bf16.mxu0 0
      %983 = vmatpush1.bf16.msra.mxu0 0
      %984 = vmatprep.subr.bf16.mxu0 0
      %985 = vmatpush1.bf16.msra.mxu0 0
      %986 = vmatprep.subr.bf16.mxu0 0
      %987 = vmatpush1.bf16.msra.mxu0 0
      %988 = vmatprep.subr.bf16.mxu0 0
      %989 = vmatpush1.bf16.msra.mxu0 0
      %990 = vmatprep.subr.bf16.mxu0 0
      %991 = vmatpush1.bf16.msra.mxu0 0
      %992 = vmatprep.subr.bf16.mxu0 0
      %993 = vmatpush1.bf16.msra.mxu0 0
      %994 = vmatprep.subr.bf16.mxu0 0
      %995 = vmatpush1.bf16.msra.mxu0 0
      %996 = vmatprep.mubr.bf16.mxu0 0
      %997 = vmatmul.mubr.bf16.gmra.mrb[0].mxu0 %v714
      %v998 = vpop.f32.mrb[0].mxu0
      %v999 = vadd.f32 0.0, %v998
      %v1000 = vpop.f32.mrb[0].mxu0
      %v1001 = vpop.f32.mrb[0].mxu0
      %v1002 = vadd.f32 0.0, %v1001
      %v1003 = vpop.f32.mrb[0].mxu0
      %1004 = vmatprep.mubr.bf16.mxu0 0
      %1005 = vmatmul.mubr.bf16.gmra.mrb[0].mxu0 %v717
      %v1006 = vpop.f32.mrb[0].mxu0
      %v1007 = vadd.f32 0.0, %v1006
      %v1008 = vpop.f32.mrb[0].mxu0
      %v1009 = vpop.f32.mrb[0].mxu0
      %v1010 = vadd.f32 0.0, %v1009
      %v1011 = vpop.f32.mrb[0].mxu0
      %1012 = vmatprep.mubr.bf16.mxu0 0
      %1013 = vmatmul.mubr.bf16.gmra.mrb[0].mxu0 %v720
      %v1014 = vpop.f32.mrb[0].mxu0
      %v1015 = vadd.f32 0.0, %v1014
      %v1016 = vpop.f32.mrb[0].mxu0
      %v1017 = vpop.f32.mrb[0].mxu0
      %v1018 = vadd.f32 0.0, %v1017
      %v1019 = vpop.f32.mrb[0].mxu0
      %1020 = vmatprep.mubr.bf16.mxu0 0
      %1021 = vmatmul.mubr.bf16.gmra.mrb[0].mxu0 %v723
      %v1022 = vpop.f32.mrb[0].mxu0
      %v1023 = vadd.f32 0.0, %v1022
      %v1024 = vpop.f32.mrb[0].mxu0
      %v1025 = vpop.f32.mrb[0].mxu0
      %v1026 = vadd.f32 0.0, %v1025
      %v1027 = vpop.f32.mrb[0].mxu0
      %1028 = vmatprep.mubr.bf16.mxu0 0
      %1029 = vmatmul.mubr.bf16.gmra.mrb[0].mxu0 %v726
      %v1030 = vpop.f32.mrb[0].mxu0
      %v1031 = vadd.f32 0.0, %v1030
      %v1032 = vpop.f32.mrb[0].mxu0
      %v1033 = vpop.f32.mrb[0].mxu0
      %v1034 = vadd.f32 0.0, %v1033
      %v1035 = vpop.f32.mrb[0].mxu0
      %1036 = vmatprep.mubr.bf16.mxu0 0
      %1037 = vmatmul.mubr.bf16.gmra.mrb[0].mxu0 %v729
      %v1038 = vpop.f32.mrb[0].mxu0
      %v1039 = vadd.f32 0.0, %v1038
      %v1040 = vpop.f32.mrb[0].mxu0
      %v1041 = vpop.f32.mrb[0].mxu0
      %v1042 = vadd.f32 0.0, %v1041
      %v1043 = vpop.f32.mrb[0].mxu0
      %1044 = vmatprep.mubr.bf16.mxu0 0
      %1045 = vmatmul.mubr.bf16.gmra.mrb[0].mxu0 %v732
      %v1046 = vpop.f32.mrb[0].mxu0
      %v1047 = vadd.f32 0.0, %v1046
      %v1048 = vpop.f32.mrb[0].mxu0
      %v1049 = vpop.f32.mrb[0].mxu0
      %v1050 = vadd.f32 0.0, %v1049
      %v1051 = vpop.f32.mrb[0].mxu0
      %1052 = vmatprep.mubr.bf16.mxu0 0
      %1053 = vmatmul.mubr.bf16.gmra.mrb[0].mxu0 %v962
      %v1054 = vpop.f32.mrb[0].mxu0
      %v1055 = vadd.f32 0.0, %v1054
      %v1056 = vpop.f32.mrb[0].mxu0
      %v1057 = vpop.f32.mrb[0].mxu0
      %v1058 = vadd.f32 0.0, %v1057
      %v1059 = vpop.f32.mrb[0].mxu0
      %1060 = vdwg.mxu0
      %v1061 = vadd.f32 %v881, %v999
      %v1062 = vadd.f32 %v884, %v1002
      %v1063 = vadd.f32 %v889, %v1007
      %v1064 = vadd.f32 %v892, %v1010
      %v1065 = vadd.f32 %v897, %v1015
      %v1066 = vadd.f32 %v900, %v1018
      %v1067 = vadd.f32 %v905, %v1023
      %v1068 = vadd.f32 %v908, %v1026
      %v1069 = vadd.f32 %v913, %v1031
      %v1070 = vadd.f32 %v916, %v1034
      %v1071 = vadd.f32 %v921, %v1039
      %v1072 = vadd.f32 %v924, %v1042
      %v1073 = vadd.f32 %v929, %v1047
      %v1074 = vadd.f32 %v932, %v1050
      %v1075 = vadd.f32 %v937, %v1055
      %v1076 = vadd.f32 %v940, %v1058
      %v1077 = vld [vmem:[#allocation2 + $0x1] sm:$0xff]
      %v1078 = vld [vmem:[#allocation2 + $0x9] sm:$0xff]
      %v1079 = vld [vmem:[#allocation2 + $0x19] sm:$0xff]
      %v1080 = vld [vmem:[#allocation2 + $0x21] sm:$0xff]
      %v1081 = vld [vmem:[#allocation2 + $0x31] sm:$0xff]
      %v1082 = vld [vmem:[#allocation2 + $0x39] sm:$0xff]
      %v1083 = vld [vmem:[#allocation2 + $0x49] sm:$0xff]
      %v1084 = vld [vmem:[#allocation2 + $0x51] sm:$0xff]
      %v1085 = vld [vmem:[#allocation2 + $0x61] sm:$0xff]
      %v1086 = vld [vmem:[#allocation2 + $0x69] sm:$0xff]
      %v1087 = vld [vmem:[#allocation2 + $0x79] sm:$0xff]
      %v1088 = vld [vmem:[#allocation2 + $0x81] sm:$0xff]
      %v1089 = vld [vmem:[#allocation2 + $0x91] sm:$0xff]
      %v1090 = vld [vmem:[#allocation2 + $0x99] sm:$0xff]
      %v1091 = vld [vmem:[#allocation2 + $0xa9] sm:$0xff]
      %v1092 = vld [vmem:[#allocation2 + $0xb1] sm:$0xff]
      %v1093 = vld [vmem:[#allocation2 + $0xc1] sm:$0xff]
      %v1094 = vld [vmem:[#allocation2 + $0xc9] sm:$0xff]
      %v1095 = vld [vmem:[#allocation2 + $0xd9] sm:$0xff]
      %v1096 = vld [vmem:[#allocation2 + $0xe1] sm:$0xff]
      %v1097 = vpack.c.bf16 %v1078, %v1077
      %v1098 = vpack.c.bf16 %v1080, %v1079
      %v1099 = vpack.c.bf16 %v1082, %v1081
      %v1100 = vpack.c.bf16 %v1084, %v1083
      %v1101 = vpack.c.bf16 %v1086, %v1085
      %v1102 = vpack.c.bf16 %v1088, %v1087
      %v1103 = vpack.c.bf16 %v1090, %v1089
      %v1104 = vpack.c.bf16 %v1092, %v1091
      %s1105 = scalar_lea.vmem %s6, 16
      %v1106 = vld [vmem:[%s1105] sm:$0xf]
      %v1107 = vld [vmem:[%s1105 + $0x4] sm:$0xf]
      %v1108 = vld [vmem:[%s1105 + $0x8] sm:$0xf]
      %v1109 = vld [vmem:[%s1105 + $0xc] sm:$0xf]
      %v1114 = vunpack.c.l.b16 %v1106
      %v1115 = vunpack.c.l.b16 %v1107
      %v1116 = vunpack.c.l.b16 %v1108
      %v1117 = vunpack.c.l.b16 %v1109
      %v1118 = vpack.c.b16 %v1115, %v1114
      %v1119 = vpack.c.b16 %v1117, %v1116
      %v1123 = vsel %vm480, %v1097, 0
      %v1126 = vsel %vm480, %v1098, 0
      %v1129 = vsel %vm480, %v1099, 0
      %v1132 = vsel %vm480, %v1100, 0
      %v1135 = vsel %vm480, %v1101, 0
      %v1138 = vsel %vm480, %v1102, 0
      %v1141 = vsel %vm480, %v1103, 0
      %v1144 = vsel %vm480, %v1104, 0
      %1146 = vmatprep.subr.bf16.mxu0 0
      %1147 = vmatpush1.bf16.msra.mxu0 %v1118
      %1148 = vmatprep.subr.bf16.mxu0 0
      %1149 = vmatpush1.bf16.msra.mxu0 %v1119
      %1150 = vmatprep.subr.bf16.mxu0 0
      %1151 = vmatpush1.bf16.msra.mxu0 0
      %1152 = vmatprep.subr.bf16.mxu0 0
      %1153 = vmatpush1.bf16.msra.mxu0 0
      %1154 = vmatprep.subr.bf16.mxu0 0
      %1155 = vmatpush1.bf16.msra.mxu0 0
      %1156 = vmatprep.subr.bf16.mxu0 0
      %1157 = vmatpush1.bf16.msra.mxu0 0
      %1158 = vmatprep.subr.bf16.mxu0 0
      %1159 = vmatpush1.bf16.msra.mxu0 0
      %1160 = vmatprep.subr.bf16.mxu0 0
      %1161 = vmatpush1.bf16.msra.mxu0 0
      %1162 = vmatprep.subr.bf16.mxu0 0
      %1163 = vmatpush1.bf16.msra.mxu0 0
      %1164 = vmatprep.subr.bf16.mxu0 0
      %1165 = vmatpush1.bf16.msra.mxu0 0
      %1166 = vmatprep.subr.bf16.mxu0 0
      %1167 = vmatpush1.bf16.msra.mxu0 0
      %1168 = vmatprep.subr.bf16.mxu0 0
      %1169 = vmatpush1.bf16.msra.mxu0 0
      %1170 = vmatprep.subr.bf16.mxu0 0
      %1171 = vmatpush1.bf16.msra.mxu0 0
      %1172 = vmatprep.subr.bf16.mxu0 0
      %1173 = vmatpush1.bf16.msra.mxu0 0
      %1174 = vmatprep.subr.bf16.mxu0 0
      %1175 = vmatpush1.bf16.msra.mxu0 0
      %1176 = vmatprep.subr.bf16.mxu0 0
      %1177 = vmatpush1.bf16.msra.mxu0 0
      %1178 = vmatprep.mubr.bf16.mxu0 0
      %1179 = vmatmul.mubr.bf16.gmra.mrb[0].mxu0 %v1123
      %v1180 = vpop.f32.mrb[0].mxu0
      %v1181 = vadd.f32 0.0, %v1180
      %v1182 = vpop.f32.mrb[0].mxu0
      %v1183 = vpop.f32.mrb[0].mxu0
      %v1184 = vadd.f32 0.0, %v1183
      %v1185 = vpop.f32.mrb[0].mxu0
      %1186 = vmatprep.mubr.bf16.mxu0 0
      %1187 = vmatmul.mubr.bf16.gmra.mrb[0].mxu0 %v1126
      %v1188 = vpop.f32.mrb[0].mxu0
      %v1189 = vadd.f32 0.0, %v1188
      %v1190 = vpop.f32.mrb[0].mxu0
      %v1191 = vpop.f32.mrb[0].mxu0
      %v1192 = vadd.f32 0.0, %v1191
      %v1193 = vpop.f32.mrb[0].mxu0
      %1194 = vmatprep.mubr.bf16.mxu0 0
      %1195 = vmatmul.mubr.bf16.gmra.mrb[0].mxu0 %v1129
      %v1196 = vpop.f32.mrb[0].mxu0
      %v1197 = vadd.f32 0.0, %v1196
      %v1198 = vpop.f32.mrb[0].mxu0
      %v1199 = vpop.f32.mrb[0].mxu0
      %v1200 = vadd.f32 0.0, %v1199
      %v1201 = vpop.f32.mrb[0].mxu0
      %1202 = vmatprep.mubr.bf16.mxu0 0
      %1203 = vmatmul.mubr.bf16.gmra.mrb[0].mxu0 %v1132
      %v1204 = vpop.f32.mrb[0].mxu0
      %v1205 = vadd.f32 0.0, %v1204
      %v1206 = vpop.f32.mrb[0].mxu0
      %v1207 = vpop.f32.mrb[0].mxu0
      %v1208 = vadd.f32 0.0, %v1207
      %v1209 = vpop.f32.mrb[0].mxu0
      %1210 = vmatprep.mubr.bf16.mxu0 0
      %1211 = vmatmul.mubr.bf16.gmra.mrb[0].mxu0 %v1135
      %v1212 = vpop.f32.mrb[0].mxu0
      %v1213 = vadd.f32 0.0, %v1212
      %v1214 = vpop.f32.mrb[0].mxu0
      %v1215 = vpop.f32.mrb[0].mxu0
      %v1216 = vadd.f32 0.0, %v1215
      %v1217 = vpop.f32.mrb[0].mxu0
      %1218 = vmatprep.mubr.bf16.mxu0 0
      %1219 = vmatmul.mubr.bf16.gmra.mrb[0].mxu0 %v1138
      %v1220 = vpop.f32.mrb[0].mxu0
      %v1221 = vadd.f32 0.0, %v1220
      %v1222 = vpop.f32.mrb[0].mxu0
      %v1223 = vpop.f32.mrb[0].mxu0
      %v1224 = vadd.f32 0.0, %v1223
      %v1225 = vpop.f32.mrb[0].mxu0
      %1226 = vmatprep.mubr.bf16.mxu0 0
      %1227 = vmatmul.mubr.bf16.gmra.mrb[0].mxu0 %v1141
      %v1228 = vpop.f32.mrb[0].mxu0
      %v1229 = vadd.f32 0.0, %v1228
      %v1230 = vpop.f32.mrb[0].mxu0
      %v1231 = vpop.f32.mrb[0].mxu0
      %v1232 = vadd.f32 0.0, %v1231
      %v1233 = vpop.f32.mrb[0].mxu0
      %1234 = vmatprep.mubr.bf16.mxu0 0
      %1235 = vmatmul.mubr.bf16.gmra.mrb[0].mxu0 %v1144
      %v1236 = vpop.f32.mrb[0].mxu0
      %v1237 = vadd.f32 0.0, %v1236
      %v1238 = vpop.f32.mrb[0].mxu0
      %v1239 = vpop.f32.mrb[0].mxu0
      %v1240 = vadd.f32 0.0, %v1239
      %v1241 = vpop.f32.mrb[0].mxu0
      %1242 = vdwg.mxu0
      %v1243 = vadd.f32 %v1061, %v1181
      %v1244 = vadd.f32 %v1062, %v1184
      %v1245 = vadd.f32 %v1063, %v1189
      %v1246 = vadd.f32 %v1064, %v1192
      %v1247 = vadd.f32 %v1065, %v1197
      %v1248 = vadd.f32 %v1066, %v1200
      %v1249 = vadd.f32 %v1067, %v1205
      %v1250 = vadd.f32 %v1068, %v1208
      %v1251 = vadd.f32 %v1069, %v1213
      %v1252 = vadd.f32 %v1070, %v1216
      %v1253 = vadd.f32 %v1071, %v1221
      %v1254 = vadd.f32 %v1072, %v1224
      %v1255 = vadd.f32 %v1073, %v1229
      %v1256 = vadd.f32 %v1074, %v1232
      %v1257 = vadd.f32 %v1075, %v1237
      %v1258 = vadd.f32 %v1076, %v1240
      %v1259 = vpack.c.bf16 %v1094, %v1093
      %s1260 = scalar_lea.vmem %s6, 64
      %v1261 = vld [vmem:[%s1260] sm:$0xf]
      %v1262 = vld [vmem:[%s1260 + $0x4] sm:$0xf]
      %v1263 = vld [vmem:[%s1260 + $0x8] sm:$0xf]
      %v1264 = vld [vmem:[%s1260 + $0xc] sm:$0xf]
      %v1269 = vunpack.c.l.b16 %v1261
      %v1270 = vunpack.c.l.b16 %v1262
      %v1271 = vunpack.c.l.b16 %v1263
      %v1272 = vunpack.c.l.b16 %v1264
      %v1273 = vpack.c.b16 %v1270, %v1269
      %v1274 = vpack.c.b16 %v1272, %v1271
      %v1278 = vsel %vm480, %v1259, 0
      %1280 = vmatprep.subr.bf16.mxu0 0
      %1281 = vmatpush1.bf16.msra.mxu0 %v1273
      %1282 = vmatprep.subr.bf16.mxu0 0
      %1283 = vmatpush1.bf16.msra.mxu0 %v1274
      %1284 = vmatprep.subr.bf16.mxu0 0
      %1285 = vmatpush1.bf16.msra.mxu0 0
      %1286 = vmatprep.subr.bf16.mxu0 0
      %1287 = vmatpush1.bf16.msra.mxu0 0
      %1288 = vmatprep.subr.bf16.mxu0 0
      %1289 = vmatpush1.bf16.msra.mxu0 0
      %1290 = vmatprep.subr.bf16.mxu0 0
      %1291 = vmatpush1.bf16.msra.mxu0 0
      %1292 = vmatprep.subr.bf16.mxu0 0
      %1293 = vmatpush1.bf16.msra.mxu0 0
      %1294 = vmatprep.subr.bf16.mxu0 0
      %1295 = vmatpush1.bf16.msra.mxu0 0
      %1296 = vmatprep.subr.bf16.mxu0 0
      %1297 = vmatpush1.bf16.msra.mxu0 0
      %1298 = vmatprep.subr.bf16.mxu0 0
      %1299 = vmatpush1.bf16.msra.mxu0 0
      %1300 = vmatprep.subr.bf16.mxu0 0
      %1301 = vmatpush1.bf16.msra.mxu0 0
      %1302 = vmatprep.subr.bf16.mxu0 0
      %1303 = vmatpush1.bf16.msra.mxu0 0
      %1304 = vmatprep.subr.bf16.mxu0 0
      %1305 = vmatpush1.bf16.msra.mxu0 0
      %1306 = vmatprep.subr.bf16.mxu0 0
      %1307 = vmatpush1.bf16.msra.mxu0 0
      %1308 = vmatprep.subr.bf16.mxu0 0
      %1309 = vmatpush1.bf16.msra.mxu0 0
      %1310 = vmatprep.subr.bf16.mxu0 0
      %1311 = vmatpush1.bf16.msra.mxu0 0
      %1312 = vmatprep.mubr.bf16.mxu0 0
      %1313 = vmatmul.mubr.bf16.gmra.mrb[0].mxu0 %v1126
      %v1314 = vpop.f32.mrb[0].mxu0
      %v1315 = vadd.f32 0.0, %v1314
      %v1316 = vpop.f32.mrb[0].mxu0
      %v1317 = vpop.f32.mrb[0].mxu0
      %v1318 = vadd.f32 0.0, %v1317
      %v1319 = vpop.f32.mrb[0].mxu0
      %1320 = vmatprep.mubr.bf16.mxu0 0
      %1321 = vmatmul.mubr.bf16.gmra.mrb[0].mxu0 %v1129
      %v1322 = vpop.f32.mrb[0].mxu0
      %v1323 = vadd.f32 0.0, %v1322
      %v1324 = vpop.f32.mrb[0].mxu0
      %v1325 = vpop.f32.mrb[0].mxu0
      %v1326 = vadd.f32 0.0, %v1325
      %v1327 = vpop.f32.mrb[0].mxu0
      %1328 = vmatprep.mubr.bf16.mxu0 0
      %1329 = vmatmul.mubr.bf16.gmra.mrb[0].mxu0 %v1132
      %v1330 = vpop.f32.mrb[0].mxu0
      %v1331 = vadd.f32 0.0, %v1330
      %v1332 = vpop.f32.mrb[0].mxu0
      %v1333 = vpop.f32.mrb[0].mxu0
      %v1334 = vadd.f32 0.0, %v1333
      %v1335 = vpop.f32.mrb[0].mxu0
      %1336 = vmatprep.mubr.bf16.mxu0 0
      %1337 = vmatmul.mubr.bf16.gmra.mrb[0].mxu0 %v1135
      %v1338 = vpop.f32.mrb[0].mxu0
      %v1339 = vadd.f32 0.0, %v1338
      %v1340 = vpop.f32.mrb[0].mxu0
      %v1341 = vpop.f32.mrb[0].mxu0
      %v1342 = vadd.f32 0.0, %v1341
      %v1343 = vpop.f32.mrb[0].mxu0
      %1344 = vmatprep.mubr.bf16.mxu0 0
      %1345 = vmatmul.mubr.bf16.gmra.mrb[0].mxu0 %v1138
      %v1346 = vpop.f32.mrb[0].mxu0
      %v1347 = vadd.f32 0.0, %v1346
      %v1348 = vpop.f32.mrb[0].mxu0
      %v1349 = vpop.f32.mrb[0].mxu0
      %v1350 = vadd.f32 0.0, %v1349
      %v1351 = vpop.f32.mrb[0].mxu0
      %1352 = vmatprep.mubr.bf16.mxu0 0
      %1353 = vmatmul.mubr.bf16.gmra.mrb[0].mxu0 %v1141
      %v1354 = vpop.f32.mrb[0].mxu0
      %v1355 = vadd.f32 0.0, %v1354
      %v1356 = vpop.f32.mrb[0].mxu0
      %v1357 = vpop.f32.mrb[0].mxu0
      %v1358 = vadd.f32 0.0, %v1357
      %v1359 = vpop.f32.mrb[0].mxu0
      %1360 = vmatprep.mubr.bf16.mxu0 0
      %1361 = vmatmul.mubr.bf16.gmra.mrb[0].mxu0 %v1144
      %v1362 = vpop.f32.mrb[0].mxu0
      %v1363 = vadd.f32 0.0, %v1362
      %v1364 = vpop.f32.mrb[0].mxu0
      %v1365 = vpop.f32.mrb[0].mxu0
      %v1366 = vadd.f32 0.0, %v1365
      %v1367 = vpop.f32.mrb[0].mxu0
      %1368 = vmatprep.mubr.bf16.mxu0 0
      %1369 = vmatmul.mubr.bf16.gmra.mrb[0].mxu0 %v1278
      %v1370 = vpop.f32.mrb[0].mxu0
      %v1371 = vadd.f32 0.0, %v1370
      %v1372 = vpop.f32.mrb[0].mxu0
      %v1373 = vpop.f32.mrb[0].mxu0
      %v1374 = vadd.f32 0.0, %v1373
      %v1375 = vpop.f32.mrb[0].mxu0
      %1376 = vdwg.mxu0
      %v1377 = vadd.f32 %v1243, %v1315
      %v1378 = vadd.f32 %v1244, %v1318
      %v1379 = vadd.f32 %v1245, %v1323
      %v1380 = vadd.f32 %v1246, %v1326
      %v1381 = vadd.f32 %v1247, %v1331
      %v1382 = vadd.f32 %v1248, %v1334
      %v1383 = vadd.f32 %v1249, %v1339
      %v1384 = vadd.f32 %v1250, %v1342
      %v1385 = vadd.f32 %v1251, %v1347
      %v1386 = vadd.f32 %v1252, %v1350
      %v1387 = vadd.f32 %v1253, %v1355
      %v1388 = vadd.f32 %v1254, %v1358
      %v1389 = vadd.f32 %v1255, %v1363
      %v1390 = vadd.f32 %v1256, %v1366
      %v1391 = vadd.f32 %v1257, %v1371
      %v1392 = vadd.f32 %v1258, %v1374
      %v1393 = vpack.c.bf16 %v1096, %v1095
      %s1394 = scalar_lea.vmem %s6, 112
      %v1395 = vld [vmem:[%s1394] sm:$0xf]
      %v1396 = vld [vmem:[%s1394 + $0x4] sm:$0xf]
      %v1397 = vld [vmem:[%s1394 + $0x8] sm:$0xf]
      %v1398 = vld [vmem:[%s1394 + $0xc] sm:$0xf]
      %v1403 = vunpack.c.l.b16 %v1395
      %v1404 = vunpack.c.l.b16 %v1396
      %v1405 = vunpack.c.l.b16 %v1397
      %v1406 = vunpack.c.l.b16 %v1398
      %v1407 = vpack.c.b16 %v1404, %v1403
      %v1408 = vpack.c.b16 %v1406, %v1405
      %v1412 = vsel %vm480, %v1393, 0
      %1414 = vmatprep.subr.bf16.mxu0 0
      %1415 = vmatpush1.bf16.msra.mxu0 %v1407
      %1416 = vmatprep.subr.bf16.mxu0 0
      %1417 = vmatpush1.bf16.msra.mxu0 %v1408
      %1418 = vmatprep.subr.bf16.mxu0 0
      %1419 = vmatpush1.bf16.msra.mxu0 0
      %1420 = vmatprep.subr.bf16.mxu0 0
      %1421 = vmatpush1.bf16.msra.mxu0 0
      %1422 = vmatprep.subr.bf16.mxu0 0
      %1423 = vmatpush1.bf16.msra.mxu0 0
      %1424 = vmatprep.subr.bf16.mxu0 0
      %1425 = vmatpush1.bf16.msra.mxu0 0
      %1426 = vmatprep.subr.bf16.mxu0 0
      %1427 = vmatpush1.bf16.msra.mxu0 0
      %1428 = vmatprep.subr.bf16.mxu0 0
      %1429 = vmatpush1.bf16.msra.mxu0 0
      %1430 = vmatprep.subr.bf16.mxu0 0
      %1431 = vmatpush1.bf16.msra.mxu0 0
      %1432 = vmatprep.subr.bf16.mxu0 0
      %1433 = vmatpush1.bf16.msra.mxu0 0
      %1434 = vmatprep.subr.bf16.mxu0 0
      %1435 = vmatpush1.bf16.msra.mxu0 0
      %1436 = vmatprep.subr.bf16.mxu0 0
      %1437 = vmatpush1.bf16.msra.mxu0 0
      %1438 = vmatprep.subr.bf16.mxu0 0
      %1439 = vmatpush1.bf16.msra.mxu0 0
      %1440 = vmatprep.subr.bf16.mxu0 0
      %1441 = vmatpush1.bf16.msra.mxu0 0
      %1442 = vmatprep.subr.bf16.mxu0 0
      %1443 = vmatpush1.bf16.msra.mxu0 0
      %1444 = vmatprep.subr.bf16.mxu0 0
      %1445 = vmatpush1.bf16.msra.mxu0 0
      %1446 = vmatprep.mubr.bf16.mxu0 0
      %1447 = vmatmul.mubr.bf16.gmra.mrb[0].mxu0 %v1129
      %v1448 = vpop.f32.mrb[0].mxu0
      %v1449 = vadd.f32 0.0, %v1448
      %v1450 = vpop.f32.mrb[0].mxu0
      %v1451 = vpop.f32.mrb[0].mxu0
      %v1452 = vadd.f32 0.0, %v1451
      %v1453 = vpop.f32.mrb[0].mxu0
      %1454 = vmatprep.mubr.bf16.mxu0 0
      %1455 = vmatmul.mubr.bf16.gmra.mrb[0].mxu0 %v1132
      %v1456 = vpop.f32.mrb[0].mxu0
      %v1457 = vadd.f32 0.0, %v1456
      %v1458 = vpop.f32.mrb[0].mxu0
      %v1459 = vpop.f32.mrb[0].mxu0
      %v1460 = vadd.f32 0.0, %v1459
      %v1461 = vpop.f32.mrb[0].mxu0
      %1462 = vmatprep.mubr.bf16.mxu0 0
      %1463 = vmatmul.mubr.bf16.gmra.mrb[0].mxu0 %v1135
      %v1464 = vpop.f32.mrb[0].mxu0
      %v1465 = vadd.f32 0.0, %v1464
      %v1466 = vpop.f32.mrb[0].mxu0
      %v1467 = vpop.f32.mrb[0].mxu0
      %v1468 = vadd.f32 0.0, %v1467
      %v1469 = vpop.f32.mrb[0].mxu0
      %1470 = vmatprep.mubr.bf16.mxu0 0
      %1471 = vmatmul.mubr.bf16.gmra.mrb[0].mxu0 %v1138
      %v1472 = vpop.f32.mrb[0].mxu0
      %v1473 = vadd.f32 0.0, %v1472
      %v1474 = vpop.f32.mrb[0].mxu0
      %v1475 = vpop.f32.mrb[0].mxu0
      %v1476 = vadd.f32 0.0, %v1475
      %v1477 = vpop.f32.mrb[0].mxu0
      %1478 = vmatprep.mubr.bf16.mxu0 0
      %1479 = vmatmul.mubr.bf16.gmra.mrb[0].mxu0 %v1141
      %v1480 = vpop.f32.mrb[0].mxu0
      %v1481 = vadd.f32 0.0, %v1480
      %v1482 = vpop.f32.mrb[0].mxu0
      %v1483 = vpop.f32.mrb[0].mxu0
      %v1484 = vadd.f32 0.0, %v1483
      %v1485 = vpop.f32.mrb[0].mxu0
      %1486 = vmatprep.mubr.bf16.mxu0 0
      %1487 = vmatmul.mubr.bf16.gmra.mrb[0].mxu0 %v1144
      %v1488 = vpop.f32.mrb[0].mxu0
      %v1489 = vadd.f32 0.0, %v1488
      %v1490 = vpop.f32.mrb[0].mxu0
      %v1491 = vpop.f32.mrb[0].mxu0
      %v1492 = vadd.f32 0.0, %v1491
      %v1493 = vpop.f32.mrb[0].mxu0
      %1494 = vmatprep.mubr.bf16.mxu0 0
      %1495 = vmatmul.mubr.bf16.gmra.mrb[0].mxu0 %v1278
      %v1496 = vpop.f32.mrb[0].mxu0
      %v1497 = vadd.f32 0.0, %v1496
      %v1498 = vpop.f32.mrb[0].mxu0
      %v1499 = vpop.f32.mrb[0].mxu0
      %v1500 = vadd.f32 0.0, %v1499
      %v1501 = vpop.f32.mrb[0].mxu0
      %1502 = vmatprep.mubr.bf16.mxu0 0
      %1503 = vmatmul.mubr.bf16.gmra.mrb[0].mxu0 %v1412
      %v1504 = vpop.f32.mrb[0].mxu0
      %v1505 = vadd.f32 0.0, %v1504
      %v1506 = vpop.f32.mrb[0].mxu0
      %v1507 = vpop.f32.mrb[0].mxu0
      %v1508 = vadd.f32 0.0, %v1507
      %v1509 = vpop.f32.mrb[0].mxu0
      %1510 = vdwg.mxu0
      %v1511 = vadd.f32 %v1377, %v1449
      %v1512 = vadd.f32 %v1378, %v1452
      %v1513 = vadd.f32 %v1379, %v1457
      %v1514 = vadd.f32 %v1380, %v1460
      %v1515 = vadd.f32 %v1381, %v1465
      %v1516 = vadd.f32 %v1382, %v1468
      %v1517 = vadd.f32 %v1383, %v1473
      %v1518 = vadd.f32 %v1384, %v1476
      %v1519 = vadd.f32 %v1385, %v1481
      %v1520 = vadd.f32 %v1386, %v1484
      %v1521 = vadd.f32 %v1387, %v1489
      %v1522 = vadd.f32 %v1388, %v1492
      %v1523 = vadd.f32 %v1389, %v1497
      %v1524 = vadd.f32 %v1390, %v1500
      %v1525 = vadd.f32 %v1391, %v1505
      %v1526 = vadd.f32 %v1392, %v1508
      %v1527 = vld [vmem:[#allocation2 + $0x2] sm:$0xff]
      %v1528 = vld [vmem:[#allocation2 + $0xa] sm:$0xff]
      %v1529 = vld [vmem:[#allocation2 + $0x1a] sm:$0xff]
      %v1530 = vld [vmem:[#allocation2 + $0x22] sm:$0xff]
      %v1531 = vld [vmem:[#allocation2 + $0x32] sm:$0xff]
      %v1532 = vld [vmem:[#allocation2 + $0x3a] sm:$0xff]
      %v1533 = vld [vmem:[#allocation2 + $0x4a] sm:$0xff]
      %v1534 = vld [vmem:[#allocation2 + $0x52] sm:$0xff]
      %v1535 = vld [vmem:[#allocation2 + $0x62] sm:$0xff]
      %v1536 = vld [vmem:[#allocation2 + $0x6a] sm:$0xff]
      %v1537 = vld [vmem:[#allocation2 + $0x7a] sm:$0xff]
      %v1538 = vld [vmem:[#allocation2 + $0x82] sm:$0xff]
      %v1539 = vld [vmem:[#allocation2 + $0x92] sm:$0xff]
      %v1540 = vld [vmem:[#allocation2 + $0x9a] sm:$0xff]
      %v1541 = vld [vmem:[#allocation2 + $0xaa] sm:$0xff]
      %v1542 = vld [vmem:[#allocation2 + $0xb2] sm:$0xff]
      %v1543 = vld [vmem:[#allocation2 + $0xc2] sm:$0xff]
      %v1544 = vld [vmem:[#allocation2 + $0xca] sm:$0xff]
      %v1545 = vld [vmem:[#allocation2 + $0xda] sm:$0xff]
      %v1546 = vld [vmem:[#allocation2 + $0xe2] sm:$0xff]
      %v1547 = vpack.c.bf16 %v1528, %v1527
      %v1548 = vpack.c.bf16 %v1530, %v1529
      %v1549 = vpack.c.bf16 %v1532, %v1531
      %v1550 = vpack.c.bf16 %v1534, %v1533
      %v1551 = vpack.c.bf16 %v1536, %v1535
      %v1552 = vpack.c.bf16 %v1538, %v1537
      %v1553 = vpack.c.bf16 %v1540, %v1539
      %v1554 = vpack.c.bf16 %v1542, %v1541
      %s1555 = scalar_lea.vmem %s6, 32
      %v1556 = vld [vmem:[%s1555] sm:$0xf]
      %v1557 = vld [vmem:[%s1555 + $0x4] sm:$0xf]
      %v1558 = vld [vmem:[%s1555 + $0x8] sm:$0xf]
      %v1559 = vld [vmem:[%s1555 + $0xc] sm:$0xf]
      %v1564 = vunpack.c.l.b16 %v1556
      %v1565 = vunpack.c.l.b16 %v1557
      %v1566 = vunpack.c.l.b16 %v1558
      %v1567 = vunpack.c.l.b16 %v1559
      %v1568 = vpack.c.b16 %v1565, %v1564
      %v1569 = vpack.c.b16 %v1567, %v1566
      %v1573 = vsel %vm480, %v1547, 0
      %v1576 = vsel %vm480, %v1548, 0
      %v1579 = vsel %vm480, %v1549, 0
      %v1582 = vsel %vm480, %v1550, 0
      %v1585 = vsel %vm480, %v1551, 0
      %v1588 = vsel %vm480, %v1552, 0
      %v1591 = vsel %vm480, %v1553, 0
      %v1594 = vsel %vm480, %v1554, 0
      %1596 = vmatprep.subr.bf16.mxu0 0
      %1597 = vmatpush1.bf16.msra.mxu0 %v1568
      %1598 = vmatprep.subr.bf16.mxu0 0
      %1599 = vmatpush1.bf16.msra.mxu0 %v1569
      %1600 = vmatprep.subr.bf16.mxu0 0
      %1601 = vmatpush1.bf16.msra.mxu0 0
      %1602 = vmatprep.subr.bf16.mxu0 0
      %1603 = vmatpush1.bf16.msra.mxu0 0
      %1604 = vmatprep.subr.bf16.mxu0 0
      %1605 = vmatpush1.bf16.msra.mxu0 0
      %1606 = vmatprep.subr.bf16.mxu0 0
      %1607 = vmatpush1.bf16.msra.mxu0 0
      %1608 = vmatprep.subr.bf16.mxu0 0
      %1609 = vmatpush1.bf16.msra.mxu0 0
      %1610 = vmatprep.subr.bf16.mxu0 0
      %1611 = vmatpush1.bf16.msra.mxu0 0
      %1612 = vmatprep.subr.bf16.mxu0 0
      %1613 = vmatpush1.bf16.msra.mxu0 0
      %1614 = vmatprep.subr.bf16.mxu0 0
      %1615 = vmatpush1.bf16.msra.mxu0 0
      %1616 = vmatprep.subr.bf16.mxu0 0
      %1617 = vmatpush1.bf16.msra.mxu0 0
      %1618 = vmatprep.subr.bf16.mxu0 0
      %1619 = vmatpush1.bf16.msra.mxu0 0
      %1620 = vmatprep.subr.bf16.mxu0 0
      %1621 = vmatpush1.bf16.msra.mxu0 0
      %1622 = vmatprep.subr.bf16.mxu0 0
      %1623 = vmatpush1.bf16.msra.mxu0 0
      %1624 = vmatprep.subr.bf16.mxu0 0
      %1625 = vmatpush1.bf16.msra.mxu0 0
      %1626 = vmatprep.subr.bf16.mxu0 0
      %1627 = vmatpush1.bf16.msra.mxu0 0
      %1628 = vmatprep.mubr.bf16.mxu0 0
      %1629 = vmatmul.mubr.bf16.gmra.mrb[0].mxu0 %v1573
      %v1630 = vpop.f32.mrb[0].mxu0
      %v1631 = vadd.f32 0.0, %v1630
      %v1632 = vpop.f32.mrb[0].mxu0
      %v1633 = vpop.f32.mrb[0].mxu0
      %v1634 = vadd.f32 0.0, %v1633
      %v1635 = vpop.f32.mrb[0].mxu0
      %1636 = vmatprep.mubr.bf16.mxu0 0
      %1637 = vmatmul.mubr.bf16.gmra.mrb[0].mxu0 %v1576
      %v1638 = vpop.f32.mrb[0].mxu0
      %v1639 = vadd.f32 0.0, %v1638
      %v1640 = vpop.f32.mrb[0].mxu0
      %v1641 = vpop.f32.mrb[0].mxu0
      %v1642 = vadd.f32 0.0, %v1641
      %v1643 = vpop.f32.mrb[0].mxu0
      %1644 = vmatprep.mubr.bf16.mxu0 0
      %1645 = vmatmul.mubr.bf16.gmra.mrb[0].mxu0 %v1579
      %v1646 = vpop.f32.mrb[0].mxu0
      %v1647 = vadd.f32 0.0, %v1646
      %v1648 = vpop.f32.mrb[0].mxu0
      %v1649 = vpop.f32.mrb[0].mxu0
      %v1650 = vadd.f32 0.0, %v1649
      %v1651 = vpop.f32.mrb[0].mxu0
      %1652 = vmatprep.mubr.bf16.mxu0 0
      %1653 = vmatmul.mubr.bf16.gmra.mrb[0].mxu0 %v1582
      %v1654 = vpop.f32.mrb[0].mxu0
      %v1655 = vadd.f32 0.0, %v1654
      %v1656 = vpop.f32.mrb[0].mxu0
      %v1657 = vpop.f32.mrb[0].mxu0
      %v1658 = vadd.f32 0.0, %v1657
      %v1659 = vpop.f32.mrb[0].mxu0
      %1660 = vmatprep.mubr.bf16.mxu0 0
      %1661 = vmatmul.mubr.bf16.gmra.mrb[0].mxu0 %v1585
      %v1662 = vpop.f32.mrb[0].mxu0
      %v1663 = vadd.f32 0.0, %v1662
      %v1664 = vpop.f32.mrb[0].mxu0
      %v1665 = vpop.f32.mrb[0].mxu0
      %v1666 = vadd.f32 0.0, %v1665
      %v1667 = vpop.f32.mrb[0].mxu0
      %1668 = vmatprep.mubr.bf16.mxu0 0
      %1669 = vmatmul.mubr.bf16.gmra.mrb[0].mxu0 %v1588
      %v1670 = vpop.f32.mrb[0].mxu0
      %v1671 = vadd.f32 0.0, %v1670
      %v1672 = vpop.f32.mrb[0].mxu0
      %v1673 = vpop.f32.mrb[0].mxu0
      %v1674 = vadd.f32 0.0, %v1673
      %v1675 = vpop.f32.mrb[0].mxu0
      %1676 = vmatprep.mubr.bf16.mxu0 0
      %1677 = vmatmul.mubr.bf16.gmra.mrb[0].mxu0 %v1591
      %v1678 = vpop.f32.mrb[0].mxu0
      %v1679 = vadd.f32 0.0, %v1678
      %v1680 = vpop.f32.mrb[0].mxu0
      %v1681 = vpop.f32.mrb[0].mxu0
      %v1682 = vadd.f32 0.0, %v1681
      %v1683 = vpop.f32.mrb[0].mxu0
      %1684 = vmatprep.mubr.bf16.mxu0 0
      %1685 = vmatmul.mubr.bf16.gmra.mrb[0].mxu0 %v1594
      %v1686 = vpop.f32.mrb[0].mxu0
      %v1687 = vadd.f32 0.0, %v1686
      %v1688 = vpop.f32.mrb[0].mxu0
      %v1689 = vpop.f32.mrb[0].mxu0
      %v1690 = vadd.f32 0.0, %v1689
      %v1691 = vpop.f32.mrb[0].mxu0
      %1692 = vdwg.mxu0
      %v1693 = vadd.f32 %v1511, %v1631
      %v1694 = vadd.f32 %v1512, %v1634
      %v1695 = vadd.f32 %v1513, %v1639
      %v1696 = vadd.f32 %v1514, %v1642
      %v1697 = vadd.f32 %v1515, %v1647
      %v1698 = vadd.f32 %v1516, %v1650
      %v1699 = vadd.f32 %v1517, %v1655
      %v1700 = vadd.f32 %v1518, %v1658
      %v1701 = vadd.f32 %v1519, %v1663
      %v1702 = vadd.f32 %v1520, %v1666
      %v1703 = vadd.f32 %v1521, %v1671
      %v1704 = vadd.f32 %v1522, %v1674
      %v1705 = vadd.f32 %v1523, %v1679
      %v1706 = vadd.f32 %v1524, %v1682
      %v1707 = vadd.f32 %v1525, %v1687
      %v1708 = vadd.f32 %v1526, %v1690
      %v1709 = vpack.c.bf16 %v1544, %v1543
      %s1710 = scalar_lea.vmem %s6, 80
      %v1711 = vld [vmem:[%s1710] sm:$0xf]
      %v1712 = vld [vmem:[%s1710 + $0x4] sm:$0xf]
      %v1713 = vld [vmem:[%s1710 + $0x8] sm:$0xf]
      %v1714 = vld [vmem:[%s1710 + $0xc] sm:$0xf]
      %v1719 = vunpack.c.l.b16 %v1711
      %v1720 = vunpack.c.l.b16 %v1712
      %v1721 = vunpack.c.l.b16 %v1713
      %v1722 = vunpack.c.l.b16 %v1714
      %v1723 = vpack.c.b16 %v1720, %v1719
      %v1724 = vpack.c.b16 %v1722, %v1721
      %v1728 = vsel %vm480, %v1709, 0
      %1730 = vmatprep.subr.bf16.mxu0 0
      %1731 = vmatpush1.bf16.msra.mxu0 %v1723
      %1732 = vmatprep.subr.bf16.mxu0 0
      %1733 = vmatpush1.bf16.msra.mxu0 %v1724
      %1734 = vmatprep.subr.bf16.mxu0 0
      %1735 = vmatpush1.bf16.msra.mxu0 0
      %1736 = vmatprep.subr.bf16.mxu0 0
      %1737 = vmatpush1.bf16.msra.mxu0 0
      %1738 = vmatprep.subr.bf16.mxu0 0
      %1739 = vmatpush1.bf16.msra.mxu0 0
      %1740 = vmatprep.subr.bf16.mxu0 0
      %1741 = vmatpush1.bf16.msra.mxu0 0
      %1742 = vmatprep.subr.bf16.mxu0 0
      %1743 = vmatpush1.bf16.msra.mxu0 0
      %1744 = vmatprep.subr.bf16.mxu0 0
      %1745 = vmatpush1.bf16.msra.mxu0 0
      %1746 = vmatprep.subr.bf16.mxu0 0
      %1747 = vmatpush1.bf16.msra.mxu0 0
      %1748 = vmatprep.subr.bf16.mxu0 0
      %1749 = vmatpush1.bf16.msra.mxu0 0
      %1750 = vmatprep.subr.bf16.mxu0 0
      %1751 = vmatpush1.bf16.msra.mxu0 0
      %1752 = vmatprep.subr.bf16.mxu0 0
      %1753 = vmatpush1.bf16.msra.mxu0 0
      %1754 = vmatprep.subr.bf16.mxu0 0
      %1755 = vmatpush1.bf16.msra.mxu0 0
      %1756 = vmatprep.subr.bf16.mxu0 0
      %1757 = vmatpush1.bf16.msra.mxu0 0
      %1758 = vmatprep.subr.bf16.mxu0 0
      %1759 = vmatpush1.bf16.msra.mxu0 0
      %1760 = vmatprep.subr.bf16.mxu0 0
      %1761 = vmatpush1.bf16.msra.mxu0 0
      %1762 = vmatprep.mubr.bf16.mxu0 0
      %1763 = vmatmul.mubr.bf16.gmra.mrb[0].mxu0 %v1576
      %v1764 = vpop.f32.mrb[0].mxu0
      %v1765 = vadd.f32 0.0, %v1764
      %v1766 = vpop.f32.mrb[0].mxu0
      %v1767 = vpop.f32.mrb[0].mxu0
      %v1768 = vadd.f32 0.0, %v1767
      %v1769 = vpop.f32.mrb[0].mxu0
      %1770 = vmatprep.mubr.bf16.mxu0 0
      %1771 = vmatmul.mubr.bf16.gmra.mrb[0].mxu0 %v1579
      %v1772 = vpop.f32.mrb[0].mxu0
      %v1773 = vadd.f32 0.0, %v1772
      %v1774 = vpop.f32.mrb[0].mxu0
      %v1775 = vpop.f32.mrb[0].mxu0
      %v1776 = vadd.f32 0.0, %v1775
      %v1777 = vpop.f32.mrb[0].mxu0
      %1778 = vmatprep.mubr.bf16.mxu0 0
      %1779 = vmatmul.mubr.bf16.gmra.mrb[0].mxu0 %v1582
      %v1780 = vpop.f32.mrb[0].mxu0
      %v1781 = vadd.f32 0.0, %v1780
      %v1782 = vpop.f32.mrb[0].mxu0
      %v1783 = vpop.f32.mrb[0].mxu0
      %v1784 = vadd.f32 0.0, %v1783
      %v1785 = vpop.f32.mrb[0].mxu0
      %1786 = vmatprep.mubr.bf16.mxu0 0
      %1787 = vmatmul.mubr.bf16.gmra.mrb[0].mxu0 %v1585
      %v1788 = vpop.f32.mrb[0].mxu0
      %v1789 = vadd.f32 0.0, %v1788
      %v1790 = vpop.f32.mrb[0].mxu0
      %v1791 = vpop.f32.mrb[0].mxu0
      %v1792 = vadd.f32 0.0, %v1791
      %v1793 = vpop.f32.mrb[0].mxu0
      %1794 = vmatprep.mubr.bf16.mxu0 0
      %1795 = vmatmul.mubr.bf16.gmra.mrb[0].mxu0 %v1588
      %v1796 = vpop.f32.mrb[0].mxu0
      %v1797 = vadd.f32 0.0, %v1796
      %v1798 = vpop.f32.mrb[0].mxu0
      %v1799 = vpop.f32.mrb[0].mxu0
      %v1800 = vadd.f32 0.0, %v1799
      %v1801 = vpop.f32.mrb[0].mxu0
      %1802 = vmatprep.mubr.bf16.mxu0 0
      %1803 = vmatmul.mubr.bf16.gmra.mrb[0].mxu0 %v1591
      %v1804 = vpop.f32.mrb[0].mxu0
      %v1805 = vadd.f32 0.0, %v1804
      %v1806 = vpop.f32.mrb[0].mxu0
      %v1807 = vpop.f32.mrb[0].mxu0
      %v1808 = vadd.f32 0.0, %v1807
      %v1809 = vpop.f32.mrb[0].mxu0
      %1810 = vmatprep.mubr.bf16.mxu0 0
      %1811 = vmatmul.mubr.bf16.gmra.mrb[0].mxu0 %v1594
      %v1812 = vpop.f32.mrb[0].mxu0
      %v1813 = vadd.f32 0.0, %v1812
      %v1814 = vpop.f32.mrb[0].mxu0
      %v1815 = vpop.f32.mrb[0].mxu0
      %v1816 = vadd.f32 0.0, %v1815
      %v1817 = vpop.f32.mrb[0].mxu0
      %1818 = vmatprep.mubr.bf16.mxu0 0
      %1819 = vmatmul.mubr.bf16.gmra.mrb[0].mxu0 %v1728
      %v1820 = vpop.f32.mrb[0].mxu0
      %v1821 = vadd.f32 0.0, %v1820
      %v1822 = vpop.f32.mrb[0].mxu0
      %v1823 = vpop.f32.mrb[0].mxu0
      %v1824 = vadd.f32 0.0, %v1823
      %v1825 = vpop.f32.mrb[0].mxu0
      %1826 = vdwg.mxu0
      %v1827 = vadd.f32 %v1693, %v1765
      %v1828 = vadd.f32 %v1694, %v1768
      %v1829 = vadd.f32 %v1695, %v1773
      %v1830 = vadd.f32 %v1696, %v1776
      %v1831 = vadd.f32 %v1697, %v1781
      %v1832 = vadd.f32 %v1698, %v1784
      %v1833 = vadd.f32 %v1699, %v1789
      %v1834 = vadd.f32 %v1700, %v1792
      %v1835 = vadd.f32 %v1701, %v1797
      %v1836 = vadd.f32 %v1702, %v1800
      %v1837 = vadd.f32 %v1703, %v1805
      %v1838 = vadd.f32 %v1704, %v1808
      %v1839 = vadd.f32 %v1705, %v1813
      %v1840 = vadd.f32 %v1706, %v1816
      %v1841 = vadd.f32 %v1707, %v1821
      %v1842 = vadd.f32 %v1708, %v1824
      %v1843 = vpack.c.bf16 %v1546, %v1545
      %s1844 = scalar_lea.vmem %s6, 128
      %v1845 = vld [vmem:[%s1844] sm:$0xf]
      %v1846 = vld [vmem:[%s1844 + $0x4] sm:$0xf]
      %v1847 = vld [vmem:[%s1844 + $0x8] sm:$0xf]
      %v1848 = vld [vmem:[%s1844 + $0xc] sm:$0xf]
      %v1853 = vunpack.c.l.b16 %v1845
      %v1854 = vunpack.c.l.b16 %v1846
      %v1855 = vunpack.c.l.b16 %v1847
      %v1856 = vunpack.c.l.b16 %v1848
      %v1857 = vpack.c.b16 %v1854, %v1853
      %v1858 = vpack.c.b16 %v1856, %v1855
      %v1862 = vsel %vm480, %v1843, 0
      %1864 = vmatprep.subr.bf16.mxu0 0
      %1865 = vmatpush1.bf16.msra.mxu0 %v1857
      %1866 = vmatprep.subr.bf16.mxu0 0
      %1867 = vmatpush1.bf16.msra.mxu0 %v1858
      %1868 = vmatprep.subr.bf16.mxu0 0
      %1869 = vmatpush1.bf16.msra.mxu0 0
      %1870 = vmatprep.subr.bf16.mxu0 0
      %1871 = vmatpush1.bf16.msra.mxu0 0
      %1872 = vmatprep.subr.bf16.mxu0 0
      %1873 = vmatpush1.bf16.msra.mxu0 0
      %1874 = vmatprep.subr.bf16.mxu0 0
      %1875 = vmatpush1.bf16.msra.mxu0 0
      %1876 = vmatprep.subr.bf16.mxu0 0
      %1877 = vmatpush1.bf16.msra.mxu0 0
      %1878 = vmatprep.subr.bf16.mxu0 0
      %1879 = vmatpush1.bf16.msra.mxu0 0
      %1880 = vmatprep.subr.bf16.mxu0 0
      %1881 = vmatpush1.bf16.msra.mxu0 0
      %1882 = vmatprep.subr.bf16.mxu0 0
      %1883 = vmatpush1.bf16.msra.mxu0 0
      %1884 = vmatprep.subr.bf16.mxu0 0
      %1885 = vmatpush1.bf16.msra.mxu0 0
      %1886 = vmatprep.subr.bf16.mxu0 0
      %1887 = vmatpush1.bf16.msra.mxu0 0
      %1888 = vmatprep.subr.bf16.mxu0 0
      %1889 = vmatpush1.bf16.msra.mxu0 0
      %1890 = vmatprep.subr.bf16.mxu0 0
      %1891 = vmatpush1.bf16.msra.mxu0 0
      %1892 = vmatprep.subr.bf16.mxu0 0
      %1893 = vmatpush1.bf16.msra.mxu0 0
      %1894 = vmatprep.subr.bf16.mxu0 0
      %1895 = vmatpush1.bf16.msra.mxu0 0
      %1896 = vmatprep.mubr.bf16.mxu0 0
      %1897 = vmatmul.mubr.bf16.gmra.mrb[0].mxu0 %v1579
      %v1898 = vpop.f32.mrb[0].mxu0
      %v1899 = vadd.f32 0.0, %v1898
      %v1900 = vpop.f32.mrb[0].mxu0
      %v1901 = vpop.f32.mrb[0].mxu0
      %v1902 = vadd.f32 0.0, %v1901
      %v1903 = vpop.f32.mrb[0].mxu0
      %1904 = vmatprep.mubr.bf16.mxu0 0
      %1905 = vmatmul.mubr.bf16.gmra.mrb[0].mxu0 %v1582
      %v1906 = vpop.f32.mrb[0].mxu0
      %v1907 = vadd.f32 0.0, %v1906
      %v1908 = vpop.f32.mrb[0].mxu0
      %v1909 = vpop.f32.mrb[0].mxu0
      %v1910 = vadd.f32 0.0, %v1909
      %v1911 = vpop.f32.mrb[0].mxu0
      %1912 = vmatprep.mubr.bf16.mxu0 0
      %1913 = vmatmul.mubr.bf16.gmra.mrb[0].mxu0 %v1585
      %v1914 = vpop.f32.mrb[0].mxu0
      %v1915 = vadd.f32 0.0, %v1914
      %v1916 = vpop.f32.mrb[0].mxu0
      %v1917 = vpop.f32.mrb[0].mxu0
      %v1918 = vadd.f32 0.0, %v1917
      %v1919 = vpop.f32.mrb[0].mxu0
      %1920 = vmatprep.mubr.bf16.mxu0 0
      %1921 = vmatmul.mubr.bf16.gmra.mrb[0].mxu0 %v1588
      %v1922 = vpop.f32.mrb[0].mxu0
      %v1923 = vadd.f32 0.0, %v1922
      %v1924 = vpop.f32.mrb[0].mxu0
      %v1925 = vpop.f32.mrb[0].mxu0
      %v1926 = vadd.f32 0.0, %v1925
      %v1927 = vpop.f32.mrb[0].mxu0
      %1928 = vmatprep.mubr.bf16.mxu0 0
      %1929 = vmatmul.mubr.bf16.gmra.mrb[0].mxu0 %v1591
      %v1930 = vpop.f32.mrb[0].mxu0
      %v1931 = vadd.f32 0.0, %v1930
      %v1932 = vpop.f32.mrb[0].mxu0
      %v1933 = vpop.f32.mrb[0].mxu0
      %v1934 = vadd.f32 0.0, %v1933
      %v1935 = vpop.f32.mrb[0].mxu0
      %1936 = vmatprep.mubr.bf16.mxu0 0
      %1937 = vmatmul.mubr.bf16.gmra.mrb[0].mxu0 %v1594
      %v1938 = vpop.f32.mrb[0].mxu0
      %v1939 = vadd.f32 0.0, %v1938
      %v1940 = vpop.f32.mrb[0].mxu0
      %v1941 = vpop.f32.mrb[0].mxu0
      %v1942 = vadd.f32 0.0, %v1941
      %v1943 = vpop.f32.mrb[0].mxu0
      %1944 = vmatprep.mubr.bf16.mxu0 0
      %1945 = vmatmul.mubr.bf16.gmra.mrb[0].mxu0 %v1728
      %v1946 = vpop.f32.mrb[0].mxu0
      %v1947 = vadd.f32 0.0, %v1946
      %v1948 = vpop.f32.mrb[0].mxu0
      %v1949 = vpop.f32.mrb[0].mxu0
      %v1950 = vadd.f32 0.0, %v1949
      %v1951 = vpop.f32.mrb[0].mxu0
      %1952 = vmatprep.mubr.bf16.mxu0 0
      %1953 = vmatmul.mubr.bf16.gmra.mrb[0].mxu0 %v1862
      %v1954 = vpop.f32.mrb[0].mxu0
      %v1955 = vadd.f32 0.0, %v1954
      %v1956 = vpop.f32.mrb[0].mxu0
      %v1957 = vpop.f32.mrb[0].mxu0
      %v1958 = vadd.f32 0.0, %v1957
      %v1959 = vpop.f32.mrb[0].mxu0
      %1960 = vdwg.mxu0
      %v1961 = vadd.f32 %v1827, %v1899
      %v1962 = vadd.f32 %v1828, %v1902
      %v1963 = vadd.f32 %v1829, %v1907
      %v1964 = vadd.f32 %v1830, %v1910
      %v1965 = vadd.f32 %v1831, %v1915
      %v1966 = vadd.f32 %v1832, %v1918
      %v1967 = vadd.f32 %v1833, %v1923
      %v1968 = vadd.f32 %v1834, %v1926
      %v1969 = vadd.f32 %v1835, %v1931
      %v1970 = vadd.f32 %v1836, %v1934
      %v1971 = vadd.f32 %v1837, %v1939
      %v1972 = vadd.f32 %v1838, %v1942
      %v1973 = vadd.f32 %v1839, %v1947
      %v1974 = vadd.f32 %v1840, %v1950
      %v1975 = vadd.f32 %v1841, %v1955
      %v1976 = vadd.f32 %v1842, %v1958
      %v1977 = vld [vmem:[%s7] sm:$0x1]
      %v1979 = vlaneseq
      %v1980 = vshrl.u32 %v1979, 7
      %v1981 = vsub.s32 0, %v1980
      %v1982 = vrot.slane %v1977, %v1981
      %v1984 = vadd.f32 %v1961, %v1982
      %v1985 = vadd.f32 %v1962, %v1982
      %v1986 = vadd.f32 %v1963, %v1982
      %v1987 = vadd.f32 %v1964, %v1982
      %v1988 = vadd.f32 %v1965, %v1982
      %v1989 = vadd.f32 %v1966, %v1982
      %v1990 = vadd.f32 %v1967, %v1982
      %v1991 = vadd.f32 %v1968, %v1982
      %v1992 = vadd.f32 %v1969, %v1982
      %v1993 = vadd.f32 %v1970, %v1982
      %v1994 = vadd.f32 %v1971, %v1982
      %v1995 = vadd.f32 %v1972, %v1982
      %v1996 = vadd.f32 %v1973, %v1982
      %v1997 = vadd.f32 %v1974, %v1982
      %v1998 = vadd.f32 %v1975, %v1982
      %v1999 = vadd.f32 %v1976, %v1982
      %v2000 = vlaneseq
      %v2001 = vshrl.u32 %v2000, 7
      %v2002 = vsub.s32 0, %v2001
      %v2003 = vrot.slane %v655, %v2002
      %v2004 = vadd.f32 %v1984, %v2003
      %v2005 = vadd.f32 %v1985, %v2003
      %v2006 = vadd.f32 %v1986, %v2003
      %v2007 = vadd.f32 %v1987, %v2003
      %v2008 = vadd.f32 %v1988, %v2003
      %v2009 = vadd.f32 %v1989, %v2003
      %v2010 = vadd.f32 %v1990, %v2003
      %v2011 = vadd.f32 %v1991, %v2003
      %v2012 = vadd.f32 %v1992, %v2003
      %v2013 = vadd.f32 %v1993, %v2003
      %v2014 = vadd.f32 %v1994, %v2003
      %v2015 = vadd.f32 %v1995, %v2003
      %v2016 = vadd.f32 %v1996, %v2003
      %v2017 = vadd.f32 %v1997, %v2003
      %v2018 = vadd.f32 %v1998, %v2003
      %v2019 = vadd.f32 %v1999, %v2003
      %v2020 = vtanh.pop %v2004
      %v2021 = vtanh.pop %v2005
      %v2022 = vtanh.pop %v2006
      %v2023 = vtanh.pop %v2007
      %v2024 = vtanh.pop %v2008
      %v2025 = vtanh.pop %v2009
      %v2026 = vtanh.pop %v2010
      %v2027 = vtanh.pop %v2011
      %v2028 = vtanh.pop %v2012
      %v2029 = vtanh.pop %v2013
      %v2030 = vtanh.pop %v2014
      %v2031 = vtanh.pop %v2015
      %v2032 = vtanh.pop %v2016
      %v2033 = vtanh.pop %v2017
      %v2034 = vtanh.pop %v2018
      %v2035 = vtanh.pop %v2019
      %v2036 = vpack.c.bf16 %v2021, %v2020
      %v2037 = vpack.c.bf16 %v2023, %v2022
      %v2038 = vpack.c.bf16 %v2025, %v2024
      %v2039 = vpack.c.bf16 %v2027, %v2026
      %v2040 = vpack.c.bf16 %v2029, %v2028
      %v2041 = vpack.c.bf16 %v2031, %v2030
      %v2042 = vpack.c.bf16 %v2033, %v2032
      %v2043 = vpack.c.bf16 %v2035, %v2034
      %v2044 = vld [vmem:[%s8] sm:$0xf]
      %v2045 = vld [vmem:[%s8 + $0x4] sm:$0xf]
      %v2048 = vunpack.c.l.b16 %v2044
      %v2049 = vunpack.c.l.b16 %v2045
      %v2050 = vpack.c.b16 %v2049, %v2048
      %vm2052 = vcmask 130048
      %v2054 = vsel %vm2052, %v2036, 0
      %v2057 = vsel %vm2052, %v2037, 0
      %v2060 = vsel %vm2052, %v2038, 0
      %v2063 = vsel %vm2052, %v2039, 0
      %v2066 = vsel %vm2052, %v2040, 0
      %v2069 = vsel %vm2052, %v2041, 0
      %v2072 = vsel %vm2052, %v2042, 0
      %v2075 = vsel %vm2052, %v2043, 0
      %2077 = vmatprep.subr.bf16.mxu0 0
      %2078 = vmatpush1.bf16.msra.mxu0 %v2050
      %2079 = vmatprep.subr.bf16.mxu0 0
      %2080 = vmatpush1.bf16.msra.mxu0 0
      %2081 = vmatprep.subr.bf16.mxu0 0
      %2082 = vmatpush1.bf16.msra.mxu0 0
      %2083 = vmatprep.subr.bf16.mxu0 0
      %2084 = vmatpush1.bf16.msra.mxu0 0
      %2085 = vmatprep.subr.bf16.mxu0 0
      %2086 = vmatpush1.bf16.msra.mxu0 0
      %2087 = vmatprep.subr.bf16.mxu0 0
      %2088 = vmatpush1.bf16.msra.mxu0 0
      %2089 = vmatprep.subr.bf16.mxu0 0
      %2090 = vmatpush1.bf16.msra.mxu0 0
      %2091 = vmatprep.subr.bf16.mxu0 0
      %2092 = vmatpush1.bf16.msra.mxu0 0
      %2093 = vmatprep.subr.bf16.mxu0 0
      %2094 = vmatpush1.bf16.msra.mxu0 0
      %2095 = vmatprep.subr.bf16.mxu0 0
      %2096 = vmatpush1.bf16.msra.mxu0 0
      %2097 = vmatprep.subr.bf16.mxu0 0
      %2098 = vmatpush1.bf16.msra.mxu0 0
      %2099 = vmatprep.subr.bf16.mxu0 0
      %2100 = vmatpush1.bf16.msra.mxu0 0
      %2101 = vmatprep.subr.bf16.mxu0 0
      %2102 = vmatpush1.bf16.msra.mxu0 0
      %2103 = vmatprep.subr.bf16.mxu0 0
      %2104 = vmatpush1.bf16.msra.mxu0 0
      %2105 = vmatprep.subr.bf16.mxu0 0
      %2106 = vmatpush1.bf16.msra.mxu0 0
      %2107 = vmatprep.subr.bf16.mxu0 0
      %2108 = vmatpush1.bf16.msra.mxu0 0
      %2109 = vmatprep.mubr.bf16.mxu0 0
      %2110 = vmatmul.mubr.bf16.gmra.mrb[0].mxu0 %v2054
      %v2111 = vpop.f32.mrb[0].mxu0
      %v2112 = vadd.f32 0.0, %v2111
      %v2113 = vpop.f32.mrb[0].mxu0
      %v2114 = vpop.f32.mrb[0].mxu0
      %v2115 = vadd.f32 0.0, %v2114
      %v2116 = vpop.f32.mrb[0].mxu0
      %2117 = vmatprep.mubr.bf16.mxu0 0
      %2118 = vmatmul.mubr.bf16.gmra.mrb[0].mxu0 %v2057
      %v2119 = vpop.f32.mrb[0].mxu0
      %v2120 = vadd.f32 0.0, %v2119
      %v2121 = vpop.f32.mrb[0].mxu0
      %v2122 = vpop.f32.mrb[0].mxu0
      %v2123 = vadd.f32 0.0, %v2122
      %v2124 = vpop.f32.mrb[0].mxu0
      %2125 = vmatprep.mubr.bf16.mxu0 0
      %2126 = vmatmul.mubr.bf16.gmra.mrb[0].mxu0 %v2060
      %v2127 = vpop.f32.mrb[0].mxu0
      %v2128 = vadd.f32 0.0, %v2127
      %v2129 = vpop.f32.mrb[0].mxu0
      %v2130 = vpop.f32.mrb[0].mxu0
      %v2131 = vadd.f32 0.0, %v2130
      %v2132 = vpop.f32.mrb[0].mxu0
      %2133 = vmatprep.mubr.bf16.mxu0 0
      %2134 = vmatmul.mubr.bf16.gmra.mrb[0].mxu0 %v2063
      %v2135 = vpop.f32.mrb[0].mxu0
      %v2136 = vadd.f32 0.0, %v2135
      %v2137 = vpop.f32.mrb[0].mxu0
      %v2138 = vpop.f32.mrb[0].mxu0
      %v2139 = vadd.f32 0.0, %v2138
      %v2140 = vpop.f32.mrb[0].mxu0
      %2141 = vmatprep.mubr.bf16.mxu0 0
      %2142 = vmatmul.mubr.bf16.gmra.mrb[0].mxu0 %v2066
      %v2143 = vpop.f32.mrb[0].mxu0
      %v2144 = vadd.f32 0.0, %v2143
      %v2145 = vpop.f32.mrb[0].mxu0
      %v2146 = vpop.f32.mrb[0].mxu0
      %v2147 = vadd.f32 0.0, %v2146
      %v2148 = vpop.f32.mrb[0].mxu0
      %2149 = vmatprep.mubr.bf16.mxu0 0
      %2150 = vmatmul.mubr.bf16.gmra.mrb[0].mxu0 %v2069
      %v2151 = vpop.f32.mrb[0].mxu0
      %v2152 = vadd.f32 0.0, %v2151
      %v2153 = vpop.f32.mrb[0].mxu0
      %v2154 = vpop.f32.mrb[0].mxu0
      %v2155 = vadd.f32 0.0, %v2154
      %v2156 = vpop.f32.mrb[0].mxu0
      %2157 = vmatprep.mubr.bf16.mxu0 0
      %2158 = vmatmul.mubr.bf16.gmra.mrb[0].mxu0 %v2072
      %v2159 = vpop.f32.mrb[0].mxu0
      %v2160 = vadd.f32 0.0, %v2159
      %v2161 = vpop.f32.mrb[0].mxu0
      %v2162 = vpop.f32.mrb[0].mxu0
      %v2163 = vadd.f32 0.0, %v2162
      %v2164 = vpop.f32.mrb[0].mxu0
      %2165 = vmatprep.mubr.bf16.mxu0 0
      %2166 = vmatmul.mubr.bf16.gmra.mrb[0].mxu0 %v2075
      %v2167 = vpop.f32.mrb[0].mxu0
      %v2168 = vadd.f32 0.0, %v2167
      %v2169 = vpop.f32.mrb[0].mxu0
      %v2170 = vpop.f32.mrb[0].mxu0
      %v2171 = vadd.f32 0.0, %v2170
      %v2172 = vpop.f32.mrb[0].mxu0
      %2173 = vdwg.mxu0
      %v2174 = vlaneseq
      %v2175 = vshrl.u32 %v2174, 7
      %v2176 = vsub.s32 1, %v2175
      %v2177 = vrot.slane %v655, %v2176
      %v2178 = vadd.f32 %v1984, %v2177
      %v2179 = vadd.f32 %v1985, %v2177
      %v2180 = vadd.f32 %v1986, %v2177
      %v2181 = vadd.f32 %v1987, %v2177
      %v2182 = vadd.f32 %v1988, %v2177
      %v2183 = vadd.f32 %v1989, %v2177
      %v2184 = vadd.f32 %v1990, %v2177
      %v2185 = vadd.f32 %v1991, %v2177
      %v2186 = vadd.f32 %v1992, %v2177
      %v2187 = vadd.f32 %v1993, %v2177
      %v2188 = vadd.f32 %v1994, %v2177
      %v2189 = vadd.f32 %v1995, %v2177
      %v2190 = vadd.f32 %v1996, %v2177
      %v2191 = vadd.f32 %v1997, %v2177
      %v2192 = vadd.f32 %v1998, %v2177
      %v2193 = vadd.f32 %v1999, %v2177
      %v2194 = vtanh.pop %v2178
      %v2195 = vtanh.pop %v2179
      %v2196 = vtanh.pop %v2180
      %v2197 = vtanh.pop %v2181
      %v2198 = vtanh.pop %v2182
      %v2199 = vtanh.pop %v2183
      %v2200 = vtanh.pop %v2184
      %v2201 = vtanh.pop %v2185
      %v2202 = vtanh.pop %v2186
      %v2203 = vtanh.pop %v2187
      %v2204 = vtanh.pop %v2188
      %v2205 = vtanh.pop %v2189
      %v2206 = vtanh.pop %v2190
      %v2207 = vtanh.pop %v2191
      %v2208 = vtanh.pop %v2192
      %v2209 = vtanh.pop %v2193
      %v2210 = vpack.c.bf16 %v2195, %v2194
      %v2211 = vpack.c.bf16 %v2197, %v2196
      %v2212 = vpack.c.bf16 %v2199, %v2198
      %v2213 = vpack.c.bf16 %v2201, %v2200
      %v2214 = vpack.c.bf16 %v2203, %v2202
      %v2215 = vpack.c.bf16 %v2205, %v2204
      %v2216 = vpack.c.bf16 %v2207, %v2206
      %v2217 = vpack.c.bf16 %v2209, %v2208
      %v2219 = vsel %vm2052, %v2210, 0
      %v2222 = vsel %vm2052, %v2211, 0
      %v2225 = vsel %vm2052, %v2212, 0
      %v2228 = vsel %vm2052, %v2213, 0
      %v2231 = vsel %vm2052, %v2214, 0
      %v2234 = vsel %vm2052, %v2215, 0
      %v2237 = vsel %vm2052, %v2216, 0
      %v2240 = vsel %vm2052, %v2217, 0
      %2242 = vmatprep.subr.bf16.mxu0 0
      %2243 = vmatpush1.bf16.msra.mxu0 %v2050
      %2244 = vmatprep.subr.bf16.mxu0 0
      %2245 = vmatpush1.bf16.msra.mxu0 0
      %2246 = vmatprep.subr.bf16.mxu0 0
      %2247 = vmatpush1.bf16.msra.mxu0 0
      %2248 = vmatprep.subr.bf16.mxu0 0
      %2249 = vmatpush1.bf16.msra.mxu0 0
      %2250 = vmatprep.subr.bf16.mxu0 0
      %2251 = vmatpush1.bf16.msra.mxu0 0
      %2252 = vmatprep.subr.bf16.mxu0 0
      %2253 = vmatpush1.bf16.msra.mxu0 0
      %2254 = vmatprep.subr.bf16.mxu0 0
      %2255 = vmatpush1.bf16.msra.mxu0 0
      %2256 = vmatprep.subr.bf16.mxu0 0
      %2257 = vmatpush1.bf16.msra.mxu0 0
      %2258 = vmatprep.subr.bf16.mxu0 0
      %2259 = vmatpush1.bf16.msra.mxu0 0
      %2260 = vmatprep.subr.bf16.mxu0 0
      %2261 = vmatpush1.bf16.msra.mxu0 0
      %2262 = vmatprep.subr.bf16.mxu0 0
      %2263 = vmatpush1.bf16.msra.mxu0 0
      %2264 = vmatprep.subr.bf16.mxu0 0
      %2265 = vmatpush1.bf16.msra.mxu0 0
      %2266 = vmatprep.subr.bf16.mxu0 0
      %2267 = vmatpush1.bf16.msra.mxu0 0
      %2268 = vmatprep.subr.bf16.mxu0 0
      %2269 = vmatpush1.bf16.msra.mxu0 0
      %2270 = vmatprep.subr.bf16.mxu0 0
      %2271 = vmatpush1.bf16.msra.mxu0 0
      %2272 = vmatprep.subr.bf16.mxu0 0
      %2273 = vmatpush1.bf16.msra.mxu0 0
      %2274 = vmatprep.mubr.bf16.mxu0 0
      %2275 = vmatmul.mubr.bf16.gmra.mrb[0].mxu0 %v2219
      %v2276 = vpop.f32.mrb[0].mxu0
      %v2277 = vadd.f32 0.0, %v2276
      %v2278 = vpop.f32.mrb[0].mxu0
      %v2279 = vpop.f32.mrb[0].mxu0
      %v2280 = vadd.f32 0.0, %v2279
      %v2281 = vpop.f32.mrb[0].mxu0
      %2282 = vmatprep.mubr.bf16.mxu0 0
      %2283 = vmatmul.mubr.bf16.gmra.mrb[0].mxu0 %v2222
      %v2284 = vpop.f32.mrb[0].mxu0
      %v2285 = vadd.f32 0.0, %v2284
      %v2286 = vpop.f32.mrb[0].mxu0
      %v2287 = vpop.f32.mrb[0].mxu0
      %v2288 = vadd.f32 0.0, %v2287
      %v2289 = vpop.f32.mrb[0].mxu0
      %2290 = vmatprep.mubr.bf16.mxu0 0
      %2291 = vmatmul.mubr.bf16.gmra.mrb[0].mxu0 %v2225
      %v2292 = vpop.f32.mrb[0].mxu0
      %v2293 = vadd.f32 0.0, %v2292
      %v2294 = vpop.f32.mrb[0].mxu0
      %v2295 = vpop.f32.mrb[0].mxu0
      %v2296 = vadd.f32 0.0, %v2295
      %v2297 = vpop.f32.mrb[0].mxu0
      %2298 = vmatprep.mubr.bf16.mxu0 0
      %2299 = vmatmul.mubr.bf16.gmra.mrb[0].mxu0 %v2228
      %v2300 = vpop.f32.mrb[0].mxu0
      %v2301 = vadd.f32 0.0, %v2300
      %v2302 = vpop.f32.mrb[0].mxu0
      %v2303 = vpop.f32.mrb[0].mxu0
      %v2304 = vadd.f32 0.0, %v2303
      %v2305 = vpop.f32.mrb[0].mxu0
      %2306 = vmatprep.mubr.bf16.mxu0 0
      %2307 = vmatmul.mubr.bf16.gmra.mrb[0].mxu0 %v2231
      %v2308 = vpop.f32.mrb[0].mxu0
      %v2309 = vadd.f32 0.0, %v2308
      %v2310 = vpop.f32.mrb[0].mxu0
      %v2311 = vpop.f32.mrb[0].mxu0
      %v2312 = vadd.f32 0.0, %v2311
      %v2313 = vpop.f32.mrb[0].mxu0
      %2314 = vmatprep.mubr.bf16.mxu0 0
      %2315 = vmatmul.mubr.bf16.gmra.mrb[0].mxu0 %v2234
      %v2316 = vpop.f32.mrb[0].mxu0
      %v2317 = vadd.f32 0.0, %v2316
      %v2318 = vpop.f32.mrb[0].mxu0
      %v2319 = vpop.f32.mrb[0].mxu0
      %v2320 = vadd.f32 0.0, %v2319
      %v2321 = vpop.f32.mrb[0].mxu0
      %2322 = vmatprep.mubr.bf16.mxu0 0
      %2323 = vmatmul.mubr.bf16.gmra.mrb[0].mxu0 %v2237
      %v2324 = vpop.f32.mrb[0].mxu0
      %v2325 = vadd.f32 0.0, %v2324
      %v2326 = vpop.f32.mrb[0].mxu0
      %v2327 = vpop.f32.mrb[0].mxu0
      %v2328 = vadd.f32 0.0, %v2327
      %v2329 = vpop.f32.mrb[0].mxu0
      %2330 = vmatprep.mubr.bf16.mxu0 0
      %2331 = vmatmul.mubr.bf16.gmra.mrb[0].mxu0 %v2240
      %v2332 = vpop.f32.mrb[0].mxu0
      %v2333 = vadd.f32 0.0, %v2332
      %v2334 = vpop.f32.mrb[0].mxu0
      %v2335 = vpop.f32.mrb[0].mxu0
      %v2336 = vadd.f32 0.0, %v2335
      %v2337 = vpop.f32.mrb[0].mxu0
      %2338 = vdwg.mxu0
      %v2339 = vlaneseq
      %v2340 = vshrl.u32 %v2339, 7
      %v2341 = vsub.s32 2, %v2340
      %v2342 = vrot.slane %v655, %v2341
      %v2343 = vadd.f32 %v1984, %v2342
      %v2344 = vadd.f32 %v1985, %v2342
      %v2345 = vadd.f32 %v1986, %v2342
      %v2346 = vadd.f32 %v1987, %v2342
      %v2347 = vadd.f32 %v1988, %v2342
      %v2348 = vadd.f32 %v1989, %v2342
      %v2349 = vadd.f32 %v1990, %v2342
      %v2350 = vadd.f32 %v1991, %v2342
      %v2351 = vadd.f32 %v1992, %v2342
      %v2352 = vadd.f32 %v1993, %v2342
      %v2353 = vadd.f32 %v1994, %v2342
      %v2354 = vadd.f32 %v1995, %v2342
      %v2355 = vadd.f32 %v1996, %v2342
      %v2356 = vadd.f32 %v1997, %v2342
      %v2357 = vadd.f32 %v1998, %v2342
      %v2358 = vadd.f32 %v1999, %v2342
      %v2359 = vtanh.pop %v2343
      %v2360 = vtanh.pop %v2344
      %v2361 = vtanh.pop %v2345
      %v2362 = vtanh.pop %v2346
      %v2363 = vtanh.pop %v2347
      %v2364 = vtanh.pop %v2348
      %v2365 = vtanh.pop %v2349
      %v2366 = vtanh.pop %v2350
      %v2367 = vtanh.pop %v2351
      %v2368 = vtanh.pop %v2352
      %v2369 = vtanh.pop %v2353
      %v2370 = vtanh.pop %v2354
      %v2371 = vtanh.pop %v2355
      %v2372 = vtanh.pop %v2356
      %v2373 = vtanh.pop %v2357
      %v2374 = vtanh.pop %v2358
      %v2375 = vpack.c.bf16 %v2360, %v2359
      %v2376 = vpack.c.bf16 %v2362, %v2361
      %v2377 = vpack.c.bf16 %v2364, %v2363
      %v2378 = vpack.c.bf16 %v2366, %v2365
      %v2379 = vpack.c.bf16 %v2368, %v2367
      %v2380 = vpack.c.bf16 %v2370, %v2369
      %v2381 = vpack.c.bf16 %v2372, %v2371
      %v2382 = vpack.c.bf16 %v2374, %v2373
      %v2384 = vsel %vm2052, %v2375, 0
      %v2387 = vsel %vm2052, %v2376, 0
      %v2390 = vsel %vm2052, %v2377, 0
      %v2393 = vsel %vm2052, %v2378, 0
      %v2396 = vsel %vm2052, %v2379, 0
      %v2399 = vsel %vm2052, %v2380, 0
      %v2402 = vsel %vm2052, %v2381, 0
      %v2405 = vsel %vm2052, %v2382, 0
      %2407 = vmatprep.subr.bf16.mxu0 0
      %2408 = vmatpush1.bf16.msra.mxu0 %v2050
      %2409 = vmatprep.subr.bf16.mxu0 0
      %2410 = vmatpush1.bf16.msra.mxu0 0
      %2411 = vmatprep.subr.bf16.mxu0 0
      %2412 = vmatpush1.bf16.msra.mxu0 0
      %2413 = vmatprep.subr.bf16.mxu0 0
      %2414 = vmatpush1.bf16.msra.mxu0 0
      %2415 = vmatprep.subr.bf16.mxu0 0
      %2416 = vmatpush1.bf16.msra.mxu0 0
      %2417 = vmatprep.subr.bf16.mxu0 0
      %2418 = vmatpush1.bf16.msra.mxu0 0
      %2419 = vmatprep.subr.bf16.mxu0 0
      %2420 = vmatpush1.bf16.msra.mxu0 0
      %2421 = vmatprep.subr.bf16.mxu0 0
      %2422 = vmatpush1.bf16.msra.mxu0 0
      %2423 = vmatprep.subr.bf16.mxu0 0
      %2424 = vmatpush1.bf16.msra.mxu0 0
      %2425 = vmatprep.subr.bf16.mxu0 0
      %2426 = vmatpush1.bf16.msra.mxu0 0
      %2427 = vmatprep.subr.bf16.mxu0 0
      %2428 = vmatpush1.bf16.msra.mxu0 0
      %2429 = vmatprep.subr.bf16.mxu0 0
      %2430 = vmatpush1.bf16.msra.mxu0 0
      %2431 = vmatprep.subr.bf16.mxu0 0
      %2432 = vmatpush1.bf16.msra.mxu0 0
      %2433 = vmatprep.subr.bf16.mxu0 0
      %2434 = vmatpush1.bf16.msra.mxu0 0
      %2435 = vmatprep.subr.bf16.mxu0 0
      %2436 = vmatpush1.bf16.msra.mxu0 0
      %2437 = vmatprep.subr.bf16.mxu0 0
      %2438 = vmatpush1.bf16.msra.mxu0 0
      %2439 = vmatprep.mubr.bf16.mxu0 0
      %2440 = vmatmul.mubr.bf16.gmra.mrb[0].mxu0 %v2384
      %v2441 = vpop.f32.mrb[0].mxu0
      %v2442 = vadd.f32 0.0, %v2441
      %v2443 = vpop.f32.mrb[0].mxu0
      %v2444 = vpop.f32.mrb[0].mxu0
      %v2445 = vadd.f32 0.0, %v2444
      %v2446 = vpop.f32.mrb[0].mxu0
      %2447 = vmatprep.mubr.bf16.mxu0 0
      %2448 = vmatmul.mubr.bf16.gmra.mrb[0].mxu0 %v2387
      %v2449 = vpop.f32.mrb[0].mxu0
      %v2450 = vadd.f32 0.0, %v2449
      %v2451 = vpop.f32.mrb[0].mxu0
      %v2452 = vpop.f32.mrb[0].mxu0
      %v2453 = vadd.f32 0.0, %v2452
      %v2454 = vpop.f32.mrb[0].mxu0
      %2455 = vmatprep.mubr.bf16.mxu0 0
      %2456 = vmatmul.mubr.bf16.gmra.mrb[0].mxu0 %v2390
      %v2457 = vpop.f32.mrb[0].mxu0
      %v2458 = vadd.f32 0.0, %v2457
      %v2459 = vpop.f32.mrb[0].mxu0
      %v2460 = vpop.f32.mrb[0].mxu0
      %v2461 = vadd.f32 0.0, %v2460
      %v2462 = vpop.f32.mrb[0].mxu0
      %2463 = vmatprep.mubr.bf16.mxu0 0
      %2464 = vmatmul.mubr.bf16.gmra.mrb[0].mxu0 %v2393
      %v2465 = vpop.f32.mrb[0].mxu0
      %v2466 = vadd.f32 0.0, %v2465
      %v2467 = vpop.f32.mrb[0].mxu0
      %v2468 = vpop.f32.mrb[0].mxu0
      %v2469 = vadd.f32 0.0, %v2468
      %v2470 = vpop.f32.mrb[0].mxu0
      %2471 = vmatprep.mubr.bf16.mxu0 0
      %2472 = vmatmul.mubr.bf16.gmra.mrb[0].mxu0 %v2396
      %v2473 = vpop.f32.mrb[0].mxu0
      %v2474 = vadd.f32 0.0, %v2473
      %v2475 = vpop.f32.mrb[0].mxu0
      %v2476 = vpop.f32.mrb[0].mxu0
      %v2477 = vadd.f32 0.0, %v2476
      %v2478 = vpop.f32.mrb[0].mxu0
      %2479 = vmatprep.mubr.bf16.mxu0 0
      %2480 = vmatmul.mubr.bf16.gmra.mrb[0].mxu0 %v2399
      %v2481 = vpop.f32.mrb[0].mxu0
      %v2482 = vadd.f32 0.0, %v2481
      %v2483 = vpop.f32.mrb[0].mxu0
      %v2484 = vpop.f32.mrb[0].mxu0
      %v2485 = vadd.f32 0.0, %v2484
      %v2486 = vpop.f32.mrb[0].mxu0
      %2487 = vmatprep.mubr.bf16.mxu0 0
      %2488 = vmatmul.mubr.bf16.gmra.mrb[0].mxu0 %v2402
      %v2489 = vpop.f32.mrb[0].mxu0
      %v2490 = vadd.f32 0.0, %v2489
      %v2491 = vpop.f32.mrb[0].mxu0
      %v2492 = vpop.f32.mrb[0].mxu0
      %v2493 = vadd.f32 0.0, %v2492
      %v2494 = vpop.f32.mrb[0].mxu0
      %2495 = vmatprep.mubr.bf16.mxu0 0
      %2496 = vmatmul.mubr.bf16.gmra.mrb[0].mxu0 %v2405
      %v2497 = vpop.f32.mrb[0].mxu0
      %v2498 = vadd.f32 0.0, %v2497
      %v2499 = vpop.f32.mrb[0].mxu0
      %v2500 = vpop.f32.mrb[0].mxu0
      %v2501 = vadd.f32 0.0, %v2500
      %v2502 = vpop.f32.mrb[0].mxu0
      %2503 = vdwg.mxu0
      %v2504 = vlaneseq
      %v2505 = vshrl.u32 %v2504, 7
      %v2506 = vsub.s32 3, %v2505
      %v2507 = vrot.slane %v655, %v2506
      %v2508 = vadd.f32 %v1984, %v2507
      %v2509 = vadd.f32 %v1985, %v2507
      %v2510 = vadd.f32 %v1986, %v2507
      %v2511 = vadd.f32 %v1987, %v2507
      %v2512 = vadd.f32 %v1988, %v2507
      %v2513 = vadd.f32 %v1989, %v2507
      %v2514 = vadd.f32 %v1990, %v2507
      %v2515 = vadd.f32 %v1991, %v2507
      %v2516 = vadd.f32 %v1992, %v2507
      %v2517 = vadd.f32 %v1993, %v2507
      %v2518 = vadd.f32 %v1994, %v2507
      %v2519 = vadd.f32 %v1995, %v2507
      %v2520 = vadd.f32 %v1996, %v2507
      %v2521 = vadd.f32 %v1997, %v2507
      %v2522 = vadd.f32 %v1998, %v2507
      %v2523 = vadd.f32 %v1999, %v2507
      %v2524 = vtanh.pop %v2508
      %v2525 = vtanh.pop %v2509
      %v2526 = vtanh.pop %v2510
      %v2527 = vtanh.pop %v2511
      %v2528 = vtanh.pop %v2512
      %v2529 = vtanh.pop %v2513
      %v2530 = vtanh.pop %v2514
      %v2531 = vtanh.pop %v2515
      %v2532 = vtanh.pop %v2516
      %v2533 = vtanh.pop %v2517
      %v2534 = vtanh.pop %v2518
      %v2535 = vtanh.pop %v2519
      %v2536 = vtanh.pop %v2520
      %v2537 = vtanh.pop %v2521
      %v2538 = vtanh.pop %v2522
      %v2539 = vtanh.pop %v2523
      %v2540 = vpack.c.bf16 %v2525, %v2524
      %v2541 = vpack.c.bf16 %v2527, %v2526
      %v2542 = vpack.c.bf16 %v2529, %v2528
      %v2543 = vpack.c.bf16 %v2531, %v2530
      %v2544 = vpack.c.bf16 %v2533, %v2532
      %v2545 = vpack.c.bf16 %v2535, %v2534
      %v2546 = vpack.c.bf16 %v2537, %v2536
      %v2547 = vpack.c.bf16 %v2539, %v2538
      %v2549 = vsel %vm2052, %v2540, 0
      %v2552 = vsel %vm2052, %v2541, 0
      %v2555 = vsel %vm2052, %v2542, 0
      %v2558 = vsel %vm2052, %v2543, 0
      %v2561 = vsel %vm2052, %v2544, 0
      %v2564 = vsel %vm2052, %v2545, 0
      %v2567 = vsel %vm2052, %v2546, 0
      %v2570 = vsel %vm2052, %v2547, 0
      %2572 = vmatprep.subr.bf16.mxu0 0
      %2573 = vmatpush1.bf16.msra.mxu0 %v2050
      %2574 = vmatprep.subr.bf16.mxu0 0
      %2575 = vmatpush1.bf16.msra.mxu0 0
      %2576 = vmatprep.subr.bf16.mxu0 0
      %2577 = vmatpush1.bf16.msra.mxu0 0
      %2578 = vmatprep.subr.bf16.mxu0 0
      %2579 = vmatpush1.bf16.msra.mxu0 0
      %2580 = vmatprep.subr.bf16.mxu0 0
      %2581 = vmatpush1.bf16.msra.mxu0 0
      %2582 = vmatprep.subr.bf16.mxu0 0
      %2583 = vmatpush1.bf16.msra.mxu0 0
      %2584 = vmatprep.subr.bf16.mxu0 0
      %2585 = vmatpush1.bf16.msra.mxu0 0
      %2586 = vmatprep.subr.bf16.mxu0 0
      %2587 = vmatpush1.bf16.msra.mxu0 0
      %2588 = vmatprep.subr.bf16.mxu0 0
      %2589 = vmatpush1.bf16.msra.mxu0 0
      %2590 = vmatprep.subr.bf16.mxu0 0
      %2591 = vmatpush1.bf16.msra.mxu0 0
      %2592 = vmatprep.subr.bf16.mxu0 0
      %2593 = vmatpush1.bf16.msra.mxu0 0
      %2594 = vmatprep.subr.bf16.mxu0 0
      %2595 = vmatpush1.bf16.msra.mxu0 0
      %2596 = vmatprep.subr.bf16.mxu0 0
      %2597 = vmatpush1.bf16.msra.mxu0 0
      %2598 = vmatprep.subr.bf16.mxu0 0
      %2599 = vmatpush1.bf16.msra.mxu0 0
      %2600 = vmatprep.subr.bf16.mxu0 0
      %2601 = vmatpush1.bf16.msra.mxu0 0
      %2602 = vmatprep.subr.bf16.mxu0 0
      %2603 = vmatpush1.bf16.msra.mxu0 0
      %2604 = vmatprep.mubr.bf16.mxu0 0
      %2605 = vmatmul.mubr.bf16.gmra.mrb[0].mxu0 %v2549
      %v2606 = vpop.f32.mrb[0].mxu0
      %v2607 = vadd.f32 0.0, %v2606
      %v2608 = vpop.f32.mrb[0].mxu0
      %v2609 = vpop.f32.mrb[0].mxu0
      %v2610 = vadd.f32 0.0, %v2609
      %v2611 = vpop.f32.mrb[0].mxu0
      %2612 = vmatprep.mubr.bf16.mxu0 0
      %2613 = vmatmul.mubr.bf16.gmra.mrb[0].mxu0 %v2552
      %v2614 = vpop.f32.mrb[0].mxu0
      %v2615 = vadd.f32 0.0, %v2614
      %v2616 = vpop.f32.mrb[0].mxu0
      %v2617 = vpop.f32.mrb[0].mxu0
      %v2618 = vadd.f32 0.0, %v2617
      %v2619 = vpop.f32.mrb[0].mxu0
      %2620 = vmatprep.mubr.bf16.mxu0 0
      %2621 = vmatmul.mubr.bf16.gmra.mrb[0].mxu0 %v2555
      %v2622 = vpop.f32.mrb[0].mxu0
      %v2623 = vadd.f32 0.0, %v2622
      %v2624 = vpop.f32.mrb[0].mxu0
      %v2625 = vpop.f32.mrb[0].mxu0
      %v2626 = vadd.f32 0.0, %v2625
      %v2627 = vpop.f32.mrb[0].mxu0
      %2628 = vmatprep.mubr.bf16.mxu0 0
      %2629 = vmatmul.mubr.bf16.gmra.mrb[0].mxu0 %v2558
      %v2630 = vpop.f32.mrb[0].mxu0
      %v2631 = vadd.f32 0.0, %v2630
      %v2632 = vpop.f32.mrb[0].mxu0
      %v2633 = vpop.f32.mrb[0].mxu0
      %v2634 = vadd.f32 0.0, %v2633
      %v2635 = vpop.f32.mrb[0].mxu0
      %2636 = vmatprep.mubr.bf16.mxu0 0
      %2637 = vmatmul.mubr.bf16.gmra.mrb[0].mxu0 %v2561
      %v2638 = vpop.f32.mrb[0].mxu0
      %v2639 = vadd.f32 0.0, %v2638
      %v2640 = vpop.f32.mrb[0].mxu0
      %v2641 = vpop.f32.mrb[0].mxu0
      %v2642 = vadd.f32 0.0, %v2641
      %v2643 = vpop.f32.mrb[0].mxu0
      %2644 = vmatprep.mubr.bf16.mxu0 0
      %2645 = vmatmul.mubr.bf16.gmra.mrb[0].mxu0 %v2564
      %v2646 = vpop.f32.mrb[0].mxu0
      %v2647 = vadd.f32 0.0, %v2646
      %v2648 = vpop.f32.mrb[0].mxu0
      %v2649 = vpop.f32.mrb[0].mxu0
      %v2650 = vadd.f32 0.0, %v2649
      %v2651 = vpop.f32.mrb[0].mxu0
      %2652 = vmatprep.mubr.bf16.mxu0 0
      %2653 = vmatmul.mubr.bf16.gmra.mrb[0].mxu0 %v2567
      %v2654 = vpop.f32.mrb[0].mxu0
      %v2655 = vadd.f32 0.0, %v2654
      %v2656 = vpop.f32.mrb[0].mxu0
      %v2657 = vpop.f32.mrb[0].mxu0
      %v2658 = vadd.f32 0.0, %v2657
      %v2659 = vpop.f32.mrb[0].mxu0
      %2660 = vmatprep.mubr.bf16.mxu0 0
      %2661 = vmatmul.mubr.bf16.gmra.mrb[0].mxu0 %v2570
      %v2662 = vpop.f32.mrb[0].mxu0
      %v2663 = vadd.f32 0.0, %v2662
      %v2664 = vpop.f32.mrb[0].mxu0
      %v2665 = vpop.f32.mrb[0].mxu0
      %v2666 = vadd.f32 0.0, %v2665
      %v2667 = vpop.f32.mrb[0].mxu0
      %2668 = vdwg.mxu0
      %v2669 = vlaneseq
      %v2670 = vshrl.u32 %v2669, 7
      %v2671 = vsub.s32 4, %v2670
      %v2672 = vrot.slane %v655, %v2671
      %v2673 = vadd.f32 %v1984, %v2672
      %v2674 = vadd.f32 %v1985, %v2672
      %v2675 = vadd.f32 %v1986, %v2672
      %v2676 = vadd.f32 %v1987, %v2672
      %v2677 = vadd.f32 %v1988, %v2672
      %v2678 = vadd.f32 %v1989, %v2672
      %v2679 = vadd.f32 %v1990, %v2672
      %v2680 = vadd.f32 %v1991, %v2672
      %v2681 = vadd.f32 %v1992, %v2672
      %v2682 = vadd.f32 %v1993, %v2672
      %v2683 = vadd.f32 %v1994, %v2672
      %v2684 = vadd.f32 %v1995, %v2672
      %v2685 = vadd.f32 %v1996, %v2672
      %v2686 = vadd.f32 %v1997, %v2672
      %v2687 = vadd.f32 %v1998, %v2672
      %v2688 = vadd.f32 %v1999, %v2672
      %v2689 = vtanh.pop %v2673
      %v2690 = vtanh.pop %v2674
      %v2691 = vtanh.pop %v2675
      %v2692 = vtanh.pop %v2676
      %v2693 = vtanh.pop %v2677
      %v2694 = vtanh.pop %v2678
      %v2695 = vtanh.pop %v2679
      %v2696 = vtanh.pop %v2680
      %v2697 = vtanh.pop %v2681
      %v2698 = vtanh.pop %v2682
      %v2699 = vtanh.pop %v2683
      %v2700 = vtanh.pop %v2684
      %v2701 = vtanh.pop %v2685
      %v2702 = vtanh.pop %v2686
      %v2703 = vtanh.pop %v2687
      %v2704 = vtanh.pop %v2688
      %v2705 = vpack.c.bf16 %v2690, %v2689
      %v2706 = vpack.c.bf16 %v2692, %v2691
      %v2707 = vpack.c.bf16 %v2694, %v2693
      %v2708 = vpack.c.bf16 %v2696, %v2695
      %v2709 = vpack.c.bf16 %v2698, %v2697
      %v2710 = vpack.c.bf16 %v2700, %v2699
      %v2711 = vpack.c.bf16 %v2702, %v2701
      %v2712 = vpack.c.bf16 %v2704, %v2703
      %v2714 = vsel %vm2052, %v2705, 0
      %v2717 = vsel %vm2052, %v2706, 0
      %v2720 = vsel %vm2052, %v2707, 0
      %v2723 = vsel %vm2052, %v2708, 0
      %v2726 = vsel %vm2052, %v2709, 0
      %v2729 = vsel %vm2052, %v2710, 0
      %v2732 = vsel %vm2052, %v2711, 0
      %v2735 = vsel %vm2052, %v2712, 0
      %2737 = vmatprep.subr.bf16.mxu0 0
      %2738 = vmatpush1.bf16.msra.mxu0 %v2050
      %2739 = vmatprep.subr.bf16.mxu0 0
      %2740 = vmatpush1.bf16.msra.mxu0 0
      %2741 = vmatprep.subr.bf16.mxu0 0
      %2742 = vmatpush1.bf16.msra.mxu0 0
      %2743 = vmatprep.subr.bf16.mxu0 0
      %2744 = vmatpush1.bf16.msra.mxu0 0
      %2745 = vmatprep.subr.bf16.mxu0 0
      %2746 = vmatpush1.bf16.msra.mxu0 0
      %2747 = vmatprep.subr.bf16.mxu0 0
      %2748 = vmatpush1.bf16.msra.mxu0 0
      %2749 = vmatprep.subr.bf16.mxu0 0
      %2750 = vmatpush1.bf16.msra.mxu0 0
      %2751 = vmatprep.subr.bf16.mxu0 0
      %2752 = vmatpush1.bf16.msra.mxu0 0
      %2753 = vmatprep.subr.bf16.mxu0 0
      %2754 = vmatpush1.bf16.msra.mxu0 0
      %2755 = vmatprep.subr.bf16.mxu0 0
      %2756 = vmatpush1.bf16.msra.mxu0 0
      %2757 = vmatprep.subr.bf16.mxu0 0
      %2758 = vmatpush1.bf16.msra.mxu0 0
      %2759 = vmatprep.subr.bf16.mxu0 0
      %2760 = vmatpush1.bf16.msra.mxu0 0
      %2761 = vmatprep.subr.bf16.mxu0 0
      %2762 = vmatpush1.bf16.msra.mxu0 0
      %2763 = vmatprep.subr.bf16.mxu0 0
      %2764 = vmatpush1.bf16.msra.mxu0 0
      %2765 = vmatprep.subr.bf16.mxu0 0
      %2766 = vmatpush1.bf16.msra.mxu0 0
      %2767 = vmatprep.subr.bf16.mxu0 0
      %2768 = vmatpush1.bf16.msra.mxu0 0
      %2769 = vmatprep.mubr.bf16.mxu0 0
      %2770 = vmatmul.mubr.bf16.gmra.mrb[0].mxu0 %v2714
      %v2771 = vpop.f32.mrb[0].mxu0
      %v2772 = vadd.f32 0.0, %v2771
      %v2773 = vpop.f32.mrb[0].mxu0
      %v2774 = vpop.f32.mrb[0].mxu0
      %v2775 = vadd.f32 0.0, %v2774
      %v2776 = vpop.f32.mrb[0].mxu0
      %2777 = vmatprep.mubr.bf16.mxu0 0
      %2778 = vmatmul.mubr.bf16.gmra.mrb[0].mxu0 %v2717
      %v2779 = vpop.f32.mrb[0].mxu0
      %v2780 = vadd.f32 0.0, %v2779
      %v2781 = vpop.f32.mrb[0].mxu0
      %v2782 = vpop.f32.mrb[0].mxu0
      %v2783 = vadd.f32 0.0, %v2782
      %v2784 = vpop.f32.mrb[0].mxu0
      %2785 = vmatprep.mubr.bf16.mxu0 0
      %2786 = vmatmul.mubr.bf16.gmra.mrb[0].mxu0 %v2720
      %v2787 = vpop.f32.mrb[0].mxu0
      %v2788 = vadd.f32 0.0, %v2787
      %v2789 = vpop.f32.mrb[0].mxu0
      %v2790 = vpop.f32.mrb[0].mxu0
      %v2791 = vadd.f32 0.0, %v2790
      %v2792 = vpop.f32.mrb[0].mxu0
      %2793 = vmatprep.mubr.bf16.mxu0 0
      %2794 = vmatmul.mubr.bf16.gmra.mrb[0].mxu0 %v2723
      %v2795 = vpop.f32.mrb[0].mxu0
      %v2796 = vadd.f32 0.0, %v2795
      %v2797 = vpop.f32.mrb[0].mxu0
      %v2798 = vpop.f32.mrb[0].mxu0
      %v2799 = vadd.f32 0.0, %v2798
      %v2800 = vpop.f32.mrb[0].mxu0
      %2801 = vmatprep.mubr.bf16.mxu0 0
      %2802 = vmatmul.mubr.bf16.gmra.mrb[0].mxu0 %v2726
      %v2803 = vpop.f32.mrb[0].mxu0
      %v2804 = vadd.f32 0.0, %v2803
      %v2805 = vpop.f32.mrb[0].mxu0
      %v2806 = vpop.f32.mrb[0].mxu0
      %v2807 = vadd.f32 0.0, %v2806
      %v2808 = vpop.f32.mrb[0].mxu0
      %2809 = vmatprep.mubr.bf16.mxu0 0
      %2810 = vmatmul.mubr.bf16.gmra.mrb[0].mxu0 %v2729
      %v2811 = vpop.f32.mrb[0].mxu0
      %v2812 = vadd.f32 0.0, %v2811
      %v2813 = vpop.f32.mrb[0].mxu0
      %v2814 = vpop.f32.mrb[0].mxu0
      %v2815 = vadd.f32 0.0, %v2814
      %v2816 = vpop.f32.mrb[0].mxu0
      %2817 = vmatprep.mubr.bf16.mxu0 0
      %2818 = vmatmul.mubr.bf16.gmra.mrb[0].mxu0 %v2732
      %v2819 = vpop.f32.mrb[0].mxu0
      %v2820 = vadd.f32 0.0, %v2819
      %v2821 = vpop.f32.mrb[0].mxu0
      %v2822 = vpop.f32.mrb[0].mxu0
      %v2823 = vadd.f32 0.0, %v2822
      %v2824 = vpop.f32.mrb[0].mxu0
      %2825 = vmatprep.mubr.bf16.mxu0 0
      %2826 = vmatmul.mubr.bf16.gmra.mrb[0].mxu0 %v2735
      %v2827 = vpop.f32.mrb[0].mxu0
      %v2828 = vadd.f32 0.0, %v2827
      %v2829 = vpop.f32.mrb[0].mxu0
      %v2830 = vpop.f32.mrb[0].mxu0
      %v2831 = vadd.f32 0.0, %v2830
      %v2832 = vpop.f32.mrb[0].mxu0
      %2833 = vdwg.mxu0
      %v2834 = vlaneseq
      %v2835 = vshrl.u32 %v2834, 7
      %v2836 = vsub.s32 5, %v2835
      %v2837 = vrot.slane %v655, %v2836
      %v2838 = vadd.f32 %v1984, %v2837
      %v2839 = vadd.f32 %v1985, %v2837
      %v2840 = vadd.f32 %v1986, %v2837
      %v2841 = vadd.f32 %v1987, %v2837
      %v2842 = vadd.f32 %v1988, %v2837
      %v2843 = vadd.f32 %v1989, %v2837
      %v2844 = vadd.f32 %v1990, %v2837
      %v2845 = vadd.f32 %v1991, %v2837
      %v2846 = vadd.f32 %v1992, %v2837
      %v2847 = vadd.f32 %v1993, %v2837
      %v2848 = vadd.f32 %v1994, %v2837
      %v2849 = vadd.f32 %v1995, %v2837
      %v2850 = vadd.f32 %v1996, %v2837
      %v2851 = vadd.f32 %v1997, %v2837
      %v2852 = vadd.f32 %v1998, %v2837
      %v2853 = vadd.f32 %v1999, %v2837
      %v2854 = vtanh.pop %v2838
      %v2855 = vtanh.pop %v2839
      %v2856 = vtanh.pop %v2840
      %v2857 = vtanh.pop %v2841
      %v2858 = vtanh.pop %v2842
      %v2859 = vtanh.pop %v2843
      %v2860 = vtanh.pop %v2844
      %v2861 = vtanh.pop %v2845
      %v2862 = vtanh.pop %v2846
      %v2863 = vtanh.pop %v2847
      %v2864 = vtanh.pop %v2848
      %v2865 = vtanh.pop %v2849
      %v2866 = vtanh.pop %v2850
      %v2867 = vtanh.pop %v2851
      %v2868 = vtanh.pop %v2852
      %v2869 = vtanh.pop %v2853
      %v2870 = vpack.c.bf16 %v2855, %v2854
      %v2871 = vpack.c.bf16 %v2857, %v2856
      %v2872 = vpack.c.bf16 %v2859, %v2858
      %v2873 = vpack.c.bf16 %v2861, %v2860
      %v2874 = vpack.c.bf16 %v2863, %v2862
      %v2875 = vpack.c.bf16 %v2865, %v2864
      %v2876 = vpack.c.bf16 %v2867, %v2866
      %v2877 = vpack.c.bf16 %v2869, %v2868
      %v2879 = vsel %vm2052, %v2870, 0
      %v2882 = vsel %vm2052, %v2871, 0
      %v2885 = vsel %vm2052, %v2872, 0
      %v2888 = vsel %vm2052, %v2873, 0
      %v2891 = vsel %vm2052, %v2874, 0
      %v2894 = vsel %vm2052, %v2875, 0
      %v2897 = vsel %vm2052, %v2876, 0
      %v2900 = vsel %vm2052, %v2877, 0
      %2902 = vmatprep.subr.bf16.mxu0 0
      %2903 = vmatpush1.bf16.msra.mxu0 %v2050
      %2904 = vmatprep.subr.bf16.mxu0 0
      %2905 = vmatpush1.bf16.msra.mxu0 0
      %2906 = vmatprep.subr.bf16.mxu0 0
      %2907 = vmatpush1.bf16.msra.mxu0 0
      %2908 = vmatprep.subr.bf16.mxu0 0
      %2909 = vmatpush1.bf16.msra.mxu0 0
      %2910 = vmatprep.subr.bf16.mxu0 0
      %2911 = vmatpush1.bf16.msra.mxu0 0
      %2912 = vmatprep.subr.bf16.mxu0 0
      %2913 = vmatpush1.bf16.msra.mxu0 0
      %2914 = vmatprep.subr.bf16.mxu0 0
      %2915 = vmatpush1.bf16.msra.mxu0 0
      %2916 = vmatprep.subr.bf16.mxu0 0
      %2917 = vmatpush1.bf16.msra.mxu0 0
      %2918 = vmatprep.subr.bf16.mxu0 0
      %2919 = vmatpush1.bf16.msra.mxu0 0
      %2920 = vmatprep.subr.bf16.mxu0 0
      %2921 = vmatpush1.bf16.msra.mxu0 0
      %2922 = vmatprep.subr.bf16.mxu0 0
      %2923 = vmatpush1.bf16.msra.mxu0 0
      %2924 = vmatprep.subr.bf16.mxu0 0
      %2925 = vmatpush1.bf16.msra.mxu0 0
      %2926 = vmatprep.subr.bf16.mxu0 0
      %2927 = vmatpush1.bf16.msra.mxu0 0
      %2928 = vmatprep.subr.bf16.mxu0 0
      %2929 = vmatpush1.bf16.msra.mxu0 0
      %2930 = vmatprep.subr.bf16.mxu0 0
      %2931 = vmatpush1.bf16.msra.mxu0 0
      %2932 = vmatprep.subr.bf16.mxu0 0
      %2933 = vmatpush1.bf16.msra.mxu0 0
      %2934 = vmatprep.mubr.bf16.mxu0 0
      %2935 = vmatmul.mubr.bf16.gmra.mrb[0].mxu0 %v2879
      %v2936 = vpop.f32.mrb[0].mxu0
      %v2937 = vadd.f32 0.0, %v2936
      %v2938 = vpop.f32.mrb[0].mxu0
      %v2939 = vpop.f32.mrb[0].mxu0
      %v2940 = vadd.f32 0.0, %v2939
      %v2941 = vpop.f32.mrb[0].mxu0
      %2942 = vmatprep.mubr.bf16.mxu0 0
      %2943 = vmatmul.mubr.bf16.gmra.mrb[0].mxu0 %v2882
      %v2944 = vpop.f32.mrb[0].mxu0
      %v2945 = vadd.f32 0.0, %v2944
      %v2946 = vpop.f32.mrb[0].mxu0
      %v2947 = vpop.f32.mrb[0].mxu0
      %v2948 = vadd.f32 0.0, %v2947
      %v2949 = vpop.f32.mrb[0].mxu0
      %2950 = vmatprep.mubr.bf16.mxu0 0
      %2951 = vmatmul.mubr.bf16.gmra.mrb[0].mxu0 %v2885
      %v2952 = vpop.f32.mrb[0].mxu0
      %v2953 = vadd.f32 0.0, %v2952
      %v2954 = vpop.f32.mrb[0].mxu0
      %v2955 = vpop.f32.mrb[0].mxu0
      %v2956 = vadd.f32 0.0, %v2955
      %v2957 = vpop.f32.mrb[0].mxu0
      %2958 = vmatprep.mubr.bf16.mxu0 0
      %2959 = vmatmul.mubr.bf16.gmra.mrb[0].mxu0 %v2888
      %v2960 = vpop.f32.mrb[0].mxu0
      %v2961 = vadd.f32 0.0, %v2960
      %v2962 = vpop.f32.mrb[0].mxu0
      %v2963 = vpop.f32.mrb[0].mxu0
      %v2964 = vadd.f32 0.0, %v2963
      %v2965 = vpop.f32.mrb[0].mxu0
      %2966 = vmatprep.mubr.bf16.mxu0 0
      %2967 = vmatmul.mubr.bf16.gmra.mrb[0].mxu0 %v2891
      %v2968 = vpop.f32.mrb[0].mxu0
      %v2969 = vadd.f32 0.0, %v2968
      %v2970 = vpop.f32.mrb[0].mxu0
      %v2971 = vpop.f32.mrb[0].mxu0
      %v2972 = vadd.f32 0.0, %v2971
      %v2973 = vpop.f32.mrb[0].mxu0
      %2974 = vmatprep.mubr.bf16.mxu0 0
      %2975 = vmatmul.mubr.bf16.gmra.mrb[0].mxu0 %v2894
      %v2976 = vpop.f32.mrb[0].mxu0
      %v2977 = vadd.f32 0.0, %v2976
      %v2978 = vpop.f32.mrb[0].mxu0
      %v2979 = vpop.f32.mrb[0].mxu0
      %v2980 = vadd.f32 0.0, %v2979
      %v2981 = vpop.f32.mrb[0].mxu0
      %2982 = vmatprep.mubr.bf16.mxu0 0
      %2983 = vmatmul.mubr.bf16.gmra.mrb[0].mxu0 %v2897
      %v2984 = vpop.f32.mrb[0].mxu0
      %v2985 = vadd.f32 0.0, %v2984
      %v2986 = vpop.f32.mrb[0].mxu0
      %v2987 = vpop.f32.mrb[0].mxu0
      %v2988 = vadd.f32 0.0, %v2987
      %v2989 = vpop.f32.mrb[0].mxu0
      %2990 = vmatprep.mubr.bf16.mxu0 0
      %2991 = vmatmul.mubr.bf16.gmra.mrb[0].mxu0 %v2900
      %v2992 = vpop.f32.mrb[0].mxu0
      %v2993 = vadd.f32 0.0, %v2992
      %v2994 = vpop.f32.mrb[0].mxu0
      %v2995 = vpop.f32.mrb[0].mxu0
      %v2996 = vadd.f32 0.0, %v2995
      %v2997 = vpop.f32.mrb[0].mxu0
      %2998 = vdwg.mxu0
      %v2999 = vlaneseq
      %v3000 = vshrl.u32 %v2999, 7
      %v3001 = vsub.s32 6, %v3000
      %v3002 = vrot.slane %v655, %v3001
      %v3003 = vadd.f32 %v1984, %v3002
      %v3004 = vadd.f32 %v1985, %v3002
      %v3005 = vadd.f32 %v1986, %v3002
      %v3006 = vadd.f32 %v1987, %v3002
      %v3007 = vadd.f32 %v1988, %v3002
      %v3008 = vadd.f32 %v1989, %v3002
      %v3009 = vadd.f32 %v1990, %v3002
      %v3010 = vadd.f32 %v1991, %v3002
      %v3011 = vadd.f32 %v1992, %v3002
      %v3012 = vadd.f32 %v1993, %v3002
      %v3013 = vadd.f32 %v1994, %v3002
      %v3014 = vadd.f32 %v1995, %v3002
      %v3015 = vadd.f32 %v1996, %v3002
      %v3016 = vadd.f32 %v1997, %v3002
      %v3017 = vadd.f32 %v1998, %v3002
      %v3018 = vadd.f32 %v1999, %v3002
      %v3019 = vtanh.pop %v3003
      %v3020 = vtanh.pop %v3004
      %v3021 = vtanh.pop %v3005
      %v3022 = vtanh.pop %v3006
      %v3023 = vtanh.pop %v3007
      %v3024 = vtanh.pop %v3008
      %v3025 = vtanh.pop %v3009
      %v3026 = vtanh.pop %v3010
      %v3027 = vtanh.pop %v3011
      %v3028 = vtanh.pop %v3012
      %v3029 = vtanh.pop %v3013
      %v3030 = vtanh.pop %v3014
      %v3031 = vtanh.pop %v3015
      %v3032 = vtanh.pop %v3016
      %v3033 = vtanh.pop %v3017
      %v3034 = vtanh.pop %v3018
      %v3035 = vpack.c.bf16 %v3020, %v3019
      %v3036 = vpack.c.bf16 %v3022, %v3021
      %v3037 = vpack.c.bf16 %v3024, %v3023
      %v3038 = vpack.c.bf16 %v3026, %v3025
      %v3039 = vpack.c.bf16 %v3028, %v3027
      %v3040 = vpack.c.bf16 %v3030, %v3029
      %v3041 = vpack.c.bf16 %v3032, %v3031
      %v3042 = vpack.c.bf16 %v3034, %v3033
      %v3044 = vsel %vm2052, %v3035, 0
      %v3047 = vsel %vm2052, %v3036, 0
      %v3050 = vsel %vm2052, %v3037, 0
      %v3053 = vsel %vm2052, %v3038, 0
      %v3056 = vsel %vm2052, %v3039, 0
      %v3059 = vsel %vm2052, %v3040, 0
      %v3062 = vsel %vm2052, %v3041, 0
      %v3065 = vsel %vm2052, %v3042, 0
      %3067 = vmatprep.subr.bf16.mxu0 0
      %3068 = vmatpush1.bf16.msra.mxu0 %v2050
      %3069 = vmatprep.subr.bf16.mxu0 0
      %3070 = vmatpush1.bf16.msra.mxu0 0
      %3071 = vmatprep.subr.bf16.mxu0 0
      %3072 = vmatpush1.bf16.msra.mxu0 0
      %3073 = vmatprep.subr.bf16.mxu0 0
      %3074 = vmatpush1.bf16.msra.mxu0 0
      %3075 = vmatprep.subr.bf16.mxu0 0
      %3076 = vmatpush1.bf16.msra.mxu0 0
      %3077 = vmatprep.subr.bf16.mxu0 0
      %3078 = vmatpush1.bf16.msra.mxu0 0
      %3079 = vmatprep.subr.bf16.mxu0 0
      %3080 = vmatpush1.bf16.msra.mxu0 0
      %3081 = vmatprep.subr.bf16.mxu0 0
      %3082 = vmatpush1.bf16.msra.mxu0 0
      %3083 = vmatprep.subr.bf16.mxu0 0
      %3084 = vmatpush1.bf16.msra.mxu0 0
      %3085 = vmatprep.subr.bf16.mxu0 0
      %3086 = vmatpush1.bf16.msra.mxu0 0
      %3087 = vmatprep.subr.bf16.mxu0 0
      %3088 = vmatpush1.bf16.msra.mxu0 0
      %3089 = vmatprep.subr.bf16.mxu0 0
      %3090 = vmatpush1.bf16.msra.mxu0 0
      %3091 = vmatprep.subr.bf16.mxu0 0
      %3092 = vmatpush1.bf16.msra.mxu0 0
      %3093 = vmatprep.subr.bf16.mxu0 0
      %3094 = vmatpush1.bf16.msra.mxu0 0
      %3095 = vmatprep.subr.bf16.mxu0 0
      %3096 = vmatpush1.bf16.msra.mxu0 0
      %3097 = vmatprep.subr.bf16.mxu0 0
      %3098 = vmatpush1.bf16.msra.mxu0 0
      %3099 = vmatprep.mubr.bf16.mxu0 0
      %3100 = vmatmul.mubr.bf16.gmra.mrb[0].mxu0 %v3044
      %v3101 = vpop.f32.mrb[0].mxu0
      %v3102 = vadd.f32 0.0, %v3101
      %v3103 = vpop.f32.mrb[0].mxu0
      %v3104 = vpop.f32.mrb[0].mxu0
      %v3105 = vadd.f32 0.0, %v3104
      %v3106 = vpop.f32.mrb[0].mxu0
      %3107 = vmatprep.mubr.bf16.mxu0 0
      %3108 = vmatmul.mubr.bf16.gmra.mrb[0].mxu0 %v3047
      %v3109 = vpop.f32.mrb[0].mxu0
      %v3110 = vadd.f32 0.0, %v3109
      %v3111 = vpop.f32.mrb[0].mxu0
      %v3112 = vpop.f32.mrb[0].mxu0
      %v3113 = vadd.f32 0.0, %v3112
      %v3114 = vpop.f32.mrb[0].mxu0
      %3115 = vmatprep.mubr.bf16.mxu0 0
      %3116 = vmatmul.mubr.bf16.gmra.mrb[0].mxu0 %v3050
      %v3117 = vpop.f32.mrb[0].mxu0
      %v3118 = vadd.f32 0.0, %v3117
      %v3119 = vpop.f32.mrb[0].mxu0
      %v3120 = vpop.f32.mrb[0].mxu0
      %v3121 = vadd.f32 0.0, %v3120
      %v3122 = vpop.f32.mrb[0].mxu0
      %3123 = vmatprep.mubr.bf16.mxu0 0
      %3124 = vmatmul.mubr.bf16.gmra.mrb[0].mxu0 %v3053
      %v3125 = vpop.f32.mrb[0].mxu0
      %v3126 = vadd.f32 0.0, %v3125
      %v3127 = vpop.f32.mrb[0].mxu0
      %v3128 = vpop.f32.mrb[0].mxu0
      %v3129 = vadd.f32 0.0, %v3128
      %v3130 = vpop.f32.mrb[0].mxu0
      %3131 = vmatprep.mubr.bf16.mxu0 0
      %3132 = vmatmul.mubr.bf16.gmra.mrb[0].mxu0 %v3056
      %v3133 = vpop.f32.mrb[0].mxu0
      %v3134 = vadd.f32 0.0, %v3133
      %v3135 = vpop.f32.mrb[0].mxu0
      %v3136 = vpop.f32.mrb[0].mxu0
      %v3137 = vadd.f32 0.0, %v3136
      %v3138 = vpop.f32.mrb[0].mxu0
      %3139 = vmatprep.mubr.bf16.mxu0 0
      %3140 = vmatmul.mubr.bf16.gmra.mrb[0].mxu0 %v3059
      %v3141 = vpop.f32.mrb[0].mxu0
      %v3142 = vadd.f32 0.0, %v3141
      %v3143 = vpop.f32.mrb[0].mxu0
      %v3144 = vpop.f32.mrb[0].mxu0
      %v3145 = vadd.f32 0.0, %v3144
      %v3146 = vpop.f32.mrb[0].mxu0
      %3147 = vmatprep.mubr.bf16.mxu0 0
      %3148 = vmatmul.mubr.bf16.gmra.mrb[0].mxu0 %v3062
      %v3149 = vpop.f32.mrb[0].mxu0
      %v3150 = vadd.f32 0.0, %v3149
      %v3151 = vpop.f32.mrb[0].mxu0
      %v3152 = vpop.f32.mrb[0].mxu0
      %v3153 = vadd.f32 0.0, %v3152
      %v3154 = vpop.f32.mrb[0].mxu0
      %3155 = vmatprep.mubr.bf16.mxu0 0
      %3156 = vmatmul.mubr.bf16.gmra.mrb[0].mxu0 %v3065
      %v3157 = vpop.f32.mrb[0].mxu0
      %v3158 = vadd.f32 0.0, %v3157
      %v3159 = vpop.f32.mrb[0].mxu0
      %v3160 = vpop.f32.mrb[0].mxu0
      %v3161 = vadd.f32 0.0, %v3160
      %v3162 = vpop.f32.mrb[0].mxu0
      %3163 = vdwg.mxu0
      %v3164 = vlaneseq
      %v3165 = vshrl.u32 %v3164, 7
      %v3166 = vsub.s32 7, %v3165
      %v3167 = vrot.slane %v655, %v3166
      %v3168 = vadd.f32 %v1984, %v3167
      %v3169 = vadd.f32 %v1985, %v3167
      %v3170 = vadd.f32 %v1986, %v3167
      %v3171 = vadd.f32 %v1987, %v3167
      %v3172 = vadd.f32 %v1988, %v3167
      %v3173 = vadd.f32 %v1989, %v3167
      %v3174 = vadd.f32 %v1990, %v3167
      %v3175 = vadd.f32 %v1991, %v3167
      %v3176 = vadd.f32 %v1992, %v3167
      %v3177 = vadd.f32 %v1993, %v3167
      %v3178 = vadd.f32 %v1994, %v3167
      %v3179 = vadd.f32 %v1995, %v3167
      %v3180 = vadd.f32 %v1996, %v3167
      %v3181 = vadd.f32 %v1997, %v3167
      %v3182 = vadd.f32 %v1998, %v3167
      %v3183 = vadd.f32 %v1999, %v3167
      %v3184 = vtanh.pop %v3168
      %v3185 = vtanh.pop %v3169
      %v3186 = vtanh.pop %v3170
      %v3187 = vtanh.pop %v3171
      %v3188 = vtanh.pop %v3172
      %v3189 = vtanh.pop %v3173
      %v3190 = vtanh.pop %v3174
      %v3191 = vtanh.pop %v3175
      %v3192 = vtanh.pop %v3176
      %v3193 = vtanh.pop %v3177
      %v3194 = vtanh.pop %v3178
      %v3195 = vtanh.pop %v3179
      %v3196 = vtanh.pop %v3180
      %v3197 = vtanh.pop %v3181
      %v3198 = vtanh.pop %v3182
      %v3199 = vtanh.pop %v3183
      %v3200 = vpack.c.bf16 %v3185, %v3184
      %v3201 = vpack.c.bf16 %v3187, %v3186
      %v3202 = vpack.c.bf16 %v3189, %v3188
      %v3203 = vpack.c.bf16 %v3191, %v3190
      %v3204 = vpack.c.bf16 %v3193, %v3192
      %v3205 = vpack.c.bf16 %v3195, %v3194
      %v3206 = vpack.c.bf16 %v3197, %v3196
      %v3207 = vpack.c.bf16 %v3199, %v3198
      %v3209 = vsel %vm2052, %v3200, 0
      %v3212 = vsel %vm2052, %v3201, 0
      %v3215 = vsel %vm2052, %v3202, 0
      %v3218 = vsel %vm2052, %v3203, 0
      %v3221 = vsel %vm2052, %v3204, 0
      %v3224 = vsel %vm2052, %v3205, 0
      %v3227 = vsel %vm2052, %v3206, 0
      %v3230 = vsel %vm2052, %v3207, 0
      %3232 = vmatprep.subr.bf16.mxu0 0
      %3233 = vmatpush1.bf16.msra.mxu0 %v2050
      %3234 = vmatprep.subr.bf16.mxu0 0
      %3235 = vmatpush1.bf16.msra.mxu0 0
      %3236 = vmatprep.subr.bf16.mxu0 0
      %3237 = vmatpush1.bf16.msra.mxu0 0
      %3238 = vmatprep.subr.bf16.mxu0 0
      %3239 = vmatpush1.bf16.msra.mxu0 0
      %3240 = vmatprep.subr.bf16.mxu0 0
      %3241 = vmatpush1.bf16.msra.mxu0 0
      %3242 = vmatprep.subr.bf16.mxu0 0
      %3243 = vmatpush1.bf16.msra.mxu0 0
      %3244 = vmatprep.subr.bf16.mxu0 0
      %3245 = vmatpush1.bf16.msra.mxu0 0
      %3246 = vmatprep.subr.bf16.mxu0 0
      %3247 = vmatpush1.bf16.msra.mxu0 0
      %3248 = vmatprep.subr.bf16.mxu0 0
      %3249 = vmatpush1.bf16.msra.mxu0 0
      %3250 = vmatprep.subr.bf16.mxu0 0
      %3251 = vmatpush1.bf16.msra.mxu0 0
      %3252 = vmatprep.subr.bf16.mxu0 0
      %3253 = vmatpush1.bf16.msra.mxu0 0
      %3254 = vmatprep.subr.bf16.mxu0 0
      %3255 = vmatpush1.bf16.msra.mxu0 0
      %3256 = vmatprep.subr.bf16.mxu0 0
      %3257 = vmatpush1.bf16.msra.mxu0 0
      %3258 = vmatprep.subr.bf16.mxu0 0
      %3259 = vmatpush1.bf16.msra.mxu0 0
      %3260 = vmatprep.subr.bf16.mxu0 0
      %3261 = vmatpush1.bf16.msra.mxu0 0
      %3262 = vmatprep.subr.bf16.mxu0 0
      %3263 = vmatpush1.bf16.msra.mxu0 0
      %3264 = vmatprep.mubr.bf16.mxu0 0
      %3265 = vmatmul.mubr.bf16.gmra.mrb[0].mxu0 %v3209
      %v3266 = vpop.f32.mrb[0].mxu0
      %v3267 = vadd.f32 0.0, %v3266
      %v3268 = vpop.f32.mrb[0].mxu0
      %v3269 = vpop.f32.mrb[0].mxu0
      %v3270 = vadd.f32 0.0, %v3269
      %v3271 = vpop.f32.mrb[0].mxu0
      %3272 = vmatprep.mubr.bf16.mxu0 0
      %3273 = vmatmul.mubr.bf16.gmra.mrb[0].mxu0 %v3212
      %v3274 = vpop.f32.mrb[0].mxu0
      %v3275 = vadd.f32 0.0, %v3274
      %v3276 = vpop.f32.mrb[0].mxu0
      %v3277 = vpop.f32.mrb[0].mxu0
      %v3278 = vadd.f32 0.0, %v3277
      %v3279 = vpop.f32.mrb[0].mxu0
      %3280 = vmatprep.mubr.bf16.mxu0 0
      %3281 = vmatmul.mubr.bf16.gmra.mrb[0].mxu0 %v3215
      %v3282 = vpop.f32.mrb[0].mxu0
      %v3283 = vadd.f32 0.0, %v3282
      %v3284 = vpop.f32.mrb[0].mxu0
      %v3285 = vpop.f32.mrb[0].mxu0
      %v3286 = vadd.f32 0.0, %v3285
      %v3287 = vpop.f32.mrb[0].mxu0
      %3288 = vmatprep.mubr.bf16.mxu0 0
      %3289 = vmatmul.mubr.bf16.gmra.mrb[0].mxu0 %v3218
      %v3290 = vpop.f32.mrb[0].mxu0
      %v3291 = vadd.f32 0.0, %v3290
      %v3292 = vpop.f32.mrb[0].mxu0
      %v3293 = vpop.f32.mrb[0].mxu0
      %v3294 = vadd.f32 0.0, %v3293
      %v3295 = vpop.f32.mrb[0].mxu0
      %3296 = vmatprep.mubr.bf16.mxu0 0
      %3297 = vmatmul.mubr.bf16.gmra.mrb[0].mxu0 %v3221
      %v3298 = vpop.f32.mrb[0].mxu0
      %v3299 = vadd.f32 0.0, %v3298
      %v3300 = vpop.f32.mrb[0].mxu0
      %v3301 = vpop.f32.mrb[0].mxu0
      %v3302 = vadd.f32 0.0, %v3301
      %v3303 = vpop.f32.mrb[0].mxu0
      %3304 = vmatprep.mubr.bf16.mxu0 0
      %3305 = vmatmul.mubr.bf16.gmra.mrb[0].mxu0 %v3224
      %v3306 = vpop.f32.mrb[0].mxu0
      %v3307 = vadd.f32 0.0, %v3306
      %v3308 = vpop.f32.mrb[0].mxu0
      %v3309 = vpop.f32.mrb[0].mxu0
      %v3310 = vadd.f32 0.0, %v3309
      %v3311 = vpop.f32.mrb[0].mxu0
      %3312 = vmatprep.mubr.bf16.mxu0 0
      %3313 = vmatmul.mubr.bf16.gmra.mrb[0].mxu0 %v3227
      %v3314 = vpop.f32.mrb[0].mxu0
      %v3315 = vadd.f32 0.0, %v3314
      %v3316 = vpop.f32.mrb[0].mxu0
      %v3317 = vpop.f32.mrb[0].mxu0
      %v3318 = vadd.f32 0.0, %v3317
      %v3319 = vpop.f32.mrb[0].mxu0
      %3320 = vmatprep.mubr.bf16.mxu0 0
      %3321 = vmatmul.mubr.bf16.gmra.mrb[0].mxu0 %v3230
      %v3322 = vpop.f32.mrb[0].mxu0
      %v3323 = vadd.f32 0.0, %v3322
      %v3324 = vpop.f32.mrb[0].mxu0
      %v3325 = vpop.f32.mrb[0].mxu0
      %v3326 = vadd.f32 0.0, %v3325
      %v3327 = vpop.f32.mrb[0].mxu0
      %3328 = vdwg.mxu0
      %3345 = vrot.lane.b32.xlu0 %v2277, 1
      %v3346 = vpop.permute.xlu0 %3345
      %3347 = vrot.lane.b32.xlu0 %v2280, 1
      %v3348 = vpop.permute.xlu0 %3347
      %3349 = vrot.lane.b32.xlu0 %v2285, 1
      %v3350 = vpop.permute.xlu0 %3349
      %3351 = vrot.lane.b32.xlu0 %v2288, 1
      %v3352 = vpop.permute.xlu0 %3351
      %3353 = vrot.lane.b32.xlu0 %v2293, 1
      %v3354 = vpop.permute.xlu0 %3353
      %3355 = vrot.lane.b32.xlu0 %v2296, 1
      %v3356 = vpop.permute.xlu0 %3355
      %3357 = vrot.lane.b32.xlu0 %v2301, 1
      %v3358 = vpop.permute.xlu0 %3357
      %3359 = vrot.lane.b32.xlu0 %v2304, 1
      %v3360 = vpop.permute.xlu0 %3359
      %3361 = vrot.lane.b32.xlu0 %v2309, 1
      %v3362 = vpop.permute.xlu0 %3361
      %3363 = vrot.lane.b32.xlu0 %v2312, 1
      %v3364 = vpop.permute.xlu0 %3363
      %3365 = vrot.lane.b32.xlu0 %v2317, 1
      %v3366 = vpop.permute.xlu0 %3365
      %3367 = vrot.lane.b32.xlu0 %v2320, 1
      %v3368 = vpop.permute.xlu0 %3367
      %3369 = vrot.lane.b32.xlu0 %v2325, 1
      %v3370 = vpop.permute.xlu0 %3369
      %3371 = vrot.lane.b32.xlu0 %v2328, 1
      %v3372 = vpop.permute.xlu0 %3371
      %3373 = vrot.lane.b32.xlu0 %v2333, 1
      %v3374 = vpop.permute.xlu0 %3373
      %3375 = vrot.lane.b32.xlu0 %v2336, 1
      %v3376 = vpop.permute.xlu0 %3375
      %3409 = vrot.lane.b32.xlu0 %v2442, 2
      %v3410 = vpop.permute.xlu0 %3409
      %3411 = vrot.lane.b32.xlu0 %v2445, 2
      %v3412 = vpop.permute.xlu0 %3411
      %3413 = vrot.lane.b32.xlu0 %v2450, 2
      %v3414 = vpop.permute.xlu0 %3413
      %3415 = vrot.lane.b32.xlu0 %v2453, 2
      %v3416 = vpop.permute.xlu0 %3415
      %3417 = vrot.lane.b32.xlu0 %v2458, 2
      %v3418 = vpop.permute.xlu0 %3417
      %3419 = vrot.lane.b32.xlu0 %v2461, 2
      %v3420 = vpop.permute.xlu0 %3419
      %3421 = vrot.lane.b32.xlu0 %v2466, 2
      %v3422 = vpop.permute.xlu0 %3421
      %3423 = vrot.lane.b32.xlu0 %v2469, 2
      %v3424 = vpop.permute.xlu0 %3423
      %3425 = vrot.lane.b32.xlu0 %v2474, 2
      %v3426 = vpop.permute.xlu0 %3425
      %3427 = vrot.lane.b32.xlu0 %v2477, 2
      %v3428 = vpop.permute.xlu0 %3427
      %3429 = vrot.lane.b32.xlu0 %v2482, 2
      %v3430 = vpop.permute.xlu0 %3429
      %3431 = vrot.lane.b32.xlu0 %v2485, 2
      %v3432 = vpop.permute.xlu0 %3431
      %3433 = vrot.lane.b32.xlu0 %v2490, 2
      %v3434 = vpop.permute.xlu0 %3433
      %3435 = vrot.lane.b32.xlu0 %v2493, 2
      %v3436 = vpop.permute.xlu0 %3435
      %3437 = vrot.lane.b32.xlu0 %v2498, 2
      %v3438 = vpop.permute.xlu0 %3437
      %3439 = vrot.lane.b32.xlu0 %v2501, 2
      %v3440 = vpop.permute.xlu0 %3439
      %3473 = vrot.lane.b32.xlu0 %v2607, 3
      %v3474 = vpop.permute.xlu0 %3473
      %3475 = vrot.lane.b32.xlu0 %v2610, 3
      %v3476 = vpop.permute.xlu0 %3475
      %3477 = vrot.lane.b32.xlu0 %v2615, 3
      %v3478 = vpop.permute.xlu0 %3477
      %3479 = vrot.lane.b32.xlu0 %v2618, 3
      %v3480 = vpop.permute.xlu0 %3479
      %3481 = vrot.lane.b32.xlu0 %v2623, 3
      %v3482 = vpop.permute.xlu0 %3481
      %3483 = vrot.lane.b32.xlu0 %v2626, 3
      %v3484 = vpop.permute.xlu0 %3483
      %3485 = vrot.lane.b32.xlu0 %v2631, 3
      %v3486 = vpop.permute.xlu0 %3485
      %3487 = vrot.lane.b32.xlu0 %v2634, 3
      %v3488 = vpop.permute.xlu0 %3487
      %3489 = vrot.lane.b32.xlu0 %v2639, 3
      %v3490 = vpop.permute.xlu0 %3489
      %3491 = vrot.lane.b32.xlu0 %v2642, 3
      %v3492 = vpop.permute.xlu0 %3491
      %3493 = vrot.lane.b32.xlu0 %v2647, 3
      %v3494 = vpop.permute.xlu0 %3493
      %3495 = vrot.lane.b32.xlu0 %v2650, 3
      %v3496 = vpop.permute.xlu0 %3495
      %3497 = vrot.lane.b32.xlu0 %v2655, 3
      %v3498 = vpop.permute.xlu0 %3497
      %3499 = vrot.lane.b32.xlu0 %v2658, 3
      %v3500 = vpop.permute.xlu0 %3499
      %3501 = vrot.lane.b32.xlu0 %v2663, 3
      %v3502 = vpop.permute.xlu0 %3501
      %3503 = vrot.lane.b32.xlu0 %v2666, 3
      %v3504 = vpop.permute.xlu0 %3503
      %3537 = vrot.lane.b32.xlu0 %v2772, 4
      %v3538 = vpop.permute.xlu0 %3537
      %3539 = vrot.lane.b32.xlu0 %v2775, 4
      %v3540 = vpop.permute.xlu0 %3539
      %3541 = vrot.lane.b32.xlu0 %v2780, 4
      %v3542 = vpop.permute.xlu0 %3541
      %3543 = vrot.lane.b32.xlu0 %v2783, 4
      %v3544 = vpop.permute.xlu0 %3543
      %3545 = vrot.lane.b32.xlu0 %v2788, 4
      %v3546 = vpop.permute.xlu0 %3545
      %3547 = vrot.lane.b32.xlu0 %v2791, 4
      %v3548 = vpop.permute.xlu0 %3547
      %3549 = vrot.lane.b32.xlu0 %v2796, 4
      %v3550 = vpop.permute.xlu0 %3549
      %3551 = vrot.lane.b32.xlu0 %v2799, 4
      %v3552 = vpop.permute.xlu0 %3551
      %3553 = vrot.lane.b32.xlu0 %v2804, 4
      %v3554 = vpop.permute.xlu0 %3553
      %3555 = vrot.lane.b32.xlu0 %v2807, 4
      %v3556 = vpop.permute.xlu0 %3555
      %3557 = vrot.lane.b32.xlu0 %v2812, 4
      %v3558 = vpop.permute.xlu0 %3557
      %3559 = vrot.lane.b32.xlu0 %v2815, 4
      %v3560 = vpop.permute.xlu0 %3559
      %3561 = vrot.lane.b32.xlu0 %v2820, 4
      %v3562 = vpop.permute.xlu0 %3561
      %3563 = vrot.lane.b32.xlu0 %v2823, 4
      %v3564 = vpop.permute.xlu0 %3563
      %3565 = vrot.lane.b32.xlu0 %v2828, 4
      %v3566 = vpop.permute.xlu0 %3565
      %3567 = vrot.lane.b32.xlu0 %v2831, 4
      %v3568 = vpop.permute.xlu0 %3567
      %3601 = vrot.lane.b32.xlu0 %v2937, 5
      %v3602 = vpop.permute.xlu0 %3601
      %3603 = vrot.lane.b32.xlu0 %v2940, 5
      %v3604 = vpop.permute.xlu0 %3603
      %3605 = vrot.lane.b32.xlu0 %v2945, 5
      %v3606 = vpop.permute.xlu0 %3605
      %3607 = vrot.lane.b32.xlu0 %v2948, 5
      %v3608 = vpop.permute.xlu0 %3607
      %3609 = vrot.lane.b32.xlu0 %v2953, 5
      %v3610 = vpop.permute.xlu0 %3609
      %3611 = vrot.lane.b32.xlu0 %v2956, 5
      %v3612 = vpop.permute.xlu0 %3611
      %3613 = vrot.lane.b32.xlu0 %v2961, 5
      %v3614 = vpop.permute.xlu0 %3613
      %3615 = vrot.lane.b32.xlu0 %v2964, 5
      %v3616 = vpop.permute.xlu0 %3615
      %3617 = vrot.lane.b32.xlu0 %v2969, 5
      %v3618 = vpop.permute.xlu0 %3617
      %3619 = vrot.lane.b32.xlu0 %v2972, 5
      %v3620 = vpop.permute.xlu0 %3619
      %3621 = vrot.lane.b32.xlu0 %v2977, 5
      %v3622 = vpop.permute.xlu0 %3621
      %3623 = vrot.lane.b32.xlu0 %v2980, 5
      %v3624 = vpop.permute.xlu0 %3623
      %3625 = vrot.lane.b32.xlu0 %v2985, 5
      %v3626 = vpop.permute.xlu0 %3625
      %3627 = vrot.lane.b32.xlu0 %v2988, 5
      %v3628 = vpop.permute.xlu0 %3627
      %3629 = vrot.lane.b32.xlu0 %v2993, 5
      %v3630 = vpop.permute.xlu0 %3629
      %3631 = vrot.lane.b32.xlu0 %v2996, 5
      %v3632 = vpop.permute.xlu0 %3631
      %3665 = vrot.lane.b32.xlu0 %v3102, 6
      %v3666 = vpop.permute.xlu0 %3665
      %3667 = vrot.lane.b32.xlu0 %v3105, 6
      %v3668 = vpop.permute.xlu0 %3667
      %3669 = vrot.lane.b32.xlu0 %v3110, 6
      %v3670 = vpop.permute.xlu0 %3669
      %3671 = vrot.lane.b32.xlu0 %v3113, 6
      %v3672 = vpop.permute.xlu0 %3671
      %3673 = vrot.lane.b32.xlu0 %v3118, 6
      %v3674 = vpop.permute.xlu0 %3673
      %3675 = vrot.lane.b32.xlu0 %v3121, 6
      %v3676 = vpop.permute.xlu0 %3675
      %3677 = vrot.lane.b32.xlu0 %v3126, 6
      %v3678 = vpop.permute.xlu0 %3677
      %3679 = vrot.lane.b32.xlu0 %v3129, 6
      %v3680 = vpop.permute.xlu0 %3679
      %3681 = vrot.lane.b32.xlu0 %v3134, 6
      %v3682 = vpop.permute.xlu0 %3681
      %3683 = vrot.lane.b32.xlu0 %v3137, 6
      %v3684 = vpop.permute.xlu0 %3683
      %3685 = vrot.lane.b32.xlu0 %v3142, 6
      %v3686 = vpop.permute.xlu0 %3685
      %3687 = vrot.lane.b32.xlu0 %v3145, 6
      %v3688 = vpop.permute.xlu0 %3687
      %3689 = vrot.lane.b32.xlu0 %v3150, 6
      %v3690 = vpop.permute.xlu0 %3689
      %3691 = vrot.lane.b32.xlu0 %v3153, 6
      %v3692 = vpop.permute.xlu0 %3691
      %3693 = vrot.lane.b32.xlu0 %v3158, 6
      %v3694 = vpop.permute.xlu0 %3693
      %3695 = vrot.lane.b32.xlu0 %v3161, 6
      %v3696 = vpop.permute.xlu0 %3695
      %3729 = vrot.lane.b32.xlu0 %v3267, 7
      %v3730 = vpop.permute.xlu0 %3729
      %3731 = vrot.lane.b32.xlu0 %v3270, 7
      %v3732 = vpop.permute.xlu0 %3731
      %3733 = vrot.lane.b32.xlu0 %v3275, 7
      %v3734 = vpop.permute.xlu0 %3733
      %3735 = vrot.lane.b32.xlu0 %v3278, 7
      %v3736 = vpop.permute.xlu0 %3735
      %3737 = vrot.lane.b32.xlu0 %v3283, 7
      %v3738 = vpop.permute.xlu0 %3737
      %3739 = vrot.lane.b32.xlu0 %v3286, 7
      %v3740 = vpop.permute.xlu0 %3739
      %3741 = vrot.lane.b32.xlu0 %v3291, 7
      %v3742 = vpop.permute.xlu0 %3741
      %3743 = vrot.lane.b32.xlu0 %v3294, 7
      %v3744 = vpop.permute.xlu0 %3743
      %3745 = vrot.lane.b32.xlu0 %v3299, 7
      %v3746 = vpop.permute.xlu0 %3745
      %3747 = vrot.lane.b32.xlu0 %v3302, 7
      %v3748 = vpop.permute.xlu0 %3747
      %3749 = vrot.lane.b32.xlu0 %v3307, 7
      %v3750 = vpop.permute.xlu0 %3749
      %3751 = vrot.lane.b32.xlu0 %v3310, 7
      %v3752 = vpop.permute.xlu0 %3751
      %3753 = vrot.lane.b32.xlu0 %v3315, 7
      %v3754 = vpop.permute.xlu0 %3753
      %3755 = vrot.lane.b32.xlu0 %v3318, 7
      %v3756 = vpop.permute.xlu0 %3755
      %3757 = vrot.lane.b32.xlu0 %v3323, 7
      %v3758 = vpop.permute.xlu0 %3757
      %3759 = vrot.lane.b32.xlu0 %v3326, 7
      %v3760 = vpop.permute.xlu0 %3759
      %vm3777 = vcmask 7168
      %v3778 = vsel %vm3777, %v2112, %v3346
      %v3779 = vsel %vm3777, %v2115, %v3348
      %v3780 = vsel %vm3777, %v2120, %v3350
      %v3781 = vsel %vm3777, %v2123, %v3352
      %v3782 = vsel %vm3777, %v2128, %v3354
      %v3783 = vsel %vm3777, %v2131, %v3356
      %v3784 = vsel %vm3777, %v2136, %v3358
      %v3785 = vsel %vm3777, %v2139, %v3360
      %v3786 = vsel %vm3777, %v2144, %v3362
      %v3787 = vsel %vm3777, %v2147, %v3364
      %v3788 = vsel %vm3777, %v2152, %v3366
      %v3789 = vsel %vm3777, %v2155, %v3368
      %v3790 = vsel %vm3777, %v2160, %v3370
      %v3791 = vsel %vm3777, %v2163, %v3372
      %v3792 = vsel %vm3777, %v2168, %v3374
      %v3793 = vsel %vm3777, %v2171, %v3376
      %vm3794 = vcmask 15360
      %v3795 = vsel %vm3794, %v3778, %v3410
      %v3796 = vsel %vm3794, %v3779, %v3412
      %v3797 = vsel %vm3794, %v3780, %v3414
      %v3798 = vsel %vm3794, %v3781, %v3416
      %v3799 = vsel %vm3794, %v3782, %v3418
      %v3800 = vsel %vm3794, %v3783, %v3420
      %v3801 = vsel %vm3794, %v3784, %v3422
      %v3802 = vsel %vm3794, %v3785, %v3424
      %v3803 = vsel %vm3794, %v3786, %v3426
      %v3804 = vsel %vm3794, %v3787, %v3428
      %v3805 = vsel %vm3794, %v3788, %v3430
      %v3806 = vsel %vm3794, %v3789, %v3432
      %v3807 = vsel %vm3794, %v3790, %v3434
      %v3808 = vsel %vm3794, %v3791, %v3436
      %v3809 = vsel %vm3794, %v3792, %v3438
      %v3810 = vsel %vm3794, %v3793, %v3440
      %vm3811 = vcmask 23552
      %v3812 = vsel %vm3811, %v3795, %v3474
      %v3813 = vsel %vm3811, %v3796, %v3476
      %v3814 = vsel %vm3811, %v3797, %v3478
      %v3815 = vsel %vm3811, %v3798, %v3480
      %v3816 = vsel %vm3811, %v3799, %v3482
      %v3817 = vsel %vm3811, %v3800, %v3484
      %v3818 = vsel %vm3811, %v3801, %v3486
      %v3819 = vsel %vm3811, %v3802, %v3488
      %v3820 = vsel %vm3811, %v3803, %v3490
      %v3821 = vsel %vm3811, %v3804, %v3492
      %v3822 = vsel %vm3811, %v3805, %v3494
      %v3823 = vsel %vm3811, %v3806, %v3496
      %v3824 = vsel %vm3811, %v3807, %v3498
      %v3825 = vsel %vm3811, %v3808, %v3500
      %v3826 = vsel %vm3811, %v3809, %v3502
      %v3827 = vsel %vm3811, %v3810, %v3504
      %vm3828 = vcmask 31744
      %v3829 = vsel %vm3828, %v3812, %v3538
      %v3830 = vsel %vm3828, %v3813, %v3540
      %v3831 = vsel %vm3828, %v3814, %v3542
      %v3832 = vsel %vm3828, %v3815, %v3544
      %v3833 = vsel %vm3828, %v3816, %v3546
      %v3834 = vsel %vm3828, %v3817, %v3548
      %v3835 = vsel %vm3828, %v3818, %v3550
      %v3836 = vsel %vm3828, %v3819, %v3552
      %v3837 = vsel %vm3828, %v3820, %v3554
      %v3838 = vsel %vm3828, %v3821, %v3556
      %v3839 = vsel %vm3828, %v3822, %v3558
      %v3840 = vsel %vm3828, %v3823, %v3560
      %v3841 = vsel %vm3828, %v3824, %v3562
      %v3842 = vsel %vm3828, %v3825, %v3564
      %v3843 = vsel %vm3828, %v3826, %v3566
      %v3844 = vsel %vm3828, %v3827, %v3568
      %vm3845 = vcmask 39936
      %v3846 = vsel %vm3845, %v3829, %v3602
      %v3847 = vsel %vm3845, %v3830, %v3604
      %v3848 = vsel %vm3845, %v3831, %v3606
      %v3849 = vsel %vm3845, %v3832, %v3608
      %v3850 = vsel %vm3845, %v3833, %v3610
      %v3851 = vsel %vm3845, %v3834, %v3612
      %v3852 = vsel %vm3845, %v3835, %v3614
      %v3853 = vsel %vm3845, %v3836, %v3616
      %v3854 = vsel %vm3845, %v3837, %v3618
      %v3855 = vsel %vm3845, %v3838, %v3620
      %v3856 = vsel %vm3845, %v3839, %v3622
      %v3857 = vsel %vm3845, %v3840, %v3624
      %v3858 = vsel %vm3845, %v3841, %v3626
      %v3859 = vsel %vm3845, %v3842, %v3628
      %v3860 = vsel %vm3845, %v3843, %v3630
      %v3861 = vsel %vm3845, %v3844, %v3632
      %vm3862 = vcmask 48128
      %v3863 = vsel %vm3862, %v3846, %v3666
      %v3864 = vsel %vm3862, %v3847, %v3668
      %v3865 = vsel %vm3862, %v3848, %v3670
      %v3866 = vsel %vm3862, %v3849, %v3672
      %v3867 = vsel %vm3862, %v3850, %v3674
      %v3868 = vsel %vm3862, %v3851, %v3676
      %v3869 = vsel %vm3862, %v3852, %v3678
      %v3870 = vsel %vm3862, %v3853, %v3680
      %v3871 = vsel %vm3862, %v3854, %v3682
      %v3872 = vsel %vm3862, %v3855, %v3684
      %v3873 = vsel %vm3862, %v3856, %v3686
      %v3874 = vsel %vm3862, %v3857, %v3688
      %v3875 = vsel %vm3862, %v3858, %v3690
      %v3876 = vsel %vm3862, %v3859, %v3692
      %v3877 = vsel %vm3862, %v3860, %v3694
      %v3878 = vsel %vm3862, %v3861, %v3696
      %vm3879 = vcmask 56320
      %v3880 = vsel %vm3879, %v3863, %v3730
      %v3881 = vsel %vm3879, %v3864, %v3732
      %v3882 = vsel %vm3879, %v3865, %v3734
      %v3883 = vsel %vm3879, %v3866, %v3736
      %v3884 = vsel %vm3879, %v3867, %v3738
      %v3885 = vsel %vm3879, %v3868, %v3740
      %v3886 = vsel %vm3879, %v3869, %v3742
      %v3887 = vsel %vm3879, %v3870, %v3744
      %v3888 = vsel %vm3879, %v3871, %v3746
      %v3889 = vsel %vm3879, %v3872, %v3748
      %v3890 = vsel %vm3879, %v3873, %v3750
      %v3891 = vsel %vm3879, %v3874, %v3752
      %v3892 = vsel %vm3879, %v3875, %v3754
      %v3893 = vsel %vm3879, %v3876, %v3756
      %v3894 = vsel %vm3879, %v3877, %v3758
      %v3895 = vsel %vm3879, %v3878, %v3760
      %3896 = vxpose.xlu0.b32.start [1/16] %v3880, 128
      %3897 = vxpose.xlu0.b32.cont [2/16] %v3881, 128
      %3898 = vxpose.xlu0.b32.cont [3/16] %v3882, 128
      %3899 = vxpose.xlu0.b32.cont [4/16] %v3883, 128
      %3900 = vxpose.xlu0.b32.cont [5/16] %v3884, 128
      %3901 = vxpose.xlu0.b32.cont [6/16] %v3885, 128
      %3902 = vxpose.xlu0.b32.cont [7/16] %v3886, 128
      %3903 = vxpose.xlu0.b32.cont [8/16] %v3887, 128
      %3904 = vxpose.xlu0.b32.cont [9/16] %v3888, 128
      %3905 = vxpose.xlu0.b32.cont [10/16] %v3889, 128
      %3906 = vxpose.xlu0.b32.cont [11/16] %v3890, 128
      %3907 = vxpose.xlu0.b32.cont [12/16] %v3891, 128
      %3908 = vxpose.xlu0.b32.cont [13/16] %v3892, 128
      %3909 = vxpose.xlu0.b32.cont [14/16] %v3893, 128
      %3910 = vxpose.xlu0.b32.cont [15/16] %v3894, 128
      %3911 = vxpose.xlu0.b32.end [16/16] %v3895, 128
      %v3912 = vpop.trf.xlu0
      %v3913 = vpop.trf.xlu0
      %v3914 = vpop.trf.xlu0
      %v3915 = vpop.trf.xlu0
      %v3916 = vpop.trf.xlu0
      %v3917 = vpop.trf.xlu0
      %v3918 = vpop.trf.xlu0
      %v3919 = vpop.trf.xlu0
      %v3920 = vpop.trf.xlu0
      %v3921 = vpop.trf.xlu0
      %v3922 = vpop.trf.xlu0
      %v3923 = vpop.trf.xlu0
      %v3924 = vpop.trf.xlu0
      %v3925 = vpop.trf.xlu0
      %v3926 = vpop.trf.xlu0
      %v3927 = vpop.trf.xlu0
      %v3928 = vld [vmem:[#allocation5] sm:$0x1]
      %v3930 = vlaneseq
      %v3931 = vshrl.u32 %v3930, 7
      %v3932 = vsub.s32 0, %v3931
      %v3933 = vrot.slane %v3928, %v3932
      %3934 = vset.pattern.permute.xlu0 0
      %3935 = vperm.xlu0 %3934, %v3933
      %v3936 = vpop.permute.xlu0 %3935
      %v3938 = vadd.f32 %v3912, %v3936
      %v3939 = vlaneseq
      %v3940 = vand.u32 %v3939, 127
      %vm3941 = vcmp.lt.s32.totalorder %v3940, 0
      %v3942 = vsub.s32 0, %v3940
      %v3943 = vsel %vm3941, %v3942, %v3940
      %v3944 = vshrl.u32 %v3943, 4
      %v3945 = vand.u32 %v3943, 15
      %v3946 = vsub.s32 0, %v3945
      %v3947 = vsel %vm3941, %v3946, %v3945
      %vm3948 = vcmp.ne.s32.totalorder %v3947, 0
      %vm3949 = vcmp.lt.s32.totalorder %v3947, 0
      %vm3950 = vmand %vm3949, %vm3948
      %v3951 = vadd.s32 %v3947, 16
      %v3952 = vsel %vm3950, %v3951, %v3947
      %s3953 = sld [smem:[#allocation4 + %s33]]
      %v3954 = vstv %s3953
      %vm3955 = vcmp.lt.s32.totalorder %v3952, %v3954
      %v3956 = vsel %vm3955, %v3938, -inf
      %3957 = vmax.xlane.f32.xlu0 %v3956
      %v3958 = vpop.xlane.xlu0 %3957
      %v3959 = vsub.f32 %v3956, %v3958
      %v3960 = vmul.f32 %v3959, 1.442695
      %v3961 = vpow.pop %v3960
      %3962 = vadd.xlane.f32.xlu0 %v3961
      %v3963 = vpop.xlane.xlu0 %3962
      %v3964 = vrcp.pop %v3963
      %v3965 = vmul.f32 %v3961, %v3964
      %v3966 = vpack.c.bf16 %v3965, %v3965
      %3967 = vmatprep.subr.bf16.mxu0 0
      %3968 = vmatpush1.bf16.msra.mxu0 %v1098
      %3969 = vmatprep.subr.bf16.mxu0 0
      %3970 = vmatpush1.bf16.msra.mxu0 %v1099
      %3971 = vmatprep.subr.bf16.mxu0 0
      %3972 = vmatpush1.bf16.msra.mxu0 %v1100
      %3973 = vmatprep.subr.bf16.mxu0 0
      %3974 = vmatpush1.bf16.msra.mxu0 %v1101
      %3975 = vmatprep.subr.bf16.mxu0 0
      %3976 = vmatpush1.bf16.msra.mxu0 %v1102
      %3977 = vmatprep.subr.bf16.mxu0 0
      %3978 = vmatpush1.bf16.msra.mxu0 %v1103
      %3979 = vmatprep.subr.bf16.mxu0 0
      %3980 = vmatpush1.bf16.msra.mxu0 %v1104
      %3981 = vmatprep.subr.bf16.mxu0 0
      %3982 = vmatpush1.bf16.msra.mxu0 %v1259
      %3983 = vmatprep.subr.bf16.mxu0 0
      %3984 = vmatpush1.bf16.msra.mxu0 0
      %3985 = vmatprep.subr.bf16.mxu0 0
      %3986 = vmatpush1.bf16.msra.mxu0 0
      %3987 = vmatprep.subr.bf16.mxu0 0
      %3988 = vmatpush1.bf16.msra.mxu0 0
      %3989 = vmatprep.subr.bf16.mxu0 0
      %3990 = vmatpush1.bf16.msra.mxu0 0
      %3991 = vmatprep.subr.bf16.mxu0 0
      %3992 = vmatpush1.bf16.msra.mxu0 0
      %3993 = vmatprep.subr.bf16.mxu0 0
      %3994 = vmatpush1.bf16.msra.mxu0 0
      %3995 = vmatprep.subr.bf16.mxu0 0
      %3996 = vmatpush1.bf16.msra.mxu0 0
      %3997 = vmatprep.subr.bf16.mxu0 0
      %3998 = vmatpush1.bf16.msra.mxu0 0
      %3999 = vmatprep.mubr.bf16.mxu0 0
      %4000 = vmatmul.mubr.bf16.gmra.mrb[0].mxu0 %v3966
      %v4001 = vpop.f32.mrb[0].mxu0
      %v4002 = vadd.f32 0.0, %v4001
      %v4003 = vpop.f32.mrb[0].mxu0
      %v4004 = vpop.f32.mrb[0].mxu0
      %v4005 = vpop.f32.mrb[0].mxu0
      %4006 = vdwg.mxu0
      %v4007 = vld [vmem:[%s10] sm:$0xf]
      %v4008 = vld [vmem:[%s10 + $0x4] sm:$0xf]
      %v4009 = vld [vmem:[%s10 + $0x8] sm:$0xf]
      %v4010 = vld [vmem:[%s10 + $0xc] sm:$0xf]
      %v4011 = vld [vmem:[%s10 + $0x10] sm:$0xf]
      %v4012 = vld [vmem:[%s10 + $0x14] sm:$0xf]
      %v4013 = vld [vmem:[%s10 + $0x18] sm:$0xf]
      %v4014 = vld [vmem:[%s10 + $0x1c] sm:$0xf]
      %v4015 = vld [vmem:[%s10 + $0x20] sm:$0xf]
      %v4016 = vld [vmem:[%s10 + $0x24] sm:$0xf]
      %v4017 = vld [vmem:[%s10 + $0x28] sm:$0xf]
      %v4018 = vld [vmem:[%s10 + $0x2c] sm:$0xf]
      %v4019 = vld [vmem:[%s10 + $0x30] sm:$0xf]
      %v4020 = vld [vmem:[%s10 + $0x34] sm:$0xf]
      %v4021 = vld [vmem:[%s10 + $0x38] sm:$0xf]
      %v4022 = vld [vmem:[%s10 + $0x3c] sm:$0xf]
      %v4023 = vpack.c.bf16 %v4002, %v4002
      %v4024 = vld [vmem:[%s11] sm:$0xf]
      %v4025 = vld [vmem:[%s11 + $0x4] sm:$0xf]
      %v4026 = vld [vmem:[%s11 + $0x8] sm:$0xf]
      %v4027 = vld [vmem:[%s11 + $0xc] sm:$0xf]
      %v4032 = vunpack.c.l.b16 %v4024
      %v4033 = vunpack.c.l.b16 %v4025
      %v4034 = vunpack.c.l.b16 %v4026
      %v4035 = vunpack.c.l.b16 %v4027
      %v4036 = vpack.c.b16 %v4033, %v4032
      %v4037 = vpack.c.b16 %v4035, %v4034
      %v4041 = vsel %vm480, %v4023, 0
      %4043 = vmatprep.subr.bf16.mxu0 0
      %4044 = vmatpush1.bf16.msra.mxu0 %v4036
      %4045 = vmatprep.subr.bf16.mxu0 0
      %4046 = vmatpush1.bf16.msra.mxu0 %v4037
      %4047 = vmatprep.subr.bf16.mxu0 0
      %4048 = vmatpush1.bf16.msra.mxu0 0
      %4049 = vmatprep.subr.bf16.mxu0 0
      %4050 = vmatpush1.bf16.msra.mxu0 0
      %4051 = vmatprep.subr.bf16.mxu0 0
      %4052 = vmatpush1.bf16.msra.mxu0 0
      %4053 = vmatprep.subr.bf16.mxu0 0
      %4054 = vmatpush1.bf16.msra.mxu0 0
      %4055 = vmatprep.subr.bf16.mxu0 0
      %4056 = vmatpush1.bf16.msra.mxu0 0
      %4057 = vmatprep.subr.bf16.mxu0 0
      %4058 = vmatpush1.bf16.msra.mxu0 0
      %4059 = vmatprep.subr.bf16.mxu0 0
      %4060 = vmatpush1.bf16.msra.mxu0 0
      %4061 = vmatprep.subr.bf16.mxu0 0
      %4062 = vmatpush1.bf16.msra.mxu0 0
      %4063 = vmatprep.subr.bf16.mxu0 0
      %4064 = vmatpush1.bf16.msra.mxu0 0
      %4065 = vmatprep.subr.bf16.mxu0 0
      %4066 = vmatpush1.bf16.msra.mxu0 0
      %4067 = vmatprep.subr.bf16.mxu0 0
      %4068 = vmatpush1.bf16.msra.mxu0 0
      %4069 = vmatprep.subr.bf16.mxu0 0
      %4070 = vmatpush1.bf16.msra.mxu0 0
      %4071 = vmatprep.subr.bf16.mxu0 0
      %4072 = vmatpush1.bf16.msra.mxu0 0
      %4073 = vmatprep.subr.bf16.mxu0 0
      %4074 = vmatpush1.bf16.msra.mxu0 0
      %4075 = vmatprep.mubr.bf16.mxu0 0
      %4076 = vmatmul.mubr.bf16.gmra.mrb[0].mxu0 %v4041
      %v4077 = vpop.f32.mrb[0].mxu0
      %v4078 = vadd.f32 0.0, %v4077
      %v4079 = vpop.f32.mrb[0].mxu0
      %v4080 = vpop.f32.mrb[0].mxu0
      %v4081 = vpop.f32.mrb[0].mxu0
      %4082 = vdwg.mxu0
      %v4099 = vunpack.c.l.b16 %v4007
      %v4100 = vunpack.c.l.b16 %v4008
      %v4101 = vunpack.c.l.b16 %v4009
      %v4102 = vunpack.c.l.b16 %v4010
      %v4103 = vunpack.c.l.b16 %v4011
      %v4104 = vunpack.c.l.b16 %v4012
      %v4105 = vunpack.c.l.b16 %v4013
      %v4106 = vunpack.c.l.b16 %v4014
      %v4107 = vunpack.c.l.b16 %v4015
      %v4108 = vunpack.c.l.b16 %v4016
      %v4109 = vunpack.c.l.b16 %v4017
      %v4110 = vunpack.c.l.b16 %v4018
      %v4111 = vunpack.c.l.b16 %v4019
      %v4112 = vunpack.c.l.b16 %v4020
      %v4113 = vunpack.c.l.b16 %v4021
      %v4114 = vunpack.c.l.b16 %v4022
      %v4115 = vpack.c.b16 %v4100, %v4099
      %v4116 = vpack.c.b16 %v4102, %v4101
      %v4117 = vpack.c.b16 %v4104, %v4103
      %v4118 = vpack.c.b16 %v4106, %v4105
      %v4119 = vpack.c.b16 %v4108, %v4107
      %v4120 = vpack.c.b16 %v4110, %v4109
      %v4121 = vpack.c.b16 %v4112, %v4111
      %v4122 = vpack.c.b16 %v4114, %v4113
      %4131 = vmatprep.subr.bf16.mxu0 0
      %4132 = vmatpush1.bf16.msra.mxu0 %v4115
      %4133 = vmatprep.subr.bf16.mxu0 0
      %4134 = vmatpush1.bf16.msra.mxu0 %v4116
      %4135 = vmatprep.subr.bf16.mxu0 0
      %4136 = vmatpush1.bf16.msra.mxu0 %v4117
      %4137 = vmatprep.subr.bf16.mxu0 0
      %4138 = vmatpush1.bf16.msra.mxu0 %v4118
      %4139 = vmatprep.subr.bf16.mxu0 0
      %4140 = vmatpush1.bf16.msra.mxu0 %v4119
      %4141 = vmatprep.subr.bf16.mxu0 0
      %4142 = vmatpush1.bf16.msra.mxu0 %v4120
      %4143 = vmatprep.subr.bf16.mxu0 0
      %4144 = vmatpush1.bf16.msra.mxu0 %v4121
      %4145 = vmatprep.subr.bf16.mxu0 0
      %4146 = vmatpush1.bf16.msra.mxu0 %v4122
      %4147 = vmatprep.subr.bf16.mxu0 0
      %4148 = vmatpush1.bf16.msra.mxu0 0
      %4149 = vmatprep.subr.bf16.mxu0 0
      %4150 = vmatpush1.bf16.msra.mxu0 0
      %4151 = vmatprep.subr.bf16.mxu0 0
      %4152 = vmatpush1.bf16.msra.mxu0 0
      %4153 = vmatprep.subr.bf16.mxu0 0
      %4154 = vmatpush1.bf16.msra.mxu0 0
      %4155 = vmatprep.subr.bf16.mxu0 0
      %4156 = vmatpush1.bf16.msra.mxu0 0
      %4157 = vmatprep.subr.bf16.mxu0 0
      %4158 = vmatpush1.bf16.msra.mxu0 0
      %4159 = vmatprep.subr.bf16.mxu0 0
      %4160 = vmatpush1.bf16.msra.mxu0 0
      %4161 = vmatprep.subr.bf16.mxu0 0
      %4162 = vmatpush1.bf16.msra.mxu0 0
      %4163 = vmatprep.mubr.bf16.mxu0 0
      %4164 = vmatmul.mubr.bf16.gmra.mrb[0].mxu0 %v546
      %v4165 = vpop.f32.mrb[0].mxu0
      %v4166 = vadd.f32 %v4078, %v4165
      %v4167 = vpop.f32.mrb[0].mxu0
      %v4168 = vpop.f32.mrb[0].mxu0
      %v4169 = vpop.f32.mrb[0].mxu0
      %4170 = vdwg.mxu0
      %v4171 = vld [vmem:[%s12] sm:$0xf]
      %v4172 = vld [vmem:[%s12 + $0x4] sm:$0xf]
      %v4173 = vld [vmem:[%s12 + $0x8] sm:$0xf]
      %v4174 = vld [vmem:[%s12 + $0xc] sm:$0xf]
      %v4179 = vunpack.c.l.b16 %v4171
      %v4180 = vunpack.c.l.b16 %v4172
      %v4181 = vunpack.c.l.b16 %v4173
      %v4182 = vunpack.c.l.b16 %v4174
      %v4183 = vpack.c.b16 %v4180, %v4179
      %v4184 = vpack.c.b16 %v4182, %v4181
      %v4188 = vsel %vm480, %v548, 0
      %4190 = vmatprep.subr.bf16.mxu0 0
      %4191 = vmatpush1.bf16.msra.mxu0 %v4183
      %4192 = vmatprep.subr.bf16.mxu0 0
      %4193 = vmatpush1.bf16.msra.mxu0 %v4184
      %4194 = vmatprep.subr.bf16.mxu0 0
      %4195 = vmatpush1.bf16.msra.mxu0 0
      %4196 = vmatprep.subr.bf16.mxu0 0
      %4197 = vmatpush1.bf16.msra.mxu0 0
      %4198 = vmatprep.subr.bf16.mxu0 0
      %4199 = vmatpush1.bf16.msra.mxu0 0
      %4200 = vmatprep.subr.bf16.mxu0 0
      %4201 = vmatpush1.bf16.msra.mxu0 0
      %4202 = vmatprep.subr.bf16.mxu0 0
      %4203 = vmatpush1.bf16.msra.mxu0 0
      %4204 = vmatprep.subr.bf16.mxu0 0
      %4205 = vmatpush1.bf16.msra.mxu0 0
      %4206 = vmatprep.subr.bf16.mxu0 0
      %4207 = vmatpush1.bf16.msra.mxu0 0
      %4208 = vmatprep.subr.bf16.mxu0 0
      %4209 = vmatpush1.bf16.msra.mxu0 0
      %4210 = vmatprep.subr.bf16.mxu0 0
      %4211 = vmatpush1.bf16.msra.mxu0 0
      %4212 = vmatprep.subr.bf16.mxu0 0
      %4213 = vmatpush1.bf16.msra.mxu0 0
      %4214 = vmatprep.subr.bf16.mxu0 0
      %4215 = vmatpush1.bf16.msra.mxu0 0
      %4216 = vmatprep.subr.bf16.mxu0 0
      %4217 = vmatpush1.bf16.msra.mxu0 0
      %4218 = vmatprep.subr.bf16.mxu0 0
      %4219 = vmatpush1.bf16.msra.mxu0 0
      %4220 = vmatprep.subr.bf16.mxu0 0
      %4221 = vmatpush1.bf16.msra.mxu0 0
      %4222 = vmatprep.mubr.bf16.mxu0 0
      %4223 = vmatmul.mubr.bf16.gmra.mrb[0].mxu0 %v4188
      %v4224 = vpop.f32.mrb[0].mxu0
      %v4225 = vadd.f32 0.0, %v4224
      %v4226 = vpop.f32.mrb[0].mxu0
      %v4227 = vpop.f32.mrb[0].mxu0
      %v4228 = vpop.f32.mrb[0].mxu0
      %4229 = vdwg.mxu0
      %v4230 = vlaneseq
      %v4231 = vshrl.u32 %v4230, 7
      %v4232 = vsub.s32 0, %v4231
      %v4233 = vrot.slane %v4225, %v4232
      %v4234 = vadd.f32 %v4166, %v4233
      %v4235 = vld [vmem:[%s13] sm:$0x1]
      %v4237 = vlaneseq
      %v4238 = vshrl.u32 %v4237, 7
      %v4239 = vsub.s32 0, %v4238
      %v4240 = vrot.slane %v4235, %v4239
      %v4242 = vadd.f32 %v4234, %v4240
      %4243 = vst [vmem:[%s478] sm:$0xff] %v4242
      %p4244 = scmp.lt.s32.totalorder %s33, 1
      %s4245 = scalar_select %p4244, %s33, 1
      %s4246 = smul.addr %s4245, 8
      %s4247 = scalar_lea.vmem %s14, %s4246
      // Predicated region
      $region73: #{sar_head_forward.5} parent=71 // pred_check
        %p4248 = pneg %p339
      $region74: #{sar_head_forward.5} parent=71 // pred_check_branch
        %4250 = sbr.rel (%p4248) target = $region76
      $region75: #{sar_head_forward.5} parent=71 // pred_region
        _
      $region76: #{sar_head_forward.5} parent=71 // pred_fallthru
        _
    $region72: #{sar_head_forward.5} parent=5 // pred_fallthru
      _
    %p4251 = scmp.le.s32.totalorder 2, %s28
    // Predicated region
    $region77: #{sar_head_forward.5} parent=5 // pred_check
      %p4252 = pneg %p4251
    $region78: #{sar_head_forward.5} parent=5 // pred_check_branch
      %4254 = sbr.rel (%p4252) target = $region80
    $region79: #{sar_head_forward.5} parent=5 // pred_region
      %s4255 = ssub.s32 %s28, 2
      // Predicated region
      $region81: #{sar_head_forward.5} parent=79 // pred_check
        %p4256 = pneg %p345
      $region82: #{sar_head_forward.5} parent=79 // pred_check_branch
        %4258 = sbr.rel (%p4256) target = $region84
      $region83: #{sar_head_forward.5} parent=79 // pred_region
        %p4259 = scmp.lt.s32.totalorder %s34, 1
        %s4260 = scalar_select %p4259, %s34, 1
        %s4261 = smul.addr %s4260, 8
        %s4262 = scalar_lea.vmem %s14, %s4261
      $region84: #{sar_head_forward.5} parent=79 // pred_fallthru
        _
    $region80: #{sar_head_forward.5} parent=5 // pred_fallthru
      _
  $region6: #{sar_head_forward.5} parent=0 // loop_footer
    %s32 = sadd.s32 1, %s28
  $region7: #{sar_head_forward.5} parent=0 // loop_footer_branch
    %27 = sbr.rel target = $region3
  $region8: #{sar_head_forward.5} parent=0 // loop_exit
    _

</llo_original>
